<compile_context>
chip_gen: v7x
topology: tpu7x:2x2x1
jax: 0.10.0
libtpu: 0.0.40
codegen_flags: <defaults>
</compile_context>

<pallas_src>
import math

import jax
import jax.numpy as jnp
from jax.experimental import pallas as pl
from jax.experimental.pallas import tpu as pltpu

_NEG_INF = -1e30  # large negative used for the additive causal mask
VMEM_SPEC = pl.BlockSpec(memory_space=pltpu.MemorySpace.VMEM)

ENC_KEYS = ('wqkv', 'bqkv', 'wo', 'bo', 'n1g', 'n1b',
            'w1', 'b1', 'w2', 'b2', 'n2g', 'n2b')
DEC_KEYS = ('sa_wqkv', 'sa_bqkv', 'sa_wo', 'sa_bo', 'n1g', 'n1b',
            'ca_wq', 'ca_bq', 'ca_wkv', 'ca_bkv', 'ca_wo', 'ca_bo',
            'n2g', 'n2b', 'w1', 'b1', 'w2', 'b2', 'n3g', 'n3b')


# --------------------------- in-kernel helpers -------------------------------

def _layer_norm(h, g, b):
    # LayerNorm over last dim, eps = 1e-5 (PyTorch default), biased variance.
    mu = jnp.mean(h, axis=-1, keepdims=True)
    var = jnp.mean((h - mu) ** 2, axis=-1, keepdims=True)
    return (h - mu) * jax.lax.rsqrt(var + 1e-5) * g + b


def _attn(q, k, v, mask):
    # Single-head scaled dot-product attention on 2-D tiles.
    d = q.shape[-1]
    s = jax.lax.dot_general(q, k, (((1,), (1,)), ((), ())),
                            preferred_element_type=jnp.float32)
    s = s * (1.0 / math.sqrt(d))
    if mask is not None:               # static specialization (no zero masks)
        s = s + mask
    m = jnp.max(s, axis=-1, keepdims=True)
    p = jnp.exp(s - m)
    p = p * pl.reciprocal(jnp.sum(p, axis=-1, keepdims=True), approx=True)
    return jnp.dot(p, v, preferred_element_type=jnp.float32)


# --------------------------- Pallas kernels ----------------------------------

def _embed_proj_kernel(adj_ref, we_ref, be_ref, wp_ref, bp_ref, o_ref):
    # row_input_embed -> enc_input_proj, fused; grid over batch.
    e = jnp.dot(adj_ref[0], we_ref[...],
                preferred_element_type=jnp.float32) + be_ref[...]
    o_ref[0] = jnp.dot(e, wp_ref[...],
                       preferred_element_type=jnp.float32) + bp_ref[...]


def _embed_kernel(adj_ref, we_ref, be_ref, o_ref):
    o_ref[0] = jnp.dot(adj_ref[0], we_ref[...],
                       preferred_element_type=jnp.float32) + be_ref[...]


def _encoder_stack_kernel(x_ref, wqkv_ref, bqkv_ref, wo_ref, bo_ref,
                          n1g_ref, n1b_ref, w1_ref, b1_ref, w2_ref, b2_ref,
                          n2g_ref, n2b_ref, o_ref, h_scr):
    # grid = (batch, num_layers); activation carried in VMEM scratch.
    layer = pl.program_id(1)

    @pl.when(layer == 0)
    def _():
        h_scr[...] = x_ref[0]

    x = h_scr[...]                                        # (N, D)
    D = x.shape[-1]

    # fused single-head self-attention (unmasked)
    qkv = jnp.dot(x, wqkv_ref[0],
                  preferred_element_type=jnp.float32) + bqkv_ref[0]
    q, k, v = qkv[:, :D], qkv[:, D:2 * D], qkv[:, 2 * D:]
    a = _attn(q, k, v, None)
    a = jnp.dot(a, wo_ref[0], preferred_element_type=jnp.float32) + bo_ref[0]
    h = _layer_norm(x + a, n1g_ref[0], n1b_ref[0])

    # feed-forward (linear -> relu -> linear), dropout == identity
    f = jnp.dot(h, w1_ref[0], preferred_element_type=jnp.float32) + b1_ref[0]
    f = jnp.maximum(f, 0.0)
    f = jnp.dot(f, w2_ref[0], preferred_element_type=jnp.float32) + b2_ref[0]
    out = _layer_norm(h + f, n2g_ref[0], n2b_ref[0])

    h_scr[...] = out

    @pl.when(layer == pl.num_programs(1) - 1)
    def _():
        o_ref[0] = out


def _decoder_stack_kernel(x_ref, mem_ref, mask_ref,
                          sa_wqkv_ref, sa_bqkv_ref, sa_wo_ref, sa_bo_ref,
                          n1g_ref, n1b_ref,
                          ca_wq_ref, ca_bq_ref, ca_wkv_ref, ca_bkv_ref,
                          ca_wo_ref, ca_bo_ref, n2g_ref, n2b_ref,
                          w1_ref, b1_ref, w2_ref, b2_ref, n3g_ref, n3b_ref,
                          o_ref, h_scr):
    layer = pl.program_id(1)

    @pl.when(layer == 0)
    def _():
        h_scr[...] = x_ref[0]

    x = h_scr[...]                                        # (L, D)
    D = x.shape[-1]
    mem = mem_ref[0]                                      # (N+1, D)

    # masked self-attention (fused QKV)
    qkv = jnp.dot(x, sa_wqkv_ref[0],
                  preferred_element_type=jnp.float32) + sa_bqkv_ref[0]
    q, k, v = qkv[:, :D], qkv[:, D:2 * D], qkv[:, 2 * D:]
    a = _attn(q, k, v, mask_ref[...])
    a = jnp.dot(a, sa_wo_ref[0],
                preferred_element_type=jnp.float32) + sa_bo_ref[0]
    h = _layer_norm(x + a, n1g_ref[0], n1b_ref[0])

    # cross-attention on encoder memory (unmasked, fused KV)
    q = jnp.dot(h, ca_wq_ref[0],
                preferred_element_type=jnp.float32) + ca_bq_ref[0]
    kv = jnp.dot(mem, ca_wkv_ref[0],
                 preferred_element_type=jnp.float32) + ca_bkv_ref[0]
    k, v = kv[:, :D], kv[:, D:]
    a = _attn(q, k, v, None)
    a = jnp.dot(a, ca_wo_ref[0],
                preferred_element_type=jnp.float32) + ca_bo_ref[0]
    h = _layer_norm(h + a, n2g_ref[0], n2b_ref[0])

    # feed-forward
    f = jnp.dot(h, w1_ref[0], preferred_element_type=jnp.float32) + b1_ref[0]
    f = jnp.maximum(f, 0.0)
    f = jnp.dot(f, w2_ref[0], preferred_element_type=jnp.float32) + b2_ref[0]
    out = _layer_norm(h + f, n3g_ref[0], n3b_ref[0])

    h_scr[...] = out

    @pl.when(layer == pl.num_programs(1) - 1)
    def _():
        o_ref[0] = out


def _pointer_ce_kernel(dec_ref, enc_ref, tgt_ref, loss_ref):
    # pointer logits = dec @ enc^T, mean cross-entropy (ignore_index=-100).
    logits = jnp.einsum('bld,bnd->bln', dec_ref[...], enc_ref[...],
                        preferred_element_type=jnp.float32)   # (B, L, N+1)
    tgt = tgt_ref[...]                                          # (B, L) int32
    valid = tgt != -100
    safe_tgt = jnp.where(valid, tgt, 0)
    m = jnp.max(logits, axis=-1, keepdims=True)
    lse = jnp.log(jnp.sum(jnp.exp(logits - m), axis=-1)) + m[..., 0]
    col = jax.lax.broadcasted_iota(jnp.int32, logits.shape, 2)
    picked = jnp.sum(jnp.where(col == safe_tgt[:, :, None], logits, 0.0),
                     axis=-1)
    per_tok = jnp.where(valid, lse - picked, 0.0)
    loss_sum = jnp.sum(per_tok, keepdims=True)                  # (1, 1)
    cnt = jnp.maximum(jnp.sum(valid.astype(jnp.float32), keepdims=True), 1.0)
    loss_ref[...] = loss_sum / cnt


# --------------------------- pallas_call wrappers -----------------------------

def _stacked_weight_spec(arr):
    # weights stacked as (num_layers, ...): stream layer `l`'s block each step.
    return pl.BlockSpec((1,) + arr.shape[1:], lambda b, l: (l, 0, 0))


def embed(adj, we, be, wp=None, bp=None):
    B, n, _ = adj.shape
    if wp is None:
        D = we.shape[1]
        kernel = _embed_kernel
        args = (adj, we, be)
        wspecs = [pl.BlockSpec(we.shape, lambda b: (0, 0)),
                  pl.BlockSpec(be.shape, lambda b: (0, 0))]
    else:
        D = wp.shape[1]
        kernel = _embed_proj_kernel
        args = (adj, we, be, wp, bp)
        wspecs = [pl.BlockSpec(we.shape, lambda b: (0, 0)),
                  pl.BlockSpec(be.shape, lambda b: (0, 0)),
                  pl.BlockSpec(wp.shape, lambda b: (0, 0)),
                  pl.BlockSpec(bp.shape, lambda b: (0, 0))]
    return pl.pallas_call(
        kernel,
        out_shape=jax.ShapeDtypeStruct((B, n, D), jnp.float32),
        grid=(B,),
        in_specs=[pl.BlockSpec((1, n, n), lambda b: (b, 0, 0))] + wspecs,
        out_specs=pl.BlockSpec((1, n, D), lambda b: (b, 0, 0)),
        compiler_params=pltpu.CompilerParams(
            dimension_semantics=("parallel",)),
    )(*args)


def encoder_stack(x, w):
    B, N, D = x.shape
    NL = w['wqkv'].shape[0]
    weights = [w[k] for k in ENC_KEYS]
    return pl.pallas_call(
        _encoder_stack_kernel,
        out_shape=jax.ShapeDtypeStruct((B, N, D), jnp.float32),
        grid=(B, NL),
        in_specs=[pl.BlockSpec((1, N, D), lambda b, l: (b, 0, 0))]
                 + [_stacked_weight_spec(a) for a in weights],
        out_specs=pl.BlockSpec((1, N, D), lambda b, l: (b, 0, 0)),
        scratch_shapes=[pltpu.VMEM((N, D), jnp.float32)],
        compiler_params=pltpu.CompilerParams(
            dimension_semantics=("parallel", "arbitrary")),
    )(x, *weights)


def decoder_stack(x, mem, mask, w):
    B, L, D = x.shape
    N1 = mem.shape[1]
    NL = w['sa_wqkv'].shape[0]
    weights = [w[k] for k in DEC_KEYS]
    return pl.pallas_call(
        _decoder_stack_kernel,
        out_shape=jax.ShapeDtypeStruct((B, L, D), jnp.float32),
        grid=(B, NL),
        in_specs=[pl.BlockSpec((1, L, D), lambda b, l: (b, 0, 0)),
                  pl.BlockSpec((1, N1, D), lambda b, l: (b, 0, 0)),
                  pl.BlockSpec((L, L), lambda b, l: (0, 0))]
                 + [_stacked_weight_spec(a) for a in weights],
        out_specs=pl.BlockSpec((1, L, D), lambda b, l: (b, 0, 0)),
        scratch_shapes=[pltpu.VMEM((L, D), jnp.float32)],
        compiler_params=pltpu.CompilerParams(
            dimension_semantics=("parallel", "arbitrary")),
    )(x, mem, mask, *weights)


def pointer_ce(dec, enc, tgt):
    loss = pl.pallas_call(
        _pointer_ce_kernel,
        out_shape=jax.ShapeDtypeStruct((1, 1), jnp.float32),
        in_specs=[VMEM_SPEC, VMEM_SPEC, VMEM_SPEC],
        out_specs=VMEM_SPEC,
    )(dec, enc, tgt)
    return loss[0, 0]


# --------------------------- parameters --------------------------------------

def init_params(key, input_dim, embedding_dim, hidden_dim,
                num_encoder_layers=4, num_decoder_layers=2):
    """Parameters in PyTorch layout (out_features, in_features)."""
    ff_dim = hidden_dim * 4
    keys = iter(jax.random.split(key, 512))

    def u(shape):
        return jax.random.uniform(next(keys), shape, jnp.float32, -0.1, 0.1)

    def mha_p():
        return {'in_w': u((3 * hidden_dim, hidden_dim)),
                'in_b': u((3 * hidden_dim,)),
                'out_w': u((hidden_dim, hidden_dim)),
                'out_b': u((hidden_dim,))}

    def enc_layer_p():
        return {'self_attn': mha_p(),
                'lin1_w': u((ff_dim, hidden_dim)), 'lin1_b': u((ff_dim,)),
                'lin2_w': u((hidden_dim, ff_dim)), 'lin2_b': u((hidden_dim,)),
                'norm1_g': jnp.ones((hidden_dim,), jnp.float32),
                'norm1_b': jnp.zeros((hidden_dim,), jnp.float32),
                'norm2_g': jnp.ones((hidden_dim,), jnp.float32),
                'norm2_b': jnp.zeros((hidden_dim,), jnp.float32)}

    def dec_layer_p():
        d = enc_layer_p()
        d['cross_attn'] = mha_p()
        d['norm3_g'] = jnp.ones((hidden_dim,), jnp.float32)
        d['norm3_b'] = jnp.zeros((hidden_dim,), jnp.float32)
        return d

    p = {
        'emb_w': u((embedding_dim, input_dim)),
        'emb_b': u((embedding_dim,)),
        'decoder_start': u((hidden_dim,)),
        'enc_eos': u((hidden_dim,)),
        'encoder': [enc_layer_p() for _ in range(num_encoder_layers)],
        'decoder': [dec_layer_p() for _ in range(num_decoder_layers)],
    }
    if embedding_dim != hidden_dim:
        p['proj_w'] = u((hidden_dim, embedding_dim))
        p['proj_b'] = u((hidden_dim,))
    return p


def pack_params(p):
    """One-time pre-transpose / pre-stack into Pallas-friendly layout."""
    D = p['decoder_start'].shape[0]

    def ln2d(x):
        return x.reshape(1, -1)

    out = {
        'emb_w': p['emb_w'].T, 'emb_b': ln2d(p['emb_b']),
        'decoder_start': p['decoder_start'], 'enc_eos': p['enc_eos'],
    }
    if 'proj_w' in p:
        out['proj_w'] = p['proj_w'].T
        out['proj_b'] = ln2d(p['proj_b'])

    enc = p['encoder']
    out['enc'] = {
        'wqkv': jnp.stack([l['self_attn']['in_w'].T for l in enc]),
        'bqkv': jnp.stack([ln2d(l['self_attn']['in_b']) for l in enc]),
        'wo':   jnp.stack([l['self_attn']['out_w'].T for l in enc]),
        'bo':   jnp.stack([ln2d(l['self_attn']['out_b']) for l in enc]),
        'n1g':  jnp.stack([ln2d(l['norm1_g']) for l in enc]),
        'n1b':  jnp.stack([ln2d(l['norm1_b']) for l in enc]),
        'w1':   jnp.stack([l['lin1_w'].T for l in enc]),
        'b1':   jnp.stack([ln2d(l['lin1_b']) for l in enc]),
        'w2':   jnp.stack([l['lin2_w'].T for l in enc]),
        'b2':   jnp.stack([ln2d(l['lin2_b']) for l in enc]),
        'n2g':  jnp.stack([ln2d(l['norm2_g']) for l in enc]),
        'n2b':  jnp.stack([ln2d(l['norm2_b']) for l in enc]),
    }
    dec = p['decoder']
    out['dec'] = {
        'sa_wqkv': jnp.stack([l['self_attn']['in_w'].T for l in dec]),
        'sa_bqkv': jnp.stack([ln2d(l['self_attn']['in_b']) for l in dec]),
        'sa_wo':   jnp.stack([l['self_attn']['out_w'].T for l in dec]),
        'sa_bo':   jnp.stack([ln2d(l['self_attn']['out_b']) for l in dec]),
        'n1g':     jnp.stack([ln2d(l['norm1_g']) for l in dec]),
        'n1b':     jnp.stack([ln2d(l['norm1_b']) for l in dec]),
        'ca_wq':   jnp.stack([l['cross_attn']['in_w'][:D].T for l in dec]),
        'ca_bq':   jnp.stack([ln2d(l['cross_attn']['in_b'][:D]) for l in dec]),
        'ca_wkv':  jnp.stack([l['cross_attn']['in_w'][D:].T for l in dec]),
        'ca_bkv':  jnp.stack([ln2d(l['cross_attn']['in_b'][D:]) for l in dec]),
        'ca_wo':   jnp.stack([l['cross_attn']['out_w'].T for l in dec]),
        'ca_bo':   jnp.stack([ln2d(l['cross_attn']['out_b']) for l in dec]),
        'n2g':     jnp.stack([ln2d(l['norm2_g']) for l in dec]),
        'n2b':     jnp.stack([ln2d(l['norm2_b']) for l in dec]),
        'w1':      jnp.stack([l['lin1_w'].T for l in dec]),
        'b1':      jnp.stack([ln2d(l['lin1_b']) for l in dec]),
        'w2':      jnp.stack([l['lin2_w'].T for l in dec]),
        'b2':      jnp.stack([ln2d(l['lin2_b']) for l in dec]),
        'n3g':     jnp.stack([ln2d(l['norm3_g']) for l in dec]),
        'n3b':     jnp.stack([ln2d(l['norm3_b']) for l in dec]),
    }
    return out


# --------------------------- forward (loss path) ------------------------------

def transformer_pointer_loss(params, adj_matrix, target_seq):
    B, n, _ = adj_matrix.shape
    D = params['decoder_start'].shape[0]

    # row_input_embed (+ enc_input_proj), fused in one kernel
    if 'proj_w' in params:
        enc_input = embed(adj_matrix, params['emb_w'], params['emb_b'],
                          params['proj_w'], params['proj_b'])
    else:
        enc_input = embed(adj_matrix, params['emb_w'], params['emb_b'])

    # encoder stack: one pallas_call over (batch, num_layers)
    enc = encoder_stack(enc_input, params['enc'])

    eos_enc = jnp.broadcast_to(params['enc_eos'][None, None, :], (B, 1, D))
    extended_enc = jnp.concatenate([enc, eos_enc], axis=1)          # (B, n+1, D)

    # decoder input embeddings: gather node features by teacher-forced indices
    extended_node_feats = jnp.concatenate(
        [enc_input, jnp.zeros((B, 1, D), jnp.float32)], axis=1)     # (B, n+1, D)
    L = target_seq.shape[1]
    dec_idx = jnp.clip(target_seq[:, :-1], 0, n).astype(jnp.int32)  # (B, L-1)
    gathered = jnp.take_along_axis(extended_node_feats,
                                   dec_idx[:, :, None], axis=1)
    start = jnp.broadcast_to(params['decoder_start'][None, None, :], (B, 1, D))
    dec_in = jnp.concatenate([start, gathered], axis=1)             # (B, L, D)

    tgt_mask = jnp.where(jnp.triu(jnp.ones((L, L), dtype=bool), k=1),
                         _NEG_INF, 0.0).astype(jnp.float32)

    # decoder stack: one pallas_call over (batch, num_layers)
    dec = decoder_stack(dec_in, extended_enc, tgt_mask, params['dec'])

    return pointer_ce(dec, extended_enc, target_seq.astype(jnp.int32))


# --------------------------- main ---------------------------------------------

if __name__ == "__main__":
    B, n = 2, 8
    input_dim = n            # adjacency rows are the node features
    embedding_dim = 64
    hidden_dim = 128         # lane-dense hidden size (multiple of 128)

    key = jax.random.PRNGKey(0)
    k_param, k_adj = jax.random.split(key)
    raw_params = init_params(k_param, input_dim, embedding_dim, hidden_dim,
                             num_encoder_layers=4, num_decoder_layers=2)
    params = pack_params(raw_params)   # pre-transpose/stack once, outside jit

    # deterministic symmetric 0/1 adjacency with zero diagonal
    a = jax.random.uniform(k_adj, (B, n, n), jnp.float32)
    adj = ((a + jnp.swapaxes(a, 1, 2)) > 1.0).astype(jnp.float32)
    adj = adj * (1.0 - jnp.eye(n, dtype=jnp.float32))

    # target sequences: a permutation of node indices followed by EOS = n
    target_seq = jnp.array([[1, 3, 5, 7, 0, 2, 4, 6, n],
                            [7, 6, 5, 4, 3, 2, 1, 0, n]], dtype=jnp.int32)

    loss_fn = jax.jit(transformer_pointer_loss)
    loss = loss_fn(params, adj, target_seq)
    loss = jax.block_until_ready(loss)
    assert bool(jnp.isfinite(loss)), "loss is not finite"
    print("KERNEL_OK")
</pallas_src>

<mosaic_0001>
module attributes {stable_mosaic.version = 11 : i64} {
  func.func @_embed_proj_kernel(%arg0: i32, %arg1: memref<1x8x8xf32, #tpu.memory_space<vmem>>, %arg2: memref<8x64xf32, #tpu.memory_space<vmem>>, %arg3: memref<1x64xf32, #tpu.memory_space<vmem>>, %arg4: memref<64x128xf32, #tpu.memory_space<vmem>>, %arg5: memref<1x128xf32, #tpu.memory_space<vmem>>, %arg6: memref<1x8x128xf32, #tpu.memory_space<vmem>>) attributes {dimension_semantics = [#tpu.dimension_semantics<parallel>], iteration_bounds = array<i64: 2>, scalar_prefetch = 0 : i64, scratch_operands = 0 : i64, tpu.core_type = #tpu.core_type<tc>, window_params = [{transform_indices = @transform_0, window_bounds = array<i64: 1, 8, 8>}, {pipeline_mode = #tpu.pipeline_mode<synchronous>, transform_indices = @transform_1, window_bounds = array<i64: 8, 64>}, {pipeline_mode = #tpu.pipeline_mode<synchronous>, transform_indices = @transform_2, window_bounds = array<i64: 1, 64>}, {pipeline_mode = #tpu.pipeline_mode<synchronous>, transform_indices = @transform_3, window_bounds = array<i64: 64, 128>}, {pipeline_mode = #tpu.pipeline_mode<synchronous>, transform_indices = @transform_4, window_bounds = array<i64: 1, 128>}, {transform_indices = @transform_5, window_bounds = array<i64: 1, 8, 128>}]} {
    %c0 = arith.constant 0 : index
    %c0_0 = arith.constant 0 : index
    %c0_1 = arith.constant 0 : index
    %0 = vector.load %arg1[%c0, %c0_0, %c0_1] : memref<1x8x8xf32, #tpu.memory_space<vmem>>, vector<1x8x8xf32>
    %1 = vector.shape_cast %0 : vector<1x8x8xf32> to vector<8x8xf32>
    %c0_2 = arith.constant 0 : index
    %c0_3 = arith.constant 0 : index
    %2 = vector.load %arg2[%c0_2, %c0_3] : memref<8x64xf32, #tpu.memory_space<vmem>>, vector<8x64xf32>
    %cst = arith.constant dense<0.000000e+00> : vector<8x64xf32>
    %3 = tpu.matmul %1, %2, %cst {dimension_numbers = #tpu.dot_dimension_numbers<[1], [0], [0], [1], [0, 0, 1, 1], [], []>} : vector<8x8xf32>, vector<8x64xf32>, vector<8x64xf32> -> vector<8x64xf32>
    %c0_4 = arith.constant 0 : index
    %c0_5 = arith.constant 0 : index
    %4 = vector.load %arg3[%c0_4, %c0_5] : memref<1x64xf32, #tpu.memory_space<vmem>>, vector<1x64xf32>
    %5 = vector.broadcast %4 : vector<1x64xf32> to vector<8x64xf32>
    %6 = arith.addf %3, %5 : vector<8x64xf32>
    %c0_6 = arith.constant 0 : index
    %c0_7 = arith.constant 0 : index
    %7 = vector.load %arg4[%c0_6, %c0_7] : memref<64x128xf32, #tpu.memory_space<vmem>>, vector<64x128xf32>
    %cst_8 = arith.constant dense<0.000000e+00> : vector<8x128xf32>
    %8 = tpu.matmul %6, %7, %cst_8 {dimension_numbers = #tpu.dot_dimension_numbers<[1], [0], [0], [1], [0, 0, 1, 1], [], []>} : vector<8x64xf32>, vector<64x128xf32>, vector<8x128xf32> -> vector<8x128xf32>
    %c0_9 = arith.constant 0 : index
    %c0_10 = arith.constant 0 : index
    %9 = vector.load %arg5[%c0_9, %c0_10] : memref<1x128xf32, #tpu.memory_space<vmem>>, vector<1x128xf32>
    %10 = vector.broadcast %9 : vector<1x128xf32> to vector<8x128xf32>
    %11 = arith.addf %8, %10 : vector<8x128xf32>
    %c0_11 = arith.constant 0 : index
    %c0_12 = arith.constant 0 : index
    %c0_13 = arith.constant 0 : index
    %12 = vector.load %arg6[%c0_11, %c0_12, %c0_13] : memref<1x8x128xf32, #tpu.memory_space<vmem>>, vector<1x8x128xf32>
    %13 = vector.shape_cast %12 : vector<1x8x128xf32> to vector<8x128xf32>
    %14 = vector.shape_cast %11 : vector<8x128xf32> to vector<1x8x128xf32>
    tpu.vector_store %arg6[%c0_11, %c0_12, %c0_13], %14 {strides = array<i32>} : memref<1x8x128xf32, #tpu.memory_space<vmem>>, vector<1x8x128xf32>,
    return
  }
  func.func @transform_0(%arg0: i32) -> (i32, i32, i32) {
    %c0_i32 = arith.constant 0 : i32
    %c0_i32_0 = arith.constant 0 : i32
    %c0_i32_1 = arith.constant 0 : i32
    return %arg0, %c0_i32, %c0_i32_0 : i32, i32, i32
  }
  func.func @transform_1(%arg0: i32) -> (i32, i32) {
    %c0_i32 = arith.constant 0 : i32
    %c0_i32_0 = arith.constant 0 : i32
    %c0_i32_1 = arith.constant 0 : i32
    return %c0_i32, %c0_i32_0 : i32, i32
  }
  func.func @transform_2(%arg0: i32) -> (i32, i32) {
    %c0_i32 = arith.constant 0 : i32
    %c0_i32_0 = arith.constant 0 : i32
    %c0_i32_1 = arith.constant 0 : i32
    return %c0_i32, %c0_i32_0 : i32, i32
  }
  func.func @transform_3(%arg0: i32) -> (i32, i32) {
    %c0_i32 = arith.constant 0 : i32
    %c0_i32_0 = arith.constant 0 : i32
    %c0_i32_1 = arith.constant 0 : i32
    return %c0_i32, %c0_i32_0 : i32, i32
  }
  func.func @transform_4(%arg0: i32) -> (i32, i32) {
    %c0_i32 = arith.constant 0 : i32
    %c0_i32_0 = arith.constant 0 : i32
    %c0_i32_1 = arith.constant 0 : i32
    return %c0_i32, %c0_i32_0 : i32, i32
  }
  func.func @transform_5(%arg0: i32) -> (i32, i32, i32) {
    %c0_i32 = arith.constant 0 : i32
    %c0_i32_0 = arith.constant 0 : i32
    %c0_i32_1 = arith.constant 0 : i32
    return %arg0, %c0_i32, %c0_i32_0 : i32, i32, i32
  }
}

module attributes {stable_mosaic.version = 11 : i64} {
  func.func @_encoder_stack_kernel(%arg0: i32, %arg1: i32, %arg2: memref<1x8x128xf32, #tpu.memory_space<vmem>>, %arg3: memref<1x128x384xf32, #tpu.memory_space<vmem>>, %arg4: memref<1x1x384xf32, #tpu.memory_space<vmem>>, %arg5: memref<1x128x128xf32, #tpu.memory_space<vmem>>, %arg6: memref<1x1x128xf32, #tpu.memory_space<vmem>>, %arg7: memref<1x1x128xf32, #tpu.memory_space<vmem>>, %arg8: memref<1x1x128xf32, #tpu.memory_space<vmem>>, %arg9: memref<1x128x512xf32, #tpu.memory_space<vmem>>, %arg10: memref<1x1x512xf32, #tpu.memory_space<vmem>>, %arg11: memref<1x512x128xf32, #tpu.memory_space<vmem>>, %arg12: memref<1x1x128xf32, #tpu.memory_space<vmem>>, %arg13: memref<1x1x128xf32, #tpu.memory_space<vmem>>, %arg14: memref<1x1x128xf32, #tpu.memory_space<vmem>>, %arg15: memref<1x8x128xf32, #tpu.memory_space<vmem>>, %arg16: memref<8x128xf32, #tpu.memory_space<vmem>>) attributes {dimension_semantics = [#tpu.dimension_semantics<parallel>, #tpu.dimension_semantics<arbitrary>], iteration_bounds = array<i64: 2, 4>, scalar_prefetch = 0 : i64, scratch_operands = 1 : i64, tpu.core_type = #tpu.core_type<tc>, window_params = [{transform_indices = @transform_0, window_bounds = array<i64: 1, 8, 128>}, {transform_indices = @transform_1, window_bounds = array<i64: 1, 128, 384>}, {transform_indices = @transform_2, window_bounds = array<i64: 1, 1, 384>}, {transform_indices = @transform_3, window_bounds = array<i64: 1, 128, 128>}, {transform_indices = @transform_4, window_bounds = array<i64: 1, 1, 128>}, {transform_indices = @transform_5, window_bounds = array<i64: 1, 1, 128>}, {transform_indices = @transform_6, window_bounds = array<i64: 1, 1, 128>}, {transform_indices = @transform_7, window_bounds = array<i64: 1, 128, 512>}, {transform_indices = @transform_8, window_bounds = array<i64: 1, 1, 512>}, {transform_indices = @transform_9, window_bounds = array<i64: 1, 512, 128>}, {transform_indices = @transform_10, window_bounds = array<i64: 1, 1, 128>}, {transform_indices = @transform_11, window_bounds = array<i64: 1, 1, 128>}, {transform_indices = @transform_12, window_bounds = array<i64: 1, 1, 128>}, {transform_indices = @transform_13, window_bounds = array<i64: 1, 8, 128>}]} {
    %c0_i32 = arith.constant 0 : i32
    %0 = arith.cmpi eq, %arg1, %c0_i32 : i32
    %1 = arith.extui %0 : i1 to i32
    %c0_i32_0 = arith.constant 0 : i32
    %2 = arith.cmpi ne, %1, %c0_i32_0 : i32
    scf.if %2 {
      %c0_60 = arith.constant 0 : index
      %c0_61 = arith.constant 0 : index
      %c0_62 = arith.constant 0 : index
      %109 = vector.load %arg2[%c0_60, %c0_61, %c0_62] : memref<1x8x128xf32, #tpu.memory_space<vmem>>, vector<1x8x128xf32>
      %110 = vector.shape_cast %109 : vector<1x8x128xf32> to vector<8x128xf32>
      %c0_63 = arith.constant 0 : index
      %c0_64 = arith.constant 0 : index
      %111 = vector.load %arg16[%c0_63, %c0_64] : memref<8x128xf32, #tpu.memory_space<vmem>>, vector<8x128xf32>
      tpu.vector_store %arg16[%c0_63, %c0_64], %110 {strides = array<i32>} : memref<8x128xf32, #tpu.memory_space<vmem>>, vector<8x128xf32>,
    } else {
    }
    %c0 = arith.constant 0 : index
    %c0_1 = arith.constant 0 : index
    %3 = vector.load %arg16[%c0, %c0_1] : memref<8x128xf32, #tpu.memory_space<vmem>>, vector<8x128xf32>
    %c0_2 = arith.constant 0 : index
    %c0_3 = arith.constant 0 : index
    %c0_4 = arith.constant 0 : index
    %4 = vector.load %arg3[%c0_2, %c0_3, %c0_4] : memref<1x128x384xf32, #tpu.memory_space<vmem>>, vector<1x128x384xf32>
    %5 = vector.shape_cast %4 : vector<1x128x384xf32> to vector<128x384xf32>
    %cst = arith.constant dense<0.000000e+00> : vector<8x384xf32>
    %6 = tpu.matmul %3, %5, %cst {dimension_numbers = #tpu.dot_dimension_numbers<[1], [0], [0], [1], [0, 0, 1, 1], [], []>} : vector<8x128xf32>, vector<128x384xf32>, vector<8x384xf32> -> vector<8x384xf32>
    %c0_5 = arith.constant 0 : index
    %c0_6 = arith.constant 0 : index
    %c0_7 = arith.constant 0 : index
    %7 = vector.load %arg4[%c0_5, %c0_6, %c0_7] : memref<1x1x384xf32, #tpu.memory_space<vmem>>, vector<1x1x384xf32>
    %8 = vector.shape_cast %7 : vector<1x1x384xf32> to vector<1x384xf32>
    %9 = vector.broadcast %8 : vector<1x384xf32> to vector<8x384xf32>
    %10 = arith.addf %6, %9 : vector<8x384xf32>
    %11 = vector.extract_strided_slice %10 {offsets = [0, 0], sizes = [8, 128], strides = [1, 1]} : vector<8x384xf32> to vector<8x128xf32>
    %12 = vector.extract_strided_slice %10 {offsets = [0, 128], sizes = [8, 128], strides = [1, 1]} : vector<8x384xf32> to vector<8x128xf32>
    %13 = vector.extract_strided_slice %10 {offsets = [0, 256], sizes = [8, 128], strides = [1, 1]} : vector<8x384xf32> to vector<8x128xf32>
    %cst_8 = arith.constant dense<0.000000e+00> : vector<8x8xf32>
    %14 = tpu.matmul %11, %12, %cst_8 {dimension_numbers = #tpu.dot_dimension_numbers<[1], [1], [0], [0], [0, 0, 1, 0], [], []>} : vector<8x128xf32>, vector<8x128xf32>, vector<8x8xf32> -> vector<8x8xf32>
    %cst_9 = arith.constant 0.0883883461 : f32
    %15 = vector.broadcast %cst_9 : f32 to vector<8x8xf32>
    %16 = arith.mulf %14, %15 : vector<8x8xf32>
    %cst_10 = arith.constant dense<0xFF800000> : vector<8xf32>
    %17 = vector.multi_reduction <maximumf>, %16, %cst_10 [1] : vector<8x8xf32> to vector<8xf32>
    %18 = vector.shape_cast %17 : vector<8xf32> to vector<8x1xf32>
    %19 = vector.broadcast %18 : vector<8x1xf32> to vector<8x8xf32>
    %20 = arith.subf %16, %19 : vector<8x8xf32>
    %21 = math.exp %20 : vector<8x8xf32>
    %cst_11 = arith.constant dense<0.000000e+00> : vector<8xf32>
    %22 = vector.multi_reduction <add>, %21, %cst_11 [1] : vector<8x8xf32> to vector<8xf32>
    %23 = vector.shape_cast %22 : vector<8xf32> to vector<8x1xf32>
    %24 = tpu.reciprocal %23 {approx = true} : vector<8x1xf32> -> vector<8x1xf32>
    %25 = vector.broadcast %24 : vector<8x1xf32> to vector<8x8xf32>
    %26 = arith.mulf %21, %25 : vector<8x8xf32>
    %cst_12 = arith.constant dense<0.000000e+00> : vector<8x128xf32>
    %27 = tpu.matmul %26, %13, %cst_12 {dimension_numbers = #tpu.dot_dimension_numbers<[1], [0], [0], [1], [0, 0, 1, 1], [], []>} : vector<8x8xf32>, vector<8x128xf32>, vector<8x128xf32> -> vector<8x128xf32>
    %c0_13 = arith.constant 0 : index
    %c0_14 = arith.constant 0 : index
    %c0_15 = arith.constant 0 : index
    %28 = vector.load %arg5[%c0_13, %c0_14, %c0_15] : memref<1x128x128xf32, #tpu.memory_space<vmem>>, vector<1x128x128xf32>
    %29 = vector.shape_cast %28 : vector<1x128x128xf32> to vector<128x128xf32>
    %cst_16 = arith.constant dense<0.000000e+00> : vector<8x128xf32>
    %30 = tpu.matmul %27, %29, %cst_16 {dimension_numbers = #tpu.dot_dimension_numbers<[1], [0], [0], [1], [0, 0, 1, 1], [], []>} : vector<8x128xf32>, vector<128x128xf32>, vector<8x128xf32> -> vector<8x128xf32>
    %c0_17 = arith.constant 0 : index
    %c0_18 = arith.constant 0 : index
    %c0_19 = arith.constant 0 : index
    %31 = vector.load %arg6[%c0_17, %c0_18, %c0_19] : memref<1x1x128xf32, #tpu.memory_space<vmem>>, vector<1x1x128xf32>
    %32 = vector.shape_cast %31 : vector<1x1x128xf32> to vector<1x128xf32>
    %33 = vector.broadcast %32 : vector<1x128xf32> to vector<8x128xf32>
    %34 = arith.addf %30, %33 : vector<8x128xf32>
    %35 = arith.addf %3, %34 : vector<8x128xf32>
    %c0_20 = arith.constant 0 : index
    %c0_21 = arith.constant 0 : index
    %c0_22 = arith.constant 0 : index
    %36 = vector.load %arg7[%c0_20, %c0_21, %c0_22] : memref<1x1x128xf32, #tpu.memory_space<vmem>>, vector<1x1x128xf32>
    %37 = vector.shape_cast %36 : vector<1x1x128xf32> to vector<1x128xf32>
    %c0_23 = arith.constant 0 : index
    %c0_24 = arith.constant 0 : index
    %c0_25 = arith.constant 0 : index
    %38 = vector.load %arg8[%c0_23, %c0_24, %c0_25] : memref<1x1x128xf32, #tpu.memory_space<vmem>>, vector<1x1x128xf32>
    %39 = vector.shape_cast %38 : vector<1x1x128xf32> to vector<1x128xf32>
    %cst_26 = arith.constant dense<0.000000e+00> : vector<8xf32>
    %40 = vector.multi_reduction <add>, %35, %cst_26 [1] : vector<8x128xf32> to vector<8xf32>
    %41 = vector.shape_cast %40 : vector<8xf32> to vector<8x1xf32>
    %cst_27 = arith.constant 1.280000e+02 : f32
    %42 = vector.broadcast %cst_27 : f32 to vector<8x1xf32>
    %43 = arith.divf %41, %42 : vector<8x1xf32>
    %44 = vector.broadcast %43 : vector<8x1xf32> to vector<8x128xf32>
    %45 = arith.subf %35, %44 : vector<8x128xf32>
    %46 = arith.mulf %45, %45 : vector<8x128xf32>
    %cst_28 = arith.constant dense<0.000000e+00> : vector<8xf32>
    %47 = vector.multi_reduction <add>, %46, %cst_28 [1] : vector<8x128xf32> to vector<8xf32>
    %48 = vector.shape_cast %47 : vector<8xf32> to vector<8x1xf32>
    %cst_29 = arith.constant 1.280000e+02 : f32
    %49 = vector.broadcast %cst_29 : f32 to vector<8x1xf32>
    %50 = arith.divf %48, %49 : vector<8x1xf32>
    %51 = vector.broadcast %43 : vector<8x1xf32> to vector<8x128xf32>
    %52 = arith.subf %35, %51 : vector<8x128xf32>
    %cst_30 = arith.constant 9.99999974E-6 : f32
    %53 = vector.broadcast %cst_30 : f32 to vector<8x1xf32>
    %54 = arith.addf %50, %53 : vector<8x1xf32>
    %55 = math.rsqrt %54 : vector<8x1xf32>
    %56 = vector.broadcast %55 : vector<8x1xf32> to vector<8x128xf32>
    %57 = arith.mulf %52, %56 : vector<8x128xf32>
    %58 = vector.broadcast %37 : vector<1x128xf32> to vector<8x128xf32>
    %59 = arith.mulf %57, %58 : vector<8x128xf32>
    %60 = vector.broadcast %39 : vector<1x128xf32> to vector<8x128xf32>
    %61 = arith.addf %59, %60 : vector<8x128xf32>
    %c0_31 = arith.constant 0 : index
    %c0_32 = arith.constant 0 : index
    %c0_33 = arith.constant 0 : index
    %62 = vector.load %arg9[%c0_31, %c0_32, %c0_33] : memref<1x128x512xf32, #tpu.memory_space<vmem>>, vector<1x128x512xf32>
    %63 = vector.shape_cast %62 : vector<1x128x512xf32> to vector<128x512xf32>
    %cst_34 = arith.constant dense<0.000000e+00> : vector<8x512xf32>
    %64 = tpu.matmul %61, %63, %cst_34 {dimension_numbers = #tpu.dot_dimension_numbers<[1], [0], [0], [1], [0, 0, 1, 1], [], []>} : vector<8x128xf32>, vector<128x512xf32>, vector<8x512xf32> -> vector<8x512xf32>
    %c0_35 = arith.constant 0 : index
    %c0_36 = arith.constant 0 : index
    %c0_37 = arith.constant 0 : index
    %65 = vector.load %arg10[%c0_35, %c0_36, %c0_37] : memref<1x1x512xf32, #tpu.memory_space<vmem>>, vector<1x1x512xf32>
    %66 = vector.shape_cast %65 : vector<1x1x512xf32> to vector<1x512xf32>
    %67 = vector.broadcast %66 : vector<1x512xf32> to vector<8x512xf32>
    %68 = arith.addf %64, %67 : vector<8x512xf32>
    %cst_38 = arith.constant 0.000000e+00 : f32
    %69 = vector.broadcast %cst_38 : f32 to vector<8x512xf32>
    %70 = arith.maximumf %68, %69 : vector<8x512xf32>
    %c0_39 = arith.constant 0 : index
    %c0_40 = arith.constant 0 : index
    %c0_41 = arith.constant 0 : index
    %71 = vector.load %arg11[%c0_39, %c0_40, %c0_41] : memref<1x512x128xf32, #tpu.memory_space<vmem>>, vector<1x512x128xf32>
    %72 = vector.shape_cast %71 : vector<1x512x128xf32> to vector<512x128xf32>
    %cst_42 = arith.constant dense<0.000000e+00> : vector<8x128xf32>
    %73 = tpu.matmul %70, %72, %cst_42 {dimension_numbers = #tpu.dot_dimension_numbers<[1], [0], [0], [1], [0, 0, 1, 1], [], []>} : vector<8x512xf32>, vector<512x128xf32>, vector<8x128xf32> -> vector<8x128xf32>
    %c0_43 = arith.constant 0 : index
    %c0_44 = arith.constant 0 : index
    %c0_45 = arith.constant 0 : index
    %74 = vector.load %arg12[%c0_43, %c0_44, %c0_45] : memref<1x1x128xf32, #tpu.memory_space<vmem>>, vector<1x1x128xf32>
    %75 = vector.shape_cast %74 : vector<1x1x128xf32> to vector<1x128xf32>
    %76 = vector.broadcast %75 : vector<1x128xf32> to vector<8x128xf32>
    %77 = arith.addf %73, %76 : vector<8x128xf32>
    %78 = arith.addf %61, %77 : vector<8x128xf32>
    %c0_46 = arith.constant 0 : index
    %c0_47 = arith.constant 0 : index
    %c0_48 = arith.constant 0 : index
    %79 = vector.load %arg13[%c0_46, %c0_47, %c0_48] : memref<1x1x128xf32, #tpu.memory_space<vmem>>, vector<1x1x128xf32>
    %80 = vector.shape_cast %79 : vector<1x1x128xf32> to vector<1x128xf32>
    %c0_49 = arith.constant 0 : index
    %c0_50 = arith.constant 0 : index
    %c0_51 = arith.constant 0 : index
    %81 = vector.load %arg14[%c0_49, %c0_50, %c0_51] : memref<1x1x128xf32, #tpu.memory_space<vmem>>, vector<1x1x128xf32>
    %82 = vector.shape_cast %81 : vector<1x1x128xf32> to vector<1x128xf32>
    %cst_52 = arith.constant dense<0.000000e+00> : vector<8xf32>
    %83 = vector.multi_reduction <add>, %78, %cst_52 [1] : vector<8x128xf32> to vector<8xf32>
    %84 = vector.shape_cast %83 : vector<8xf32> to vector<8x1xf32>
    %cst_53 = arith.constant 1.280000e+02 : f32
    %85 = vector.broadcast %cst_53 : f32 to vector<8x1xf32>
    %86 = arith.divf %84, %85 : vector<8x1xf32>
    %87 = vector.broadcast %86 : vector<8x1xf32> to vector<8x128xf32>
    %88 = arith.subf %78, %87 : vector<8x128xf32>
    %89 = arith.mulf %88, %88 : vector<8x128xf32>
    %cst_54 = arith.constant dense<0.000000e+00> : vector<8xf32>
    %90 = vector.multi_reduction <add>, %89, %cst_54 [1] : vector<8x128xf32> to vector<8xf32>
    %91 = vector.shape_cast %90 : vector<8xf32> to vector<8x1xf32>
    %cst_55 = arith.constant 1.280000e+02 : f32
    %92 = vector.broadcast %cst_55 : f32 to vector<8x1xf32>
    %93 = arith.divf %91, %92 : vector<8x1xf32>
    %94 = vector.broadcast %86 : vector<8x1xf32> to vector<8x128xf32>
    %95 = arith.subf %78, %94 : vector<8x128xf32>
    %cst_56 = arith.constant 9.99999974E-6 : f32
    %96 = vector.broadcast %cst_56 : f32 to vector<8x1xf32>
    %97 = arith.addf %93, %96 : vector<8x1xf32>
    %98 = math.rsqrt %97 : vector<8x1xf32>
    %99 = vector.broadcast %98 : vector<8x1xf32> to vector<8x128xf32>
    %100 = arith.mulf %95, %99 : vector<8x128xf32>
    %101 = vector.broadcast %80 : vector<1x128xf32> to vector<8x128xf32>
    %102 = arith.mulf %100, %101 : vector<8x128xf32>
    %103 = vector.broadcast %82 : vector<1x128xf32> to vector<8x128xf32>
    %104 = arith.addf %102, %103 : vector<8x128xf32>
    %c0_57 = arith.constant 0 : index
    %c0_58 = arith.constant 0 : index
    %105 = vector.load %arg16[%c0_57, %c0_58] : memref<8x128xf32, #tpu.memory_space<vmem>>, vector<8x128xf32>
    tpu.vector_store %arg16[%c0_57, %c0_58], %104 {strides = array<i32>} : memref<8x128xf32, #tpu.memory_space<vmem>>, vector<8x128xf32>,
    %c3_i32 = arith.constant 3 : i32
    %106 = arith.cmpi eq, %arg1, %c3_i32 : i32
    %107 = arith.extui %106 : i1 to i32
    %c0_i32_59 = arith.constant 0 : i32
    %108 = arith.cmpi ne, %107, %c0_i32_59 : i32
    scf.if %108 {
      %c0_60 = arith.constant 0 : index
      %c0_61 = arith.constant 0 : index
      %c0_62 = arith.constant 0 : index
      %109 = vector.load %arg15[%c0_60, %c0_61, %c0_62] : memref<1x8x128xf32, #tpu.memory_space<vmem>>, vector<1x8x128xf32>
      %110 = vector.shape_cast %109 : vector<1x8x128xf32> to vector<8x128xf32>
      %111 = vector.shape_cast %104 : vector<8x128xf32> to vector<1x8x128xf32>
      tpu.vector_store %arg15[%c0_60, %c0_61, %c0_62], %111 {strides = array<i32>} : memref<1x8x128xf32, #tpu.memory_space<vmem>>, vector<1x8x128xf32>,
    } else {
    }
    return
  }
  func.func @transform_0(%arg0: i32, %arg1: i32) -> (i32, i32, i32) {
    %c0_i32 = arith.constant 0 : i32
    %c0_i32_0 = arith.constant 0 : i32
    %c0_i32_1 = arith.constant 0 : i32
    return %arg0, %c0_i32, %c0_i32_0 : i32, i32, i32
  }
  func.func @transform_1(%arg0: i32, %arg1: i32) -> (i32, i32, i32) {
    %c0_i32 = arith.constant 0 : i32
    %c0_i32_0 = arith.constant 0 : i32
    %c0_i32_1 = arith.constant 0 : i32
    return %arg1, %c0_i32, %c0_i32_0 : i32, i32, i32
  }
  func.func @transform_2(%arg0: i32, %arg1: i32) -> (i32, i32, i32) {
    %c0_i32 = arith.constant 0 : i32
    %c0_i32_0 = arith.constant 0 : i32
    %c0_i32_1 = arith.constant 0 : i32
    return %arg1, %c0_i32, %c0_i32_0 : i32, i32, i32
  }
  func.func @transform_3(%arg0: i32, %arg1: i32) -> (i32, i32, i32) {
    %c0_i32 = arith.constant 0 : i32
    %c0_i32_0 = arith.constant 0 : i32
    %c0_i32_1 = arith.constant 0 : i32
    return %arg1, %c0_i32, %c0_i32_0 : i32, i32, i32
  }
  func.func @transform_4(%arg0: i32, %arg1: i32) -> (i32, i32, i32) {
    %c0_i32 = arith.constant 0 : i32
    %c0_i32_0 = arith.constant 0 : i32
    %c0_i32_1 = arith.constant 0 : i32
    return %arg1, %c0_i32, %c0_i32_0 : i32, i32, i32
  }
  func.func @transform_5(%arg0: i32, %arg1: i32) -> (i32, i32, i32) {
    %c0_i32 = arith.constant 0 : i32
    %c0_i32_0 = arith.constant 0 : i32
    %c0_i32_1 = arith.constant 0 : i32
    return %arg1, %c0_i32, %c0_i32_0 : i32, i32, i32
  }
  func.func @transform_6(%arg0: i32, %arg1: i32) -> (i32, i32, i32) {
    %c0_i32 = arith.constant 0 : i32
    %c0_i32_0 = arith.constant 0 : i32
    %c0_i32_1 = arith.constant 0 : i32
    return %arg1, %c0_i32, %c0_i32_0 : i32, i32, i32
  }
  func.func @transform_7(%arg0: i32, %arg1: i32) -> (i32, i32, i32) {
    %c0_i32 = arith.constant 0 : i32
    %c0_i32_0 = arith.constant 0 : i32
    %c0_i32_1 = arith.constant 0 : i32
    return %arg1, %c0_i32, %c0_i32_0 : i32, i32, i32
  }
  func.func @transform_8(%arg0: i32, %arg1: i32) -> (i32, i32, i32) {
    %c0_i32 = arith.constant 0 : i32
    %c0_i32_0 = arith.constant 0 : i32
    %c0_i32_1 = arith.constant 0 : i32
    return %arg1, %c0_i32, %c0_i32_0 : i32, i32, i32
  }
  func.func @transform_9(%arg0: i32, %arg1: i32) -> (i32, i32, i32) {
    %c0_i32 = arith.constant 0 : i32
    %c0_i32_0 = arith.constant 0 : i32
    %c0_i32_1 = arith.constant 0 : i32
    return %arg1, %c0_i32, %c0_i32_0 : i32, i32, i32
  }
  func.func @transform_10(%arg0: i32, %arg1: i32) -> (i32, i32, i32) {
    %c0_i32 = arith.constant 0 : i32
    %c0_i32_0 = arith.constant 0 : i32
    %c0_i32_1 = arith.constant 0 : i32
    return %arg1, %c0_i32, %c0_i32_0 : i32, i32, i32
  }
  func.func @transform_11(%arg0: i32, %arg1: i32) -> (i32, i32, i32) {
    %c0_i32 = arith.constant 0 : i32
    %c0_i32_0 = arith.constant 0 : i32
    %c0_i32_1 = arith.constant 0 : i32
    return %arg1, %c0_i32, %c0_i32_0 : i32, i32, i32
  }
  func.func @transform_12(%arg0: i32, %arg1: i32) -> (i32, i32, i32) {
    %c0_i32 = arith.constant 0 : i32
    %c0_i32_0 = arith.constant 0 : i32
    %c0_i32_1 = arith.constant 0 : i32
    return %arg1, %c0_i32, %c0_i32_0 : i32, i32, i32
  }
  func.func @transform_13(%arg0: i32, %arg1: i32) -> (i32, i32, i32) {
    %c0_i32 = arith.constant 0 : i32
    %c0_i32_0 = arith.constant 0 : i32
    %c0_i32_1 = arith.constant 0 : i32
    return %arg0, %c0_i32, %c0_i32_0 : i32, i32, i32
  }
}

module attributes {stable_mosaic.version = 11 : i64} {
  func.func @_pointer_ce_kernel(%arg0: memref<2x9x128xf32, #tpu.memory_space<vmem>>, %arg1: memref<2x9x128xf32, #tpu.memory_space<vmem>>, %arg2: memref<2x9xi32, #tpu.memory_space<vmem>>, %arg3: memref<1x1xf32, #tpu.memory_space<vmem>>) attributes {dimension_semantics = [], scalar_prefetch = 0 : i64, scratch_operands = 0 : i64, tpu.core_type = #tpu.core_type<tc>} {
    %c0 = arith.constant 0 : index
    %c0_0 = arith.constant 0 : index
    %c0_1 = arith.constant 0 : index
    %0 = vector.load %arg0[%c0, %c0_0, %c0_1] : memref<2x9x128xf32, #tpu.memory_space<vmem>>, vector<2x9x128xf32>
    %c0_2 = arith.constant 0 : index
    %c0_3 = arith.constant 0 : index
    %c0_4 = arith.constant 0 : index
    %1 = vector.load %arg1[%c0_2, %c0_3, %c0_4] : memref<2x9x128xf32, #tpu.memory_space<vmem>>, vector<2x9x128xf32>
    "tpu.trace_start"() <{level = 10 : i32, message = "bld,bnd->bln"}> : () -> ()
    %cst = arith.constant dense<0.000000e+00> : vector<2x9x9xf32>
    %2 = tpu.matmul %0, %1, %cst {dimension_numbers = #tpu.dot_dimension_numbers<[2], [2], [1], [1], [0, 0, 0, 1, 1, 1], [0], [0]>} : vector<2x9x128xf32>, vector<2x9x128xf32>, vector<2x9x9xf32> -> vector<2x9x9xf32>
    "tpu.trace_stop"() : () -> ()
    %c0_5 = arith.constant 0 : index
    %c0_6 = arith.constant 0 : index
    %3 = vector.load %arg2[%c0_5, %c0_6] : memref<2x9xi32, #tpu.memory_space<vmem>>, vector<2x9xi32>
    %c-100_i32 = arith.constant -100 : i32
    %4 = vector.broadcast %c-100_i32 : i32 to vector<2x9xi32>
    %5 = arith.cmpi ne, %3, %4 : vector<2x9xi32>
    %c0_i32 = arith.constant 0 : i32
    %6 = vector.broadcast %c0_i32 : i32 to vector<2x9xi32>
    %7 = arith.select %5, %3, %6 : vector<2x9xi1>, vector<2x9xi32>
    %cst_7 = arith.constant dense<0xFF800000> : vector<2x9xf32>
    %8 = vector.multi_reduction <maximumf>, %2, %cst_7 [2] : vector<2x9x9xf32> to vector<2x9xf32>
    %9 = vector.shape_cast %8 : vector<2x9xf32> to vector<2x9x1xf32>
    %10 = vector.broadcast %9 : vector<2x9x1xf32> to vector<2x9x9xf32>
    %11 = arith.subf %2, %10 : vector<2x9x9xf32>
    %12 = math.exp %11 : vector<2x9x9xf32>
    %cst_8 = arith.constant dense<0.000000e+00> : vector<2x9xf32>
    %13 = vector.multi_reduction <add>, %12, %cst_8 [2] : vector<2x9x9xf32> to vector<2x9xf32>
    %14 = math.log %13 : vector<2x9xf32>
    %15 = vector.shape_cast %9 : vector<2x9x1xf32> to vector<2x9xf32>
    %16 = arith.addf %14, %15 : vector<2x9xf32>
    %17 = tpu.iota {dimensions = array<i32: 2>} : vector<2x9x9xi32>
    %18 = vector.shape_cast %7 : vector<2x9xi32> to vector<2x9x1xi32>
    %19 = vector.broadcast %18 : vector<2x9x1xi32> to vector<2x9x9xi32>
    %20 = arith.cmpi eq, %17, %19 : vector<2x9x9xi32>
    %cst_9 = arith.constant 0.000000e+00 : f32
    %21 = vector.broadcast %cst_9 : f32 to vector<2x9x9xf32>
    %22 = arith.select %20, %2, %21 : vector<2x9x9xi1>, vector<2x9x9xf32>
    %cst_10 = arith.constant dense<0.000000e+00> : vector<2x9xf32>
    %23 = vector.multi_reduction <add>, %22, %cst_10 [2] : vector<2x9x9xf32> to vector<2x9xf32>
    %24 = arith.subf %16, %23 : vector<2x9xf32>
    %cst_11 = arith.constant 0.000000e+00 : f32
    %25 = vector.broadcast %cst_11 : f32 to vector<2x9xf32>
    %26 = arith.select %5, %24, %25 : vector<2x9xi1>, vector<2x9xf32>
    %27 = vector.shape_cast %26 : vector<2x9xf32> to vector<1x2x9xf32>
    %cst_12 = arith.constant dense<0.000000e+00> : vector<1xf32>
    %28 = vector.multi_reduction <add>, %27, %cst_12 [1, 2] : vector<1x2x9xf32> to vector<1xf32>
    %29 = vector.shape_cast %28 : vector<1xf32> to vector<1x1x1xf32>
    %30 = vector.extract %29[0, 0, 0] : f32 from vector<1x1x1xf32>
    %31 = vector.broadcast %30 : f32 to vector<1x1xf32>
    %32 = arith.extui %5 : vector<2x9xi1> to vector<2x9xi32>
    %33 = arith.sitofp %32 : vector<2x9xi32> to vector<2x9xf32>
    %34 = vector.shape_cast %33 : vector<2x9xf32> to vector<1x2x9xf32>
    %cst_13 = arith.constant dense<0.000000e+00> : vector<1xf32>
    %35 = vector.multi_reduction <add>, %34, %cst_13 [1, 2] : vector<1x2x9xf32> to vector<1xf32>
    %36 = vector.shape_cast %35 : vector<1xf32> to vector<1x1x1xf32>
    %37 = vector.extract %36[0, 0, 0] : f32 from vector<1x1x1xf32>
    %38 = vector.broadcast %37 : f32 to vector<1x1xf32>
    %cst_14 = arith.constant 1.000000e+00 : f32
    %39 = vector.broadcast %cst_14 : f32 to vector<1x1xf32>
    %40 = arith.maximumf %38, %39 : vector<1x1xf32>
    %41 = arith.divf %31, %40 : vector<1x1xf32>
    %c0_15 = arith.constant 0 : index
    %c0_16 = arith.constant 0 : index
    %42 = vector.load %arg3[%c0_15, %c0_16] : memref<1x1xf32, #tpu.memory_space<vmem>>, vector<1x1xf32>
    tpu.vector_store %arg3[%c0_15, %c0_16], %41 {strides = array<i32>} : memref<1x1xf32, #tpu.memory_space<vmem>>, vector<1x1xf32>,
    return
  }
}

module attributes {stable_mosaic.version = 11 : i64} {
  func.func @_decoder_stack_kernel(%arg0: i32, %arg1: i32, %arg2: memref<1x9x128xf32, #tpu.memory_space<vmem>>, %arg3: memref<1x9x128xf32, #tpu.memory_space<vmem>>, %arg4: memref<9x9xf32, #tpu.memory_space<vmem>>, %arg5: memref<1x128x384xf32, #tpu.memory_space<vmem>>, %arg6: memref<1x1x384xf32, #tpu.memory_space<vmem>>, %arg7: memref<1x128x128xf32, #tpu.memory_space<vmem>>, %arg8: memref<1x1x128xf32, #tpu.memory_space<vmem>>, %arg9: memref<1x1x128xf32, #tpu.memory_space<vmem>>, %arg10: memref<1x1x128xf32, #tpu.memory_space<vmem>>, %arg11: memref<1x128x128xf32, #tpu.memory_space<vmem>>, %arg12: memref<1x1x128xf32, #tpu.memory_space<vmem>>, %arg13: memref<1x128x256xf32, #tpu.memory_space<vmem>>, %arg14: memref<1x1x256xf32, #tpu.memory_space<vmem>>, %arg15: memref<1x128x128xf32, #tpu.memory_space<vmem>>, %arg16: memref<1x1x128xf32, #tpu.memory_space<vmem>>, %arg17: memref<1x1x128xf32, #tpu.memory_space<vmem>>, %arg18: memref<1x1x128xf32, #tpu.memory_space<vmem>>, %arg19: memref<1x128x512xf32, #tpu.memory_space<vmem>>, %arg20: memref<1x1x512xf32, #tpu.memory_space<vmem>>, %arg21: memref<1x512x128xf32, #tpu.memory_space<vmem>>, %arg22: memref<1x1x128xf32, #tpu.memory_space<vmem>>, %arg23: memref<1x1x128xf32, #tpu.memory_space<vmem>>, %arg24: memref<1x1x128xf32, #tpu.memory_space<vmem>>, %arg25: memref<1x9x128xf32, #tpu.memory_space<vmem>>, %arg26: memref<9x128xf32, #tpu.memory_space<vmem>>) attributes {dimension_semantics = [#tpu.dimension_semantics<parallel>, #tpu.dimension_semantics<arbitrary>], iteration_bounds = array<i64: 2, 2>, scalar_prefetch = 0 : i64, scratch_operands = 1 : i64, tpu.core_type = #tpu.core_type<tc>, window_params = [{transform_indices = @transform_0, window_bounds = array<i64: 1, 9, 128>}, {transform_indices = @transform_1, window_bounds = array<i64: 1, 9, 128>}, {pipeline_mode = #tpu.pipeline_mode<synchronous>, transform_indices = @transform_2, window_bounds = array<i64: 9, 9>}, {transform_indices = @transform_3, window_bounds = array<i64: 1, 128, 384>}, {transform_indices = @transform_4, window_bounds = array<i64: 1, 1, 384>}, {transform_indices = @transform_5, window_bounds = array<i64: 1, 128, 128>}, {transform_indices = @transform_6, window_bounds = array<i64: 1, 1, 128>}, {transform_indices = @transform_7, window_bounds = array<i64: 1, 1, 128>}, {transform_indices = @transform_8, window_bounds = array<i64: 1, 1, 128>}, {transform_indices = @transform_9, window_bounds = array<i64: 1, 128, 128>}, {transform_indices = @transform_10, window_bounds = array<i64: 1, 1, 128>}, {transform_indices = @transform_11, window_bounds = array<i64: 1, 128, 256>}, {transform_indices = @transform_12, window_bounds = array<i64: 1, 1, 256>}, {transform_indices = @transform_13, window_bounds = array<i64: 1, 128, 128>}, {transform_indices = @transform_14, window_bounds = array<i64: 1, 1, 128>}, {transform_indices = @transform_15, window_bounds = array<i64: 1, 1, 128>}, {transform_indices = @transform_16, window_bounds = array<i64: 1, 1, 128>}, {transform_indices = @transform_17, window_bounds = array<i64: 1, 128, 512>}, {transform_indices = @transform_18, window_bounds = array<i64: 1, 1, 512>}, {transform_indices = @transform_19, window_bounds = array<i64: 1, 512, 128>}, {transform_indices = @transform_20, window_bounds = array<i64: 1, 1, 128>}, {transform_indices = @transform_21, window_bounds = array<i64: 1, 1, 128>}, {transform_indices = @transform_22, window_bounds = array<i64: 1, 1, 128>}, {transform_indices = @transform_23, window_bounds = array<i64: 1, 9, 128>}]} {
    %c0_i32 = arith.constant 0 : i32
    %0 = arith.cmpi eq, %arg1, %c0_i32 : i32
    %1 = arith.extui %0 : i1 to i32
    %c0_i32_0 = arith.constant 0 : i32
    %2 = arith.cmpi ne, %1, %c0_i32_0 : i32
    scf.if %2 {
      %c0_102 = arith.constant 0 : index
      %c0_103 = arith.constant 0 : index
      %c0_104 = arith.constant 0 : index
      %177 = vector.load %arg2[%c0_102, %c0_103, %c0_104] : memref<1x9x128xf32, #tpu.memory_space<vmem>>, vector<1x9x128xf32>
      %178 = vector.shape_cast %177 : vector<1x9x128xf32> to vector<9x128xf32>
      %c0_105 = arith.constant 0 : index
      %c0_106 = arith.constant 0 : index
      %179 = vector.load %arg26[%c0_105, %c0_106] : memref<9x128xf32, #tpu.memory_space<vmem>>, vector<9x128xf32>
      tpu.vector_store %arg26[%c0_105, %c0_106], %178 {strides = array<i32>} : memref<9x128xf32, #tpu.memory_space<vmem>>, vector<9x128xf32>,
    } else {
    }
    %c0 = arith.constant 0 : index
    %c0_1 = arith.constant 0 : index
    %3 = vector.load %arg26[%c0, %c0_1] : memref<9x128xf32, #tpu.memory_space<vmem>>, vector<9x128xf32>
    %c0_2 = arith.constant 0 : index
    %c0_3 = arith.constant 0 : index
    %c0_4 = arith.constant 0 : index
    %4 = vector.load %arg3[%c0_2, %c0_3, %c0_4] : memref<1x9x128xf32, #tpu.memory_space<vmem>>, vector<1x9x128xf32>
    %5 = vector.shape_cast %4 : vector<1x9x128xf32> to vector<9x128xf32>
    %c0_5 = arith.constant 0 : index
    %c0_6 = arith.constant 0 : index
    %c0_7 = arith.constant 0 : index
    %6 = vector.load %arg5[%c0_5, %c0_6, %c0_7] : memref<1x128x384xf32, #tpu.memory_space<vmem>>, vector<1x128x384xf32>
    %7 = vector.shape_cast %6 : vector<1x128x384xf32> to vector<128x384xf32>
    %cst = arith.constant dense<0.000000e+00> : vector<9x384xf32>
    %8 = tpu.matmul %3, %7, %cst {dimension_numbers = #tpu.dot_dimension_numbers<[1], [0], [0], [1], [0, 0, 1, 1], [], []>} : vector<9x128xf32>, vector<128x384xf32>, vector<9x384xf32> -> vector<9x384xf32>
    %c0_8 = arith.constant 0 : index
    %c0_9 = arith.constant 0 : index
    %c0_10 = arith.constant 0 : index
    %9 = vector.load %arg6[%c0_8, %c0_9, %c0_10] : memref<1x1x384xf32, #tpu.memory_space<vmem>>, vector<1x1x384xf32>
    %10 = vector.shape_cast %9 : vector<1x1x384xf32> to vector<1x384xf32>
    %11 = vector.broadcast %10 : vector<1x384xf32> to vector<9x384xf32>
    %12 = arith.addf %8, %11 : vector<9x384xf32>
    %13 = vector.extract_strided_slice %12 {offsets = [0, 0], sizes = [9, 128], strides = [1, 1]} : vector<9x384xf32> to vector<9x128xf32>
    %14 = vector.extract_strided_slice %12 {offsets = [0, 128], sizes = [9, 128], strides = [1, 1]} : vector<9x384xf32> to vector<9x128xf32>
    %15 = vector.extract_strided_slice %12 {offsets = [0, 256], sizes = [9, 128], strides = [1, 1]} : vector<9x384xf32> to vector<9x128xf32>
    %c0_11 = arith.constant 0 : index
    %c0_12 = arith.constant 0 : index
    %16 = vector.load %arg4[%c0_11, %c0_12] : memref<9x9xf32, #tpu.memory_space<vmem>>, vector<9x9xf32>
    %cst_13 = arith.constant dense<0.000000e+00> : vector<9x9xf32>
    %17 = tpu.matmul %13, %14, %cst_13 {dimension_numbers = #tpu.dot_dimension_numbers<[1], [1], [0], [0], [0, 0, 1, 0], [], []>} : vector<9x128xf32>, vector<9x128xf32>, vector<9x9xf32> -> vector<9x9xf32>
    %cst_14 = arith.constant 0.0883883461 : f32
    %18 = vector.broadcast %cst_14 : f32 to vector<9x9xf32>
    %19 = arith.mulf %17, %18 : vector<9x9xf32>
    %20 = arith.addf %19, %16 : vector<9x9xf32>
    %cst_15 = arith.constant dense<0xFF800000> : vector<9xf32>
    %21 = vector.multi_reduction <maximumf>, %20, %cst_15 [1] : vector<9x9xf32> to vector<9xf32>
    %22 = vector.shape_cast %21 : vector<9xf32> to vector<9x1xf32>
    %23 = vector.broadcast %22 : vector<9x1xf32> to vector<9x9xf32>
    %24 = arith.subf %20, %23 : vector<9x9xf32>
    %25 = math.exp %24 : vector<9x9xf32>
    %cst_16 = arith.constant dense<0.000000e+00> : vector<9xf32>
    %26 = vector.multi_reduction <add>, %25, %cst_16 [1] : vector<9x9xf32> to vector<9xf32>
    %27 = vector.shape_cast %26 : vector<9xf32> to vector<9x1xf32>
    %28 = tpu.reciprocal %27 {approx = true} : vector<9x1xf32> -> vector<9x1xf32>
    %29 = vector.broadcast %28 : vector<9x1xf32> to vector<9x9xf32>
    %30 = arith.mulf %25, %29 : vector<9x9xf32>
    %cst_17 = arith.constant dense<0.000000e+00> : vector<9x128xf32>
    %31 = tpu.matmul %30, %15, %cst_17 {dimension_numbers = #tpu.dot_dimension_numbers<[1], [0], [0], [1], [0, 0, 1, 1], [], []>} : vector<9x9xf32>, vector<9x128xf32>, vector<9x128xf32> -> vector<9x128xf32>
    %c0_18 = arith.constant 0 : index
    %c0_19 = arith.constant 0 : index
    %c0_20 = arith.constant 0 : index
    %32 = vector.load %arg7[%c0_18, %c0_19, %c0_20] : memref<1x128x128xf32, #tpu.memory_space<vmem>>, vector<1x128x128xf32>
    %33 = vector.shape_cast %32 : vector<1x128x128xf32> to vector<128x128xf32>
    %cst_21 = arith.constant dense<0.000000e+00> : vector<9x128xf32>
    %34 = tpu.matmul %31, %33, %cst_21 {dimension_numbers = #tpu.dot_dimension_numbers<[1], [0], [0], [1], [0, 0, 1, 1], [], []>} : vector<9x128xf32>, vector<128x128xf32>, vector<9x128xf32> -> vector<9x128xf32>
    %c0_22 = arith.constant 0 : index
    %c0_23 = arith.constant 0 : index
    %c0_24 = arith.constant 0 : index
    %35 = vector.load %arg8[%c0_22, %c0_23, %c0_24] : memref<1x1x128xf32, #tpu.memory_space<vmem>>, vector<1x1x128xf32>
    %36 = vector.shape_cast %35 : vector<1x1x128xf32> to vector<1x128xf32>
    %37 = vector.broadcast %36 : vector<1x128xf32> to vector<9x128xf32>
    %38 = arith.addf %34, %37 : vector<9x128xf32>
    %39 = arith.addf %3, %38 : vector<9x128xf32>
    %c0_25 = arith.constant 0 : index
    %c0_26 = arith.constant 0 : index
    %c0_27 = arith.constant 0 : index
    %40 = vector.load %arg9[%c0_25, %c0_26, %c0_27] : memref<1x1x128xf32, #tpu.memory_space<vmem>>, vector<1x1x128xf32>
    %41 = vector.shape_cast %40 : vector<1x1x128xf32> to vector<1x128xf32>
    %c0_28 = arith.constant 0 : index
    %c0_29 = arith.constant 0 : index
    %c0_30 = arith.constant 0 : index
    %42 = vector.load %arg10[%c0_28, %c0_29, %c0_30] : memref<1x1x128xf32, #tpu.memory_space<vmem>>, vector<1x1x128xf32>
    %43 = vector.shape_cast %42 : vector<1x1x128xf32> to vector<1x128xf32>
    %cst_31 = arith.constant dense<0.000000e+00> : vector<9xf32>
    %44 = vector.multi_reduction <add>, %39, %cst_31 [1] : vector<9x128xf32> to vector<9xf32>
    %45 = vector.shape_cast %44 : vector<9xf32> to vector<9x1xf32>
    %cst_32 = arith.constant 1.280000e+02 : f32
    %46 = vector.broadcast %cst_32 : f32 to vector<9x1xf32>
    %47 = arith.divf %45, %46 : vector<9x1xf32>
    %48 = vector.broadcast %47 : vector<9x1xf32> to vector<9x128xf32>
    %49 = arith.subf %39, %48 : vector<9x128xf32>
    %50 = arith.mulf %49, %49 : vector<9x128xf32>
    %cst_33 = arith.constant dense<0.000000e+00> : vector<9xf32>
    %51 = vector.multi_reduction <add>, %50, %cst_33 [1] : vector<9x128xf32> to vector<9xf32>
    %52 = vector.shape_cast %51 : vector<9xf32> to vector<9x1xf32>
    %cst_34 = arith.constant 1.280000e+02 : f32
    %53 = vector.broadcast %cst_34 : f32 to vector<9x1xf32>
    %54 = arith.divf %52, %53 : vector<9x1xf32>
    %55 = vector.broadcast %47 : vector<9x1xf32> to vector<9x128xf32>
    %56 = arith.subf %39, %55 : vector<9x128xf32>
    %cst_35 = arith.constant 9.99999974E-6 : f32
    %57 = vector.broadcast %cst_35 : f32 to vector<9x1xf32>
    %58 = arith.addf %54, %57 : vector<9x1xf32>
    %59 = math.rsqrt %58 : vector<9x1xf32>
    %60 = vector.broadcast %59 : vector<9x1xf32> to vector<9x128xf32>
    %61 = arith.mulf %56, %60 : vector<9x128xf32>
    %62 = vector.broadcast %41 : vector<1x128xf32> to vector<9x128xf32>
    %63 = arith.mulf %61, %62 : vector<9x128xf32>
    %64 = vector.broadcast %43 : vector<1x128xf32> to vector<9x128xf32>
    %65 = arith.addf %63, %64 : vector<9x128xf32>
    %c0_36 = arith.constant 0 : index
    %c0_37 = arith.constant 0 : index
    %c0_38 = arith.constant 0 : index
    %66 = vector.load %arg11[%c0_36, %c0_37, %c0_38] : memref<1x128x128xf32, #tpu.memory_space<vmem>>, vector<1x128x128xf32>
    %67 = vector.shape_cast %66 : vector<1x128x128xf32> to vector<128x128xf32>
    %cst_39 = arith.constant dense<0.000000e+00> : vector<9x128xf32>
    %68 = tpu.matmul %65, %67, %cst_39 {dimension_numbers = #tpu.dot_dimension_numbers<[1], [0], [0], [1], [0, 0, 1, 1], [], []>} : vector<9x128xf32>, vector<128x128xf32>, vector<9x128xf32> -> vector<9x128xf32>
    %c0_40 = arith.constant 0 : index
    %c0_41 = arith.constant 0 : index
    %c0_42 = arith.constant 0 : index
    %69 = vector.load %arg12[%c0_40, %c0_41, %c0_42] : memref<1x1x128xf32, #tpu.memory_space<vmem>>, vector<1x1x128xf32>
    %70 = vector.shape_cast %69 : vector<1x1x128xf32> to vector<1x128xf32>
    %71 = vector.broadcast %70 : vector<1x128xf32> to vector<9x128xf32>
    %72 = arith.addf %68, %71 : vector<9x128xf32>
    %c0_43 = arith.constant 0 : index
    %c0_44 = arith.constant 0 : index
    %c0_45 = arith.constant 0 : index
    %73 = vector.load %arg13[%c0_43, %c0_44, %c0_45] : memref<1x128x256xf32, #tpu.memory_space<vmem>>, vector<1x128x256xf32>
    %74 = vector.shape_cast %73 : vector<1x128x256xf32> to vector<128x256xf32>
    %cst_46 = arith.constant dense<0.000000e+00> : vector<9x256xf32>
    %75 = tpu.matmul %5, %74, %cst_46 {dimension_numbers = #tpu.dot_dimension_numbers<[1], [0], [0], [1], [0, 0, 1, 1], [], []>} : vector<9x128xf32>, vector<128x256xf32>, vector<9x256xf32> -> vector<9x256xf32>
    %c0_47 = arith.constant 0 : index
    %c0_48 = arith.constant 0 : index
    %c0_49 = arith.constant 0 : index
    %76 = vector.load %arg14[%c0_47, %c0_48, %c0_49] : memref<1x1x256xf32, #tpu.memory_space<vmem>>, vector<1x1x256xf32>
    %77 = vector.shape_cast %76 : vector<1x1x256xf32> to vector<1x256xf32>
    %78 = vector.broadcast %77 : vector<1x256xf32> to vector<9x256xf32>
    %79 = arith.addf %75, %78 : vector<9x256xf32>
    %80 = vector.extract_strided_slice %79 {offsets = [0, 0], sizes = [9, 128], strides = [1, 1]} : vector<9x256xf32> to vector<9x128xf32>
    %81 = vector.extract_strided_slice %79 {offsets = [0, 128], sizes = [9, 128], strides = [1, 1]} : vector<9x256xf32> to vector<9x128xf32>
    %cst_50 = arith.constant dense<0.000000e+00> : vector<9x9xf32>
    %82 = tpu.matmul %72, %80, %cst_50 {dimension_numbers = #tpu.dot_dimension_numbers<[1], [1], [0], [0], [0, 0, 1, 0], [], []>} : vector<9x128xf32>, vector<9x128xf32>, vector<9x9xf32> -> vector<9x9xf32>
    %cst_51 = arith.constant 0.0883883461 : f32
    %83 = vector.broadcast %cst_51 : f32 to vector<9x9xf32>
    %84 = arith.mulf %82, %83 : vector<9x9xf32>
    %cst_52 = arith.constant dense<0xFF800000> : vector<9xf32>
    %85 = vector.multi_reduction <maximumf>, %84, %cst_52 [1] : vector<9x9xf32> to vector<9xf32>
    %86 = vector.shape_cast %85 : vector<9xf32> to vector<9x1xf32>
    %87 = vector.broadcast %86 : vector<9x1xf32> to vector<9x9xf32>
    %88 = arith.subf %84, %87 : vector<9x9xf32>
    %89 = math.exp %88 : vector<9x9xf32>
    %cst_53 = arith.constant dense<0.000000e+00> : vector<9xf32>
    %90 = vector.multi_reduction <add>, %89, %cst_53 [1] : vector<9x9xf32> to vector<9xf32>
    %91 = vector.shape_cast %90 : vector<9xf32> to vector<9x1xf32>
    %92 = tpu.reciprocal %91 {approx = true} : vector<9x1xf32> -> vector<9x1xf32>
    %93 = vector.broadcast %92 : vector<9x1xf32> to vector<9x9xf32>
    %94 = arith.mulf %89, %93 : vector<9x9xf32>
    %cst_54 = arith.constant dense<0.000000e+00> : vector<9x128xf32>
    %95 = tpu.matmul %94, %81, %cst_54 {dimension_numbers = #tpu.dot_dimension_numbers<[1], [0], [0], [1], [0, 0, 1, 1], [], []>} : vector<9x9xf32>, vector<9x128xf32>, vector<9x128xf32> -> vector<9x128xf32>
    %c0_55 = arith.constant 0 : index
    %c0_56 = arith.constant 0 : index
    %c0_57 = arith.constant 0 : index
    %96 = vector.load %arg15[%c0_55, %c0_56, %c0_57] : memref<1x128x128xf32, #tpu.memory_space<vmem>>, vector<1x128x128xf32>
    %97 = vector.shape_cast %96 : vector<1x128x128xf32> to vector<128x128xf32>
    %cst_58 = arith.constant dense<0.000000e+00> : vector<9x128xf32>
    %98 = tpu.matmul %95, %97, %cst_58 {dimension_numbers = #tpu.dot_dimension_numbers<[1], [0], [0], [1], [0, 0, 1, 1], [], []>} : vector<9x128xf32>, vector<128x128xf32>, vector<9x128xf32> -> vector<9x128xf32>
    %c0_59 = arith.constant 0 : index
    %c0_60 = arith.constant 0 : index
    %c0_61 = arith.constant 0 : index
    %99 = vector.load %arg16[%c0_59, %c0_60, %c0_61] : memref<1x1x128xf32, #tpu.memory_space<vmem>>, vector<1x1x128xf32>
    %100 = vector.shape_cast %99 : vector<1x1x128xf32> to vector<1x128xf32>
    %101 = vector.broadcast %100 : vector<1x128xf32> to vector<9x128xf32>
    %102 = arith.addf %98, %101 : vector<9x128xf32>
    %103 = arith.addf %65, %102 : vector<9x128xf32>
    %c0_62 = arith.constant 0 : index
    %c0_63 = arith.constant 0 : index
    %c0_64 = arith.constant 0 : index
    %104 = vector.load %arg17[%c0_62, %c0_63, %c0_64] : memref<1x1x128xf32, #tpu.memory_space<vmem>>, vector<1x1x128xf32>
    %105 = vector.shape_cast %104 : vector<1x1x128xf32> to vector<1x128xf32>
    %c0_65 = arith.constant 0 : index
    %c0_66 = arith.constant 0 : index
    %c0_67 = arith.constant 0 : index
    %106 = vector.load %arg18[%c0_65, %c0_66, %c0_67] : memref<1x1x128xf32, #tpu.memory_space<vmem>>, vector<1x1x128xf32>
    %107 = vector.shape_cast %106 : vector<1x1x128xf32> to vector<1x128xf32>
    %cst_68 = arith.constant dense<0.000000e+00> : vector<9xf32>
    %108 = vector.multi_reduction <add>, %103, %cst_68 [1] : vector<9x128xf32> to vector<9xf32>
    %109 = vector.shape_cast %108 : vector<9xf32> to vector<9x1xf32>
    %cst_69 = arith.constant 1.280000e+02 : f32
    %110 = vector.broadcast %cst_69 : f32 to vector<9x1xf32>
    %111 = arith.divf %109, %110 : vector<9x1xf32>
    %112 = vector.broadcast %111 : vector<9x1xf32> to vector<9x128xf32>
    %113 = arith.subf %103, %112 : vector<9x128xf32>
    %114 = arith.mulf %113, %113 : vector<9x128xf32>
    %cst_70 = arith.constant dense<0.000000e+00> : vector<9xf32>
    %115 = vector.multi_reduction <add>, %114, %cst_70 [1] : vector<9x128xf32> to vector<9xf32>
    %116 = vector.shape_cast %115 : vector<9xf32> to vector<9x1xf32>
    %cst_71 = arith.constant 1.280000e+02 : f32
    %117 = vector.broadcast %cst_71 : f32 to vector<9x1xf32>
    %118 = arith.divf %116, %117 : vector<9x1xf32>
    %119 = vector.broadcast %111 : vector<9x1xf32> to vector<9x128xf32>
    %120 = arith.subf %103, %119 : vector<9x128xf32>
    %cst_72 = arith.constant 9.99999974E-6 : f32
    %121 = vector.broadcast %cst_72 : f32 to vector<9x1xf32>
    %122 = arith.addf %118, %121 : vector<9x1xf32>
    %123 = math.rsqrt %122 : vector<9x1xf32>
    %124 = vector.broadcast %123 : vector<9x1xf32> to vector<9x128xf32>
    %125 = arith.mulf %120, %124 : vector<9x128xf32>
    %126 = vector.broadcast %105 : vector<1x128xf32> to vector<9x128xf32>
    %127 = arith.mulf %125, %126 : vector<9x128xf32>
    %128 = vector.broadcast %107 : vector<1x128xf32> to vector<9x128xf32>
    %129 = arith.addf %127, %128 : vector<9x128xf32>
    %c0_73 = arith.constant 0 : index
    %c0_74 = arith.constant 0 : index
    %c0_75 = arith.constant 0 : index
    %130 = vector.load %arg19[%c0_73, %c0_74, %c0_75] : memref<1x128x512xf32, #tpu.memory_space<vmem>>, vector<1x128x512xf32>
    %131 = vector.shape_cast %130 : vector<1x128x512xf32> to vector<128x512xf32>
    %cst_76 = arith.constant dense<0.000000e+00> : vector<9x512xf32>
    %132 = tpu.matmul %129, %131, %cst_76 {dimension_numbers = #tpu.dot_dimension_numbers<[1], [0], [0], [1], [0, 0, 1, 1], [], []>} : vector<9x128xf32>, vector<128x512xf32>, vector<9x512xf32> -> vector<9x512xf32>
    %c0_77 = arith.constant 0 : index
    %c0_78 = arith.constant 0 : index
    %c0_79 = arith.constant 0 : index
    %133 = vector.load %arg20[%c0_77, %c0_78, %c0_79] : memref<1x1x512xf32, #tpu.memory_space<vmem>>, vector<1x1x512xf32>
    %134 = vector.shape_cast %133 : vector<1x1x512xf32> to vector<1x512xf32>
    %135 = vector.broadcast %134 : vector<1x512xf32> to vector<9x512xf32>
    %136 = arith.addf %132, %135 : vector<9x512xf32>
    %cst_80 = arith.constant 0.000000e+00 : f32
    %137 = vector.broadcast %cst_80 : f32 to vector<9x512xf32>
    %138 = arith.maximumf %136, %137 : vector<9x512xf32>
    %c0_81 = arith.constant 0 : index
    %c0_82 = arith.constant 0 : index
    %c0_83 = arith.constant 0 : index
    %139 = vector.load %arg21[%c0_81, %c0_82, %c0_83] : memref<1x512x128xf32, #tpu.memory_space<vmem>>, vector<1x512x128xf32>
    %140 = vector.shape_cast %139 : vector<1x512x128xf32> to vector<512x128xf32>
    %cst_84 = arith.constant dense<0.000000e+00> : vector<9x128xf32>
    %141 = tpu.matmul %138, %140, %cst_84 {dimension_numbers = #tpu.dot_dimension_numbers<[1], [0], [0], [1], [0, 0, 1, 1], [], []>} : vector<9x512xf32>, vector<512x128xf32>, vector<9x128xf32> -> vector<9x128xf32>
    %c0_85 = arith.constant 0 : index
    %c0_86 = arith.constant 0 : index
    %c0_87 = arith.constant 0 : index
    %142 = vector.load %arg22[%c0_85, %c0_86, %c0_87] : memref<1x1x128xf32, #tpu.memory_space<vmem>>, vector<1x1x128xf32>
    %143 = vector.shape_cast %142 : vector<1x1x128xf32> to vector<1x128xf32>
    %144 = vector.broadcast %143 : vector<1x128xf32> to vector<9x128xf32>
    %145 = arith.addf %141, %144 : vector<9x128xf32>
    %146 = arith.addf %129, %145 : vector<9x128xf32>
    %c0_88 = arith.constant 0 : index
    %c0_89 = arith.constant 0 : index
    %c0_90 = arith.constant 0 : index
    %147 = vector.load %arg23[%c0_88, %c0_89, %c0_90] : memref<1x1x128xf32, #tpu.memory_space<vmem>>, vector<1x1x128xf32>
    %148 = vector.shape_cast %147 : vector<1x1x128xf32> to vector<1x128xf32>
    %c0_91 = arith.constant 0 : index
    %c0_92 = arith.constant 0 : index
    %c0_93 = arith.constant 0 : index
    %149 = vector.load %arg24[%c0_91, %c0_92, %c0_93] : memref<1x1x128xf32, #tpu.memory_space<vmem>>, vector<1x1x128xf32>
    %150 = vector.shape_cast %149 : vector<1x1x128xf32> to vector<1x128xf32>
    %cst_94 = arith.constant dense<0.000000e+00> : vector<9xf32>
    %151 = vector.multi_reduction <add>, %146, %cst_94 [1] : vector<9x128xf32> to vector<9xf32>
    %152 = vector.shape_cast %151 : vector<9xf32> to vector<9x1xf32>
    %cst_95 = arith.constant 1.280000e+02 : f32
    %153 = vector.broadcast %cst_95 : f32 to vector<9x1xf32>
    %154 = arith.divf %152, %153 : vector<9x1xf32>
    %155 = vector.broadcast %154 : vector<9x1xf32> to vector<9x128xf32>
    %156 = arith.subf %146, %155 : vector<9x128xf32>
    %157 = arith.mulf %156, %156 : vector<9x128xf32>
    %cst_96 = arith.constant dense<0.000000e+00> : vector<9xf32>
    %158 = vector.multi_reduction <add>, %157, %cst_96 [1] : vector<9x128xf32> to vector<9xf32>
    %159 = vector.shape_cast %158 : vector<9xf32> to vector<9x1xf32>
    %cst_97 = arith.constant 1.280000e+02 : f32
    %160 = vector.broadcast %cst_97 : f32 to vector<9x1xf32>
    %161 = arith.divf %159, %160 : vector<9x1xf32>
    %162 = vector.broadcast %154 : vector<9x1xf32> to vector<9x128xf32>
    %163 = arith.subf %146, %162 : vector<9x128xf32>
    %cst_98 = arith.constant 9.99999974E-6 : f32
    %164 = vector.broadcast %cst_98 : f32 to vector<9x1xf32>
    %165 = arith.addf %161, %164 : vector<9x1xf32>
    %166 = math.rsqrt %165 : vector<9x1xf32>
    %167 = vector.broadcast %166 : vector<9x1xf32> to vector<9x128xf32>
    %168 = arith.mulf %163, %167 : vector<9x128xf32>
    %169 = vector.broadcast %148 : vector<1x128xf32> to vector<9x128xf32>
    %170 = arith.mulf %168, %169 : vector<9x128xf32>
    %171 = vector.broadcast %150 : vector<1x128xf32> to vector<9x128xf32>
    %172 = arith.addf %170, %171 : vector<9x128xf32>
    %c0_99 = arith.constant 0 : index
    %c0_100 = arith.constant 0 : index
    %173 = vector.load %arg26[%c0_99, %c0_100] : memref<9x128xf32, #tpu.memory_space<vmem>>, vector<9x128xf32>
    tpu.vector_store %arg26[%c0_99, %c0_100], %172 {strides = array<i32>} : memref<9x128xf32, #tpu.memory_space<vmem>>, vector<9x128xf32>,
    %c1_i32 = arith.constant 1 : i32
    %174 = arith.cmpi eq, %arg1, %c1_i32 : i32
    %175 = arith.extui %174 : i1 to i32
    %c0_i32_101 = arith.constant 0 : i32
    %176 = arith.cmpi ne, %175, %c0_i32_101 : i32
    scf.if %176 {
      %c0_102 = arith.constant 0 : index
      %c0_103 = arith.constant 0 : index
      %c0_104 = arith.constant 0 : index
      %177 = vector.load %arg25[%c0_102, %c0_103, %c0_104] : memref<1x9x128xf32, #tpu.memory_space<vmem>>, vector<1x9x128xf32>
      %178 = vector.shape_cast %177 : vector<1x9x128xf32> to vector<9x128xf32>
      %179 = vector.shape_cast %172 : vector<9x128xf32> to vector<1x9x128xf32>
      tpu.vector_store %arg25[%c0_102, %c0_103, %c0_104], %179 {strides = array<i32>} : memref<1x9x128xf32, #tpu.memory_space<vmem>>, vector<1x9x128xf32>,
    } else {
    }
    return
  }
  func.func @transform_0(%arg0: i32, %arg1: i32) -> (i32, i32, i32) {
    %c0_i32 = arith.constant 0 : i32
    %c0_i32_0 = arith.constant 0 : i32
    %c0_i32_1 = arith.constant 0 : i32
    return %arg0, %c0_i32, %c0_i32_0 : i32, i32, i32
  }
  func.func @transform_1(%arg0: i32, %arg1: i32) -> (i32, i32, i32) {
    %c0_i32 = arith.constant 0 : i32
    %c0_i32_0 = arith.constant 0 : i32
    %c0_i32_1 = arith.constant 0 : i32
    return %arg0, %c0_i32, %c0_i32_0 : i32, i32, i32
  }
  func.func @transform_2(%arg0: i32, %arg1: i32) -> (i32, i32) {
    %c0_i32 = arith.constant 0 : i32
    %c0_i32_0 = arith.constant 0 : i32
    %c0_i32_1 = arith.constant 0 : i32
    return %c0_i32, %c0_i32_0 : i32, i32
  }
  func.func @transform_3(%arg0: i32, %arg1: i32) -> (i32, i32, i32) {
    %c0_i32 = arith.constant 0 : i32
    %c0_i32_0 = arith.constant 0 : i32
    %c0_i32_1 = arith.constant 0 : i32
    return %arg1, %c0_i32, %c0_i32_0 : i32, i32, i32
  }
  func.func @transform_4(%arg0: i32, %arg1: i32) -> (i32, i32, i32) {
    %c0_i32 = arith.constant 0 : i32
    %c0_i32_0 = arith.constant 0 : i32
    %c0_i32_1 = arith.constant 0 : i32
    return %arg1, %c0_i32, %c0_i32_0 : i32, i32, i32
  }
  func.func @transform_5(%arg0: i32, %arg1: i32) -> (i32, i32, i32) {
    %c0_i32 = arith.constant 0 : i32
    %c0_i32_0 = arith.constant 0 : i32
    %c0_i32_1 = arith.constant 0 : i32
    return %arg1, %c0_i32, %c0_i32_0 : i32, i32, i32
  }
  func.func @transform_6(%arg0: i32, %arg1: i32) -> (i32, i32, i32) {
    %c0_i32 = arith.constant 0 : i32
    %c0_i32_0 = arith.constant 0 : i32
    %c0_i32_1 = arith.constant 0 : i32
    return %arg1, %c0_i32, %c0_i32_0 : i32, i32, i32
  }
  func.func @transform_7(%arg0: i32, %arg1: i32) -> (i32, i32, i32) {
    %c0_i32 = arith.constant 0 : i32
    %c0_i32_0 = arith.constant 0 : i32
    %c0_i32_1 = arith.constant 0 : i32
    return %arg1, %c0_i32, %c0_i32_0 : i32, i32, i32
  }
  func.func @transform_8(%arg0: i32, %arg1: i32) -> (i32, i32, i32) {
    %c0_i32 = arith.constant 0 : i32
    %c0_i32_0 = arith.constant 0 : i32
    %c0_i32_1 = arith.constant 0 : i32
    return %arg1, %c0_i32, %c0_i32_0 : i32, i32, i32
  }
  func.func @transform_9(%arg0: i32, %arg1: i32) -> (i32, i32, i32) {
    %c0_i32 = arith.constant 0 : i32
    %c0_i32_0 = arith.constant 0 : i32
    %c0_i32_1 = arith.constant 0 : i32
    return %arg1, %c0_i32, %c0_i32_0 : i32, i32, i32
  }
  func.func @transform_10(%arg0: i32, %arg1: i32) -> (i32, i32, i32) {
    %c0_i32 = arith.constant 0 : i32
    %c0_i32_0 = arith.constant 0 : i32
    %c0_i32_1 = arith.constant 0 : i32
    return %arg1, %c0_i32, %c0_i32_0 : i32, i32, i32
  }
  func.func @transform_11(%arg0: i32, %arg1: i32) -> (i32, i32, i32) {
    %c0_i32 = arith.constant 0 : i32
    %c0_i32_0 = arith.constant 0 : i32
    %c0_i32_1 = arith.constant 0 : i32
    return %arg1, %c0_i32, %c0_i32_0 : i32, i32, i32
  }
  func.func @transform_12(%arg0: i32, %arg1: i32) -> (i32, i32, i32) {
    %c0_i32 = arith.constant 0 : i32
    %c0_i32_0 = arith.constant 0 : i32
    %c0_i32_1 = arith.constant 0 : i32
    return %arg1, %c0_i32, %c0_i32_0 : i32, i32, i32
  }
  func.func @transform_13(%arg0: i32, %arg1: i32) -> (i32, i32, i32) {
    %c0_i32 = arith.constant 0 : i32
    %c0_i32_0 = arith.constant 0 : i32
    %c0_i32_1 = arith.constant 0 : i32
    return %arg1, %c0_i32, %c0_i32_0 : i32, i32, i32
  }
  func.func @transform_14(%arg0: i32, %arg1: i32) -> (i32, i32, i32) {
    %c0_i32 = arith.constant 0 : i32
    %c0_i32_0 = arith.constant 0 : i32
    %c0_i32_1 = arith.constant 0 : i32
    return %arg1, %c0_i32, %c0_i32_0 : i32, i32, i32
  }
  func.func @transform_15(%arg0: i32, %arg1: i32) -> (i32, i32, i32) {
    %c0_i32 = arith.constant 0 : i32
    %c0_i32_0 = arith.constant 0 : i32
    %c0_i32_1 = arith.constant 0 : i32
    return %arg1, %c0_i32, %c0_i32_0 : i32, i32, i32
  }
  func.func @transform_16(%arg0: i32, %arg1: i32) -> (i32, i32, i32) {
    %c0_i32 = arith.constant 0 : i32
    %c0_i32_0 = arith.constant 0 : i32
    %c0_i32_1 = arith.constant 0 : i32
    return %arg1, %c0_i32, %c0_i32_0 : i32, i32, i32
  }
  func.func @transform_17(%arg0: i32, %arg1: i32) -> (i32, i32, i32) {
    %c0_i32 = arith.constant 0 : i32
    %c0_i32_0 = arith.constant 0 : i32
    %c0_i32_1 = arith.constant 0 : i32
    return %arg1, %c0_i32, %c0_i32_0 : i32, i32, i32
  }
  func.func @transform_18(%arg0: i32, %arg1: i32) -> (i32, i32, i32) {
    %c0_i32 = arith.constant 0 : i32
    %c0_i32_0 = arith.constant 0 : i32
    %c0_i32_1 = arith.constant 0 : i32
    return %arg1, %c0_i32, %c0_i32_0 : i32, i32, i32
  }
  func.func @transform_19(%arg0: i32, %arg1: i32) -> (i32, i32, i32) {
    %c0_i32 = arith.constant 0 : i32
    %c0_i32_0 = arith.constant 0 : i32
    %c0_i32_1 = arith.constant 0 : i32
    return %arg1, %c0_i32, %c0_i32_0 : i32, i32, i32
  }
  func.func @transform_20(%arg0: i32, %arg1: i32) -> (i32, i32, i32) {
    %c0_i32 = arith.constant 0 : i32
    %c0_i32_0 = arith.constant 0 : i32
    %c0_i32_1 = arith.constant 0 : i32
    return %arg1, %c0_i32, %c0_i32_0 : i32, i32, i32
  }
  func.func @transform_21(%arg0: i32, %arg1: i32) -> (i32, i32, i32) {
    %c0_i32 = arith.constant 0 : i32
    %c0_i32_0 = arith.constant 0 : i32
    %c0_i32_1 = arith.constant 0 : i32
    return %arg1, %c0_i32, %c0_i32_0 : i32, i32, i32
  }
  func.func @transform_22(%arg0: i32, %arg1: i32) -> (i32, i32, i32) {
    %c0_i32 = arith.constant 0 : i32
    %c0_i32_0 = arith.constant 0 : i32
    %c0_i32_1 = arith.constant 0 : i32
    return %arg1, %c0_i32, %c0_i32_0 : i32, i32, i32
  }
  func.func @transform_23(%arg0: i32, %arg1: i32) -> (i32, i32, i32) {
    %c0_i32 = arith.constant 0 : i32
    %c0_i32_0 = arith.constant 0 : i32
    %c0_i32_1 = arith.constant 0 : i32
    return %arg0, %c0_i32, %c0_i32_0 : i32, i32, i32
  }
}

</mosaic_0001>

<llo_original>
// kernel: transformer_pointer_loss.4
$region0: #{transformer_pointer_loss.4}
  #allocation0 [shape = 'u32[]', space=smem, size = 0x4, offset = 0x4, fixed_abs, tag = 'smem constant byte address 0x4 - core index']
  #allocation1 [shape = 'u32[144,128]{1,0:T(1,128)}', space=vmem, size = 0x12000, scoped, tag = 'internal scratch']
  %s0 = inlined_call_operand.vmem [shape: f32[2,8,8], index: 0, kind: input, shape index: {}]
  %s1 = inlined_call_operand.vmem [shape: f32[8,64], index: 1, kind: input, shape index: {}]
  %s2 = inlined_call_operand.vmem [shape: f32[1,64], index: 2, kind: input, shape index: {}]
  %s3 = inlined_call_operand.vmem [shape: f32[64,128], index: 3, kind: input, shape index: {}]
  %s4 = inlined_call_operand.vmem [shape: f32[1,128], index: 4, kind: input, shape index: {}]
  %s5 = inlined_call_operand.vmem [shape: f32[2,8,128], index: 5, kind: output, shape index: {}]
  %s6 = sld [smem:[#allocation0]]
  $region53: #{transformer_pointer_loss.4} parent=0
    _
  %s8 = ssub.s32 1, %s6
  %s9 = scalar_select 0, %s8, %s6
  loop: start=0, step=1, limit=4
  $region2: #{transformer_pointer_loss.4} parent=0 // loop_pre_header
    _
  $region3: #{transformer_pointer_loss.4} parent=0 // loop_header
    %s11 = sphi 0, %s15
    %p12 = scmp.ge.s32.totalorder %s11, 4
    %s21 = sphi 0, %s23
    %s24 = sphi 0, %s21
    %s25 = sphi 0, %s24
    %s41 = sphi 0, %s25
    %s45 = sphi 0, %s45
    %s47 = sphi 0, %s45
    %s48 = sphi 0, %s47
    %s62 = sphi 0, %s48
    %s66 = sphi 0, %s66
    %s68 = sphi 0, %s66
    %s69 = sphi 0, %s68
    %s83 = sphi 0, %s69
    %s87 = sphi 0, %s87
    %s89 = sphi 0, %s87
    %s90 = sphi 0, %s89
    %s104 = sphi 0, %s90
    %s108 = sphi 0, %s108
    %s110 = sphi 0, %s108
    %s111 = sphi 0, %s110
    %s125 = sphi 0, %s111
    %s131 = sphi 0, %s133
    %s134 = sphi 0, %s131
    %s135 = sphi 0, %s134
    %s151 = sphi 0, %s135
  $region4: #{transformer_pointer_loss.4} parent=0 // loop_header_branch
    %14 = sbr.rel (%p12) target = $region8
  $region5: #{transformer_pointer_loss.4} parent=0 // loop_body
    %s16 = ssub.s32 %s11, 1
    %s17 = ssub.s32 %s11, 2
    %s18 = sadd.s32 %s11, 1
    %s19 = ssub.s32 %s11, %s18
    %p20 = scmp.eq.s32.totalorder %s19, 0
    %s22 = sadd.s32 %s21, 1
    %s23 = scalar_select %p20, %s21, %s22
    %p26 = pneg %p20
    %p27 = scmp.eq.s32.totalorder %s11, 1
    %p28 = por %p26, %p27
    %p29 = scmp.ne.s32.totalorder %s21, %s24
    %p30 = scmp.eq.s32.totalorder %s11, 0
    %p31 = por %p29, %p30
    %p32 = scmp.ne.s32.totalorder %s21, %s24
    %p33 = scmp.eq.s32.totalorder %s16, 1
    %p34 = por %p32, %p33
    %p35 = scmp.ne.s32.totalorder %s24, %s25
    %p36 = scmp.eq.s32.totalorder %s16, 0
    %p37 = por %p35, %p36
    %p38 = scmp.ne.s32.totalorder %s24, %s25
    %p39 = scmp.eq.s32.totalorder %s17, 1
    %p40 = por %p38, %p39
    %p42 = scmp.ne.s32.totalorder %s25, %s41
    %p43 = scmp.eq.s32.totalorder %s17, 0
    %p44 = por %p42, %p43
    %s46 = sadd.s32 %s45, 1
    %p49 = scmp.eq.s32.totalorder %s11, 1
    %p50 = scmp.ne.s32.totalorder %s45, %s47
    %p51 = scmp.eq.s32.totalorder %s11, 0
    %p52 = por %p50, %p51
    %p53 = scmp.ne.s32.totalorder %s45, %s47
    %p54 = scmp.eq.s32.totalorder %s16, 1
    %p55 = por %p53, %p54
    %p56 = scmp.ne.s32.totalorder %s47, %s48
    %p57 = scmp.eq.s32.totalorder %s16, 0
    %p58 = por %p56, %p57
    %p59 = scmp.ne.s32.totalorder %s47, %s48
    %p60 = scmp.eq.s32.totalorder %s17, 1
    %p61 = por %p59, %p60
    %p63 = scmp.ne.s32.totalorder %s48, %s62
    %p64 = scmp.eq.s32.totalorder %s17, 0
    %p65 = por %p63, %p64
    %s67 = sadd.s32 %s66, 1
    %p70 = scmp.eq.s32.totalorder %s11, 1
    %p71 = scmp.ne.s32.totalorder %s66, %s68
    %p72 = scmp.eq.s32.totalorder %s11, 0
    %p73 = por %p71, %p72
    %p74 = scmp.ne.s32.totalorder %s66, %s68
    %p75 = scmp.eq.s32.totalorder %s16, 1
    %p76 = por %p74, %p75
    %p77 = scmp.ne.s32.totalorder %s68, %s69
    %p78 = scmp.eq.s32.totalorder %s16, 0
    %p79 = por %p77, %p78
    %p80 = scmp.ne.s32.totalorder %s68, %s69
    %p81 = scmp.eq.s32.totalorder %s17, 1
    %p82 = por %p80, %p81
    %p84 = scmp.ne.s32.totalorder %s69, %s83
    %p85 = scmp.eq.s32.totalorder %s17, 0
    %p86 = por %p84, %p85
    %s88 = sadd.s32 %s87, 1
    %p91 = scmp.eq.s32.totalorder %s11, 1
    %p92 = scmp.ne.s32.totalorder %s87, %s89
    %p93 = scmp.eq.s32.totalorder %s11, 0
    %p94 = por %p92, %p93
    %p95 = scmp.ne.s32.totalorder %s87, %s89
    %p96 = scmp.eq.s32.totalorder %s16, 1
    %p97 = por %p95, %p96
    %p98 = scmp.ne.s32.totalorder %s89, %s90
    %p99 = scmp.eq.s32.totalorder %s16, 0
    %p100 = por %p98, %p99
    %p101 = scmp.ne.s32.totalorder %s89, %s90
    %p102 = scmp.eq.s32.totalorder %s17, 1
    %p103 = por %p101, %p102
    %p105 = scmp.ne.s32.totalorder %s90, %s104
    %p106 = scmp.eq.s32.totalorder %s17, 0
    %p107 = por %p105, %p106
    %s109 = sadd.s32 %s108, 1
    %p112 = scmp.eq.s32.totalorder %s11, 1
    %p113 = scmp.ne.s32.totalorder %s108, %s110
    %p114 = scmp.eq.s32.totalorder %s11, 0
    %p115 = por %p113, %p114
    %p116 = scmp.ne.s32.totalorder %s108, %s110
    %p117 = scmp.eq.s32.totalorder %s16, 1
    %p118 = por %p116, %p117
    %p119 = scmp.ne.s32.totalorder %s110, %s111
    %p120 = scmp.eq.s32.totalorder %s16, 0
    %p121 = por %p119, %p120
    %p122 = scmp.ne.s32.totalorder %s110, %s111
    %p123 = scmp.eq.s32.totalorder %s17, 1
    %p124 = por %p122, %p123
    %p126 = scmp.ne.s32.totalorder %s111, %s125
    %p127 = scmp.eq.s32.totalorder %s17, 0
    %p128 = por %p126, %p127
    %s129 = ssub.s32 %s11, %s18
    %p130 = scmp.eq.s32.totalorder %s129, 0
    %s132 = sadd.s32 %s131, 1
    %s133 = scalar_select %p130, %s131, %s132
    %p136 = pneg %p130
    %p137 = scmp.eq.s32.totalorder %s11, 1
    %p138 = por %p136, %p137
    %p139 = scmp.ne.s32.totalorder %s131, %s134
    %p140 = scmp.eq.s32.totalorder %s11, 0
    %p141 = por %p139, %p140
    %p142 = scmp.ne.s32.totalorder %s131, %s134
    %p143 = scmp.eq.s32.totalorder %s16, 1
    %p144 = por %p142, %p143
    %p145 = scmp.ne.s32.totalorder %s134, %s135
    %p146 = scmp.eq.s32.totalorder %s16, 0
    %p147 = por %p145, %p146
    %p148 = scmp.ne.s32.totalorder %s134, %s135
    %p149 = scmp.eq.s32.totalorder %s17, 1
    %p150 = por %p148, %p149
    %p152 = scmp.ne.s32.totalorder %s135, %s151
    %p153 = scmp.eq.s32.totalorder %s17, 0
    %p154 = por %p152, %p153
    %p155 = scmp.le.s32.totalorder 1, %s11
    %p156 = scmp.lt.s32.totalorder %s11, 3
    %p157 = pnand %p155, %p156
    %p158 = pneg %p157
    // Predicated region
    $region9: #{transformer_pointer_loss.4} parent=5 // pred_check
      _
    $region10: #{transformer_pointer_loss.4} parent=5 // pred_check_branch
      %160 = sbr.rel (%p157) target = $region12
    $region11: #{transformer_pointer_loss.4} parent=5 // pred_region
      %s161 = ssub.s32 %s11, 1
      // Predicated region
      $region13: #{transformer_pointer_loss.4} parent=11 // pred_check
        %p162 = pneg %p58
      $region14: #{transformer_pointer_loss.4} parent=11 // pred_check_branch
        %164 = sbr.rel (%p162) target = $region16
      $region15: #{transformer_pointer_loss.4} parent=11 // pred_region
        _
      $region16: #{transformer_pointer_loss.4} parent=11 // pred_fallthru
        _
      // Predicated region
      $region17: #{transformer_pointer_loss.4} parent=11 // pred_check
        %p165 = pneg %p79
      $region18: #{transformer_pointer_loss.4} parent=11 // pred_check_branch
        %167 = sbr.rel (%p165) target = $region20
      $region19: #{transformer_pointer_loss.4} parent=11 // pred_region
        _
      $region20: #{transformer_pointer_loss.4} parent=11 // pred_fallthru
        _
      // Predicated region
      $region21: #{transformer_pointer_loss.4} parent=11 // pred_check
        %p168 = pneg %p100
      $region22: #{transformer_pointer_loss.4} parent=11 // pred_check_branch
        %170 = sbr.rel (%p168) target = $region24
      $region23: #{transformer_pointer_loss.4} parent=11 // pred_region
        _
      $region24: #{transformer_pointer_loss.4} parent=11 // pred_fallthru
        _
      // Predicated region
      $region25: #{transformer_pointer_loss.4} parent=11 // pred_check
        %p171 = pneg %p121
      $region26: #{transformer_pointer_loss.4} parent=11 // pred_check_branch
        %173 = sbr.rel (%p171) target = $region28
      $region27: #{transformer_pointer_loss.4} parent=11 // pred_region
        _
      $region28: #{transformer_pointer_loss.4} parent=11 // pred_fallthru
        _
    $region12: #{transformer_pointer_loss.4} parent=5 // pred_fallthru
      _
    %p174 = scmp.lt.s32.totalorder %s11, 2
    // Predicated region
    $region29: #{transformer_pointer_loss.4} parent=5 // pred_check
      %p175 = pneg %p174
    $region30: #{transformer_pointer_loss.4} parent=5 // pred_check_branch
      %177 = sbr.rel (%p175) target = $region32
    $region31: #{transformer_pointer_loss.4} parent=5 // pred_region
      // Predicated region
      $region33: #{transformer_pointer_loss.4} parent=31 // pred_check
        %p178 = pneg %p31
      $region34: #{transformer_pointer_loss.4} parent=31 // pred_check_branch
        %180 = sbr.rel (%p178) target = $region36
      $region35: #{transformer_pointer_loss.4} parent=31 // pred_region
        %p181 = scmp.lt.s32.totalorder %s11, 1
        %s182 = scalar_select %p181, %s11, 1
        %s183 = smul.addr %s182, 8
        %s184 = scalar_lea.vmem %s0, %s183
      $region36: #{transformer_pointer_loss.4} parent=31 // pred_fallthru
        _
    $region32: #{transformer_pointer_loss.4} parent=5 // pred_fallthru
      _
    %p185 = scmp.le.s32.totalorder 1, %s11
    %p186 = scmp.lt.s32.totalorder %s11, 3
    %p187 = pnand %p185, %p186
    %p188 = pneg %p187
    // Predicated region
    $region37: #{transformer_pointer_loss.4} parent=5 // pred_check
      _
    $region38: #{transformer_pointer_loss.4} parent=5 // pred_check_branch
      %190 = sbr.rel (%p187) target = $region40
    $region39: #{transformer_pointer_loss.4} parent=5 // pred_region
      %s191 = ssub.s32 %s11, 1
      %p192 = scmp.lt.s32.totalorder %s16, 1
      %s193 = scalar_select %p192, %s16, 1
      %s194 = smul.addr %s193, 8
      %s195 = scalar_lea.vmem %s0, %s194
      %p196 = pneg %p37
      %p197 = pneg %p34
      %p198 = pneg %p58
      %p199 = pneg %p55
      %p200 = pneg %p79
      %p201 = pneg %p76
      %p202 = pneg %p100
      %p203 = pneg %p97
      %p204 = pneg %p121
      %p205 = pneg %p118
      %p206 = pneg %p147
      %p207 = pneg %p144
      %p208 = scmp.lt.s32.totalorder %s16, 1
      %s209 = scalar_select %p208, %s16, 1
      %s210 = smul.addr %s209, 8
      %s211 = scalar_lea.vmem %s5, %s210
      %p212 = scmp.lt.s32.totalorder %s16, 1
      %s213 = scalar_select %p212, %s16, 1
      %s214 = smul.addr %s213, 8
      %s215 = scalar_lea.vmem %s0, %s214
      %p216 = scmp.lt.s32.totalorder %s16, 1
      %s217 = scalar_select %p216, %s16, 1
      %s218 = smul.addr %s217, 8
      %s219 = scalar_lea.vmem %s5, %s218
      %v220 = vld [vmem:[%s215] sm:$0xff]
      %v221 = vld [vmem:[%s1] sm:$0xff]
      %v222 = vld [vmem:[%s2] sm:$0x1]
      %v224 = vlaneseq
      %v225 = vshrl.u32 %v224, 7
      %v226 = vsub.s32 0, %v225
      %v227 = vrot.slane %v222, %v226
      %vm229 = vcmask 64512
      %v231 = vsel %vm229, %v220, 0
      %233 = vmatprep.subr.mxu0 0.0
      %234 = vmatpush1.msra.mxu0 %v221
      %235 = vmatprep.subr.mxu0 0.0
      %236 = vmatpush1.msra.mxu0 0.0
      %237 = vmatprep.subr.mxu0 0.0
      %238 = vmatpush1.msra.mxu0 0.0
      %239 = vmatprep.subr.mxu0 0.0
      %240 = vmatpush1.msra.mxu0 0.0
      %241 = vmatprep.subr.mxu0 0.0
      %242 = vmatpush1.msra.mxu0 0.0
      %243 = vmatprep.subr.mxu0 0.0
      %244 = vmatpush1.msra.mxu0 0.0
      %245 = vmatprep.subr.mxu0 0.0
      %246 = vmatpush1.msra.mxu0 0.0
      %247 = vmatprep.subr.mxu0 0.0
      %248 = vmatpush1.msra.mxu0 0.0
      %249 = vmatprep.subr.mxu0 0.0
      %250 = vmatpush1.msra.mxu0 0.0
      %251 = vmatprep.subr.mxu0 0.0
      %252 = vmatpush1.msra.mxu0 0.0
      %253 = vmatprep.subr.mxu0 0.0
      %254 = vmatpush1.msra.mxu0 0.0
      %255 = vmatprep.subr.mxu0 0.0
      %256 = vmatpush1.msra.mxu0 0.0
      %257 = vmatprep.subr.mxu0 0.0
      %258 = vmatpush1.msra.mxu0 0.0
      %259 = vmatprep.subr.mxu0 0.0
      %260 = vmatpush1.msra.mxu0 0.0
      %261 = vmatprep.subr.mxu0 0.0
      %262 = vmatpush1.msra.mxu0 0.0
      %263 = vmatprep.subr.mxu0 0.0
      %264 = vmatpush1.msra.mxu0 0.0
      %265 = vmatprep.subr.mxu0 0.0
      %266 = vmatpush1.msra.mxu0 0.0
      %267 = vmatprep.subr.mxu0 0.0
      %268 = vmatpush1.msra.mxu0 0.0
      %269 = vmatprep.subr.mxu0 0.0
      %270 = vmatpush1.msra.mxu0 0.0
      %271 = vmatprep.subr.mxu0 0.0
      %272 = vmatpush1.msra.mxu0 0.0
      %273 = vmatprep.subr.mxu0 0.0
      %274 = vmatpush1.msra.mxu0 0.0
      %275 = vmatprep.subr.mxu0 0.0
      %276 = vmatpush1.msra.mxu0 0.0
      %277 = vmatprep.subr.mxu0 0.0
      %278 = vmatpush1.msra.mxu0 0.0
      %279 = vmatprep.subr.mxu0 0.0
      %280 = vmatpush1.msra.mxu0 0.0
      %281 = vmatprep.subr.mxu0 0.0
      %282 = vmatpush1.msra.mxu0 0.0
      %283 = vmatprep.subr.mxu0 0.0
      %284 = vmatpush1.msra.mxu0 0.0
      %285 = vmatprep.subr.mxu0 0.0
      %286 = vmatpush1.msra.mxu0 0.0
      %287 = vmatprep.subr.mxu0 0.0
      %288 = vmatpush1.msra.mxu0 0.0
      %289 = vmatprep.subr.mxu0 0.0
      %290 = vmatpush1.msra.mxu0 0.0
      %291 = vmatprep.subr.mxu0 0.0
      %292 = vmatpush1.msra.mxu0 0.0
      %293 = vmatprep.subr.mxu0 0.0
      %294 = vmatpush1.msra.mxu0 0.0
      %295 = vmatprep.subr.mxu0 0.0
      %296 = vmatpush1.msra.mxu0 0.0
      %297 = vmatprep.mubr.f32.mxu0 0.0
      %298 = vmatmul.mubr.f32.gmra.mrb[0].mxu0 %v231
      %v299 = vpop.f32.mrb[0].mxu0
      %v300 = vadd.f32 %v227, %v299
      %v301 = vpop.f32.mrb[0].mxu0
      %302 = vdwg.mxu0
      %v303 = vld [vmem:[%s3] sm:$0xff]
      %v304 = vld [vmem:[%s3 + $0x8] sm:$0xff]
      %v305 = vld [vmem:[%s3 + $0x10] sm:$0xff]
      %v306 = vld [vmem:[%s3 + $0x18] sm:$0xff]
      %v307 = vld [vmem:[%s3 + $0x20] sm:$0xff]
      %v308 = vld [vmem:[%s3 + $0x28] sm:$0xff]
      %v309 = vld [vmem:[%s3 + $0x30] sm:$0xff]
      %v310 = vld [vmem:[%s3 + $0x38] sm:$0xff]
      %v311 = vld [vmem:[%s4] sm:$0x1]
      %v313 = vlaneseq
      %v314 = vshrl.u32 %v313, 7
      %v315 = vsub.s32 0, %v314
      %v316 = vrot.slane %v311, %v315
      %vm318 = vcmask 523264
      %v320 = vsel %vm318, %v300, 0
      %322 = vmatprep.subr.mxu0 0.0
      %323 = vmatpush1.msra.mxu0 %v303
      %324 = vmatprep.subr.mxu0 0.0
      %325 = vmatpush1.msra.mxu0 %v304
      %326 = vmatprep.subr.mxu0 0.0
      %327 = vmatpush1.msra.mxu0 %v305
      %328 = vmatprep.subr.mxu0 0.0
      %329 = vmatpush1.msra.mxu0 %v306
      %330 = vmatprep.subr.mxu0 0.0
      %331 = vmatpush1.msra.mxu0 %v307
      %332 = vmatprep.subr.mxu0 0.0
      %333 = vmatpush1.msra.mxu0 %v308
      %334 = vmatprep.subr.mxu0 0.0
      %335 = vmatpush1.msra.mxu0 %v309
      %336 = vmatprep.subr.mxu0 0.0
      %337 = vmatpush1.msra.mxu0 %v310
      %338 = vmatprep.subr.mxu0 0.0
      %339 = vmatpush1.msra.mxu0 0.0
      %340 = vmatprep.subr.mxu0 0.0
      %341 = vmatpush1.msra.mxu0 0.0
      %342 = vmatprep.subr.mxu0 0.0
      %343 = vmatpush1.msra.mxu0 0.0
      %344 = vmatprep.subr.mxu0 0.0
      %345 = vmatpush1.msra.mxu0 0.0
      %346 = vmatprep.subr.mxu0 0.0
      %347 = vmatpush1.msra.mxu0 0.0
      %348 = vmatprep.subr.mxu0 0.0
      %349 = vmatpush1.msra.mxu0 0.0
      %350 = vmatprep.subr.mxu0 0.0
      %351 = vmatpush1.msra.mxu0 0.0
      %352 = vmatprep.subr.mxu0 0.0
      %353 = vmatpush1.msra.mxu0 0.0
      %354 = vmatprep.subr.mxu0 0.0
      %355 = vmatpush1.msra.mxu0 0.0
      %356 = vmatprep.subr.mxu0 0.0
      %357 = vmatpush1.msra.mxu0 0.0
      %358 = vmatprep.subr.mxu0 0.0
      %359 = vmatpush1.msra.mxu0 0.0
      %360 = vmatprep.subr.mxu0 0.0
      %361 = vmatpush1.msra.mxu0 0.0
      %362 = vmatprep.subr.mxu0 0.0
      %363 = vmatpush1.msra.mxu0 0.0
      %364 = vmatprep.subr.mxu0 0.0
      %365 = vmatpush1.msra.mxu0 0.0
      %366 = vmatprep.subr.mxu0 0.0
      %367 = vmatpush1.msra.mxu0 0.0
      %368 = vmatprep.subr.mxu0 0.0
      %369 = vmatpush1.msra.mxu0 0.0
      %370 = vmatprep.subr.mxu0 0.0
      %371 = vmatpush1.msra.mxu0 0.0
      %372 = vmatprep.subr.mxu0 0.0
      %373 = vmatpush1.msra.mxu0 0.0
      %374 = vmatprep.subr.mxu0 0.0
      %375 = vmatpush1.msra.mxu0 0.0
      %376 = vmatprep.subr.mxu0 0.0
      %377 = vmatpush1.msra.mxu0 0.0
      %378 = vmatprep.subr.mxu0 0.0
      %379 = vmatpush1.msra.mxu0 0.0
      %380 = vmatprep.subr.mxu0 0.0
      %381 = vmatpush1.msra.mxu0 0.0
      %382 = vmatprep.subr.mxu0 0.0
      %383 = vmatpush1.msra.mxu0 0.0
      %384 = vmatprep.subr.mxu0 0.0
      %385 = vmatpush1.msra.mxu0 0.0
      %386 = vmatprep.mubr.f32.mxu0 0.0
      %387 = vmatmul.mubr.f32.gmra.mrb[0].mxu0 %v320
      %v388 = vpop.f32.mrb[0].mxu0
      %v389 = vadd.f32 %v316, %v388
      %v390 = vpop.f32.mrb[0].mxu0
      %391 = vdwg.mxu0
      %392 = vst [vmem:[%s219] sm:$0xff] %v389
      %p393 = scmp.lt.s32.totalorder %s16, 1
      %s394 = scalar_select %p393, %s16, 1
      %s395 = smul.addr %s394, 8
      %s396 = scalar_lea.vmem %s5, %s395
      // Predicated region
      $region41: #{transformer_pointer_loss.4} parent=39 // pred_check
        %p397 = pneg %p144
      $region42: #{transformer_pointer_loss.4} parent=39 // pred_check_branch
        %399 = sbr.rel (%p397) target = $region44
      $region43: #{transformer_pointer_loss.4} parent=39 // pred_region
        _
      $region44: #{transformer_pointer_loss.4} parent=39 // pred_fallthru
        _
    $region40: #{transformer_pointer_loss.4} parent=5 // pred_fallthru
      _
    %p400 = scmp.le.s32.totalorder 2, %s11
    // Predicated region
    $region45: #{transformer_pointer_loss.4} parent=5 // pred_check
      %p401 = pneg %p400
    $region46: #{transformer_pointer_loss.4} parent=5 // pred_check_branch
      %403 = sbr.rel (%p401) target = $region48
    $region47: #{transformer_pointer_loss.4} parent=5 // pred_region
      %s404 = ssub.s32 %s11, 2
      // Predicated region
      $region49: #{transformer_pointer_loss.4} parent=47 // pred_check
        %p405 = pneg %p150
      $region50: #{transformer_pointer_loss.4} parent=47 // pred_check_branch
        %407 = sbr.rel (%p405) target = $region52
      $region51: #{transformer_pointer_loss.4} parent=47 // pred_region
        %p408 = scmp.lt.s32.totalorder %s17, 1
        %s409 = scalar_select %p408, %s17, 1
        %s410 = smul.addr %s409, 8
        %s411 = scalar_lea.vmem %s5, %s410
      $region52: #{transformer_pointer_loss.4} parent=47 // pred_fallthru
        _
    $region48: #{transformer_pointer_loss.4} parent=5 // pred_fallthru
      _
  $region6: #{transformer_pointer_loss.4} parent=0 // loop_footer
    %s15 = sadd.s32 1, %s11
  $region7: #{transformer_pointer_loss.4} parent=0 // loop_footer_branch
    %10 = sbr.rel target = $region3
  $region8: #{transformer_pointer_loss.4} parent=0 // loop_exit
    _

// kernel: transformer_pointer_loss.7
$region0: #{transformer_pointer_loss.7}
  #allocation0 [shape = 'u32[]', space=smem, size = 0x4, offset = 0x4, fixed_abs, tag = 'smem constant byte address 0x4 - core index']
  #allocation1 [shape = 'u32[144,128]{1,0:T(1,128)}', space=vmem, size = 0x12000, scoped, tag = 'internal scratch']
  %s0 = inlined_call_operand.vmem [shape: f32[2,9,128], index: 0, kind: input, shape index: {}]
  %s1 = inlined_call_operand.vmem [shape: f32[2,9,128], index: 1, kind: input, shape index: {}]
  %s2 = inlined_call_operand.vmem [shape: s32[2,9], index: 2, kind: input, shape index: {}]
  %s3 = inlined_call_operand.hbm [shape: f32[1,1], index: 3, kind: output, shape index: {}]
  %s4 = sld [smem:[#allocation0]]
  $region22: #{transformer_pointer_loss.7} parent=0
    _
  %s6 = ssub.s32 1, %s4
  %s7 = scalar_select 0, %s6, %s4
  $region1: #{transformer_pointer_loss.7} parent=0
    #allocation2 [shape = 'u8[512]{0}', space=vmem, size = 0x400, scoped, tag = 'output window, operand 0, single buffered']
    #allocation3 [shape = 's32[1]{0}', space=sflag, size = 0x4, scoped, tag = 'scoped memory for transformer_pointer_loss.7']
    %8 = vsyncpa [#allocation3], 0
    // Predicated region
    $region2: #{transformer_pointer_loss.7} parent=1 // pred_check
      _
    $region3: #{transformer_pointer_loss.7} parent=1 // pred_check_branch
      %10 = sbr.rel (0) target = $region5
    $region4: #{transformer_pointer_loss.7} parent=1 // pred_region
      _
    $region5: #{transformer_pointer_loss.7} parent=1 // pred_fallthru
      _
    // Predicated region
    $region6: #{transformer_pointer_loss.7} parent=1 // pred_check
      _
    $region7: #{transformer_pointer_loss.7} parent=1 // pred_check_branch
      %12 = sbr.rel (0) target = $region9
    $region8: #{transformer_pointer_loss.7} parent=1 // pred_region
      _
    $region9: #{transformer_pointer_loss.7} parent=1 // pred_fallthru
      _
    // Predicated region
    $region10: #{transformer_pointer_loss.7} parent=1 // pred_check
      _
    $region11: #{transformer_pointer_loss.7} parent=1 // pred_check_branch
      %14 = sbr.rel (0) target = $region13
    $region12: #{transformer_pointer_loss.7} parent=1 // pred_region
      _
    $region13: #{transformer_pointer_loss.7} parent=1 // pred_fallthru
      _
    %v15 = vld [vmem:[%s0] sm:$0xff]
    %v16 = vld [vmem:[%s0 + $0x8] sm:$0x1]
    %v17 = vld [vmem:[%s0 + $0x10] sm:$0xff]
    %v18 = vld [vmem:[%s0 + $0x18] sm:$0x1]
    %v19 = vld [vmem:[%s1] sm:$0xff]
    %v20 = vld [vmem:[%s1 + $0x8] sm:$0x1]
    %v21 = vld [vmem:[%s1 + $0x10] sm:$0xff]
    %v22 = vld [vmem:[%s1 + $0x18] sm:$0x1]
    %23 = vmatprep.subr.mxu0 0.0
    %24 = vmatpush1.xpose.msra.mxu0 %v19
    %25 = vmatprep.subr.mxu0 0.0
    %26 = vmatpush1.xpose.msra.mxu0 %v20
    %27 = vmatprep.subr.mxu0 0.0
    %28 = vmatpush1.xpose.msra.mxu0 0.0
    %29 = vmatprep.subr.mxu0 0.0
    %30 = vmatpush1.xpose.msra.mxu0 0.0
    %31 = vmatprep.subr.mxu0 0.0
    %32 = vmatpush1.xpose.msra.mxu0 0.0
    %33 = vmatprep.subr.mxu0 0.0
    %34 = vmatpush1.xpose.msra.mxu0 0.0
    %35 = vmatprep.subr.mxu0 0.0
    %36 = vmatpush1.xpose.msra.mxu0 0.0
    %37 = vmatprep.subr.mxu0 0.0
    %38 = vmatpush1.xpose.msra.mxu0 0.0
    %39 = vmatprep.subr.mxu0 0.0
    %40 = vmatpush1.xpose.msra.mxu0 0.0
    %41 = vmatprep.subr.mxu0 0.0
    %42 = vmatpush1.xpose.msra.mxu0 0.0
    %43 = vmatprep.subr.mxu0 0.0
    %44 = vmatpush1.xpose.msra.mxu0 0.0
    %45 = vmatprep.subr.mxu0 0.0
    %46 = vmatpush1.xpose.msra.mxu0 0.0
    %47 = vmatprep.subr.mxu0 0.0
    %48 = vmatpush1.xpose.msra.mxu0 0.0
    %49 = vmatprep.subr.mxu0 0.0
    %50 = vmatpush1.xpose.msra.mxu0 0.0
    %51 = vmatprep.subr.mxu0 0.0
    %52 = vmatpush1.xpose.msra.mxu0 0.0
    %53 = vmatprep.subr.mxu0 0.0
    %54 = vmatpush1.xpose.msra.mxu0 0.0
    %55 = vmatprep.subr.mxu0 0.0
    %56 = vmatpush1.xpose.msra.mxu0 0.0
    %57 = vmatprep.subr.mxu0 0.0
    %58 = vmatpush1.xpose.msra.mxu0 0.0
    %59 = vmatprep.subr.mxu0 0.0
    %60 = vmatpush1.xpose.msra.mxu0 0.0
    %61 = vmatprep.subr.mxu0 0.0
    %62 = vmatpush1.xpose.msra.mxu0 0.0
    %63 = vmatprep.subr.mxu0 0.0
    %64 = vmatpush1.xpose.msra.mxu0 0.0
    %65 = vmatprep.subr.mxu0 0.0
    %66 = vmatpush1.xpose.msra.mxu0 0.0
    %67 = vmatprep.subr.mxu0 0.0
    %68 = vmatpush1.xpose.msra.mxu0 0.0
    %69 = vmatprep.subr.mxu0 0.0
    %70 = vmatpush1.xpose.msra.mxu0 0.0
    %71 = vmatprep.subr.mxu0 0.0
    %72 = vmatpush1.xpose.msra.mxu0 0.0
    %73 = vmatprep.subr.mxu0 0.0
    %74 = vmatpush1.xpose.msra.mxu0 0.0
    %75 = vmatprep.subr.mxu0 0.0
    %76 = vmatpush1.xpose.msra.mxu0 0.0
    %77 = vmatprep.subr.mxu0 0.0
    %78 = vmatpush1.xpose.msra.mxu0 0.0
    %79 = vmatprep.subr.mxu0 0.0
    %80 = vmatpush1.xpose.msra.mxu0 0.0
    %81 = vmatprep.subr.mxu0 0.0
    %82 = vmatpush1.xpose.msra.mxu0 0.0
    %83 = vmatprep.subr.mxu0 0.0
    %84 = vmatpush1.xpose.msra.mxu0 0.0
    %85 = vmatprep.subr.mxu0 0.0
    %86 = vmatpush1.xpose.msra.mxu0 0.0
    %87 = vmatprep.mubr.f32.mxu0 0.0
    %88 = vmatmul.mubr.f32.gmra.mrb[0].mxu0 %v15
    %v89 = vpop.f32.mrb[0].mxu0
    %v90 = vadd.f32 0.0, %v89
    %v91 = vpop.f32.mrb[0].mxu0
    %92 = vmatprep.mubr.f32.mxu0 0.0
    %93 = vmatmul.mubr.f32.gmra.mrb[0].mxu0 %v16
    %v94 = vpop.f32.mrb[0].mxu0
    %v95 = vadd.f32 0.0, %v94
    %v96 = vpop.f32.mrb[0].mxu0
    %97 = vdwg.mxu0
    %98 = vmatprep.subr.mxu0 0.0
    %99 = vmatpush1.xpose.msra.mxu0 %v21
    %100 = vmatprep.subr.mxu0 0.0
    %101 = vmatpush1.xpose.msra.mxu0 %v22
    %102 = vmatprep.subr.mxu0 0.0
    %103 = vmatpush1.xpose.msra.mxu0 0.0
    %104 = vmatprep.subr.mxu0 0.0
    %105 = vmatpush1.xpose.msra.mxu0 0.0
    %106 = vmatprep.subr.mxu0 0.0
    %107 = vmatpush1.xpose.msra.mxu0 0.0
    %108 = vmatprep.subr.mxu0 0.0
    %109 = vmatpush1.xpose.msra.mxu0 0.0
    %110 = vmatprep.subr.mxu0 0.0
    %111 = vmatpush1.xpose.msra.mxu0 0.0
    %112 = vmatprep.subr.mxu0 0.0
    %113 = vmatpush1.xpose.msra.mxu0 0.0
    %114 = vmatprep.subr.mxu0 0.0
    %115 = vmatpush1.xpose.msra.mxu0 0.0
    %116 = vmatprep.subr.mxu0 0.0
    %117 = vmatpush1.xpose.msra.mxu0 0.0
    %118 = vmatprep.subr.mxu0 0.0
    %119 = vmatpush1.xpose.msra.mxu0 0.0
    %120 = vmatprep.subr.mxu0 0.0
    %121 = vmatpush1.xpose.msra.mxu0 0.0
    %122 = vmatprep.subr.mxu0 0.0
    %123 = vmatpush1.xpose.msra.mxu0 0.0
    %124 = vmatprep.subr.mxu0 0.0
    %125 = vmatpush1.xpose.msra.mxu0 0.0
    %126 = vmatprep.subr.mxu0 0.0
    %127 = vmatpush1.xpose.msra.mxu0 0.0
    %128 = vmatprep.subr.mxu0 0.0
    %129 = vmatpush1.xpose.msra.mxu0 0.0
    %130 = vmatprep.subr.mxu0 0.0
    %131 = vmatpush1.xpose.msra.mxu0 0.0
    %132 = vmatprep.subr.mxu0 0.0
    %133 = vmatpush1.xpose.msra.mxu0 0.0
    %134 = vmatprep.subr.mxu0 0.0
    %135 = vmatpush1.xpose.msra.mxu0 0.0
    %136 = vmatprep.subr.mxu0 0.0
    %137 = vmatpush1.xpose.msra.mxu0 0.0
    %138 = vmatprep.subr.mxu0 0.0
    %139 = vmatpush1.xpose.msra.mxu0 0.0
    %140 = vmatprep.subr.mxu0 0.0
    %141 = vmatpush1.xpose.msra.mxu0 0.0
    %142 = vmatprep.subr.mxu0 0.0
    %143 = vmatpush1.xpose.msra.mxu0 0.0
    %144 = vmatprep.subr.mxu0 0.0
    %145 = vmatpush1.xpose.msra.mxu0 0.0
    %146 = vmatprep.subr.mxu0 0.0
    %147 = vmatpush1.xpose.msra.mxu0 0.0
    %148 = vmatprep.subr.mxu0 0.0
    %149 = vmatpush1.xpose.msra.mxu0 0.0
    %150 = vmatprep.subr.mxu0 0.0
    %151 = vmatpush1.xpose.msra.mxu0 0.0
    %152 = vmatprep.subr.mxu0 0.0
    %153 = vmatpush1.xpose.msra.mxu0 0.0
    %154 = vmatprep.subr.mxu0 0.0
    %155 = vmatpush1.xpose.msra.mxu0 0.0
    %156 = vmatprep.subr.mxu0 0.0
    %157 = vmatpush1.xpose.msra.mxu0 0.0
    %158 = vmatprep.subr.mxu0 0.0
    %159 = vmatpush1.xpose.msra.mxu0 0.0
    %160 = vmatprep.subr.mxu0 0.0
    %161 = vmatpush1.xpose.msra.mxu0 0.0
    %162 = vmatprep.mubr.f32.mxu0 0.0
    %163 = vmatmul.mubr.f32.gmra.mrb[0].mxu0 %v17
    %v164 = vpop.f32.mrb[0].mxu0
    %v165 = vadd.f32 0.0, %v164
    %v166 = vpop.f32.mrb[0].mxu0
    %167 = vmatprep.mubr.f32.mxu0 0.0
    %168 = vmatmul.mubr.f32.gmra.mrb[0].mxu0 %v18
    %v169 = vpop.f32.mrb[0].mxu0
    %v170 = vadd.f32 0.0, %v169
    %v171 = vpop.f32.mrb[0].mxu0
    %172 = vdwg.mxu0
    %v173 = vld [vmem:[%s2] sm:$0x3]
    %vm174 = vcmp.ne.s32.totalorder %v173, 4294967196
    %v175 = vsel %vm174, %v173, 0
    %vm176 = vcmask 72704
    %v177 = vsel %vm176, %v90, -inf
    %178 = vmax.xlane.f32.xlu0 %v177
    %v179 = vpop.xlane.xlu0 %178
    %vm180 = vcmask 65536
    %v181 = vsel %vm180, %v95, -inf
    %182 = vmax.xlane.f32.xlu0 %v181
    %v183 = vpop.xlane.xlu0 %182
    %v184 = vsel %vm176, %v165, -inf
    %185 = vmax.xlane.f32.xlu0 %v184
    %v186 = vpop.xlane.xlu0 %185
    %v187 = vsel %vm180, %v170, -inf
    %188 = vmax.xlane.f32.xlu0 %v187
    %v189 = vpop.xlane.xlu0 %188
    %v190 = vsub.f32 %v90, %v179
    %v191 = vsub.f32 %v95, %v183
    %v192 = vsub.f32 %v165, %v186
    %v193 = vsub.f32 %v170, %v189
    %v194 = vmul.f32 %v190, 1.442695
    %v195 = vpow.pop %v194
    %v196 = vmul.f32 %v191, 1.442695
    %v197 = vpow.pop %v196
    %v198 = vmul.f32 %v192, 1.442695
    %v199 = vpow.pop %v198
    %v200 = vmul.f32 %v193, 1.442695
    %v201 = vpow.pop %v200
    %v202 = vsel %vm176, %v195, 0.0
    %203 = vadd.xlane.f32.xlu0 %v202
    %v204 = vpop.xlane.xlu0 %203
    %v205 = vsel %vm180, %v197, 0.0
    %206 = vadd.xlane.f32.xlu0 %v205
    %v207 = vpop.xlane.xlu0 %206
    %v208 = vsel %vm176, %v199, 0.0
    %209 = vadd.xlane.f32.xlu0 %v208
    %v210 = vpop.xlane.xlu0 %209
    %v211 = vsel %vm180, %v201, 0.0
    %212 = vadd.xlane.f32.xlu0 %v211
    %v213 = vpop.xlane.xlu0 %212
    %v214 = vlog2.pop %v204
    %v215 = vmul.f32 %v214, 0.6931472
    %v216 = vlog2.pop %v207
    %v217 = vmul.f32 %v216, 0.6931472
    %v218 = vlog2.pop %v210
    %v219 = vmul.f32 %v218, 0.6931472
    %v220 = vlog2.pop %v213
    %v221 = vmul.f32 %v220, 0.6931472
    %v222 = vadd.f32 %v215, %v179
    %v223 = vadd.f32 %v217, %v183
    %v224 = vadd.f32 %v219, %v186
    %v225 = vadd.f32 %v221, %v189
    %v226 = vlaneseq
    %v227 = vand.u32 %v226, 127
    %v228 = vlaneseq
    %v229 = vshrl.u32 %v228, 7
    %v230 = vsub.s32 0, %v229
    %v231 = vrot.slane %v175, %v230
    %233 = vbcast.lane.b32.xlu0 %v231, 256
    %v234 = vpop.permute.xlu0 %233
    %s236 = sor.u32 256, 8
    %237 = vbcast.lane.b32.xlu0 %v231, %s236
    %v238 = vpop.permute.xlu0 %237
    %v239 = vlaneseq
    %v240 = vshrl.u32 %v239, 7
    %v241 = vsub.s32 1, %v240
    %v242 = vrot.slane %v175, %v241
    %244 = vbcast.lane.b32.xlu0 %v242, 256
    %v245 = vpop.permute.xlu0 %244
    %s247 = sor.u32 256, 8
    %248 = vbcast.lane.b32.xlu0 %v242, %s247
    %v249 = vpop.permute.xlu0 %248
    %vm250 = vcmp.eq.s32.totalorder %v227, %v234
    %vm251 = vcmp.eq.s32.totalorder %v227, %v238
    %vm252 = vcmp.eq.s32.totalorder %v227, %v245
    %vm253 = vcmp.eq.s32.totalorder %v227, %v249
    %v254 = vsel %vm250, %v90, 0.0
    %v255 = vsel %vm251, %v95, 0.0
    %v256 = vsel %vm252, %v165, 0.0
    %v257 = vsel %vm253, %v170, 0.0
    %v258 = vsel %vm176, %v254, 0.0
    %259 = vadd.xlane.f32.xlu0 %v258
    %v260 = vpop.xlane.xlu0 %259
    %v261 = vsel %vm180, %v255, 0.0
    %262 = vadd.xlane.f32.xlu0 %v261
    %v263 = vpop.xlane.xlu0 %262
    %v264 = vsel %vm176, %v256, 0.0
    %265 = vadd.xlane.f32.xlu0 %v264
    %v266 = vpop.xlane.xlu0 %265
    %v267 = vsel %vm180, %v257, 0.0
    %268 = vadd.xlane.f32.xlu0 %v267
    %v269 = vpop.xlane.xlu0 %268
    %v270 = vsub.f32 %v222, %v260
    %v271 = vsub.f32 %v223, %v263
    %v272 = vsub.f32 %v224, %v266
    %v273 = vsub.f32 %v225, %v269
    %v278 = vlaneseq
    %v279 = vshrl.u32 %v278, 7
    %v280 = vsub.s32 %v227, %v279
    %v281 = vrot.slane %v270, %v280
    %v282 = vadd.s32 %v227, 4294967288
    %v283 = vlaneseq
    %v284 = vshrl.u32 %v283, 7
    %v285 = vsub.s32 %v282, %v284
    %v286 = vrot.slane %v271, %v285
    %vm287 = vcmask 130112
    %v288 = vsel %vm287, %v286, %v281
    %v289 = vlaneseq
    %v290 = vshrl.u32 %v289, 7
    %v291 = vsub.s32 %v227, %v290
    %v292 = vrot.slane %v272, %v291
    %v293 = vlaneseq
    %v294 = vshrl.u32 %v293, 7
    %v295 = vsub.s32 %v282, %v294
    %v296 = vrot.slane %v273, %v295
    %v297 = vsel %vm287, %v296, %v292
    %vm298 = vcmask 1041409
    %v299 = vsel %vm298, %v297, %v288
    %v301 = vsel %vm174, %v299, 0.0
    %vm302 = vcmask 66560
    %v303 = vsel %vm302, %v301, 0.0
    %304 = vadd.xlane.f32.xlu0 %v303
    %v305 = vpop.xlane.xlu0 %304
    %v306 = vrot.slane %v305, 4
    %v307 = vadd.f32 %v305, %v306
    %v308 = vrot.slane %v307, 2
    %v309 = vadd.f32 %v307, %v308
    %v310 = vrot.slane %v309, 1
    %v311 = vadd.f32 %v309, %v310
    %s312 = vtos %v311
    %v313 = vstv %s312
    %v314 = vsel %vm174, 1, 0
    %v315 = vcvt.s32.f32 %v314
    %v316 = vsel %vm302, %v315, 0.0
    %317 = vadd.xlane.f32.xlu0 %v316
    %v318 = vpop.xlane.xlu0 %317
    %v319 = vrot.slane %v318, 4
    %v320 = vadd.f32 %v318, %v319
    %v321 = vrot.slane %v320, 2
    %v322 = vadd.f32 %v320, %v321
    %v323 = vrot.slane %v322, 1
    %v324 = vadd.f32 %v322, %v323
    %s325 = vtos %v324
    %v326 = vstv %s325
    %v327 = vmax.f32 %v326, 1.0
    %v328 = vrcp.pop %v327
    %v329 = vmul.f32 %v313, %v328
    %vm330 = vcmask 0
    %331 = vst.msk [vmem:[#allocation2] sm:$0x1] %vm330, %v329
    // Predicated region
    $region14: #{transformer_pointer_loss.7} parent=1 // pred_check
      _
    $region15: #{transformer_pointer_loss.7} parent=1 // pred_check_branch
      %333 = sbr.rel (0) target = $region17
    $region16: #{transformer_pointer_loss.7} parent=1 // pred_region
      %s335 = ssub.s32 16, 16
      %336 = vsyncadd [#allocation3], %s335
      %s338 = sshll.u32 [#allocation2], 4
      %s339 = int_to_ptr.vmem [resolvable:$true] %s338
      %341 = dma.vmem_to_hbm [thread:$0]  %s339, 16, %s3, [#allocation3]
    $region17: #{transformer_pointer_loss.7} parent=1 // pred_fallthru
      _
    // Predicated region
    $region18: #{transformer_pointer_loss.7} parent=1 // pred_check
      _
    $region19: #{transformer_pointer_loss.7} parent=1 // pred_check_branch
      %343 = sbr.rel (0) target = $region21
    $region20: #{transformer_pointer_loss.7} parent=1 // pred_region
      %344 = dma.done [#allocation3], 16
    $region21: #{transformer_pointer_loss.7} parent=1 // pred_fallthru
      _
    %345 = vsyncpa [#allocation3], 1

// kernel: transformer_pointer_loss.5
$region0: #{transformer_pointer_loss.5}
  #allocation0 [shape = 'u32[]', space=smem, size = 0x4, offset = 0x4, fixed_abs, tag = 'smem constant byte address 0x4 - core index']
  #allocation1 [shape = 'u32[144,128]{1,0:T(1,128)}', space=vmem, size = 0x12000, scoped, tag = 'internal scratch']
  #allocation2 [shape = 'f32[8,128]{1,0:T(8,128)}', space=vmem, size = 0x1000, scoped, tag = 'scratch operand']
  %s0 = inlined_call_operand.vmem [shape: f32[2,8,128], index: 0, kind: input, shape index: {}]
  %s1 = inlined_call_operand.hbm [shape: f32[4,128,384], index: 1, kind: input, shape index: {}]
  %s2 = inlined_call_operand.vmem [shape: f32[4,1,384], index: 2, kind: input, shape index: {}]
  %s3 = inlined_call_operand.hbm [shape: f32[4,128,128], index: 3, kind: input, shape index: {}]
  %s4 = inlined_call_operand.vmem [shape: f32[4,1,128], index: 4, kind: input, shape index: {}]
  %s5 = inlined_call_operand.vmem [shape: f32[4,1,128], index: 5, kind: input, shape index: {}]
  %s6 = inlined_call_operand.vmem [shape: f32[4,1,128], index: 6, kind: input, shape index: {}]
  %s7 = inlined_call_operand.hbm [shape: f32[4,128,512], index: 7, kind: input, shape index: {}]
  %s8 = inlined_call_operand.vmem [shape: f32[4,1,512], index: 8, kind: input, shape index: {}]
  %s9 = inlined_call_operand.hbm [shape: f32[4,512,128], index: 9, kind: input, shape index: {}]
  %s10 = inlined_call_operand.vmem [shape: f32[4,1,128], index: 10, kind: input, shape index: {}]
  %s11 = inlined_call_operand.vmem [shape: f32[4,1,128], index: 11, kind: input, shape index: {}]
  %s12 = inlined_call_operand.vmem [shape: f32[4,1,128], index: 12, kind: input, shape index: {}]
  %s13 = inlined_call_operand.vmem [shape: f32[2,8,128], index: 13, kind: output, shape index: {}]
  %s14 = sld [smem:[#allocation0]]
  $region109: #{transformer_pointer_loss.5} parent=0
    _
  %s16 = ssub.s32 1, %s14
  %s17 = scalar_select 0, %s16, %s14
  $region1: #{transformer_pointer_loss.5} parent=0
    #allocation3 [shape = 'u8[393216]{0}', space=vmem, size = 0x60000, scoped, tag = 'input window, operand 1']
    #allocation4 [shape = 's32[2]{0}', space=sflag, size = 0x8, scoped, tag = 'scoped memory for transformer_pointer_loss.5']
    #allocation5 [shape = 'u8[131072]{0}', space=vmem, size = 0x20000, scoped, tag = 'input window, operand 3']
    #allocation6 [shape = 's32[2]{0}', space=sflag, size = 0x8, scoped, tag = 'scoped memory for transformer_pointer_loss.5']
    #allocation7 [shape = 'u8[524288]{0}', space=vmem, size = 0x80000, scoped, tag = 'input window, operand 7']
    #allocation8 [shape = 'u8[524288]{0}', space=vmem, size = 0x80000, scoped, tag = 'input window, operand 9']
    #allocation9 [shape = 's32[2]{0}', space=sflag, size = 0x8, scoped, tag = 'scoped memory for transformer_pointer_loss.5']
    %18 = vsyncpa [#allocation4], 0
    %s19 = scalar_lea.sflag [#allocation4], 1
    %20 = vsyncpa %s19, 0
    %21 = vsyncpa [#allocation6], 0
    %s22 = scalar_lea.sflag [#allocation6], 1
    %23 = vsyncpa %s22, 0
    %24 = vsyncpa [#allocation9], 0
    %s25 = scalar_lea.sflag [#allocation9], 1
    %26 = vsyncpa %s25, 0
    loop: start=0, step=1, limit=10
    $region2: #{transformer_pointer_loss.5} parent=1 // loop_pre_header
      _
    $region3: #{transformer_pointer_loss.5} parent=1 // loop_header
      %s28 = sphi 0, %s32
      %p29 = scmp.ge.s32.totalorder %s28, 10
      %s35 = sphi 0, %s47
      %s36 = sphi 0, %s43
      %s37 = sphi 0, %s35
      %s38 = sphi 0, %s36
      %s39 = sphi 0, %s37
      %s40 = sphi 0, %s38
      %s50 = sphi 0, %s52
      %s53 = sphi 0, %s50
      %s54 = sphi 0, %s53
      %s70 = sphi 0, %s54
      %s76 = sphi 0, %s78
      %s79 = sphi 0, %s76
      %s80 = sphi 0, %s79
      %s96 = sphi 0, %s80
      %s102 = sphi 0, %s104
      %s105 = sphi 0, %s102
      %s106 = sphi 0, %s105
      %s122 = sphi 0, %s106
      %s128 = sphi 0, %s130
      %s131 = sphi 0, %s128
      %s132 = sphi 0, %s131
      %s148 = sphi 0, %s132
      %s154 = sphi 0, %s156
      %s157 = sphi 0, %s154
      %s158 = sphi 0, %s157
      %s174 = sphi 0, %s158
      %s180 = sphi 0, %s182
      %s183 = sphi 0, %s180
      %s184 = sphi 0, %s183
      %s200 = sphi 0, %s184
      %s206 = sphi 0, %s208
      %s209 = sphi 0, %s206
      %s210 = sphi 0, %s209
      %s226 = sphi 0, %s210
      %s232 = sphi 0, %s234
      %s235 = sphi 0, %s232
      %s236 = sphi 0, %s235
      %s252 = sphi 0, %s236
      %s258 = sphi 0, %s260
      %s261 = sphi 0, %s258
      %s262 = sphi 0, %s261
      %s278 = sphi 0, %s262
      %s284 = sphi 0, %s286
      %s287 = sphi 0, %s284
      %s288 = sphi 0, %s287
      %s304 = sphi 0, %s288
      %s310 = sphi 0, %s312
      %s313 = sphi 0, %s310
      %s314 = sphi 0, %s313
      %s330 = sphi 0, %s314
      %s336 = sphi 0, %s338
      %s339 = sphi 0, %s336
      %s340 = sphi 0, %s339
      %s356 = sphi 0, %s340
      %s362 = sphi 0, %s364
      %s365 = sphi 0, %s362
      %s366 = sphi 0, %s365
      %s382 = sphi 0, %s366
      %s388 = sphi 0, %s390
      %s391 = sphi 0, %s388
      %s392 = sphi 0, %s391
      %s408 = sphi 0, %s392
    $region4: #{transformer_pointer_loss.5} parent=1 // loop_header_branch
      %31 = sbr.rel (%p29) target = $region8
    $region5: #{transformer_pointer_loss.5} parent=1 // loop_body
      %s33 = ssub.s32 %s28, 1
      %s34 = ssub.s32 %s28, 2
      %s41 = sadd.s32 1, %s36
      %p42 = scmp.ge.s32.totalorder %s41, 4
      %s43 = scalar_select %p42, 0, %s41
      %s44 = sadd.s32 1, %s35
      %s45 = scalar_select %p42, %s44, %s35
      %p46 = scmp.ge.s32.totalorder %s45, 2
      %s47 = scalar_select %p46, 0, %s45
      %s48 = ssub.s32 %s35, %s47
      %p49 = scmp.eq.s32.totalorder %s48, 0
      %s51 = sadd.s32 %s50, 1
      %s52 = scalar_select %p49, %s50, %s51
      %p55 = pneg %p49
      %p56 = scmp.eq.s32.totalorder %s28, 7
      %p57 = por %p55, %p56
      %p58 = scmp.ne.s32.totalorder %s50, %s53
      %p59 = scmp.eq.s32.totalorder %s28, 0
      %p60 = por %p58, %p59
      %p61 = scmp.ne.s32.totalorder %s50, %s53
      %p62 = scmp.eq.s32.totalorder %s33, 7
      %p63 = por %p61, %p62
      %p64 = scmp.ne.s32.totalorder %s53, %s54
      %p65 = scmp.eq.s32.totalorder %s33, 0
      %p66 = por %p64, %p65
      %p67 = scmp.ne.s32.totalorder %s53, %s54
      %p68 = scmp.eq.s32.totalorder %s34, 7
      %p69 = por %p67, %p68
      %p71 = scmp.ne.s32.totalorder %s54, %s70
      %p72 = scmp.eq.s32.totalorder %s34, 0
      %p73 = por %p71, %p72
      %s74 = ssub.s32 %s36, %s43
      %p75 = scmp.eq.s32.totalorder %s74, 0
      %s77 = sadd.s32 %s76, 1
      %s78 = scalar_select %p75, %s76, %s77
      %p81 = pneg %p75
      %p82 = scmp.eq.s32.totalorder %s28, 7
      %p83 = por %p81, %p82
      %p84 = scmp.ne.s32.totalorder %s76, %s79
      %p85 = scmp.eq.s32.totalorder %s28, 0
      %p86 = por %p84, %p85
      %p87 = scmp.ne.s32.totalorder %s76, %s79
      %p88 = scmp.eq.s32.totalorder %s33, 7
      %p89 = por %p87, %p88
      %p90 = scmp.ne.s32.totalorder %s79, %s80
      %p91 = scmp.eq.s32.totalorder %s33, 0
      %p92 = por %p90, %p91
      %p93 = scmp.ne.s32.totalorder %s79, %s80
      %p94 = scmp.eq.s32.totalorder %s34, 7
      %p95 = por %p93, %p94
      %p97 = scmp.ne.s32.totalorder %s80, %s96
      %p98 = scmp.eq.s32.totalorder %s34, 0
      %p99 = por %p97, %p98
      %s100 = ssub.s32 %s36, %s43
      %p101 = scmp.eq.s32.totalorder %s100, 0
      %s103 = sadd.s32 %s102, 1
      %s104 = scalar_select %p101, %s102, %s103
      %p107 = pneg %p101
      %p108 = scmp.eq.s32.totalorder %s28, 7
      %p109 = por %p107, %p108
      %p110 = scmp.ne.s32.totalorder %s102, %s105
      %p111 = scmp.eq.s32.totalorder %s28, 0
      %p112 = por %p110, %p111
      %p113 = scmp.ne.s32.totalorder %s102, %s105
      %p114 = scmp.eq.s32.totalorder %s33, 7
      %p115 = por %p113, %p114
      %p116 = scmp.ne.s32.totalorder %s105, %s106
      %p117 = scmp.eq.s32.totalorder %s33, 0
      %p118 = por %p116, %p117
      %p119 = scmp.ne.s32.totalorder %s105, %s106
      %p120 = scmp.eq.s32.totalorder %s34, 7
      %p121 = por %p119, %p120
      %p123 = scmp.ne.s32.totalorder %s106, %s122
      %p124 = scmp.eq.s32.totalorder %s34, 0
      %p125 = por %p123, %p124
      %s126 = ssub.s32 %s36, %s43
      %p127 = scmp.eq.s32.totalorder %s126, 0
      %s129 = sadd.s32 %s128, 1
      %s130 = scalar_select %p127, %s128, %s129
      %p133 = pneg %p127
      %p134 = scmp.eq.s32.totalorder %s28, 7
      %p135 = por %p133, %p134
      %p136 = scmp.ne.s32.totalorder %s128, %s131
      %p137 = scmp.eq.s32.totalorder %s28, 0
      %p138 = por %p136, %p137
      %p139 = scmp.ne.s32.totalorder %s128, %s131
      %p140 = scmp.eq.s32.totalorder %s33, 7
      %p141 = por %p139, %p140
      %p142 = scmp.ne.s32.totalorder %s131, %s132
      %p143 = scmp.eq.s32.totalorder %s33, 0
      %p144 = por %p142, %p143
      %p145 = scmp.ne.s32.totalorder %s131, %s132
      %p146 = scmp.eq.s32.totalorder %s34, 7
      %p147 = por %p145, %p146
      %p149 = scmp.ne.s32.totalorder %s132, %s148
      %p150 = scmp.eq.s32.totalorder %s34, 0
      %p151 = por %p149, %p150
      %s152 = ssub.s32 %s36, %s43
      %p153 = scmp.eq.s32.totalorder %s152, 0
      %s155 = sadd.s32 %s154, 1
      %s156 = scalar_select %p153, %s154, %s155
      %p159 = pneg %p153
      %p160 = scmp.eq.s32.totalorder %s28, 7
      %p161 = por %p159, %p160
      %p162 = scmp.ne.s32.totalorder %s154, %s157
      %p163 = scmp.eq.s32.totalorder %s28, 0
      %p164 = por %p162, %p163
      %p165 = scmp.ne.s32.totalorder %s154, %s157
      %p166 = scmp.eq.s32.totalorder %s33, 7
      %p167 = por %p165, %p166
      %p168 = scmp.ne.s32.totalorder %s157, %s158
      %p169 = scmp.eq.s32.totalorder %s33, 0
      %p170 = por %p168, %p169
      %p171 = scmp.ne.s32.totalorder %s157, %s158
      %p172 = scmp.eq.s32.totalorder %s34, 7
      %p173 = por %p171, %p172
      %p175 = scmp.ne.s32.totalorder %s158, %s174
      %p176 = scmp.eq.s32.totalorder %s34, 0
      %p177 = por %p175, %p176
      %s178 = ssub.s32 %s36, %s43
      %p179 = scmp.eq.s32.totalorder %s178, 0
      %s181 = sadd.s32 %s180, 1
      %s182 = scalar_select %p179, %s180, %s181
      %p185 = pneg %p179
      %p186 = scmp.eq.s32.totalorder %s28, 7
      %p187 = por %p185, %p186
      %p188 = scmp.ne.s32.totalorder %s180, %s183
      %p189 = scmp.eq.s32.totalorder %s28, 0
      %p190 = por %p188, %p189
      %p191 = scmp.ne.s32.totalorder %s180, %s183
      %p192 = scmp.eq.s32.totalorder %s33, 7
      %p193 = por %p191, %p192
      %p194 = scmp.ne.s32.totalorder %s183, %s184
      %p195 = scmp.eq.s32.totalorder %s33, 0
      %p196 = por %p194, %p195
      %p197 = scmp.ne.s32.totalorder %s183, %s184
      %p198 = scmp.eq.s32.totalorder %s34, 7
      %p199 = por %p197, %p198
      %p201 = scmp.ne.s32.totalorder %s184, %s200
      %p202 = scmp.eq.s32.totalorder %s34, 0
      %p203 = por %p201, %p202
      %s204 = ssub.s32 %s36, %s43
      %p205 = scmp.eq.s32.totalorder %s204, 0
      %s207 = sadd.s32 %s206, 1
      %s208 = scalar_select %p205, %s206, %s207
      %p211 = pneg %p205
      %p212 = scmp.eq.s32.totalorder %s28, 7
      %p213 = por %p211, %p212
      %p214 = scmp.ne.s32.totalorder %s206, %s209
      %p215 = scmp.eq.s32.totalorder %s28, 0
      %p216 = por %p214, %p215
      %p217 = scmp.ne.s32.totalorder %s206, %s209
      %p218 = scmp.eq.s32.totalorder %s33, 7
      %p219 = por %p217, %p218
      %p220 = scmp.ne.s32.totalorder %s209, %s210
      %p221 = scmp.eq.s32.totalorder %s33, 0
      %p222 = por %p220, %p221
      %p223 = scmp.ne.s32.totalorder %s209, %s210
      %p224 = scmp.eq.s32.totalorder %s34, 7
      %p225 = por %p223, %p224
      %p227 = scmp.ne.s32.totalorder %s210, %s226
      %p228 = scmp.eq.s32.totalorder %s34, 0
      %p229 = por %p227, %p228
      %s230 = ssub.s32 %s36, %s43
      %p231 = scmp.eq.s32.totalorder %s230, 0
      %s233 = sadd.s32 %s232, 1
      %s234 = scalar_select %p231, %s232, %s233
      %p237 = pneg %p231
      %p238 = scmp.eq.s32.totalorder %s28, 7
      %p239 = por %p237, %p238
      %p240 = scmp.ne.s32.totalorder %s232, %s235
      %p241 = scmp.eq.s32.totalorder %s28, 0
      %p242 = por %p240, %p241
      %p243 = scmp.ne.s32.totalorder %s232, %s235
      %p244 = scmp.eq.s32.totalorder %s33, 7
      %p245 = por %p243, %p244
      %p246 = scmp.ne.s32.totalorder %s235, %s236
      %p247 = scmp.eq.s32.totalorder %s33, 0
      %p248 = por %p246, %p247
      %p249 = scmp.ne.s32.totalorder %s235, %s236
      %p250 = scmp.eq.s32.totalorder %s34, 7
      %p251 = por %p249, %p250
      %p253 = scmp.ne.s32.totalorder %s236, %s252
      %p254 = scmp.eq.s32.totalorder %s34, 0
      %p255 = por %p253, %p254
      %s256 = ssub.s32 %s36, %s43
      %p257 = scmp.eq.s32.totalorder %s256, 0
      %s259 = sadd.s32 %s258, 1
      %s260 = scalar_select %p257, %s258, %s259
      %p263 = pneg %p257
      %p264 = scmp.eq.s32.totalorder %s28, 7
      %p265 = por %p263, %p264
      %p266 = scmp.ne.s32.totalorder %s258, %s261
      %p267 = scmp.eq.s32.totalorder %s28, 0
      %p268 = por %p266, %p267
      %p269 = scmp.ne.s32.totalorder %s258, %s261
      %p270 = scmp.eq.s32.totalorder %s33, 7
      %p271 = por %p269, %p270
      %p272 = scmp.ne.s32.totalorder %s261, %s262
      %p273 = scmp.eq.s32.totalorder %s33, 0
      %p274 = por %p272, %p273
      %p275 = scmp.ne.s32.totalorder %s261, %s262
      %p276 = scmp.eq.s32.totalorder %s34, 7
      %p277 = por %p275, %p276
      %p279 = scmp.ne.s32.totalorder %s262, %s278
      %p280 = scmp.eq.s32.totalorder %s34, 0
      %p281 = por %p279, %p280
      %s282 = ssub.s32 %s36, %s43
      %p283 = scmp.eq.s32.totalorder %s282, 0
      %s285 = sadd.s32 %s284, 1
      %s286 = scalar_select %p283, %s284, %s285
      %p289 = pneg %p283
      %p290 = scmp.eq.s32.totalorder %s28, 7
      %p291 = por %p289, %p290
      %p292 = scmp.ne.s32.totalorder %s284, %s287
      %p293 = scmp.eq.s32.totalorder %s28, 0
      %p294 = por %p292, %p293
      %p295 = scmp.ne.s32.totalorder %s284, %s287
      %p296 = scmp.eq.s32.totalorder %s33, 7
      %p297 = por %p295, %p296
      %p298 = scmp.ne.s32.totalorder %s287, %s288
      %p299 = scmp.eq.s32.totalorder %s33, 0
      %p300 = por %p298, %p299
      %p301 = scmp.ne.s32.totalorder %s287, %s288
      %p302 = scmp.eq.s32.totalorder %s34, 7
      %p303 = por %p301, %p302
      %p305 = scmp.ne.s32.totalorder %s288, %s304
      %p306 = scmp.eq.s32.totalorder %s34, 0
      %p307 = por %p305, %p306
      %s308 = ssub.s32 %s36, %s43
      %p309 = scmp.eq.s32.totalorder %s308, 0
      %s311 = sadd.s32 %s310, 1
      %s312 = scalar_select %p309, %s310, %s311
      %p315 = pneg %p309
      %p316 = scmp.eq.s32.totalorder %s28, 7
      %p317 = por %p315, %p316
      %p318 = scmp.ne.s32.totalorder %s310, %s313
      %p319 = scmp.eq.s32.totalorder %s28, 0
      %p320 = por %p318, %p319
      %p321 = scmp.ne.s32.totalorder %s310, %s313
      %p322 = scmp.eq.s32.totalorder %s33, 7
      %p323 = por %p321, %p322
      %p324 = scmp.ne.s32.totalorder %s313, %s314
      %p325 = scmp.eq.s32.totalorder %s33, 0
      %p326 = por %p324, %p325
      %p327 = scmp.ne.s32.totalorder %s313, %s314
      %p328 = scmp.eq.s32.totalorder %s34, 7
      %p329 = por %p327, %p328
      %p331 = scmp.ne.s32.totalorder %s314, %s330
      %p332 = scmp.eq.s32.totalorder %s34, 0
      %p333 = por %p331, %p332
      %s334 = ssub.s32 %s36, %s43
      %p335 = scmp.eq.s32.totalorder %s334, 0
      %s337 = sadd.s32 %s336, 1
      %s338 = scalar_select %p335, %s336, %s337
      %p341 = pneg %p335
      %p342 = scmp.eq.s32.totalorder %s28, 7
      %p343 = por %p341, %p342
      %p344 = scmp.ne.s32.totalorder %s336, %s339
      %p345 = scmp.eq.s32.totalorder %s28, 0
      %p346 = por %p344, %p345
      %p347 = scmp.ne.s32.totalorder %s336, %s339
      %p348 = scmp.eq.s32.totalorder %s33, 7
      %p349 = por %p347, %p348
      %p350 = scmp.ne.s32.totalorder %s339, %s340
      %p351 = scmp.eq.s32.totalorder %s33, 0
      %p352 = por %p350, %p351
      %p353 = scmp.ne.s32.totalorder %s339, %s340
      %p354 = scmp.eq.s32.totalorder %s34, 7
      %p355 = por %p353, %p354
      %p357 = scmp.ne.s32.totalorder %s340, %s356
      %p358 = scmp.eq.s32.totalorder %s34, 0
      %p359 = por %p357, %p358
      %s360 = ssub.s32 %s36, %s43
      %p361 = scmp.eq.s32.totalorder %s360, 0
      %s363 = sadd.s32 %s362, 1
      %s364 = scalar_select %p361, %s362, %s363
      %p367 = pneg %p361
      %p368 = scmp.eq.s32.totalorder %s28, 7
      %p369 = por %p367, %p368
      %p370 = scmp.ne.s32.totalorder %s362, %s365
      %p371 = scmp.eq.s32.totalorder %s28, 0
      %p372 = por %p370, %p371
      %p373 = scmp.ne.s32.totalorder %s362, %s365
      %p374 = scmp.eq.s32.totalorder %s33, 7
      %p375 = por %p373, %p374
      %p376 = scmp.ne.s32.totalorder %s365, %s366
      %p377 = scmp.eq.s32.totalorder %s33, 0
      %p378 = por %p376, %p377
      %p379 = scmp.ne.s32.totalorder %s365, %s366
      %p380 = scmp.eq.s32.totalorder %s34, 7
      %p381 = por %p379, %p380
      %p383 = scmp.ne.s32.totalorder %s366, %s382
      %p384 = scmp.eq.s32.totalorder %s34, 0
      %p385 = por %p383, %p384
      %s386 = ssub.s32 %s35, %s47
      %p387 = scmp.eq.s32.totalorder %s386, 0
      %s389 = sadd.s32 %s388, 1
      %s390 = scalar_select %p387, %s388, %s389
      %p393 = pneg %p387
      %p394 = scmp.eq.s32.totalorder %s28, 7
      %p395 = por %p393, %p394
      %p396 = scmp.ne.s32.totalorder %s388, %s391
      %p397 = scmp.eq.s32.totalorder %s28, 0
      %p398 = por %p396, %p397
      %p399 = scmp.ne.s32.totalorder %s388, %s391
      %p400 = scmp.eq.s32.totalorder %s33, 7
      %p401 = por %p399, %p400
      %p402 = scmp.ne.s32.totalorder %s391, %s392
      %p403 = scmp.eq.s32.totalorder %s33, 0
      %p404 = por %p402, %p403
      %p405 = scmp.ne.s32.totalorder %s391, %s392
      %p406 = scmp.eq.s32.totalorder %s34, 7
      %p407 = por %p405, %p406
      %p409 = scmp.ne.s32.totalorder %s392, %s408
      %p410 = scmp.eq.s32.totalorder %s34, 0
      %p411 = por %p409, %p410
      %p412 = scmp.le.s32.totalorder 1, %s28
      %p413 = scmp.lt.s32.totalorder %s28, 9
      %p414 = pnand %p412, %p413
      %p415 = pneg %p414
      // Predicated region
      $region9: #{transformer_pointer_loss.5} parent=5 // pred_check
        _
      $region10: #{transformer_pointer_loss.5} parent=5 // pred_check_branch
        %417 = sbr.rel (%p414) target = $region12
      $region11: #{transformer_pointer_loss.5} parent=5 // pred_region
        %s418 = ssub.s32 %s28, 1
      $region12: #{transformer_pointer_loss.5} parent=5 // pred_fallthru
        _
      %p419 = scmp.lt.s32.totalorder %s28, 8
      // Predicated region
      $region13: #{transformer_pointer_loss.5} parent=5 // pred_check
        %p420 = pneg %p419
      $region14: #{transformer_pointer_loss.5} parent=5 // pred_check_branch
        %422 = sbr.rel (%p420) target = $region16
      $region15: #{transformer_pointer_loss.5} parent=5 // pred_region
        // Predicated region
        $region17: #{transformer_pointer_loss.5} parent=15 // pred_check
          %p423 = pneg %p60
        $region18: #{transformer_pointer_loss.5} parent=15 // pred_check_branch
          %425 = sbr.rel (%p423) target = $region20
        $region19: #{transformer_pointer_loss.5} parent=15 // pred_region
          %p426 = scmp.lt.s32.totalorder %s35, 1
          %s427 = scalar_select %p426, %s35, 1
          %s428 = smul.addr %s427, 8
          %s429 = scalar_lea.vmem %s0, %s428
        $region20: #{transformer_pointer_loss.5} parent=15 // pred_fallthru
          _
        // Predicated region
        $region21: #{transformer_pointer_loss.5} parent=15 // pred_check
          %p430 = pneg %p86
        $region22: #{transformer_pointer_loss.5} parent=15 // pred_check_branch
          %432 = sbr.rel (%p430) target = $region24
        $region23: #{transformer_pointer_loss.5} parent=15 // pred_region
          %s433 = sand.u32 %s76, 1
          %s434 = scalar_lea.sflag [#allocation4], %s433
          %s435 = sand.u32 %s76, 1
          %s436 = smul.addr %s435, 384
          %s437 = scalar_lea.vmem [#allocation3], %s436
          %s439 = ssub.s32 6144, 6144
          %440 = vsyncadd %s434, %s439
          %s441 = smul.addr %s36, 48
          %s442 = smul.addr %s441, 128
          %s443 = scalar_lea.hbm %s1, %s442
          %s444 = sshll.u32 %s437, 4
          %s445 = int_to_ptr.vmem [resolvable:$true] %s444
          %450 = dma.hbm_to_vmem [thread:$0]  %s443, 6144, %s445, %s434, 384, 384, 24
        $region24: #{transformer_pointer_loss.5} parent=15 // pred_fallthru
          _
        // Predicated region
        $region25: #{transformer_pointer_loss.5} parent=15 // pred_check
          %p451 = pneg %p112
        $region26: #{transformer_pointer_loss.5} parent=15 // pred_check_branch
          %453 = sbr.rel (%p451) target = $region28
        $region27: #{transformer_pointer_loss.5} parent=15 // pred_region
          %p454 = scmp.lt.s32.totalorder %s36, 3
          %s455 = scalar_select %p454, %s36, 3
          %s456 = smul.addr %s455, 3
          %s457 = scalar_lea.vmem %s2, %s456
        $region28: #{transformer_pointer_loss.5} parent=15 // pred_fallthru
          _
        // Predicated region
        $region29: #{transformer_pointer_loss.5} parent=15 // pred_check
          %p458 = pneg %p138
        $region30: #{transformer_pointer_loss.5} parent=15 // pred_check_branch
          %460 = sbr.rel (%p458) target = $region32
        $region31: #{transformer_pointer_loss.5} parent=15 // pred_region
          %s461 = sand.u32 %s28, 1
          %s462 = scalar_lea.sflag [#allocation6], %s461
          %s463 = sand.u32 %s128, 1
          %s464 = smul.addr %s463, 128
          %s465 = scalar_lea.vmem [#allocation5], %s464
          %s467 = ssub.s32 2048, 2048
          %468 = vsyncadd %s462, %s467
          %s469 = smul.addr %s36, 16
          %s470 = smul.addr %s469, 128
          %s471 = scalar_lea.hbm %s3, %s470
          %s472 = sshll.u32 %s465, 4
          %s473 = int_to_ptr.vmem [resolvable:$true] %s472
          %478 = dma.hbm_to_vmem [thread:$0]  %s471, 2048, %s473, %s462, 128, 128, 8
        $region32: #{transformer_pointer_loss.5} parent=15 // pred_fallthru
          _
        // Predicated region
        $region33: #{transformer_pointer_loss.5} parent=15 // pred_check
          %p479 = pneg %p164
        $region34: #{transformer_pointer_loss.5} parent=15 // pred_check_branch
          %481 = sbr.rel (%p479) target = $region36
        $region35: #{transformer_pointer_loss.5} parent=15 // pred_region
          %p482 = scmp.lt.s32.totalorder %s36, 3
          %s483 = scalar_select %p482, %s36, 3
          %s484 = scalar_lea.vmem %s4, %s483
        $region36: #{transformer_pointer_loss.5} parent=15 // pred_fallthru
          _
        // Predicated region
        $region37: #{transformer_pointer_loss.5} parent=15 // pred_check
          %p485 = pneg %p190
        $region38: #{transformer_pointer_loss.5} parent=15 // pred_check_branch
          %487 = sbr.rel (%p485) target = $region40
        $region39: #{transformer_pointer_loss.5} parent=15 // pred_region
          %p488 = scmp.lt.s32.totalorder %s36, 3
          %s489 = scalar_select %p488, %s36, 3
          %s490 = scalar_lea.vmem %s5, %s489
        $region40: #{transformer_pointer_loss.5} parent=15 // pred_fallthru
          _
        // Predicated region
        $region41: #{transformer_pointer_loss.5} parent=15 // pred_check
          %p491 = pneg %p216
        $region42: #{transformer_pointer_loss.5} parent=15 // pred_check_branch
          %493 = sbr.rel (%p491) target = $region44
        $region43: #{transformer_pointer_loss.5} parent=15 // pred_region
          %p494 = scmp.lt.s32.totalorder %s36, 3
          %s495 = scalar_select %p494, %s36, 3
          %s496 = scalar_lea.vmem %s6, %s495
        $region44: #{transformer_pointer_loss.5} parent=15 // pred_fallthru
          _
        // Predicated region
        $region45: #{transformer_pointer_loss.5} parent=15 // pred_check
          %p497 = pneg %p242
        $region46: #{transformer_pointer_loss.5} parent=15 // pred_check_branch
          %499 = sbr.rel (%p497) target = $region48
        $region47: #{transformer_pointer_loss.5} parent=15 // pred_region
          %s500 = sand.u32 %s28, 1
          %s501 = scalar_lea.sflag [#allocation6], %s500
          %s502 = sand.u32 %s232, 1
          %s503 = smul.addr %s502, 512
          %s504 = scalar_lea.vmem [#allocation7], %s503
          %s506 = ssub.s32 8192, 8192
          %507 = vsyncadd %s501, %s506
          %s508 = smul.addr %s36, 64
          %s509 = smul.addr %s508, 128
          %s510 = scalar_lea.hbm %s7, %s509
          %s511 = sshll.u32 %s504, 4
          %s512 = int_to_ptr.vmem [resolvable:$true] %s511
          %517 = dma.hbm_to_vmem [thread:$0]  %s510, 8192, %s512, %s501, 512, 512, 32
        $region48: #{transformer_pointer_loss.5} parent=15 // pred_fallthru
          _
        // Predicated region
        $region49: #{transformer_pointer_loss.5} parent=15 // pred_check
          %p518 = pneg %p268
        $region50: #{transformer_pointer_loss.5} parent=15 // pred_check_branch
          %520 = sbr.rel (%p518) target = $region52
        $region51: #{transformer_pointer_loss.5} parent=15 // pred_region
          %p521 = scmp.lt.s32.totalorder %s36, 3
          %s522 = scalar_select %p521, %s36, 3
          %s523 = smul.addr %s522, 4
          %s524 = scalar_lea.vmem %s8, %s523
        $region52: #{transformer_pointer_loss.5} parent=15 // pred_fallthru
          _
        // Predicated region
        $region53: #{transformer_pointer_loss.5} parent=15 // pred_check
          %p525 = pneg %p294
        $region54: #{transformer_pointer_loss.5} parent=15 // pred_check_branch
          %527 = sbr.rel (%p525) target = $region56
        $region55: #{transformer_pointer_loss.5} parent=15 // pred_region
          %s528 = sand.u32 %s284, 1
          %s529 = scalar_lea.sflag [#allocation9], %s528
          %s530 = sand.u32 %s284, 1
          %s531 = smul.addr %s530, 512
          %s532 = scalar_lea.vmem [#allocation8], %s531
          %s534 = ssub.s32 8192, 8192
          %535 = vsyncadd %s529, %s534
          %s536 = smul.addr %s36, 64
          %s537 = smul.addr %s536, 128
          %s538 = scalar_lea.hbm %s9, %s537
          %s539 = sshll.u32 %s532, 4
          %s540 = int_to_ptr.vmem [resolvable:$true] %s539
          %545 = dma.hbm_to_vmem [thread:$0]  %s538, 8192, %s540, %s529, 128, 128, 8
        $region56: #{transformer_pointer_loss.5} parent=15 // pred_fallthru
          _
        // Predicated region
        $region57: #{transformer_pointer_loss.5} parent=15 // pred_check
          %p546 = pneg %p320
        $region58: #{transformer_pointer_loss.5} parent=15 // pred_check_branch
          %548 = sbr.rel (%p546) target = $region60
        $region59: #{transformer_pointer_loss.5} parent=15 // pred_region
          %p549 = scmp.lt.s32.totalorder %s36, 3
          %s550 = scalar_select %p549, %s36, 3
          %s551 = scalar_lea.vmem %s10, %s550
        $region60: #{transformer_pointer_loss.5} parent=15 // pred_fallthru
          _
        // Predicated region
        $region61: #{transformer_pointer_loss.5} parent=15 // pred_check
          %p552 = pneg %p346
        $region62: #{transformer_pointer_loss.5} parent=15 // pred_check_branch
          %554 = sbr.rel (%p552) target = $region64
        $region63: #{transformer_pointer_loss.5} parent=15 // pred_region
          %p555 = scmp.lt.s32.totalorder %s36, 3
          %s556 = scalar_select %p555, %s36, 3
          %s557 = scalar_lea.vmem %s11, %s556
        $region64: #{transformer_pointer_loss.5} parent=15 // pred_fallthru
          _
        // Predicated region
        $region65: #{transformer_pointer_loss.5} parent=15 // pred_check
          %p558 = pneg %p372
        $region66: #{transformer_pointer_loss.5} parent=15 // pred_check_branch
          %560 = sbr.rel (%p558) target = $region68
        $region67: #{transformer_pointer_loss.5} parent=15 // pred_region
          %p561 = scmp.lt.s32.totalorder %s36, 3
          %s562 = scalar_select %p561, %s36, 3
          %s563 = scalar_lea.vmem %s12, %s562
        $region68: #{transformer_pointer_loss.5} parent=15 // pred_fallthru
          _
      $region16: #{transformer_pointer_loss.5} parent=5 // pred_fallthru
        _
      %p564 = scmp.le.s32.totalorder 1, %s28
      %p565 = scmp.lt.s32.totalorder %s28, 9
      %p566 = pnand %p564, %p565
      %p567 = pneg %p566
      // Predicated region
      $region69: #{transformer_pointer_loss.5} parent=5 // pred_check
        _
      $region70: #{transformer_pointer_loss.5} parent=5 // pred_check_branch
        %569 = sbr.rel (%p566) target = $region72
      $region71: #{transformer_pointer_loss.5} parent=5 // pred_region
        %s570 = ssub.s32 %s28, 1
        %s571 = sand.u32 %s79, 1
        %s572 = scalar_lea.sflag [#allocation4], %s571
        %s573 = sand.u32 %s79, 1
        %s574 = smul.addr %s573, 384
        %s575 = scalar_lea.vmem [#allocation3], %s574
        // Predicated region
        $region73: #{transformer_pointer_loss.5} parent=71 // pred_check
          %p576 = pneg %p92
        $region74: #{transformer_pointer_loss.5} parent=71 // pred_check_branch
          %578 = sbr.rel (%p576) target = $region76
        $region75: #{transformer_pointer_loss.5} parent=71 // pred_region
          %579 = dma.done %s572, 6144
        $region76: #{transformer_pointer_loss.5} parent=71 // pred_fallthru
          _
        %s580 = sand.u32 %s33, 1
        %s581 = scalar_lea.sflag [#allocation6], %s580
        %s582 = sand.u32 %s131, 1
        %s583 = smul.addr %s582, 128
        %s584 = scalar_lea.vmem [#allocation5], %s583
        // Predicated region
        $region77: #{transformer_pointer_loss.5} parent=71 // pred_check
          %p585 = pneg %p144
        $region78: #{transformer_pointer_loss.5} parent=71 // pred_check_branch
          %587 = sbr.rel (%p585) target = $region80
        $region79: #{transformer_pointer_loss.5} parent=71 // pred_region
          %588 = dma.done %s581, 2048
        $region80: #{transformer_pointer_loss.5} parent=71 // pred_fallthru
          _
        %s589 = sand.u32 %s33, 1
        %s590 = scalar_lea.sflag [#allocation6], %s589
        %s591 = sand.u32 %s235, 1
        %s592 = smul.addr %s591, 512
        %s593 = scalar_lea.vmem [#allocation7], %s592
        // Predicated region
        $region81: #{transformer_pointer_loss.5} parent=71 // pred_check
          %p594 = pneg %p248
        $region82: #{transformer_pointer_loss.5} parent=71 // pred_check_branch
          %596 = sbr.rel (%p594) target = $region84
        $region83: #{transformer_pointer_loss.5} parent=71 // pred_region
          %597 = dma.done %s590, 8192
        $region84: #{transformer_pointer_loss.5} parent=71 // pred_fallthru
          _
        %s598 = sand.u32 %s287, 1
        %s599 = scalar_lea.sflag [#allocation9], %s598
        %s600 = sand.u32 %s287, 1
        %s601 = smul.addr %s600, 512
        %s602 = scalar_lea.vmem [#allocation8], %s601
        // Predicated region
        $region85: #{transformer_pointer_loss.5} parent=71 // pred_check
          %p603 = pneg %p300
        $region86: #{transformer_pointer_loss.5} parent=71 // pred_check_branch
          %605 = sbr.rel (%p603) target = $region88
        $region87: #{transformer_pointer_loss.5} parent=71 // pred_region
          %606 = dma.done %s599, 8192
        $region88: #{transformer_pointer_loss.5} parent=71 // pred_fallthru
          _
        %p607 = scmp.lt.s32.totalorder %s37, 1
        %s608 = scalar_select %p607, %s37, 1
        %s609 = smul.addr %s608, 8
        %s610 = scalar_lea.vmem %s0, %s609
        %p611 = pneg %p66
        %p612 = pneg %p63
        %s613 = sand.u32 %s79, 1
        %s614 = scalar_lea.sflag [#allocation4], %s613
        %s615 = sand.u32 %s79, 1
        %s616 = smul.addr %s615, 384
        %s617 = scalar_lea.vmem [#allocation3], %s616
        %p618 = pneg %p92
        %p619 = pneg %p89
        %p620 = scmp.lt.s32.totalorder %s38, 3
        %s621 = scalar_select %p620, %s38, 3
        %s622 = smul.addr %s621, 3
        %s623 = scalar_lea.vmem %s2, %s622
        %p624 = pneg %p118
        %p625 = pneg %p115
        %s626 = sand.u32 %s33, 1
        %s627 = scalar_lea.sflag [#allocation6], %s626
        %s628 = sand.u32 %s131, 1
        %s629 = smul.addr %s628, 128
        %s630 = scalar_lea.vmem [#allocation5], %s629
        %p631 = pneg %p144
        %p632 = pneg %p141
        %p633 = scmp.lt.s32.totalorder %s38, 3
        %s634 = scalar_select %p633, %s38, 3
        %s635 = scalar_lea.vmem %s4, %s634
        %p636 = pneg %p170
        %p637 = pneg %p167
        %p638 = scmp.lt.s32.totalorder %s38, 3
        %s639 = scalar_select %p638, %s38, 3
        %s640 = scalar_lea.vmem %s5, %s639
        %p641 = pneg %p196
        %p642 = pneg %p193
        %p643 = scmp.lt.s32.totalorder %s38, 3
        %s644 = scalar_select %p643, %s38, 3
        %s645 = scalar_lea.vmem %s6, %s644
        %p646 = pneg %p222
        %p647 = pneg %p219
        %s648 = sand.u32 %s33, 1
        %s649 = scalar_lea.sflag [#allocation6], %s648
        %s650 = sand.u32 %s235, 1
        %s651 = smul.addr %s650, 512
        %s652 = scalar_lea.vmem [#allocation7], %s651
        %p653 = pneg %p248
        %p654 = pneg %p245
        %p655 = scmp.lt.s32.totalorder %s38, 3
        %s656 = scalar_select %p655, %s38, 3
        %s657 = smul.addr %s656, 4
        %s658 = scalar_lea.vmem %s8, %s657
        %p659 = pneg %p274
        %p660 = pneg %p271
        %s661 = sand.u32 %s287, 1
        %s662 = scalar_lea.sflag [#allocation9], %s661
        %s663 = sand.u32 %s287, 1
        %s664 = smul.addr %s663, 512
        %s665 = scalar_lea.vmem [#allocation8], %s664
        %p666 = pneg %p300
        %p667 = pneg %p297
        %p668 = scmp.lt.s32.totalorder %s38, 3
        %s669 = scalar_select %p668, %s38, 3
        %s670 = scalar_lea.vmem %s10, %s669
        %p671 = pneg %p326
        %p672 = pneg %p323
        %p673 = scmp.lt.s32.totalorder %s38, 3
        %s674 = scalar_select %p673, %s38, 3
        %s675 = scalar_lea.vmem %s11, %s674
        %p676 = pneg %p352
        %p677 = pneg %p349
        %p678 = scmp.lt.s32.totalorder %s38, 3
        %s679 = scalar_select %p678, %s38, 3
        %s680 = scalar_lea.vmem %s12, %s679
        %p681 = pneg %p378
        %p682 = pneg %p375
        %p683 = pneg %p404
        %p684 = pneg %p401
        %p685 = scmp.lt.s32.totalorder %s37, 1
        %s686 = scalar_select %p685, %s37, 1
        %s687 = smul.addr %s686, 8
        %s688 = scalar_lea.vmem %s13, %s687
        %p689 = scmp.lt.s32.totalorder %s37, 1
        %s690 = scalar_select %p689, %s37, 1
        %s691 = smul.addr %s690, 8
        %s692 = scalar_lea.vmem %s0, %s691
        %p693 = scmp.lt.s32.totalorder %s38, 3
        %s694 = scalar_select %p693, %s38, 3
        %s695 = smul.addr %s694, 3
        %s696 = scalar_lea.vmem %s2, %s695
        %p697 = scmp.lt.s32.totalorder %s38, 3
        %s698 = scalar_select %p697, %s38, 3
        %s699 = scalar_lea.vmem %s4, %s698
        %p700 = scmp.lt.s32.totalorder %s38, 3
        %s701 = scalar_select %p700, %s38, 3
        %s702 = scalar_lea.vmem %s5, %s701
        %p703 = scmp.lt.s32.totalorder %s38, 3
        %s704 = scalar_select %p703, %s38, 3
        %s705 = scalar_lea.vmem %s6, %s704
        %p706 = scmp.lt.s32.totalorder %s38, 3
        %s707 = scalar_select %p706, %s38, 3
        %s708 = smul.addr %s707, 4
        %s709 = scalar_lea.vmem %s8, %s708
        %p710 = scmp.lt.s32.totalorder %s38, 3
        %s711 = scalar_select %p710, %s38, 3
        %s712 = scalar_lea.vmem %s10, %s711
        %p713 = scmp.lt.s32.totalorder %s38, 3
        %s714 = scalar_select %p713, %s38, 3
        %s715 = scalar_lea.vmem %s11, %s714
        %p716 = scmp.lt.s32.totalorder %s38, 3
        %s717 = scalar_select %p716, %s38, 3
        %s718 = scalar_lea.vmem %s12, %s717
        %p719 = scmp.lt.s32.totalorder %s37, 1
        %s720 = scalar_select %p719, %s37, 1
        %s721 = smul.addr %s720, 8
        %s722 = scalar_lea.vmem %s13, %s721
        %p723 = scmp.eq.s32.totalorder %s38, 0
        // Predicated region
        $region89: #{transformer_pointer_loss.5} parent=71 // pred_check
          %p724 = pneg %p723
        $region90: #{transformer_pointer_loss.5} parent=71 // pred_check_branch
          %726 = sbr.rel (%p724) target = $region92
        $region91: #{transformer_pointer_loss.5} parent=71 // pred_region
          %v727 = vld [vmem:[%s692] sm:$0xff]
          %728 = vst [vmem:[#allocation2] sm:$0xff] %v727
        $region92: #{transformer_pointer_loss.5} parent=71 // pred_fallthru
          _
        %v729 = vld [vmem:[#allocation2] sm:$0xff]
        %v730 = vld [vmem:[%s575] sm:$0xff]
        %v731 = vld [vmem:[%s575 + $0x8] sm:$0xff]
        %v732 = vld [vmem:[%s575 + $0x10] sm:$0xff]
        %v733 = vld [vmem:[%s575 + $0x18] sm:$0xff]
        %v734 = vld [vmem:[%s575 + $0x20] sm:$0xff]
        %v735 = vld [vmem:[%s575 + $0x28] sm:$0xff]
        %v736 = vld [vmem:[%s575 + $0x30] sm:$0xff]
        %v737 = vld [vmem:[%s575 + $0x38] sm:$0xff]
        %v738 = vld [vmem:[%s575 + $0x40] sm:$0xff]
        %v739 = vld [vmem:[%s575 + $0x48] sm:$0xff]
        %v740 = vld [vmem:[%s575 + $0x50] sm:$0xff]
        %v741 = vld [vmem:[%s575 + $0x58] sm:$0xff]
        %v742 = vld [vmem:[%s575 + $0x60] sm:$0xff]
        %v743 = vld [vmem:[%s575 + $0x68] sm:$0xff]
        %v744 = vld [vmem:[%s575 + $0x70] sm:$0xff]
        %v745 = vld [vmem:[%s575 + $0x78] sm:$0xff]
        %v746 = vld [vmem:[%s575 + $0x80] sm:$0xff]
        %v747 = vld [vmem:[%s575 + $0x88] sm:$0xff]
        %v748 = vld [vmem:[%s575 + $0x90] sm:$0xff]
        %v749 = vld [vmem:[%s575 + $0x98] sm:$0xff]
        %v750 = vld [vmem:[%s575 + $0xa0] sm:$0xff]
        %v751 = vld [vmem:[%s575 + $0xa8] sm:$0xff]
        %v752 = vld [vmem:[%s575 + $0xb0] sm:$0xff]
        %v753 = vld [vmem:[%s575 + $0xb8] sm:$0xff]
        %v754 = vld [vmem:[%s575 + $0xc0] sm:$0xff]
        %v755 = vld [vmem:[%s575 + $0xc8] sm:$0xff]
        %v756 = vld [vmem:[%s575 + $0xd0] sm:$0xff]
        %v757 = vld [vmem:[%s575 + $0xd8] sm:$0xff]
        %v758 = vld [vmem:[%s575 + $0xe0] sm:$0xff]
        %v759 = vld [vmem:[%s575 + $0xe8] sm:$0xff]
        %v760 = vld [vmem:[%s575 + $0xf0] sm:$0xff]
        %v761 = vld [vmem:[%s575 + $0xf8] sm:$0xff]
        %v762 = vld [vmem:[%s575 + $0x100] sm:$0xff]
        %v763 = vld [vmem:[%s575 + $0x108] sm:$0xff]
        %v764 = vld [vmem:[%s575 + $0x110] sm:$0xff]
        %v765 = vld [vmem:[%s575 + $0x118] sm:$0xff]
        %v766 = vld [vmem:[%s575 + $0x120] sm:$0xff]
        %v767 = vld [vmem:[%s575 + $0x128] sm:$0xff]
        %v768 = vld [vmem:[%s575 + $0x130] sm:$0xff]
        %v769 = vld [vmem:[%s575 + $0x138] sm:$0xff]
        %v770 = vld [vmem:[%s575 + $0x140] sm:$0xff]
        %v771 = vld [vmem:[%s575 + $0x148] sm:$0xff]
        %v772 = vld [vmem:[%s575 + $0x150] sm:$0xff]
        %v773 = vld [vmem:[%s575 + $0x158] sm:$0xff]
        %v774 = vld [vmem:[%s575 + $0x160] sm:$0xff]
        %v775 = vld [vmem:[%s575 + $0x168] sm:$0xff]
        %v776 = vld [vmem:[%s575 + $0x170] sm:$0xff]
        %v777 = vld [vmem:[%s575 + $0x178] sm:$0xff]
        %v778 = vld [vmem:[%s696] sm:$0x7]
        %v780 = vlaneseq
        %v781 = vshrl.u32 %v780, 7
        %v782 = vsub.s32 0, %v781
        %v783 = vrot.slane %v778, %v782
        %v784 = vlaneseq
        %v785 = vshrl.u32 %v784, 7
        %v786 = vsub.s32 1, %v785
        %v787 = vrot.slane %v778, %v786
        %v788 = vlaneseq
        %v789 = vshrl.u32 %v788, 7
        %v790 = vsub.s32 2, %v789
        %v791 = vrot.slane %v778, %v790
        %795 = vmatprep.subr.mxu0 %v731
        %796 = vmatpush1.msra.mxu0 %v730
        %797 = vmatprep.subr.mxu0 %v734
        %798 = vmatpush1.msra.mxu0 %v733
        %799 = vmatprep.subr.mxu0 %v737
        %800 = vmatpush1.msra.mxu0 %v736
        %801 = vmatprep.subr.mxu0 %v740
        %802 = vmatpush1.msra.mxu0 %v739
        %803 = vmatprep.subr.mxu0 %v743
        %804 = vmatpush1.msra.mxu0 %v742
        %805 = vmatprep.subr.mxu0 %v746
        %806 = vmatpush1.msra.mxu0 %v745
        %807 = vmatprep.subr.mxu0 %v749
        %808 = vmatpush1.msra.mxu0 %v748
        %809 = vmatprep.subr.mxu0 %v752
        %810 = vmatpush1.msra.mxu0 %v751
        %811 = vmatprep.subr.mxu0 %v755
        %812 = vmatpush1.msra.mxu0 %v754
        %813 = vmatprep.subr.mxu0 %v758
        %814 = vmatpush1.msra.mxu0 %v757
        %815 = vmatprep.subr.mxu0 %v761
        %816 = vmatpush1.msra.mxu0 %v760
        %817 = vmatprep.subr.mxu0 %v764
        %818 = vmatpush1.msra.mxu0 %v763
        %819 = vmatprep.subr.mxu0 %v767
        %820 = vmatpush1.msra.mxu0 %v766
        %821 = vmatprep.subr.mxu0 %v770
        %822 = vmatpush1.msra.mxu0 %v769
        %823 = vmatprep.subr.mxu0 %v773
        %824 = vmatpush1.msra.mxu0 %v772
        %825 = vmatprep.subr.mxu0 %v776
        %826 = vmatpush1.msra.mxu0 %v775
        %827 = vmatprep.subr.mxu0 0.0
        %828 = vmatpush1.msra.mxu0 0.0
        %829 = vmatprep.subr.mxu0 0.0
        %830 = vmatpush1.msra.mxu0 0.0
        %831 = vmatprep.subr.mxu0 0.0
        %832 = vmatpush1.msra.mxu0 0.0
        %833 = vmatprep.subr.mxu0 0.0
        %834 = vmatpush1.msra.mxu0 0.0
        %835 = vmatprep.subr.mxu0 0.0
        %836 = vmatpush1.msra.mxu0 0.0
        %837 = vmatprep.subr.mxu0 0.0
        %838 = vmatpush1.msra.mxu0 0.0
        %839 = vmatprep.subr.mxu0 0.0
        %840 = vmatpush1.msra.mxu0 0.0
        %841 = vmatprep.subr.mxu0 0.0
        %842 = vmatpush1.msra.mxu0 0.0
        %843 = vmatprep.subr.mxu0 0.0
        %844 = vmatpush1.msra.mxu0 0.0
        %845 = vmatprep.subr.mxu0 0.0
        %846 = vmatpush1.msra.mxu0 0.0
        %847 = vmatprep.subr.mxu0 0.0
        %848 = vmatpush1.msra.mxu0 0.0
        %849 = vmatprep.subr.mxu0 0.0
        %850 = vmatpush1.msra.mxu0 0.0
        %851 = vmatprep.subr.mxu0 0.0
        %852 = vmatpush1.msra.mxu0 0.0
        %853 = vmatprep.subr.mxu0 0.0
        %854 = vmatpush1.msra.mxu0 0.0
        %855 = vmatprep.subr.mxu0 0.0
        %856 = vmatpush1.msra.mxu0 0.0
        %857 = vmatprep.subr.mxu0 0.0
        %858 = vmatpush1.msra.mxu0 0.0
        %859 = vmatprep.mubr.f32.mxu0 0.0
        %860 = vmatmul.mubr.f32.gmra.mrb[0].mxu0 %v729
        %v861 = vpop.f32.mrb[0].mxu0
        %v862 = vadd.f32 %v783, %v861
        %v863 = vpop.f32.mrb[0].mxu0
        %v864 = vadd.f32 %v787, %v863
        %865 = vdwg.mxu0
        %866 = vmatprep.subr.mxu0 0.0
        %867 = vmatpush1.msra.mxu0 %v732
        %868 = vmatprep.subr.mxu0 0.0
        %869 = vmatpush1.msra.mxu0 %v735
        %870 = vmatprep.subr.mxu0 0.0
        %871 = vmatpush1.msra.mxu0 %v738
        %872 = vmatprep.subr.mxu0 0.0
        %873 = vmatpush1.msra.mxu0 %v741
        %874 = vmatprep.subr.mxu0 0.0
        %875 = vmatpush1.msra.mxu0 %v744
        %876 = vmatprep.subr.mxu0 0.0
        %877 = vmatpush1.msra.mxu0 %v747
        %878 = vmatprep.subr.mxu0 0.0
        %879 = vmatpush1.msra.mxu0 %v750
        %880 = vmatprep.subr.mxu0 0.0
        %881 = vmatpush1.msra.mxu0 %v753
        %882 = vmatprep.subr.mxu0 0.0
        %883 = vmatpush1.msra.mxu0 %v756
        %884 = vmatprep.subr.mxu0 0.0
        %885 = vmatpush1.msra.mxu0 %v759
        %886 = vmatprep.subr.mxu0 0.0
        %887 = vmatpush1.msra.mxu0 %v762
        %888 = vmatprep.subr.mxu0 0.0
        %889 = vmatpush1.msra.mxu0 %v765
        %890 = vmatprep.subr.mxu0 0.0
        %891 = vmatpush1.msra.mxu0 %v768
        %892 = vmatprep.subr.mxu0 0.0
        %893 = vmatpush1.msra.mxu0 %v771
        %894 = vmatprep.subr.mxu0 0.0
        %895 = vmatpush1.msra.mxu0 %v774
        %896 = vmatprep.subr.mxu0 0.0
        %897 = vmatpush1.msra.mxu0 %v777
        %898 = vmatprep.subr.mxu0 0.0
        %899 = vmatpush1.msra.mxu0 0.0
        %900 = vmatprep.subr.mxu0 0.0
        %901 = vmatpush1.msra.mxu0 0.0
        %902 = vmatprep.subr.mxu0 0.0
        %903 = vmatpush1.msra.mxu0 0.0
        %904 = vmatprep.subr.mxu0 0.0
        %905 = vmatpush1.msra.mxu0 0.0
        %906 = vmatprep.subr.mxu0 0.0
        %907 = vmatpush1.msra.mxu0 0.0
        %908 = vmatprep.subr.mxu0 0.0
        %909 = vmatpush1.msra.mxu0 0.0
        %910 = vmatprep.subr.mxu0 0.0
        %911 = vmatpush1.msra.mxu0 0.0
        %912 = vmatprep.subr.mxu0 0.0
        %913 = vmatpush1.msra.mxu0 0.0
        %914 = vmatprep.subr.mxu0 0.0
        %915 = vmatpush1.msra.mxu0 0.0
        %916 = vmatprep.subr.mxu0 0.0
        %917 = vmatpush1.msra.mxu0 0.0
        %918 = vmatprep.subr.mxu0 0.0
        %919 = vmatpush1.msra.mxu0 0.0
        %920 = vmatprep.subr.mxu0 0.0
        %921 = vmatpush1.msra.mxu0 0.0
        %922 = vmatprep.subr.mxu0 0.0
        %923 = vmatpush1.msra.mxu0 0.0
        %924 = vmatprep.subr.mxu0 0.0
        %925 = vmatpush1.msra.mxu0 0.0
        %926 = vmatprep.subr.mxu0 0.0
        %927 = vmatpush1.msra.mxu0 0.0
        %928 = vmatprep.subr.mxu0 0.0
        %929 = vmatpush1.msra.mxu0 0.0
        %930 = vmatprep.mubr.f32.mxu0 0.0
        %931 = vmatmul.mubr.f32.gmra.mrb[0].mxu0 %v729
        %v932 = vpop.f32.mrb[0].mxu0
        %v933 = vadd.f32 %v791, %v932
        %v934 = vpop.f32.mrb[0].mxu0
        %935 = vdwg.mxu0
        %936 = vmatprep.subr.mxu0 0.0
        %937 = vmatpush1.xpose.msra.mxu0 %v864
        %938 = vmatprep.subr.mxu0 0.0
        %939 = vmatpush1.xpose.msra.mxu0 0.0
        %940 = vmatprep.subr.mxu0 0.0
        %941 = vmatpush1.xpose.msra.mxu0 0.0
        %942 = vmatprep.subr.mxu0 0.0
        %943 = vmatpush1.xpose.msra.mxu0 0.0
        %944 = vmatprep.subr.mxu0 0.0
        %945 = vmatpush1.xpose.msra.mxu0 0.0
        %946 = vmatprep.subr.mxu0 0.0
        %947 = vmatpush1.xpose.msra.mxu0 0.0
        %948 = vmatprep.subr.mxu0 0.0
        %949 = vmatpush1.xpose.msra.mxu0 0.0
        %950 = vmatprep.subr.mxu0 0.0
        %951 = vmatpush1.xpose.msra.mxu0 0.0
        %952 = vmatprep.subr.mxu0 0.0
        %953 = vmatpush1.xpose.msra.mxu0 0.0
        %954 = vmatprep.subr.mxu0 0.0
        %955 = vmatpush1.xpose.msra.mxu0 0.0
        %956 = vmatprep.subr.mxu0 0.0
        %957 = vmatpush1.xpose.msra.mxu0 0.0
        %958 = vmatprep.subr.mxu0 0.0
        %959 = vmatpush1.xpose.msra.mxu0 0.0
        %960 = vmatprep.subr.mxu0 0.0
        %961 = vmatpush1.xpose.msra.mxu0 0.0
        %962 = vmatprep.subr.mxu0 0.0
        %963 = vmatpush1.xpose.msra.mxu0 0.0
        %964 = vmatprep.subr.mxu0 0.0
        %965 = vmatpush1.xpose.msra.mxu0 0.0
        %966 = vmatprep.subr.mxu0 0.0
        %967 = vmatpush1.xpose.msra.mxu0 0.0
        %968 = vmatprep.subr.mxu0 0.0
        %969 = vmatpush1.xpose.msra.mxu0 0.0
        %970 = vmatprep.subr.mxu0 0.0
        %971 = vmatpush1.xpose.msra.mxu0 0.0
        %972 = vmatprep.subr.mxu0 0.0
        %973 = vmatpush1.xpose.msra.mxu0 0.0
        %974 = vmatprep.subr.mxu0 0.0
        %975 = vmatpush1.xpose.msra.mxu0 0.0
        %976 = vmatprep.subr.mxu0 0.0
        %977 = vmatpush1.xpose.msra.mxu0 0.0
        %978 = vmatprep.subr.mxu0 0.0
        %979 = vmatpush1.xpose.msra.mxu0 0.0
        %980 = vmatprep.subr.mxu0 0.0
        %981 = vmatpush1.xpose.msra.mxu0 0.0
        %982 = vmatprep.subr.mxu0 0.0
        %983 = vmatpush1.xpose.msra.mxu0 0.0
        %984 = vmatprep.subr.mxu0 0.0
        %985 = vmatpush1.xpose.msra.mxu0 0.0
        %986 = vmatprep.subr.mxu0 0.0
        %987 = vmatpush1.xpose.msra.mxu0 0.0
        %988 = vmatprep.subr.mxu0 0.0
        %989 = vmatpush1.xpose.msra.mxu0 0.0
        %990 = vmatprep.subr.mxu0 0.0
        %991 = vmatpush1.xpose.msra.mxu0 0.0
        %992 = vmatprep.subr.mxu0 0.0
        %993 = vmatpush1.xpose.msra.mxu0 0.0
        %994 = vmatprep.subr.mxu0 0.0
        %995 = vmatpush1.xpose.msra.mxu0 0.0
        %996 = vmatprep.subr.mxu0 0.0
        %997 = vmatpush1.xpose.msra.mxu0 0.0
        %998 = vmatprep.subr.mxu0 0.0
        %999 = vmatpush1.xpose.msra.mxu0 0.0
        %1000 = vmatprep.mubr.f32.mxu0 0.0
        %1001 = vmatmul.mubr.f32.gmra.mrb[0].mxu0 %v862
        %v1002 = vpop.f32.mrb[0].mxu0
        %v1003 = vadd.f32 0.0, %v1002
        %v1004 = vpop.f32.mrb[0].mxu0
        %1005 = vdwg.mxu0
        %v1006 = vmul.f32 %v1003, 0.088388346
        %vm1007 = vcmask 64512
        %v1008 = vsel %vm1007, %v1006, -inf
        %1009 = vmax.xlane.f32.xlu0 %v1008
        %v1010 = vpop.xlane.xlu0 %1009
        %v1011 = vsub.f32 %v1006, %v1010
        %v1012 = vmul.f32 %v1011, 1.442695
        %v1013 = vpow.pop %v1012
        %v1014 = vsel %vm1007, %v1013, 0.0
        %1015 = vadd.xlane.f32.xlu0 %v1014
        %v1016 = vpop.xlane.xlu0 %1015
        %v1017 = vrcp.pop %v1016
        %v1018 = vmul.f32 %v1013, %v1017
        %v1020 = vsel %vm1007, %v1018, 0
        %1022 = vmatprep.subr.mxu0 0.0
        %1023 = vmatpush1.msra.mxu0 %v933
        %1024 = vmatprep.subr.mxu0 0.0
        %1025 = vmatpush1.msra.mxu0 0.0
        %1026 = vmatprep.subr.mxu0 0.0
        %1027 = vmatpush1.msra.mxu0 0.0
        %1028 = vmatprep.subr.mxu0 0.0
        %1029 = vmatpush1.msra.mxu0 0.0
        %1030 = vmatprep.subr.mxu0 0.0
        %1031 = vmatpush1.msra.mxu0 0.0
        %1032 = vmatprep.subr.mxu0 0.0
        %1033 = vmatpush1.msra.mxu0 0.0
        %1034 = vmatprep.subr.mxu0 0.0
        %1035 = vmatpush1.msra.mxu0 0.0
        %1036 = vmatprep.subr.mxu0 0.0
        %1037 = vmatpush1.msra.mxu0 0.0
        %1038 = vmatprep.subr.mxu0 0.0
        %1039 = vmatpush1.msra.mxu0 0.0
        %1040 = vmatprep.subr.mxu0 0.0
        %1041 = vmatpush1.msra.mxu0 0.0
        %1042 = vmatprep.subr.mxu0 0.0
        %1043 = vmatpush1.msra.mxu0 0.0
        %1044 = vmatprep.subr.mxu0 0.0
        %1045 = vmatpush1.msra.mxu0 0.0
        %1046 = vmatprep.subr.mxu0 0.0
        %1047 = vmatpush1.msra.mxu0 0.0
        %1048 = vmatprep.subr.mxu0 0.0
        %1049 = vmatpush1.msra.mxu0 0.0
        %1050 = vmatprep.subr.mxu0 0.0
        %1051 = vmatpush1.msra.mxu0 0.0
        %1052 = vmatprep.subr.mxu0 0.0
        %1053 = vmatpush1.msra.mxu0 0.0
        %1054 = vmatprep.subr.mxu0 0.0
        %1055 = vmatpush1.msra.mxu0 0.0
        %1056 = vmatprep.subr.mxu0 0.0
        %1057 = vmatpush1.msra.mxu0 0.0
        %1058 = vmatprep.subr.mxu0 0.0
        %1059 = vmatpush1.msra.mxu0 0.0
        %1060 = vmatprep.subr.mxu0 0.0
        %1061 = vmatpush1.msra.mxu0 0.0
        %1062 = vmatprep.subr.mxu0 0.0
        %1063 = vmatpush1.msra.mxu0 0.0
        %1064 = vmatprep.subr.mxu0 0.0
        %1065 = vmatpush1.msra.mxu0 0.0
        %1066 = vmatprep.subr.mxu0 0.0
        %1067 = vmatpush1.msra.mxu0 0.0
        %1068 = vmatprep.subr.mxu0 0.0
        %1069 = vmatpush1.msra.mxu0 0.0
        %1070 = vmatprep.subr.mxu0 0.0
        %1071 = vmatpush1.msra.mxu0 0.0
        %1072 = vmatprep.subr.mxu0 0.0
        %1073 = vmatpush1.msra.mxu0 0.0
        %1074 = vmatprep.subr.mxu0 0.0
        %1075 = vmatpush1.msra.mxu0 0.0
        %1076 = vmatprep.subr.mxu0 0.0
        %1077 = vmatpush1.msra.mxu0 0.0
        %1078 = vmatprep.subr.mxu0 0.0
        %1079 = vmatpush1.msra.mxu0 0.0
        %1080 = vmatprep.subr.mxu0 0.0
        %1081 = vmatpush1.msra.mxu0 0.0
        %1082 = vmatprep.subr.mxu0 0.0
        %1083 = vmatpush1.msra.mxu0 0.0
        %1084 = vmatprep.subr.mxu0 0.0
        %1085 = vmatpush1.msra.mxu0 0.0
        %1086 = vmatprep.mubr.f32.mxu0 0.0
        %1087 = vmatmul.mubr.f32.gmra.mrb[0].mxu0 %v1020
        %v1088 = vpop.f32.mrb[0].mxu0
        %v1089 = vadd.f32 0.0, %v1088
        %v1090 = vpop.f32.mrb[0].mxu0
        %1091 = vdwg.mxu0
        %v1092 = vld [vmem:[%s584] sm:$0xff]
        %v1093 = vld [vmem:[%s584 + $0x8] sm:$0xff]
        %v1094 = vld [vmem:[%s584 + $0x10] sm:$0xff]
        %v1095 = vld [vmem:[%s584 + $0x18] sm:$0xff]
        %v1096 = vld [vmem:[%s584 + $0x20] sm:$0xff]
        %v1097 = vld [vmem:[%s584 + $0x28] sm:$0xff]
        %v1098 = vld [vmem:[%s584 + $0x30] sm:$0xff]
        %v1099 = vld [vmem:[%s584 + $0x38] sm:$0xff]
        %v1100 = vld [vmem:[%s584 + $0x40] sm:$0xff]
        %v1101 = vld [vmem:[%s584 + $0x48] sm:$0xff]
        %v1102 = vld [vmem:[%s584 + $0x50] sm:$0xff]
        %v1103 = vld [vmem:[%s584 + $0x58] sm:$0xff]
        %v1104 = vld [vmem:[%s584 + $0x60] sm:$0xff]
        %v1105 = vld [vmem:[%s584 + $0x68] sm:$0xff]
        %v1106 = vld [vmem:[%s584 + $0x70] sm:$0xff]
        %v1107 = vld [vmem:[%s584 + $0x78] sm:$0xff]
        %v1108 = vld [vmem:[%s699] sm:$0x1]
        %v1110 = vlaneseq
        %v1111 = vshrl.u32 %v1110, 7
        %v1112 = vsub.s32 0, %v1111
        %v1113 = vrot.slane %v1108, %v1112
        %1115 = vmatprep.subr.mxu0 0.0
        %1116 = vmatpush1.msra.mxu0 %v1092
        %1117 = vmatprep.subr.mxu0 0.0
        %1118 = vmatpush1.msra.mxu0 %v1093
        %1119 = vmatprep.subr.mxu0 0.0
        %1120 = vmatpush1.msra.mxu0 %v1094
        %1121 = vmatprep.subr.mxu0 0.0
        %1122 = vmatpush1.msra.mxu0 %v1095
        %1123 = vmatprep.subr.mxu0 0.0
        %1124 = vmatpush1.msra.mxu0 %v1096
        %1125 = vmatprep.subr.mxu0 0.0
        %1126 = vmatpush1.msra.mxu0 %v1097
        %1127 = vmatprep.subr.mxu0 0.0
        %1128 = vmatpush1.msra.mxu0 %v1098
        %1129 = vmatprep.subr.mxu0 0.0
        %1130 = vmatpush1.msra.mxu0 %v1099
        %1131 = vmatprep.subr.mxu0 0.0
        %1132 = vmatpush1.msra.mxu0 %v1100
        %1133 = vmatprep.subr.mxu0 0.0
        %1134 = vmatpush1.msra.mxu0 %v1101
        %1135 = vmatprep.subr.mxu0 0.0
        %1136 = vmatpush1.msra.mxu0 %v1102
        %1137 = vmatprep.subr.mxu0 0.0
        %1138 = vmatpush1.msra.mxu0 %v1103
        %1139 = vmatprep.subr.mxu0 0.0
        %1140 = vmatpush1.msra.mxu0 %v1104
        %1141 = vmatprep.subr.mxu0 0.0
        %1142 = vmatpush1.msra.mxu0 %v1105
        %1143 = vmatprep.subr.mxu0 0.0
        %1144 = vmatpush1.msra.mxu0 %v1106
        %1145 = vmatprep.subr.mxu0 0.0
        %1146 = vmatpush1.msra.mxu0 %v1107
        %1147 = vmatprep.subr.mxu0 0.0
        %1148 = vmatpush1.msra.mxu0 0.0
        %1149 = vmatprep.subr.mxu0 0.0
        %1150 = vmatpush1.msra.mxu0 0.0
        %1151 = vmatprep.subr.mxu0 0.0
        %1152 = vmatpush1.msra.mxu0 0.0
        %1153 = vmatprep.subr.mxu0 0.0
        %1154 = vmatpush1.msra.mxu0 0.0
        %1155 = vmatprep.subr.mxu0 0.0
        %1156 = vmatpush1.msra.mxu0 0.0
        %1157 = vmatprep.subr.mxu0 0.0
        %1158 = vmatpush1.msra.mxu0 0.0
        %1159 = vmatprep.subr.mxu0 0.0
        %1160 = vmatpush1.msra.mxu0 0.0
        %1161 = vmatprep.subr.mxu0 0.0
        %1162 = vmatpush1.msra.mxu0 0.0
        %1163 = vmatprep.subr.mxu0 0.0
        %1164 = vmatpush1.msra.mxu0 0.0
        %1165 = vmatprep.subr.mxu0 0.0
        %1166 = vmatpush1.msra.mxu0 0.0
        %1167 = vmatprep.subr.mxu0 0.0
        %1168 = vmatpush1.msra.mxu0 0.0
        %1169 = vmatprep.subr.mxu0 0.0
        %1170 = vmatpush1.msra.mxu0 0.0
        %1171 = vmatprep.subr.mxu0 0.0
        %1172 = vmatpush1.msra.mxu0 0.0
        %1173 = vmatprep.subr.mxu0 0.0
        %1174 = vmatpush1.msra.mxu0 0.0
        %1175 = vmatprep.subr.mxu0 0.0
        %1176 = vmatpush1.msra.mxu0 0.0
        %1177 = vmatprep.subr.mxu0 0.0
        %1178 = vmatpush1.msra.mxu0 0.0
        %1179 = vmatprep.mubr.f32.mxu0 0.0
        %1180 = vmatmul.mubr.f32.gmra.mrb[0].mxu0 %v1089
        %v1181 = vpop.f32.mrb[0].mxu0
        %v1182 = vadd.f32 %v1113, %v1181
        %v1183 = vpop.f32.mrb[0].mxu0
        %1184 = vdwg.mxu0
        %v1185 = vadd.f32 %v729, %v1182
        %v1186 = vld [vmem:[%s702] sm:$0x1]
        %v1187 = vld [vmem:[%s705] sm:$0x1]
        %1188 = vadd.xlane.f32.xlu0 %v1185
        %v1189 = vpop.xlane.xlu0 %1188
        %v1190 = vrcp.pop 128.0
        %v1191 = vmul.f32 %v1189, %v1190
        %v1192 = vsub.f32 %v1185, %v1191
        %v1193 = vmul.f32 %v1192, %v1192
        %1194 = vadd.xlane.f32.xlu0 %v1193
        %v1195 = vpop.xlane.xlu0 %1194
        %v1196 = vmul.f32 %v1195, %v1190
        %v1197 = vadd.f32 %v1196, 1e-05
        %v1198 = vrsqrt.pop %v1197
        %v1199 = vmul.f32 %v1192, %v1198
        %v1201 = vlaneseq
        %v1202 = vshrl.u32 %v1201, 7
        %v1203 = vsub.s32 0, %v1202
        %v1204 = vrot.slane %v1186, %v1203
        %v1206 = vmul.f32 %v1199, %v1204
        %v1208 = vlaneseq
        %v1209 = vshrl.u32 %v1208, 7
        %v1210 = vsub.s32 0, %v1209
        %v1211 = vrot.slane %v1187, %v1210
        %v1213 = vadd.f32 %v1206, %v1211
        %v1214 = vld [vmem:[%s593] sm:$0xff]
        %v1215 = vld [vmem:[%s593 + $0x8] sm:$0xff]
        %v1216 = vld [vmem:[%s593 + $0x10] sm:$0xff]
        %v1217 = vld [vmem:[%s593 + $0x18] sm:$0xff]
        %v1218 = vld [vmem:[%s593 + $0x20] sm:$0xff]
        %v1219 = vld [vmem:[%s593 + $0x28] sm:$0xff]
        %v1220 = vld [vmem:[%s593 + $0x30] sm:$0xff]
        %v1221 = vld [vmem:[%s593 + $0x38] sm:$0xff]
        %v1222 = vld [vmem:[%s593 + $0x40] sm:$0xff]
        %v1223 = vld [vmem:[%s593 + $0x48] sm:$0xff]
        %v1224 = vld [vmem:[%s593 + $0x50] sm:$0xff]
        %v1225 = vld [vmem:[%s593 + $0x58] sm:$0xff]
        %v1226 = vld [vmem:[%s593 + $0x60] sm:$0xff]
        %v1227 = vld [vmem:[%s593 + $0x68] sm:$0xff]
        %v1228 = vld [vmem:[%s593 + $0x70] sm:$0xff]
        %v1229 = vld [vmem:[%s593 + $0x78] sm:$0xff]
        %v1230 = vld [vmem:[%s593 + $0x80] sm:$0xff]
        %v1231 = vld [vmem:[%s593 + $0x88] sm:$0xff]
        %v1232 = vld [vmem:[%s593 + $0x90] sm:$0xff]
        %v1233 = vld [vmem:[%s593 + $0x98] sm:$0xff]
        %v1234 = vld [vmem:[%s593 + $0xa0] sm:$0xff]
        %v1235 = vld [vmem:[%s593 + $0xa8] sm:$0xff]
        %v1236 = vld [vmem:[%s593 + $0xb0] sm:$0xff]
        %v1237 = vld [vmem:[%s593 + $0xb8] sm:$0xff]
        %v1238 = vld [vmem:[%s593 + $0xc0] sm:$0xff]
        %v1239 = vld [vmem:[%s593 + $0xc8] sm:$0xff]
        %v1240 = vld [vmem:[%s593 + $0xd0] sm:$0xff]
        %v1241 = vld [vmem:[%s593 + $0xd8] sm:$0xff]
        %v1242 = vld [vmem:[%s593 + $0xe0] sm:$0xff]
        %v1243 = vld [vmem:[%s593 + $0xe8] sm:$0xff]
        %v1244 = vld [vmem:[%s593 + $0xf0] sm:$0xff]
        %v1245 = vld [vmem:[%s593 + $0xf8] sm:$0xff]
        %v1246 = vld [vmem:[%s593 + $0x100] sm:$0xff]
        %v1247 = vld [vmem:[%s593 + $0x108] sm:$0xff]
        %v1248 = vld [vmem:[%s593 + $0x110] sm:$0xff]
        %v1249 = vld [vmem:[%s593 + $0x118] sm:$0xff]
        %v1250 = vld [vmem:[%s593 + $0x120] sm:$0xff]
        %v1251 = vld [vmem:[%s593 + $0x128] sm:$0xff]
        %v1252 = vld [vmem:[%s593 + $0x130] sm:$0xff]
        %v1253 = vld [vmem:[%s593 + $0x138] sm:$0xff]
        %v1254 = vld [vmem:[%s593 + $0x140] sm:$0xff]
        %v1255 = vld [vmem:[%s593 + $0x148] sm:$0xff]
        %v1256 = vld [vmem:[%s593 + $0x150] sm:$0xff]
        %v1257 = vld [vmem:[%s593 + $0x158] sm:$0xff]
        %v1258 = vld [vmem:[%s593 + $0x160] sm:$0xff]
        %v1259 = vld [vmem:[%s593 + $0x168] sm:$0xff]
        %v1260 = vld [vmem:[%s593 + $0x170] sm:$0xff]
        %v1261 = vld [vmem:[%s593 + $0x178] sm:$0xff]
        %v1262 = vld [vmem:[%s593 + $0x180] sm:$0xff]
        %v1263 = vld [vmem:[%s593 + $0x188] sm:$0xff]
        %v1264 = vld [vmem:[%s593 + $0x190] sm:$0xff]
        %v1265 = vld [vmem:[%s593 + $0x198] sm:$0xff]
        %v1266 = vld [vmem:[%s593 + $0x1a0] sm:$0xff]
        %v1267 = vld [vmem:[%s593 + $0x1a8] sm:$0xff]
        %v1268 = vld [vmem:[%s593 + $0x1b0] sm:$0xff]
        %v1269 = vld [vmem:[%s593 + $0x1b8] sm:$0xff]
        %v1270 = vld [vmem:[%s593 + $0x1c0] sm:$0xff]
        %v1271 = vld [vmem:[%s593 + $0x1c8] sm:$0xff]
        %v1272 = vld [vmem:[%s593 + $0x1d0] sm:$0xff]
        %v1273 = vld [vmem:[%s593 + $0x1d8] sm:$0xff]
        %v1274 = vld [vmem:[%s593 + $0x1e0] sm:$0xff]
        %v1275 = vld [vmem:[%s593 + $0x1e8] sm:$0xff]
        %v1276 = vld [vmem:[%s593 + $0x1f0] sm:$0xff]
        %v1277 = vld [vmem:[%s593 + $0x1f8] sm:$0xff]
        %v1278 = vld [vmem:[%s709] sm:$0xf]
        %v1280 = vlaneseq
        %v1281 = vshrl.u32 %v1280, 7
        %v1282 = vsub.s32 0, %v1281
        %v1283 = vrot.slane %v1278, %v1282
        %v1284 = vlaneseq
        %v1285 = vshrl.u32 %v1284, 7
        %v1286 = vsub.s32 1, %v1285
        %v1287 = vrot.slane %v1278, %v1286
        %v1288 = vlaneseq
        %v1289 = vshrl.u32 %v1288, 7
        %v1290 = vsub.s32 2, %v1289
        %v1291 = vrot.slane %v1278, %v1290
        %v1292 = vlaneseq
        %v1293 = vshrl.u32 %v1292, 7
        %v1294 = vsub.s32 3, %v1293
        %v1295 = vrot.slane %v1278, %v1294
        %1300 = vmatprep.subr.mxu0 %v1215
        %1301 = vmatpush1.msra.mxu0 %v1214
        %1302 = vmatprep.subr.mxu0 %v1219
        %1303 = vmatpush1.msra.mxu0 %v1218
        %1304 = vmatprep.subr.mxu0 %v1223
        %1305 = vmatpush1.msra.mxu0 %v1222
        %1306 = vmatprep.subr.mxu0 %v1227
        %1307 = vmatpush1.msra.mxu0 %v1226
        %1308 = vmatprep.subr.mxu0 %v1231
        %1309 = vmatpush1.msra.mxu0 %v1230
        %1310 = vmatprep.subr.mxu0 %v1235
        %1311 = vmatpush1.msra.mxu0 %v1234
        %1312 = vmatprep.subr.mxu0 %v1239
        %1313 = vmatpush1.msra.mxu0 %v1238
        %1314 = vmatprep.subr.mxu0 %v1243
        %1315 = vmatpush1.msra.mxu0 %v1242
        %1316 = vmatprep.subr.mxu0 %v1247
        %1317 = vmatpush1.msra.mxu0 %v1246
        %1318 = vmatprep.subr.mxu0 %v1251
        %1319 = vmatpush1.msra.mxu0 %v1250
        %1320 = vmatprep.subr.mxu0 %v1255
        %1321 = vmatpush1.msra.mxu0 %v1254
        %1322 = vmatprep.subr.mxu0 %v1259
        %1323 = vmatpush1.msra.mxu0 %v1258
        %1324 = vmatprep.subr.mxu0 %v1263
        %1325 = vmatpush1.msra.mxu0 %v1262
        %1326 = vmatprep.subr.mxu0 %v1267
        %1327 = vmatpush1.msra.mxu0 %v1266
        %1328 = vmatprep.subr.mxu0 %v1271
        %1329 = vmatpush1.msra.mxu0 %v1270
        %1330 = vmatprep.subr.mxu0 %v1275
        %1331 = vmatpush1.msra.mxu0 %v1274
        %1332 = vmatprep.subr.mxu0 0.0
        %1333 = vmatpush1.msra.mxu0 0.0
        %1334 = vmatprep.subr.mxu0 0.0
        %1335 = vmatpush1.msra.mxu0 0.0
        %1336 = vmatprep.subr.mxu0 0.0
        %1337 = vmatpush1.msra.mxu0 0.0
        %1338 = vmatprep.subr.mxu0 0.0
        %1339 = vmatpush1.msra.mxu0 0.0
        %1340 = vmatprep.subr.mxu0 0.0
        %1341 = vmatpush1.msra.mxu0 0.0
        %1342 = vmatprep.subr.mxu0 0.0
        %1343 = vmatpush1.msra.mxu0 0.0
        %1344 = vmatprep.subr.mxu0 0.0
        %1345 = vmatpush1.msra.mxu0 0.0
        %1346 = vmatprep.subr.mxu0 0.0
        %1347 = vmatpush1.msra.mxu0 0.0
        %1348 = vmatprep.subr.mxu0 0.0
        %1349 = vmatpush1.msra.mxu0 0.0
        %1350 = vmatprep.subr.mxu0 0.0
        %1351 = vmatpush1.msra.mxu0 0.0
        %1352 = vmatprep.subr.mxu0 0.0
        %1353 = vmatpush1.msra.mxu0 0.0
        %1354 = vmatprep.subr.mxu0 0.0
        %1355 = vmatpush1.msra.mxu0 0.0
        %1356 = vmatprep.subr.mxu0 0.0
        %1357 = vmatpush1.msra.mxu0 0.0
        %1358 = vmatprep.subr.mxu0 0.0
        %1359 = vmatpush1.msra.mxu0 0.0
        %1360 = vmatprep.subr.mxu0 0.0
        %1361 = vmatpush1.msra.mxu0 0.0
        %1362 = vmatprep.subr.mxu0 0.0
        %1363 = vmatpush1.msra.mxu0 0.0
        %1364 = vmatprep.mubr.f32.mxu0 0.0
        %1365 = vmatmul.mubr.f32.gmra.mrb[0].mxu0 %v1213
        %v1366 = vpop.f32.mrb[0].mxu0
        %v1367 = vadd.f32 %v1283, %v1366
        %v1368 = vpop.f32.mrb[0].mxu0
        %v1369 = vadd.f32 %v1287, %v1368
        %1370 = vdwg.mxu0
        %1371 = vmatprep.subr.mxu0 %v1217
        %1372 = vmatpush1.msra.mxu0 %v1216
        %1373 = vmatprep.subr.mxu0 %v1221
        %1374 = vmatpush1.msra.mxu0 %v1220
        %1375 = vmatprep.subr.mxu0 %v1225
        %1376 = vmatpush1.msra.mxu0 %v1224
        %1377 = vmatprep.subr.mxu0 %v1229
        %1378 = vmatpush1.msra.mxu0 %v1228
        %1379 = vmatprep.subr.mxu0 %v1233
        %1380 = vmatpush1.msra.mxu0 %v1232
        %1381 = vmatprep.subr.mxu0 %v1237
        %1382 = vmatpush1.msra.mxu0 %v1236
        %1383 = vmatprep.subr.mxu0 %v1241
        %1384 = vmatpush1.msra.mxu0 %v1240
        %1385 = vmatprep.subr.mxu0 %v1245
        %1386 = vmatpush1.msra.mxu0 %v1244
        %1387 = vmatprep.subr.mxu0 %v1249
        %1388 = vmatpush1.msra.mxu0 %v1248
        %1389 = vmatprep.subr.mxu0 %v1253
        %1390 = vmatpush1.msra.mxu0 %v1252
        %1391 = vmatprep.subr.mxu0 %v1257
        %1392 = vmatpush1.msra.mxu0 %v1256
        %1393 = vmatprep.subr.mxu0 %v1261
        %1394 = vmatpush1.msra.mxu0 %v1260
        %1395 = vmatprep.subr.mxu0 %v1265
        %1396 = vmatpush1.msra.mxu0 %v1264
        %1397 = vmatprep.subr.mxu0 %v1269
        %1398 = vmatpush1.msra.mxu0 %v1268
        %1399 = vmatprep.subr.mxu0 %v1273
        %1400 = vmatpush1.msra.mxu0 %v1272
        %1401 = vmatprep.subr.mxu0 %v1277
        %1402 = vmatpush1.msra.mxu0 %v1276
        %1403 = vmatprep.subr.mxu0 0.0
        %1404 = vmatpush1.msra.mxu0 0.0
        %1405 = vmatprep.subr.mxu0 0.0
        %1406 = vmatpush1.msra.mxu0 0.0
        %1407 = vmatprep.subr.mxu0 0.0
        %1408 = vmatpush1.msra.mxu0 0.0
        %1409 = vmatprep.subr.mxu0 0.0
        %1410 = vmatpush1.msra.mxu0 0.0
        %1411 = vmatprep.subr.mxu0 0.0
        %1412 = vmatpush1.msra.mxu0 0.0
        %1413 = vmatprep.subr.mxu0 0.0
        %1414 = vmatpush1.msra.mxu0 0.0
        %1415 = vmatprep.subr.mxu0 0.0
        %1416 = vmatpush1.msra.mxu0 0.0
        %1417 = vmatprep.subr.mxu0 0.0
        %1418 = vmatpush1.msra.mxu0 0.0
        %1419 = vmatprep.subr.mxu0 0.0
        %1420 = vmatpush1.msra.mxu0 0.0
        %1421 = vmatprep.subr.mxu0 0.0
        %1422 = vmatpush1.msra.mxu0 0.0
        %1423 = vmatprep.subr.mxu0 0.0
        %1424 = vmatpush1.msra.mxu0 0.0
        %1425 = vmatprep.subr.mxu0 0.0
        %1426 = vmatpush1.msra.mxu0 0.0
        %1427 = vmatprep.subr.mxu0 0.0
        %1428 = vmatpush1.msra.mxu0 0.0
        %1429 = vmatprep.subr.mxu0 0.0
        %1430 = vmatpush1.msra.mxu0 0.0
        %1431 = vmatprep.subr.mxu0 0.0
        %1432 = vmatpush1.msra.mxu0 0.0
        %1433 = vmatprep.subr.mxu0 0.0
        %1434 = vmatpush1.msra.mxu0 0.0
        %1435 = vmatprep.mubr.f32.mxu0 0.0
        %1436 = vmatmul.mubr.f32.gmra.mrb[0].mxu0 %v1213
        %v1437 = vpop.f32.mrb[0].mxu0
        %v1438 = vadd.f32 %v1291, %v1437
        %v1439 = vpop.f32.mrb[0].mxu0
        %v1440 = vadd.f32 %v1295, %v1439
        %1441 = vdwg.mxu0
        %v1442 = vmax.f32 %v1367, 0.0
        %v1443 = vmax.f32 %v1369, 0.0
        %v1444 = vmax.f32 %v1438, 0.0
        %v1445 = vmax.f32 %v1440, 0.0
        %v1446 = vld [vmem:[%s602] sm:$0xff]
        %v1447 = vld [vmem:[%s602 + $0x8] sm:$0xff]
        %v1448 = vld [vmem:[%s602 + $0x10] sm:$0xff]
        %v1449 = vld [vmem:[%s602 + $0x18] sm:$0xff]
        %v1450 = vld [vmem:[%s602 + $0x20] sm:$0xff]
        %v1451 = vld [vmem:[%s602 + $0x28] sm:$0xff]
        %v1452 = vld [vmem:[%s602 + $0x30] sm:$0xff]
        %v1453 = vld [vmem:[%s602 + $0x38] sm:$0xff]
        %v1454 = vld [vmem:[%s602 + $0x40] sm:$0xff]
        %v1455 = vld [vmem:[%s602 + $0x48] sm:$0xff]
        %v1456 = vld [vmem:[%s602 + $0x50] sm:$0xff]
        %v1457 = vld [vmem:[%s602 + $0x58] sm:$0xff]
        %v1458 = vld [vmem:[%s602 + $0x60] sm:$0xff]
        %v1459 = vld [vmem:[%s602 + $0x68] sm:$0xff]
        %v1460 = vld [vmem:[%s602 + $0x70] sm:$0xff]
        %v1461 = vld [vmem:[%s602 + $0x78] sm:$0xff]
        %v1462 = vld [vmem:[%s602 + $0x80] sm:$0xff]
        %v1463 = vld [vmem:[%s602 + $0x88] sm:$0xff]
        %v1464 = vld [vmem:[%s602 + $0x90] sm:$0xff]
        %v1465 = vld [vmem:[%s602 + $0x98] sm:$0xff]
        %v1466 = vld [vmem:[%s602 + $0xa0] sm:$0xff]
        %v1467 = vld [vmem:[%s602 + $0xa8] sm:$0xff]
        %v1468 = vld [vmem:[%s602 + $0xb0] sm:$0xff]
        %v1469 = vld [vmem:[%s602 + $0xb8] sm:$0xff]
        %v1470 = vld [vmem:[%s602 + $0xc0] sm:$0xff]
        %v1471 = vld [vmem:[%s602 + $0xc8] sm:$0xff]
        %v1472 = vld [vmem:[%s602 + $0xd0] sm:$0xff]
        %v1473 = vld [vmem:[%s602 + $0xd8] sm:$0xff]
        %v1474 = vld [vmem:[%s602 + $0xe0] sm:$0xff]
        %v1475 = vld [vmem:[%s602 + $0xe8] sm:$0xff]
        %v1476 = vld [vmem:[%s602 + $0xf0] sm:$0xff]
        %v1477 = vld [vmem:[%s602 + $0xf8] sm:$0xff]
        %v1478 = vld [vmem:[%s602 + $0x100] sm:$0xff]
        %v1479 = vld [vmem:[%s602 + $0x108] sm:$0xff]
        %v1480 = vld [vmem:[%s602 + $0x110] sm:$0xff]
        %v1481 = vld [vmem:[%s602 + $0x118] sm:$0xff]
        %v1482 = vld [vmem:[%s602 + $0x120] sm:$0xff]
        %v1483 = vld [vmem:[%s602 + $0x128] sm:$0xff]
        %v1484 = vld [vmem:[%s602 + $0x130] sm:$0xff]
        %v1485 = vld [vmem:[%s602 + $0x138] sm:$0xff]
        %v1486 = vld [vmem:[%s602 + $0x140] sm:$0xff]
        %v1487 = vld [vmem:[%s602 + $0x148] sm:$0xff]
        %v1488 = vld [vmem:[%s602 + $0x150] sm:$0xff]
        %v1489 = vld [vmem:[%s602 + $0x158] sm:$0xff]
        %v1490 = vld [vmem:[%s602 + $0x160] sm:$0xff]
        %v1491 = vld [vmem:[%s602 + $0x168] sm:$0xff]
        %v1492 = vld [vmem:[%s602 + $0x170] sm:$0xff]
        %v1493 = vld [vmem:[%s602 + $0x178] sm:$0xff]
        %v1494 = vld [vmem:[%s602 + $0x180] sm:$0xff]
        %v1495 = vld [vmem:[%s602 + $0x188] sm:$0xff]
        %v1496 = vld [vmem:[%s602 + $0x190] sm:$0xff]
        %v1497 = vld [vmem:[%s602 + $0x198] sm:$0xff]
        %v1498 = vld [vmem:[%s602 + $0x1a0] sm:$0xff]
        %v1499 = vld [vmem:[%s602 + $0x1a8] sm:$0xff]
        %v1500 = vld [vmem:[%s602 + $0x1b0] sm:$0xff]
        %v1501 = vld [vmem:[%s602 + $0x1b8] sm:$0xff]
        %v1502 = vld [vmem:[%s602 + $0x1c0] sm:$0xff]
        %v1503 = vld [vmem:[%s602 + $0x1c8] sm:$0xff]
        %v1504 = vld [vmem:[%s602 + $0x1d0] sm:$0xff]
        %v1505 = vld [vmem:[%s602 + $0x1d8] sm:$0xff]
        %v1506 = vld [vmem:[%s602 + $0x1e0] sm:$0xff]
        %v1507 = vld [vmem:[%s602 + $0x1e8] sm:$0xff]
        %v1508 = vld [vmem:[%s602 + $0x1f0] sm:$0xff]
        %v1509 = vld [vmem:[%s602 + $0x1f8] sm:$0xff]
        %v1510 = vld [vmem:[%s712] sm:$0x1]
        %v1512 = vlaneseq
        %v1513 = vshrl.u32 %v1512, 7
        %v1514 = vsub.s32 0, %v1513
        %v1515 = vrot.slane %v1510, %v1514
        %1517 = vmatprep.subr.mxu0 0.0
        %1518 = vmatpush1.msra.mxu0 %v1446
        %1519 = vmatprep.subr.mxu0 0.0
        %1520 = vmatpush1.msra.mxu0 %v1447
        %1521 = vmatprep.subr.mxu0 0.0
        %1522 = vmatpush1.msra.mxu0 %v1448
        %1523 = vmatprep.subr.mxu0 0.0
        %1524 = vmatpush1.msra.mxu0 %v1449
        %1525 = vmatprep.subr.mxu0 0.0
        %1526 = vmatpush1.msra.mxu0 %v1450
        %1527 = vmatprep.subr.mxu0 0.0
        %1528 = vmatpush1.msra.mxu0 %v1451
        %1529 = vmatprep.subr.mxu0 0.0
        %1530 = vmatpush1.msra.mxu0 %v1452
        %1531 = vmatprep.subr.mxu0 0.0
        %1532 = vmatpush1.msra.mxu0 %v1453
        %1533 = vmatprep.subr.mxu0 0.0
        %1534 = vmatpush1.msra.mxu0 %v1454
        %1535 = vmatprep.subr.mxu0 0.0
        %1536 = vmatpush1.msra.mxu0 %v1455
        %1537 = vmatprep.subr.mxu0 0.0
        %1538 = vmatpush1.msra.mxu0 %v1456
        %1539 = vmatprep.subr.mxu0 0.0
        %1540 = vmatpush1.msra.mxu0 %v1457
        %1541 = vmatprep.subr.mxu0 0.0
        %1542 = vmatpush1.msra.mxu0 %v1458
        %1543 = vmatprep.subr.mxu0 0.0
        %1544 = vmatpush1.msra.mxu0 %v1459
        %1545 = vmatprep.subr.mxu0 0.0
        %1546 = vmatpush1.msra.mxu0 %v1460
        %1547 = vmatprep.subr.mxu0 0.0
        %1548 = vmatpush1.msra.mxu0 %v1461
        %1549 = vmatprep.subr.mxu0 0.0
        %1550 = vmatpush1.msra.mxu0 %v1462
        %1551 = vmatprep.subr.mxu0 0.0
        %1552 = vmatpush1.msra.mxu0 %v1463
        %1553 = vmatprep.subr.mxu0 0.0
        %1554 = vmatpush1.msra.mxu0 %v1464
        %1555 = vmatprep.subr.mxu0 0.0
        %1556 = vmatpush1.msra.mxu0 %v1465
        %1557 = vmatprep.subr.mxu0 0.0
        %1558 = vmatpush1.msra.mxu0 %v1466
        %1559 = vmatprep.subr.mxu0 0.0
        %1560 = vmatpush1.msra.mxu0 %v1467
        %1561 = vmatprep.subr.mxu0 0.0
        %1562 = vmatpush1.msra.mxu0 %v1468
        %1563 = vmatprep.subr.mxu0 0.0
        %1564 = vmatpush1.msra.mxu0 %v1469
        %1565 = vmatprep.subr.mxu0 0.0
        %1566 = vmatpush1.msra.mxu0 %v1470
        %1567 = vmatprep.subr.mxu0 0.0
        %1568 = vmatpush1.msra.mxu0 %v1471
        %1569 = vmatprep.subr.mxu0 0.0
        %1570 = vmatpush1.msra.mxu0 %v1472
        %1571 = vmatprep.subr.mxu0 0.0
        %1572 = vmatpush1.msra.mxu0 %v1473
        %1573 = vmatprep.subr.mxu0 0.0
        %1574 = vmatpush1.msra.mxu0 %v1474
        %1575 = vmatprep.subr.mxu0 0.0
        %1576 = vmatpush1.msra.mxu0 %v1475
        %1577 = vmatprep.subr.mxu0 0.0
        %1578 = vmatpush1.msra.mxu0 %v1476
        %1579 = vmatprep.subr.mxu0 0.0
        %1580 = vmatpush1.msra.mxu0 %v1477
        %1581 = vmatprep.mubr.f32.mxu0 %v1443
        %1582 = vmatmul.mubr.f32.gmra.mrb[0].mxu0 %v1442
        %v1583 = vpop.f32.mrb[0].mxu0
        %v1584 = vadd.f32 %v1515, %v1583
        %v1585 = vpop.f32.mrb[0].mxu0
        %1586 = vdwg.mxu0
        %1587 = vmatprep.subr.mxu0 0.0
        %1588 = vmatpush1.msra.mxu0 %v1478
        %1589 = vmatprep.subr.mxu0 0.0
        %1590 = vmatpush1.msra.mxu0 %v1479
        %1591 = vmatprep.subr.mxu0 0.0
        %1592 = vmatpush1.msra.mxu0 %v1480
        %1593 = vmatprep.subr.mxu0 0.0
        %1594 = vmatpush1.msra.mxu0 %v1481
        %1595 = vmatprep.subr.mxu0 0.0
        %1596 = vmatpush1.msra.mxu0 %v1482
        %1597 = vmatprep.subr.mxu0 0.0
        %1598 = vmatpush1.msra.mxu0 %v1483
        %1599 = vmatprep.subr.mxu0 0.0
        %1600 = vmatpush1.msra.mxu0 %v1484
        %1601 = vmatprep.subr.mxu0 0.0
        %1602 = vmatpush1.msra.mxu0 %v1485
        %1603 = vmatprep.subr.mxu0 0.0
        %1604 = vmatpush1.msra.mxu0 %v1486
        %1605 = vmatprep.subr.mxu0 0.0
        %1606 = vmatpush1.msra.mxu0 %v1487
        %1607 = vmatprep.subr.mxu0 0.0
        %1608 = vmatpush1.msra.mxu0 %v1488
        %1609 = vmatprep.subr.mxu0 0.0
        %1610 = vmatpush1.msra.mxu0 %v1489
        %1611 = vmatprep.subr.mxu0 0.0
        %1612 = vmatpush1.msra.mxu0 %v1490
        %1613 = vmatprep.subr.mxu0 0.0
        %1614 = vmatpush1.msra.mxu0 %v1491
        %1615 = vmatprep.subr.mxu0 0.0
        %1616 = vmatpush1.msra.mxu0 %v1492
        %1617 = vmatprep.subr.mxu0 0.0
        %1618 = vmatpush1.msra.mxu0 %v1493
        %1619 = vmatprep.subr.mxu0 0.0
        %1620 = vmatpush1.msra.mxu0 %v1494
        %1621 = vmatprep.subr.mxu0 0.0
        %1622 = vmatpush1.msra.mxu0 %v1495
        %1623 = vmatprep.subr.mxu0 0.0
        %1624 = vmatpush1.msra.mxu0 %v1496
        %1625 = vmatprep.subr.mxu0 0.0
        %1626 = vmatpush1.msra.mxu0 %v1497
        %1627 = vmatprep.subr.mxu0 0.0
        %1628 = vmatpush1.msra.mxu0 %v1498
        %1629 = vmatprep.subr.mxu0 0.0
        %1630 = vmatpush1.msra.mxu0 %v1499
        %1631 = vmatprep.subr.mxu0 0.0
        %1632 = vmatpush1.msra.mxu0 %v1500
        %1633 = vmatprep.subr.mxu0 0.0
        %1634 = vmatpush1.msra.mxu0 %v1501
        %1635 = vmatprep.subr.mxu0 0.0
        %1636 = vmatpush1.msra.mxu0 %v1502
        %1637 = vmatprep.subr.mxu0 0.0
        %1638 = vmatpush1.msra.mxu0 %v1503
        %1639 = vmatprep.subr.mxu0 0.0
        %1640 = vmatpush1.msra.mxu0 %v1504
        %1641 = vmatprep.subr.mxu0 0.0
        %1642 = vmatpush1.msra.mxu0 %v1505
        %1643 = vmatprep.subr.mxu0 0.0
        %1644 = vmatpush1.msra.mxu0 %v1506
        %1645 = vmatprep.subr.mxu0 0.0
        %1646 = vmatpush1.msra.mxu0 %v1507
        %1647 = vmatprep.subr.mxu0 0.0
        %1648 = vmatpush1.msra.mxu0 %v1508
        %1649 = vmatprep.subr.mxu0 0.0
        %1650 = vmatpush1.msra.mxu0 %v1509
        %1651 = vmatprep.mubr.f32.mxu0 %v1445
        %1652 = vmatmul.mubr.f32.gmra.mrb[0].mxu0 %v1444
        %v1653 = vpop.f32.mrb[0].mxu0
        %v1654 = vadd.f32 %v1584, %v1653
        %v1655 = vpop.f32.mrb[0].mxu0
        %1656 = vdwg.mxu0
        %v1657 = vadd.f32 %v1213, %v1654
        %v1658 = vld [vmem:[%s715] sm:$0x1]
        %v1659 = vld [vmem:[%s718] sm:$0x1]
        %1660 = vadd.xlane.f32.xlu0 %v1657
        %v1661 = vpop.xlane.xlu0 %1660
        %v1662 = vmul.f32 %v1661, %v1190
        %v1663 = vsub.f32 %v1657, %v1662
        %v1664 = vmul.f32 %v1663, %v1663
        %1665 = vadd.xlane.f32.xlu0 %v1664
        %v1666 = vpop.xlane.xlu0 %1665
        %v1667 = vmul.f32 %v1666, %v1190
        %v1668 = vadd.f32 %v1667, 1e-05
        %v1669 = vrsqrt.pop %v1668
        %v1670 = vmul.f32 %v1663, %v1669
        %v1672 = vlaneseq
        %v1673 = vshrl.u32 %v1672, 7
        %v1674 = vsub.s32 0, %v1673
        %v1675 = vrot.slane %v1658, %v1674
        %v1677 = vmul.f32 %v1670, %v1675
        %v1679 = vlaneseq
        %v1680 = vshrl.u32 %v1679, 7
        %v1681 = vsub.s32 0, %v1680
        %v1682 = vrot.slane %v1659, %v1681
        %v1684 = vadd.f32 %v1677, %v1682
        %1685 = vst [vmem:[#allocation2] sm:$0xff] %v1684
        %p1686 = scmp.eq.s32.totalorder %s38, 3
        // Predicated region
        $region93: #{transformer_pointer_loss.5} parent=71 // pred_check
          %p1687 = pneg %p1686
        $region94: #{transformer_pointer_loss.5} parent=71 // pred_check_branch
          %1689 = sbr.rel (%p1687) target = $region96
        $region95: #{transformer_pointer_loss.5} parent=71 // pred_region
          %1690 = vst [vmem:[%s722] sm:$0xff] %v1684
        $region96: #{transformer_pointer_loss.5} parent=71 // pred_fallthru
          _
        %p1691 = scmp.lt.s32.totalorder %s37, 1
        %s1692 = scalar_select %p1691, %s37, 1
        %s1693 = smul.addr %s1692, 8
        %s1694 = scalar_lea.vmem %s13, %s1693
        // Predicated region
        $region97: #{transformer_pointer_loss.5} parent=71 // pred_check
          %p1695 = pneg %p401
        $region98: #{transformer_pointer_loss.5} parent=71 // pred_check_branch
          %1697 = sbr.rel (%p1695) target = $region100
        $region99: #{transformer_pointer_loss.5} parent=71 // pred_region
          _
        $region100: #{transformer_pointer_loss.5} parent=71 // pred_fallthru
          _
      $region72: #{transformer_pointer_loss.5} parent=5 // pred_fallthru
        _
      %p1698 = scmp.le.s32.totalorder 2, %s28
      // Predicated region
      $region101: #{transformer_pointer_loss.5} parent=5 // pred_check
        %p1699 = pneg %p1698
      $region102: #{transformer_pointer_loss.5} parent=5 // pred_check_branch
        %1701 = sbr.rel (%p1699) target = $region104
      $region103: #{transformer_pointer_loss.5} parent=5 // pred_region
        %s1702 = ssub.s32 %s28, 2
        // Predicated region
        $region105: #{transformer_pointer_loss.5} parent=103 // pred_check
          %p1703 = pneg %p407
        $region106: #{transformer_pointer_loss.5} parent=103 // pred_check_branch
          %1705 = sbr.rel (%p1703) target = $region108
        $region107: #{transformer_pointer_loss.5} parent=103 // pred_region
          %p1706 = scmp.lt.s32.totalorder %s39, 1
          %s1707 = scalar_select %p1706, %s39, 1
          %s1708 = smul.addr %s1707, 8
          %s1709 = scalar_lea.vmem %s13, %s1708
        $region108: #{transformer_pointer_loss.5} parent=103 // pred_fallthru
          _
      $region104: #{transformer_pointer_loss.5} parent=5 // pred_fallthru
        _
    $region6: #{transformer_pointer_loss.5} parent=1 // loop_footer
      %s32 = sadd.s32 1, %s28
    $region7: #{transformer_pointer_loss.5} parent=1 // loop_footer_branch
      %27 = sbr.rel target = $region3
    $region8: #{transformer_pointer_loss.5} parent=1 // loop_exit
      _
    %1710 = vsyncpa [#allocation4], 1
    %s1711 = scalar_lea.sflag [#allocation4], 1
    %1712 = vsyncpa %s1711, 1
    %1713 = vsyncpa [#allocation6], 1
    %s1714 = scalar_lea.sflag [#allocation6], 1
    %1715 = vsyncpa %s1714, 1
    %1716 = vsyncpa [#allocation9], 1
    %s1717 = scalar_lea.sflag [#allocation9], 1
    %1718 = vsyncpa %s1717, 1

// kernel: transformer_pointer_loss.6
$region0: #{transformer_pointer_loss.6}
  #allocation0 [shape = 'u32[]', space=smem, size = 0x4, offset = 0x4, fixed_abs, tag = 'smem constant byte address 0x4 - core index']
  #allocation1 [shape = 'u32[144,128]{1,0:T(1,128)}', space=vmem, size = 0x12000, scoped, tag = 'internal scratch']
  #allocation2 [shape = 'f32[9,128]{1,0:T(8,128)}', space=vmem, size = 0x2000, scoped, tag = 'scratch operand']
  %s0 = inlined_call_operand.vmem [shape: f32[2,9,128], index: 0, kind: input, shape index: {}]
  %s1 = inlined_call_operand.vmem [shape: f32[2,9,128], index: 1, kind: input, shape index: {}]
  %s2 = inlined_call_operand.vmem [shape: f32[9,9], index: 2, kind: input, shape index: {}]
  %s3 = inlined_call_operand.vmem [shape: f32[2,128,384], index: 3, kind: input, shape index: {}]
  %s4 = inlined_call_operand.vmem [shape: f32[2,1,384], index: 4, kind: input, shape index: {}]
  %s5 = inlined_call_operand.vmem [shape: f32[2,128,128], index: 5, kind: input, shape index: {}]
  %s6 = inlined_call_operand.vmem [shape: f32[2,1,128], index: 6, kind: input, shape index: {}]
  %s7 = inlined_call_operand.vmem [shape: f32[2,1,128], index: 7, kind: input, shape index: {}]
  %s8 = inlined_call_operand.vmem [shape: f32[2,1,128], index: 8, kind: input, shape index: {}]
  %s9 = inlined_call_operand.vmem [shape: f32[2,128,128], index: 9, kind: input, shape index: {}]
  %s10 = inlined_call_operand.vmem [shape: f32[2,1,128], index: 10, kind: input, shape index: {}]
  %s11 = inlined_call_operand.vmem [shape: f32[2,128,256], index: 11, kind: input, shape index: {}]
  %s12 = inlined_call_operand.vmem [shape: f32[2,1,256], index: 12, kind: input, shape index: {}]
  %s13 = inlined_call_operand.vmem [shape: f32[2,128,128], index: 13, kind: input, shape index: {}]
  %s14 = inlined_call_operand.vmem [shape: f32[2,1,128], index: 14, kind: input, shape index: {}]
  %s15 = inlined_call_operand.vmem [shape: f32[2,1,128], index: 15, kind: input, shape index: {}]
  %s16 = inlined_call_operand.vmem [shape: f32[2,1,128], index: 16, kind: input, shape index: {}]
  %s17 = inlined_call_operand.vmem [shape: f32[2,128,512], index: 17, kind: input, shape index: {}]
  %s18 = inlined_call_operand.vmem [shape: f32[2,1,512], index: 18, kind: input, shape index: {}]
  %s19 = inlined_call_operand.vmem [shape: f32[2,512,128], index: 19, kind: input, shape index: {}]
  %s20 = inlined_call_operand.vmem [shape: f32[2,1,128], index: 20, kind: input, shape index: {}]
  %s21 = inlined_call_operand.vmem [shape: f32[2,1,128], index: 21, kind: input, shape index: {}]
  %s22 = inlined_call_operand.vmem [shape: f32[2,1,128], index: 22, kind: input, shape index: {}]
  %s23 = inlined_call_operand.vmem [shape: f32[2,9,128], index: 23, kind: output, shape index: {}]
  %s24 = sld [smem:[#allocation0]]
  $region133: #{transformer_pointer_loss.6} parent=0
    _
  %s26 = ssub.s32 1, %s24
  %s27 = scalar_select 0, %s26, %s24
  loop: start=0, step=1, limit=6
  $region2: #{transformer_pointer_loss.6} parent=0 // loop_pre_header
    _
  $region3: #{transformer_pointer_loss.6} parent=0 // loop_header
    %s29 = sphi 0, %s33
    %p30 = scmp.ge.s32.totalorder %s29, 6
    %s36 = sphi 0, %s48
    %s37 = sphi 0, %s44
    %s38 = sphi 0, %s36
    %s39 = sphi 0, %s37
    %s40 = sphi 0, %s38
    %s41 = sphi 0, %s39
    %s51 = sphi 0, %s53
    %s54 = sphi 0, %s51
    %s55 = sphi 0, %s54
    %s71 = sphi 0, %s55
    %s77 = sphi 0, %s79
    %s80 = sphi 0, %s77
    %s81 = sphi 0, %s80
    %s97 = sphi 0, %s81
    %s101 = sphi 0, %s101
    %s103 = sphi 0, %s101
    %s104 = sphi 0, %s103
    %s118 = sphi 0, %s104
    %s124 = sphi 0, %s126
    %s127 = sphi 0, %s124
    %s128 = sphi 0, %s127
    %s144 = sphi 0, %s128
    %s150 = sphi 0, %s152
    %s153 = sphi 0, %s150
    %s154 = sphi 0, %s153
    %s170 = sphi 0, %s154
    %s176 = sphi 0, %s178
    %s179 = sphi 0, %s176
    %s180 = sphi 0, %s179
    %s196 = sphi 0, %s180
    %s202 = sphi 0, %s204
    %s205 = sphi 0, %s202
    %s206 = sphi 0, %s205
    %s222 = sphi 0, %s206
    %s228 = sphi 0, %s230
    %s231 = sphi 0, %s228
    %s232 = sphi 0, %s231
    %s248 = sphi 0, %s232
    %s254 = sphi 0, %s256
    %s257 = sphi 0, %s254
    %s258 = sphi 0, %s257
    %s274 = sphi 0, %s258
    %s280 = sphi 0, %s282
    %s283 = sphi 0, %s280
    %s284 = sphi 0, %s283
    %s300 = sphi 0, %s284
    %s306 = sphi 0, %s308
    %s309 = sphi 0, %s306
    %s310 = sphi 0, %s309
    %s326 = sphi 0, %s310
    %s332 = sphi 0, %s334
    %s335 = sphi 0, %s332
    %s336 = sphi 0, %s335
    %s352 = sphi 0, %s336
    %s358 = sphi 0, %s360
    %s361 = sphi 0, %s358
    %s362 = sphi 0, %s361
    %s378 = sphi 0, %s362
    %s384 = sphi 0, %s386
    %s387 = sphi 0, %s384
    %s388 = sphi 0, %s387
    %s404 = sphi 0, %s388
    %s410 = sphi 0, %s412
    %s413 = sphi 0, %s410
    %s414 = sphi 0, %s413
    %s430 = sphi 0, %s414
    %s436 = sphi 0, %s438
    %s439 = sphi 0, %s436
    %s440 = sphi 0, %s439
    %s456 = sphi 0, %s440
    %s462 = sphi 0, %s464
    %s465 = sphi 0, %s462
    %s466 = sphi 0, %s465
    %s482 = sphi 0, %s466
    %s488 = sphi 0, %s490
    %s491 = sphi 0, %s488
    %s492 = sphi 0, %s491
    %s508 = sphi 0, %s492
    %s514 = sphi 0, %s516
    %s517 = sphi 0, %s514
    %s518 = sphi 0, %s517
    %s534 = sphi 0, %s518
    %s540 = sphi 0, %s542
    %s543 = sphi 0, %s540
    %s544 = sphi 0, %s543
    %s560 = sphi 0, %s544
    %s566 = sphi 0, %s568
    %s569 = sphi 0, %s566
    %s570 = sphi 0, %s569
    %s586 = sphi 0, %s570
    %s592 = sphi 0, %s594
    %s595 = sphi 0, %s592
    %s596 = sphi 0, %s595
    %s612 = sphi 0, %s596
    %s618 = sphi 0, %s620
    %s621 = sphi 0, %s618
    %s622 = sphi 0, %s621
    %s638 = sphi 0, %s622
    %s644 = sphi 0, %s646
    %s647 = sphi 0, %s644
    %s648 = sphi 0, %s647
    %s664 = sphi 0, %s648
  $region4: #{transformer_pointer_loss.6} parent=0 // loop_header_branch
    %32 = sbr.rel (%p30) target = $region8
  $region5: #{transformer_pointer_loss.6} parent=0 // loop_body
    %s34 = ssub.s32 %s29, 1
    %s35 = ssub.s32 %s29, 2
    %s42 = sadd.s32 1, %s37
    %p43 = scmp.ge.s32.totalorder %s42, 2
    %s44 = scalar_select %p43, 0, %s42
    %s45 = sadd.s32 1, %s36
    %s46 = scalar_select %p43, %s45, %s36
    %p47 = scmp.ge.s32.totalorder %s46, 2
    %s48 = scalar_select %p47, 0, %s46
    %s49 = ssub.s32 %s36, %s48
    %p50 = scmp.eq.s32.totalorder %s49, 0
    %s52 = sadd.s32 %s51, 1
    %s53 = scalar_select %p50, %s51, %s52
    %p56 = pneg %p50
    %p57 = scmp.eq.s32.totalorder %s29, 3
    %p58 = por %p56, %p57
    %p59 = scmp.ne.s32.totalorder %s51, %s54
    %p60 = scmp.eq.s32.totalorder %s29, 0
    %p61 = por %p59, %p60
    %p62 = scmp.ne.s32.totalorder %s51, %s54
    %p63 = scmp.eq.s32.totalorder %s34, 3
    %p64 = por %p62, %p63
    %p65 = scmp.ne.s32.totalorder %s54, %s55
    %p66 = scmp.eq.s32.totalorder %s34, 0
    %p67 = por %p65, %p66
    %p68 = scmp.ne.s32.totalorder %s54, %s55
    %p69 = scmp.eq.s32.totalorder %s35, 3
    %p70 = por %p68, %p69
    %p72 = scmp.ne.s32.totalorder %s55, %s71
    %p73 = scmp.eq.s32.totalorder %s35, 0
    %p74 = por %p72, %p73
    %s75 = ssub.s32 %s36, %s48
    %p76 = scmp.eq.s32.totalorder %s75, 0
    %s78 = sadd.s32 %s77, 1
    %s79 = scalar_select %p76, %s77, %s78
    %p82 = pneg %p76
    %p83 = scmp.eq.s32.totalorder %s29, 3
    %p84 = por %p82, %p83
    %p85 = scmp.ne.s32.totalorder %s77, %s80
    %p86 = scmp.eq.s32.totalorder %s29, 0
    %p87 = por %p85, %p86
    %p88 = scmp.ne.s32.totalorder %s77, %s80
    %p89 = scmp.eq.s32.totalorder %s34, 3
    %p90 = por %p88, %p89
    %p91 = scmp.ne.s32.totalorder %s80, %s81
    %p92 = scmp.eq.s32.totalorder %s34, 0
    %p93 = por %p91, %p92
    %p94 = scmp.ne.s32.totalorder %s80, %s81
    %p95 = scmp.eq.s32.totalorder %s35, 3
    %p96 = por %p94, %p95
    %p98 = scmp.ne.s32.totalorder %s81, %s97
    %p99 = scmp.eq.s32.totalorder %s35, 0
    %p100 = por %p98, %p99
    %s102 = sadd.s32 %s101, 1
    %p105 = scmp.eq.s32.totalorder %s29, 3
    %p106 = scmp.ne.s32.totalorder %s101, %s103
    %p107 = scmp.eq.s32.totalorder %s29, 0
    %p108 = por %p106, %p107
    %p109 = scmp.ne.s32.totalorder %s101, %s103
    %p110 = scmp.eq.s32.totalorder %s34, 3
    %p111 = por %p109, %p110
    %p112 = scmp.ne.s32.totalorder %s103, %s104
    %p113 = scmp.eq.s32.totalorder %s34, 0
    %p114 = por %p112, %p113
    %p115 = scmp.ne.s32.totalorder %s103, %s104
    %p116 = scmp.eq.s32.totalorder %s35, 3
    %p117 = por %p115, %p116
    %p119 = scmp.ne.s32.totalorder %s104, %s118
    %p120 = scmp.eq.s32.totalorder %s35, 0
    %p121 = por %p119, %p120
    %s122 = ssub.s32 %s37, %s44
    %p123 = scmp.eq.s32.totalorder %s122, 0
    %s125 = sadd.s32 %s124, 1
    %s126 = scalar_select %p123, %s124, %s125
    %p129 = pneg %p123
    %p130 = scmp.eq.s32.totalorder %s29, 3
    %p131 = por %p129, %p130
    %p132 = scmp.ne.s32.totalorder %s124, %s127
    %p133 = scmp.eq.s32.totalorder %s29, 0
    %p134 = por %p132, %p133
    %p135 = scmp.ne.s32.totalorder %s124, %s127
    %p136 = scmp.eq.s32.totalorder %s34, 3
    %p137 = por %p135, %p136
    %p138 = scmp.ne.s32.totalorder %s127, %s128
    %p139 = scmp.eq.s32.totalorder %s34, 0
    %p140 = por %p138, %p139
    %p141 = scmp.ne.s32.totalorder %s127, %s128
    %p142 = scmp.eq.s32.totalorder %s35, 3
    %p143 = por %p141, %p142
    %p145 = scmp.ne.s32.totalorder %s128, %s144
    %p146 = scmp.eq.s32.totalorder %s35, 0
    %p147 = por %p145, %p146
    %s148 = ssub.s32 %s37, %s44
    %p149 = scmp.eq.s32.totalorder %s148, 0
    %s151 = sadd.s32 %s150, 1
    %s152 = scalar_select %p149, %s150, %s151
    %p155 = pneg %p149
    %p156 = scmp.eq.s32.totalorder %s29, 3
    %p157 = por %p155, %p156
    %p158 = scmp.ne.s32.totalorder %s150, %s153
    %p159 = scmp.eq.s32.totalorder %s29, 0
    %p160 = por %p158, %p159
    %p161 = scmp.ne.s32.totalorder %s150, %s153
    %p162 = scmp.eq.s32.totalorder %s34, 3
    %p163 = por %p161, %p162
    %p164 = scmp.ne.s32.totalorder %s153, %s154
    %p165 = scmp.eq.s32.totalorder %s34, 0
    %p166 = por %p164, %p165
    %p167 = scmp.ne.s32.totalorder %s153, %s154
    %p168 = scmp.eq.s32.totalorder %s35, 3
    %p169 = por %p167, %p168
    %p171 = scmp.ne.s32.totalorder %s154, %s170
    %p172 = scmp.eq.s32.totalorder %s35, 0
    %p173 = por %p171, %p172
    %s174 = ssub.s32 %s37, %s44
    %p175 = scmp.eq.s32.totalorder %s174, 0
    %s177 = sadd.s32 %s176, 1
    %s178 = scalar_select %p175, %s176, %s177
    %p181 = pneg %p175
    %p182 = scmp.eq.s32.totalorder %s29, 3
    %p183 = por %p181, %p182
    %p184 = scmp.ne.s32.totalorder %s176, %s179
    %p185 = scmp.eq.s32.totalorder %s29, 0
    %p186 = por %p184, %p185
    %p187 = scmp.ne.s32.totalorder %s176, %s179
    %p188 = scmp.eq.s32.totalorder %s34, 3
    %p189 = por %p187, %p188
    %p190 = scmp.ne.s32.totalorder %s179, %s180
    %p191 = scmp.eq.s32.totalorder %s34, 0
    %p192 = por %p190, %p191
    %p193 = scmp.ne.s32.totalorder %s179, %s180
    %p194 = scmp.eq.s32.totalorder %s35, 3
    %p195 = por %p193, %p194
    %p197 = scmp.ne.s32.totalorder %s180, %s196
    %p198 = scmp.eq.s32.totalorder %s35, 0
    %p199 = por %p197, %p198
    %s200 = ssub.s32 %s37, %s44
    %p201 = scmp.eq.s32.totalorder %s200, 0
    %s203 = sadd.s32 %s202, 1
    %s204 = scalar_select %p201, %s202, %s203
    %p207 = pneg %p201
    %p208 = scmp.eq.s32.totalorder %s29, 3
    %p209 = por %p207, %p208
    %p210 = scmp.ne.s32.totalorder %s202, %s205
    %p211 = scmp.eq.s32.totalorder %s29, 0
    %p212 = por %p210, %p211
    %p213 = scmp.ne.s32.totalorder %s202, %s205
    %p214 = scmp.eq.s32.totalorder %s34, 3
    %p215 = por %p213, %p214
    %p216 = scmp.ne.s32.totalorder %s205, %s206
    %p217 = scmp.eq.s32.totalorder %s34, 0
    %p218 = por %p216, %p217
    %p219 = scmp.ne.s32.totalorder %s205, %s206
    %p220 = scmp.eq.s32.totalorder %s35, 3
    %p221 = por %p219, %p220
    %p223 = scmp.ne.s32.totalorder %s206, %s222
    %p224 = scmp.eq.s32.totalorder %s35, 0
    %p225 = por %p223, %p224
    %s226 = ssub.s32 %s37, %s44
    %p227 = scmp.eq.s32.totalorder %s226, 0
    %s229 = sadd.s32 %s228, 1
    %s230 = scalar_select %p227, %s228, %s229
    %p233 = pneg %p227
    %p234 = scmp.eq.s32.totalorder %s29, 3
    %p235 = por %p233, %p234
    %p236 = scmp.ne.s32.totalorder %s228, %s231
    %p237 = scmp.eq.s32.totalorder %s29, 0
    %p238 = por %p236, %p237
    %p239 = scmp.ne.s32.totalorder %s228, %s231
    %p240 = scmp.eq.s32.totalorder %s34, 3
    %p241 = por %p239, %p240
    %p242 = scmp.ne.s32.totalorder %s231, %s232
    %p243 = scmp.eq.s32.totalorder %s34, 0
    %p244 = por %p242, %p243
    %p245 = scmp.ne.s32.totalorder %s231, %s232
    %p246 = scmp.eq.s32.totalorder %s35, 3
    %p247 = por %p245, %p246
    %p249 = scmp.ne.s32.totalorder %s232, %s248
    %p250 = scmp.eq.s32.totalorder %s35, 0
    %p251 = por %p249, %p250
    %s252 = ssub.s32 %s37, %s44
    %p253 = scmp.eq.s32.totalorder %s252, 0
    %s255 = sadd.s32 %s254, 1
    %s256 = scalar_select %p253, %s254, %s255
    %p259 = pneg %p253
    %p260 = scmp.eq.s32.totalorder %s29, 3
    %p261 = por %p259, %p260
    %p262 = scmp.ne.s32.totalorder %s254, %s257
    %p263 = scmp.eq.s32.totalorder %s29, 0
    %p264 = por %p262, %p263
    %p265 = scmp.ne.s32.totalorder %s254, %s257
    %p266 = scmp.eq.s32.totalorder %s34, 3
    %p267 = por %p265, %p266
    %p268 = scmp.ne.s32.totalorder %s257, %s258
    %p269 = scmp.eq.s32.totalorder %s34, 0
    %p270 = por %p268, %p269
    %p271 = scmp.ne.s32.totalorder %s257, %s258
    %p272 = scmp.eq.s32.totalorder %s35, 3
    %p273 = por %p271, %p272
    %p275 = scmp.ne.s32.totalorder %s258, %s274
    %p276 = scmp.eq.s32.totalorder %s35, 0
    %p277 = por %p275, %p276
    %s278 = ssub.s32 %s37, %s44
    %p279 = scmp.eq.s32.totalorder %s278, 0
    %s281 = sadd.s32 %s280, 1
    %s282 = scalar_select %p279, %s280, %s281
    %p285 = pneg %p279
    %p286 = scmp.eq.s32.totalorder %s29, 3
    %p287 = por %p285, %p286
    %p288 = scmp.ne.s32.totalorder %s280, %s283
    %p289 = scmp.eq.s32.totalorder %s29, 0
    %p290 = por %p288, %p289
    %p291 = scmp.ne.s32.totalorder %s280, %s283
    %p292 = scmp.eq.s32.totalorder %s34, 3
    %p293 = por %p291, %p292
    %p294 = scmp.ne.s32.totalorder %s283, %s284
    %p295 = scmp.eq.s32.totalorder %s34, 0
    %p296 = por %p294, %p295
    %p297 = scmp.ne.s32.totalorder %s283, %s284
    %p298 = scmp.eq.s32.totalorder %s35, 3
    %p299 = por %p297, %p298
    %p301 = scmp.ne.s32.totalorder %s284, %s300
    %p302 = scmp.eq.s32.totalorder %s35, 0
    %p303 = por %p301, %p302
    %s304 = ssub.s32 %s37, %s44
    %p305 = scmp.eq.s32.totalorder %s304, 0
    %s307 = sadd.s32 %s306, 1
    %s308 = scalar_select %p305, %s306, %s307
    %p311 = pneg %p305
    %p312 = scmp.eq.s32.totalorder %s29, 3
    %p313 = por %p311, %p312
    %p314 = scmp.ne.s32.totalorder %s306, %s309
    %p315 = scmp.eq.s32.totalorder %s29, 0
    %p316 = por %p314, %p315
    %p317 = scmp.ne.s32.totalorder %s306, %s309
    %p318 = scmp.eq.s32.totalorder %s34, 3
    %p319 = por %p317, %p318
    %p320 = scmp.ne.s32.totalorder %s309, %s310
    %p321 = scmp.eq.s32.totalorder %s34, 0
    %p322 = por %p320, %p321
    %p323 = scmp.ne.s32.totalorder %s309, %s310
    %p324 = scmp.eq.s32.totalorder %s35, 3
    %p325 = por %p323, %p324
    %p327 = scmp.ne.s32.totalorder %s310, %s326
    %p328 = scmp.eq.s32.totalorder %s35, 0
    %p329 = por %p327, %p328
    %s330 = ssub.s32 %s37, %s44
    %p331 = scmp.eq.s32.totalorder %s330, 0
    %s333 = sadd.s32 %s332, 1
    %s334 = scalar_select %p331, %s332, %s333
    %p337 = pneg %p331
    %p338 = scmp.eq.s32.totalorder %s29, 3
    %p339 = por %p337, %p338
    %p340 = scmp.ne.s32.totalorder %s332, %s335
    %p341 = scmp.eq.s32.totalorder %s29, 0
    %p342 = por %p340, %p341
    %p343 = scmp.ne.s32.totalorder %s332, %s335
    %p344 = scmp.eq.s32.totalorder %s34, 3
    %p345 = por %p343, %p344
    %p346 = scmp.ne.s32.totalorder %s335, %s336
    %p347 = scmp.eq.s32.totalorder %s34, 0
    %p348 = por %p346, %p347
    %p349 = scmp.ne.s32.totalorder %s335, %s336
    %p350 = scmp.eq.s32.totalorder %s35, 3
    %p351 = por %p349, %p350
    %p353 = scmp.ne.s32.totalorder %s336, %s352
    %p354 = scmp.eq.s32.totalorder %s35, 0
    %p355 = por %p353, %p354
    %s356 = ssub.s32 %s37, %s44
    %p357 = scmp.eq.s32.totalorder %s356, 0
    %s359 = sadd.s32 %s358, 1
    %s360 = scalar_select %p357, %s358, %s359
    %p363 = pneg %p357
    %p364 = scmp.eq.s32.totalorder %s29, 3
    %p365 = por %p363, %p364
    %p366 = scmp.ne.s32.totalorder %s358, %s361
    %p367 = scmp.eq.s32.totalorder %s29, 0
    %p368 = por %p366, %p367
    %p369 = scmp.ne.s32.totalorder %s358, %s361
    %p370 = scmp.eq.s32.totalorder %s34, 3
    %p371 = por %p369, %p370
    %p372 = scmp.ne.s32.totalorder %s361, %s362
    %p373 = scmp.eq.s32.totalorder %s34, 0
    %p374 = por %p372, %p373
    %p375 = scmp.ne.s32.totalorder %s361, %s362
    %p376 = scmp.eq.s32.totalorder %s35, 3
    %p377 = por %p375, %p376
    %p379 = scmp.ne.s32.totalorder %s362, %s378
    %p380 = scmp.eq.s32.totalorder %s35, 0
    %p381 = por %p379, %p380
    %s382 = ssub.s32 %s37, %s44
    %p383 = scmp.eq.s32.totalorder %s382, 0
    %s385 = sadd.s32 %s384, 1
    %s386 = scalar_select %p383, %s384, %s385
    %p389 = pneg %p383
    %p390 = scmp.eq.s32.totalorder %s29, 3
    %p391 = por %p389, %p390
    %p392 = scmp.ne.s32.totalorder %s384, %s387
    %p393 = scmp.eq.s32.totalorder %s29, 0
    %p394 = por %p392, %p393
    %p395 = scmp.ne.s32.totalorder %s384, %s387
    %p396 = scmp.eq.s32.totalorder %s34, 3
    %p397 = por %p395, %p396
    %p398 = scmp.ne.s32.totalorder %s387, %s388
    %p399 = scmp.eq.s32.totalorder %s34, 0
    %p400 = por %p398, %p399
    %p401 = scmp.ne.s32.totalorder %s387, %s388
    %p402 = scmp.eq.s32.totalorder %s35, 3
    %p403 = por %p401, %p402
    %p405 = scmp.ne.s32.totalorder %s388, %s404
    %p406 = scmp.eq.s32.totalorder %s35, 0
    %p407 = por %p405, %p406
    %s408 = ssub.s32 %s37, %s44
    %p409 = scmp.eq.s32.totalorder %s408, 0
    %s411 = sadd.s32 %s410, 1
    %s412 = scalar_select %p409, %s410, %s411
    %p415 = pneg %p409
    %p416 = scmp.eq.s32.totalorder %s29, 3
    %p417 = por %p415, %p416
    %p418 = scmp.ne.s32.totalorder %s410, %s413
    %p419 = scmp.eq.s32.totalorder %s29, 0
    %p420 = por %p418, %p419
    %p421 = scmp.ne.s32.totalorder %s410, %s413
    %p422 = scmp.eq.s32.totalorder %s34, 3
    %p423 = por %p421, %p422
    %p424 = scmp.ne.s32.totalorder %s413, %s414
    %p425 = scmp.eq.s32.totalorder %s34, 0
    %p426 = por %p424, %p425
    %p427 = scmp.ne.s32.totalorder %s413, %s414
    %p428 = scmp.eq.s32.totalorder %s35, 3
    %p429 = por %p427, %p428
    %p431 = scmp.ne.s32.totalorder %s414, %s430
    %p432 = scmp.eq.s32.totalorder %s35, 0
    %p433 = por %p431, %p432
    %s434 = ssub.s32 %s37, %s44
    %p435 = scmp.eq.s32.totalorder %s434, 0
    %s437 = sadd.s32 %s436, 1
    %s438 = scalar_select %p435, %s436, %s437
    %p441 = pneg %p435
    %p442 = scmp.eq.s32.totalorder %s29, 3
    %p443 = por %p441, %p442
    %p444 = scmp.ne.s32.totalorder %s436, %s439
    %p445 = scmp.eq.s32.totalorder %s29, 0
    %p446 = por %p444, %p445
    %p447 = scmp.ne.s32.totalorder %s436, %s439
    %p448 = scmp.eq.s32.totalorder %s34, 3
    %p449 = por %p447, %p448
    %p450 = scmp.ne.s32.totalorder %s439, %s440
    %p451 = scmp.eq.s32.totalorder %s34, 0
    %p452 = por %p450, %p451
    %p453 = scmp.ne.s32.totalorder %s439, %s440
    %p454 = scmp.eq.s32.totalorder %s35, 3
    %p455 = por %p453, %p454
    %p457 = scmp.ne.s32.totalorder %s440, %s456
    %p458 = scmp.eq.s32.totalorder %s35, 0
    %p459 = por %p457, %p458
    %s460 = ssub.s32 %s37, %s44
    %p461 = scmp.eq.s32.totalorder %s460, 0
    %s463 = sadd.s32 %s462, 1
    %s464 = scalar_select %p461, %s462, %s463
    %p467 = pneg %p461
    %p468 = scmp.eq.s32.totalorder %s29, 3
    %p469 = por %p467, %p468
    %p470 = scmp.ne.s32.totalorder %s462, %s465
    %p471 = scmp.eq.s32.totalorder %s29, 0
    %p472 = por %p470, %p471
    %p473 = scmp.ne.s32.totalorder %s462, %s465
    %p474 = scmp.eq.s32.totalorder %s34, 3
    %p475 = por %p473, %p474
    %p476 = scmp.ne.s32.totalorder %s465, %s466
    %p477 = scmp.eq.s32.totalorder %s34, 0
    %p478 = por %p476, %p477
    %p479 = scmp.ne.s32.totalorder %s465, %s466
    %p480 = scmp.eq.s32.totalorder %s35, 3
    %p481 = por %p479, %p480
    %p483 = scmp.ne.s32.totalorder %s466, %s482
    %p484 = scmp.eq.s32.totalorder %s35, 0
    %p485 = por %p483, %p484
    %s486 = ssub.s32 %s37, %s44
    %p487 = scmp.eq.s32.totalorder %s486, 0
    %s489 = sadd.s32 %s488, 1
    %s490 = scalar_select %p487, %s488, %s489
    %p493 = pneg %p487
    %p494 = scmp.eq.s32.totalorder %s29, 3
    %p495 = por %p493, %p494
    %p496 = scmp.ne.s32.totalorder %s488, %s491
    %p497 = scmp.eq.s32.totalorder %s29, 0
    %p498 = por %p496, %p497
    %p499 = scmp.ne.s32.totalorder %s488, %s491
    %p500 = scmp.eq.s32.totalorder %s34, 3
    %p501 = por %p499, %p500
    %p502 = scmp.ne.s32.totalorder %s491, %s492
    %p503 = scmp.eq.s32.totalorder %s34, 0
    %p504 = por %p502, %p503
    %p505 = scmp.ne.s32.totalorder %s491, %s492
    %p506 = scmp.eq.s32.totalorder %s35, 3
    %p507 = por %p505, %p506
    %p509 = scmp.ne.s32.totalorder %s492, %s508
    %p510 = scmp.eq.s32.totalorder %s35, 0
    %p511 = por %p509, %p510
    %s512 = ssub.s32 %s37, %s44
    %p513 = scmp.eq.s32.totalorder %s512, 0
    %s515 = sadd.s32 %s514, 1
    %s516 = scalar_select %p513, %s514, %s515
    %p519 = pneg %p513
    %p520 = scmp.eq.s32.totalorder %s29, 3
    %p521 = por %p519, %p520
    %p522 = scmp.ne.s32.totalorder %s514, %s517
    %p523 = scmp.eq.s32.totalorder %s29, 0
    %p524 = por %p522, %p523
    %p525 = scmp.ne.s32.totalorder %s514, %s517
    %p526 = scmp.eq.s32.totalorder %s34, 3
    %p527 = por %p525, %p526
    %p528 = scmp.ne.s32.totalorder %s517, %s518
    %p529 = scmp.eq.s32.totalorder %s34, 0
    %p530 = por %p528, %p529
    %p531 = scmp.ne.s32.totalorder %s517, %s518
    %p532 = scmp.eq.s32.totalorder %s35, 3
    %p533 = por %p531, %p532
    %p535 = scmp.ne.s32.totalorder %s518, %s534
    %p536 = scmp.eq.s32.totalorder %s35, 0
    %p537 = por %p535, %p536
    %s538 = ssub.s32 %s37, %s44
    %p539 = scmp.eq.s32.totalorder %s538, 0
    %s541 = sadd.s32 %s540, 1
    %s542 = scalar_select %p539, %s540, %s541
    %p545 = pneg %p539
    %p546 = scmp.eq.s32.totalorder %s29, 3
    %p547 = por %p545, %p546
    %p548 = scmp.ne.s32.totalorder %s540, %s543
    %p549 = scmp.eq.s32.totalorder %s29, 0
    %p550 = por %p548, %p549
    %p551 = scmp.ne.s32.totalorder %s540, %s543
    %p552 = scmp.eq.s32.totalorder %s34, 3
    %p553 = por %p551, %p552
    %p554 = scmp.ne.s32.totalorder %s543, %s544
    %p555 = scmp.eq.s32.totalorder %s34, 0
    %p556 = por %p554, %p555
    %p557 = scmp.ne.s32.totalorder %s543, %s544
    %p558 = scmp.eq.s32.totalorder %s35, 3
    %p559 = por %p557, %p558
    %p561 = scmp.ne.s32.totalorder %s544, %s560
    %p562 = scmp.eq.s32.totalorder %s35, 0
    %p563 = por %p561, %p562
    %s564 = ssub.s32 %s37, %s44
    %p565 = scmp.eq.s32.totalorder %s564, 0
    %s567 = sadd.s32 %s566, 1
    %s568 = scalar_select %p565, %s566, %s567
    %p571 = pneg %p565
    %p572 = scmp.eq.s32.totalorder %s29, 3
    %p573 = por %p571, %p572
    %p574 = scmp.ne.s32.totalorder %s566, %s569
    %p575 = scmp.eq.s32.totalorder %s29, 0
    %p576 = por %p574, %p575
    %p577 = scmp.ne.s32.totalorder %s566, %s569
    %p578 = scmp.eq.s32.totalorder %s34, 3
    %p579 = por %p577, %p578
    %p580 = scmp.ne.s32.totalorder %s569, %s570
    %p581 = scmp.eq.s32.totalorder %s34, 0
    %p582 = por %p580, %p581
    %p583 = scmp.ne.s32.totalorder %s569, %s570
    %p584 = scmp.eq.s32.totalorder %s35, 3
    %p585 = por %p583, %p584
    %p587 = scmp.ne.s32.totalorder %s570, %s586
    %p588 = scmp.eq.s32.totalorder %s35, 0
    %p589 = por %p587, %p588
    %s590 = ssub.s32 %s37, %s44
    %p591 = scmp.eq.s32.totalorder %s590, 0
    %s593 = sadd.s32 %s592, 1
    %s594 = scalar_select %p591, %s592, %s593
    %p597 = pneg %p591
    %p598 = scmp.eq.s32.totalorder %s29, 3
    %p599 = por %p597, %p598
    %p600 = scmp.ne.s32.totalorder %s592, %s595
    %p601 = scmp.eq.s32.totalorder %s29, 0
    %p602 = por %p600, %p601
    %p603 = scmp.ne.s32.totalorder %s592, %s595
    %p604 = scmp.eq.s32.totalorder %s34, 3
    %p605 = por %p603, %p604
    %p606 = scmp.ne.s32.totalorder %s595, %s596
    %p607 = scmp.eq.s32.totalorder %s34, 0
    %p608 = por %p606, %p607
    %p609 = scmp.ne.s32.totalorder %s595, %s596
    %p610 = scmp.eq.s32.totalorder %s35, 3
    %p611 = por %p609, %p610
    %p613 = scmp.ne.s32.totalorder %s596, %s612
    %p614 = scmp.eq.s32.totalorder %s35, 0
    %p615 = por %p613, %p614
    %s616 = ssub.s32 %s37, %s44
    %p617 = scmp.eq.s32.totalorder %s616, 0
    %s619 = sadd.s32 %s618, 1
    %s620 = scalar_select %p617, %s618, %s619
    %p623 = pneg %p617
    %p624 = scmp.eq.s32.totalorder %s29, 3
    %p625 = por %p623, %p624
    %p626 = scmp.ne.s32.totalorder %s618, %s621
    %p627 = scmp.eq.s32.totalorder %s29, 0
    %p628 = por %p626, %p627
    %p629 = scmp.ne.s32.totalorder %s618, %s621
    %p630 = scmp.eq.s32.totalorder %s34, 3
    %p631 = por %p629, %p630
    %p632 = scmp.ne.s32.totalorder %s621, %s622
    %p633 = scmp.eq.s32.totalorder %s34, 0
    %p634 = por %p632, %p633
    %p635 = scmp.ne.s32.totalorder %s621, %s622
    %p636 = scmp.eq.s32.totalorder %s35, 3
    %p637 = por %p635, %p636
    %p639 = scmp.ne.s32.totalorder %s622, %s638
    %p640 = scmp.eq.s32.totalorder %s35, 0
    %p641 = por %p639, %p640
    %s642 = ssub.s32 %s36, %s48
    %p643 = scmp.eq.s32.totalorder %s642, 0
    %s645 = sadd.s32 %s644, 1
    %s646 = scalar_select %p643, %s644, %s645
    %p649 = pneg %p643
    %p650 = scmp.eq.s32.totalorder %s29, 3
    %p651 = por %p649, %p650
    %p652 = scmp.ne.s32.totalorder %s644, %s647
    %p653 = scmp.eq.s32.totalorder %s29, 0
    %p654 = por %p652, %p653
    %p655 = scmp.ne.s32.totalorder %s644, %s647
    %p656 = scmp.eq.s32.totalorder %s34, 3
    %p657 = por %p655, %p656
    %p658 = scmp.ne.s32.totalorder %s647, %s648
    %p659 = scmp.eq.s32.totalorder %s34, 0
    %p660 = por %p658, %p659
    %p661 = scmp.ne.s32.totalorder %s647, %s648
    %p662 = scmp.eq.s32.totalorder %s35, 3
    %p663 = por %p661, %p662
    %p665 = scmp.ne.s32.totalorder %s648, %s664
    %p666 = scmp.eq.s32.totalorder %s35, 0
    %p667 = por %p665, %p666
    %p668 = scmp.le.s32.totalorder 1, %s29
    %p669 = scmp.lt.s32.totalorder %s29, 5
    %p670 = pnand %p668, %p669
    %p671 = pneg %p670
    // Predicated region
    $region9: #{transformer_pointer_loss.6} parent=5 // pred_check
      _
    $region10: #{transformer_pointer_loss.6} parent=5 // pred_check_branch
      %673 = sbr.rel (%p670) target = $region12
    $region11: #{transformer_pointer_loss.6} parent=5 // pred_region
      %s674 = ssub.s32 %s29, 1
      // Predicated region
      $region13: #{transformer_pointer_loss.6} parent=11 // pred_check
        %p675 = pneg %p114
      $region14: #{transformer_pointer_loss.6} parent=11 // pred_check_branch
        %677 = sbr.rel (%p675) target = $region16
      $region15: #{transformer_pointer_loss.6} parent=11 // pred_region
        _
      $region16: #{transformer_pointer_loss.6} parent=11 // pred_fallthru
        _
    $region12: #{transformer_pointer_loss.6} parent=5 // pred_fallthru
      _
    %p678 = scmp.lt.s32.totalorder %s29, 4
    // Predicated region
    $region17: #{transformer_pointer_loss.6} parent=5 // pred_check
      %p679 = pneg %p678
    $region18: #{transformer_pointer_loss.6} parent=5 // pred_check_branch
      %681 = sbr.rel (%p679) target = $region20
    $region19: #{transformer_pointer_loss.6} parent=5 // pred_region
      // Predicated region
      $region21: #{transformer_pointer_loss.6} parent=19 // pred_check
        %p682 = pneg %p61
      $region22: #{transformer_pointer_loss.6} parent=19 // pred_check_branch
        %684 = sbr.rel (%p682) target = $region24
      $region23: #{transformer_pointer_loss.6} parent=19 // pred_region
        %p685 = scmp.lt.s32.totalorder %s36, 1
        %s686 = scalar_select %p685, %s36, 1
        %s687 = smul.addr %s686, 2
        %s688 = smul.addr %s687, 8
        %s689 = scalar_lea.vmem %s0, %s688
      $region24: #{transformer_pointer_loss.6} parent=19 // pred_fallthru
        _
      // Predicated region
      $region25: #{transformer_pointer_loss.6} parent=19 // pred_check
        %p690 = pneg %p87
      $region26: #{transformer_pointer_loss.6} parent=19 // pred_check_branch
        %692 = sbr.rel (%p690) target = $region28
      $region27: #{transformer_pointer_loss.6} parent=19 // pred_region
        %p693 = scmp.lt.s32.totalorder %s36, 1
        %s694 = scalar_select %p693, %s36, 1
        %s695 = smul.addr %s694, 2
        %s696 = smul.addr %s695, 8
        %s697 = scalar_lea.vmem %s1, %s696
      $region28: #{transformer_pointer_loss.6} parent=19 // pred_fallthru
        _
      // Predicated region
      $region29: #{transformer_pointer_loss.6} parent=19 // pred_check
        %p698 = pneg %p134
      $region30: #{transformer_pointer_loss.6} parent=19 // pred_check_branch
        %700 = sbr.rel (%p698) target = $region32
      $region31: #{transformer_pointer_loss.6} parent=19 // pred_region
        %p701 = scmp.lt.s32.totalorder %s37, 1
        %s702 = scalar_select %p701, %s37, 1
        %s703 = smul.addr %s702, 48
        %s704 = smul.addr %s703, 8
        %s705 = scalar_lea.vmem %s3, %s704
      $region32: #{transformer_pointer_loss.6} parent=19 // pred_fallthru
        _
      // Predicated region
      $region33: #{transformer_pointer_loss.6} parent=19 // pred_check
        %p706 = pneg %p160
      $region34: #{transformer_pointer_loss.6} parent=19 // pred_check_branch
        %708 = sbr.rel (%p706) target = $region36
      $region35: #{transformer_pointer_loss.6} parent=19 // pred_region
        %p709 = scmp.lt.s32.totalorder %s37, 1
        %s710 = scalar_select %p709, %s37, 1
        %s711 = smul.addr %s710, 3
        %s712 = scalar_lea.vmem %s4, %s711
      $region36: #{transformer_pointer_loss.6} parent=19 // pred_fallthru
        _
      // Predicated region
      $region37: #{transformer_pointer_loss.6} parent=19 // pred_check
        %p713 = pneg %p186
      $region38: #{transformer_pointer_loss.6} parent=19 // pred_check_branch
        %715 = sbr.rel (%p713) target = $region40
      $region39: #{transformer_pointer_loss.6} parent=19 // pred_region
        %p716 = scmp.lt.s32.totalorder %s37, 1
        %s717 = scalar_select %p716, %s37, 1
        %s718 = smul.addr %s717, 16
        %s719 = smul.addr %s718, 8
        %s720 = scalar_lea.vmem %s5, %s719
      $region40: #{transformer_pointer_loss.6} parent=19 // pred_fallthru
        _
      // Predicated region
      $region41: #{transformer_pointer_loss.6} parent=19 // pred_check
        %p721 = pneg %p212
      $region42: #{transformer_pointer_loss.6} parent=19 // pred_check_branch
        %723 = sbr.rel (%p721) target = $region44
      $region43: #{transformer_pointer_loss.6} parent=19 // pred_region
        %p724 = scmp.lt.s32.totalorder %s37, 1
        %s725 = scalar_select %p724, %s37, 1
        %s726 = scalar_lea.vmem %s6, %s725
      $region44: #{transformer_pointer_loss.6} parent=19 // pred_fallthru
        _
      // Predicated region
      $region45: #{transformer_pointer_loss.6} parent=19 // pred_check
        %p727 = pneg %p238
      $region46: #{transformer_pointer_loss.6} parent=19 // pred_check_branch
        %729 = sbr.rel (%p727) target = $region48
      $region47: #{transformer_pointer_loss.6} parent=19 // pred_region
        %p730 = scmp.lt.s32.totalorder %s37, 1
        %s731 = scalar_select %p730, %s37, 1
        %s732 = scalar_lea.vmem %s7, %s731
      $region48: #{transformer_pointer_loss.6} parent=19 // pred_fallthru
        _
      // Predicated region
      $region49: #{transformer_pointer_loss.6} parent=19 // pred_check
        %p733 = pneg %p264
      $region50: #{transformer_pointer_loss.6} parent=19 // pred_check_branch
        %735 = sbr.rel (%p733) target = $region52
      $region51: #{transformer_pointer_loss.6} parent=19 // pred_region
        %p736 = scmp.lt.s32.totalorder %s37, 1
        %s737 = scalar_select %p736, %s37, 1
        %s738 = scalar_lea.vmem %s8, %s737
      $region52: #{transformer_pointer_loss.6} parent=19 // pred_fallthru
        _
      // Predicated region
      $region53: #{transformer_pointer_loss.6} parent=19 // pred_check
        %p739 = pneg %p290
      $region54: #{transformer_pointer_loss.6} parent=19 // pred_check_branch
        %741 = sbr.rel (%p739) target = $region56
      $region55: #{transformer_pointer_loss.6} parent=19 // pred_region
        %p742 = scmp.lt.s32.totalorder %s37, 1
        %s743 = scalar_select %p742, %s37, 1
        %s744 = smul.addr %s743, 16
        %s745 = smul.addr %s744, 8
        %s746 = scalar_lea.vmem %s9, %s745
      $region56: #{transformer_pointer_loss.6} parent=19 // pred_fallthru
        _
      // Predicated region
      $region57: #{transformer_pointer_loss.6} parent=19 // pred_check
        %p747 = pneg %p316
      $region58: #{transformer_pointer_loss.6} parent=19 // pred_check_branch
        %749 = sbr.rel (%p747) target = $region60
      $region59: #{transformer_pointer_loss.6} parent=19 // pred_region
        %p750 = scmp.lt.s32.totalorder %s37, 1
        %s751 = scalar_select %p750, %s37, 1
        %s752 = scalar_lea.vmem %s10, %s751
      $region60: #{transformer_pointer_loss.6} parent=19 // pred_fallthru
        _
      // Predicated region
      $region61: #{transformer_pointer_loss.6} parent=19 // pred_check
        %p753 = pneg %p342
      $region62: #{transformer_pointer_loss.6} parent=19 // pred_check_branch
        %755 = sbr.rel (%p753) target = $region64
      $region63: #{transformer_pointer_loss.6} parent=19 // pred_region
        %p756 = scmp.lt.s32.totalorder %s37, 1
        %s757 = scalar_select %p756, %s37, 1
        %s758 = smul.addr %s757, 32
        %s759 = smul.addr %s758, 8
        %s760 = scalar_lea.vmem %s11, %s759
      $region64: #{transformer_pointer_loss.6} parent=19 // pred_fallthru
        _
      // Predicated region
      $region65: #{transformer_pointer_loss.6} parent=19 // pred_check
        %p761 = pneg %p368
      $region66: #{transformer_pointer_loss.6} parent=19 // pred_check_branch
        %763 = sbr.rel (%p761) target = $region68
      $region67: #{transformer_pointer_loss.6} parent=19 // pred_region
        %p764 = scmp.lt.s32.totalorder %s37, 1
        %s765 = scalar_select %p764, %s37, 1
        %s766 = smul.addr %s765, 2
        %s767 = scalar_lea.vmem %s12, %s766
      $region68: #{transformer_pointer_loss.6} parent=19 // pred_fallthru
        _
      // Predicated region
      $region69: #{transformer_pointer_loss.6} parent=19 // pred_check
        %p768 = pneg %p394
      $region70: #{transformer_pointer_loss.6} parent=19 // pred_check_branch
        %770 = sbr.rel (%p768) target = $region72
      $region71: #{transformer_pointer_loss.6} parent=19 // pred_region
        %p771 = scmp.lt.s32.totalorder %s37, 1
        %s772 = scalar_select %p771, %s37, 1
        %s773 = smul.addr %s772, 16
        %s774 = smul.addr %s773, 8
        %s775 = scalar_lea.vmem %s13, %s774
      $region72: #{transformer_pointer_loss.6} parent=19 // pred_fallthru
        _
      // Predicated region
      $region73: #{transformer_pointer_loss.6} parent=19 // pred_check
        %p776 = pneg %p420
      $region74: #{transformer_pointer_loss.6} parent=19 // pred_check_branch
        %778 = sbr.rel (%p776) target = $region76
      $region75: #{transformer_pointer_loss.6} parent=19 // pred_region
        %p779 = scmp.lt.s32.totalorder %s37, 1
        %s780 = scalar_select %p779, %s37, 1
        %s781 = scalar_lea.vmem %s14, %s780
      $region76: #{transformer_pointer_loss.6} parent=19 // pred_fallthru
        _
      // Predicated region
      $region77: #{transformer_pointer_loss.6} parent=19 // pred_check
        %p782 = pneg %p446
      $region78: #{transformer_pointer_loss.6} parent=19 // pred_check_branch
        %784 = sbr.rel (%p782) target = $region80
      $region79: #{transformer_pointer_loss.6} parent=19 // pred_region
        %p785 = scmp.lt.s32.totalorder %s37, 1
        %s786 = scalar_select %p785, %s37, 1
        %s787 = scalar_lea.vmem %s15, %s786
      $region80: #{transformer_pointer_loss.6} parent=19 // pred_fallthru
        _
      // Predicated region
      $region81: #{transformer_pointer_loss.6} parent=19 // pred_check
        %p788 = pneg %p472
      $region82: #{transformer_pointer_loss.6} parent=19 // pred_check_branch
        %790 = sbr.rel (%p788) target = $region84
      $region83: #{transformer_pointer_loss.6} parent=19 // pred_region
        %p791 = scmp.lt.s32.totalorder %s37, 1
        %s792 = scalar_select %p791, %s37, 1
        %s793 = scalar_lea.vmem %s16, %s792
      $region84: #{transformer_pointer_loss.6} parent=19 // pred_fallthru
        _
      // Predicated region
      $region85: #{transformer_pointer_loss.6} parent=19 // pred_check
        %p794 = pneg %p498
      $region86: #{transformer_pointer_loss.6} parent=19 // pred_check_branch
        %796 = sbr.rel (%p794) target = $region88
      $region87: #{transformer_pointer_loss.6} parent=19 // pred_region
        %p797 = scmp.lt.s32.totalorder %s37, 1
        %s798 = scalar_select %p797, %s37, 1
        %s799 = smul.addr %s798, 64
        %s800 = smul.addr %s799, 8
        %s801 = scalar_lea.vmem %s17, %s800
      $region88: #{transformer_pointer_loss.6} parent=19 // pred_fallthru
        _
      // Predicated region
      $region89: #{transformer_pointer_loss.6} parent=19 // pred_check
        %p802 = pneg %p524
      $region90: #{transformer_pointer_loss.6} parent=19 // pred_check_branch
        %804 = sbr.rel (%p802) target = $region92
      $region91: #{transformer_pointer_loss.6} parent=19 // pred_region
        %p805 = scmp.lt.s32.totalorder %s37, 1
        %s806 = scalar_select %p805, %s37, 1
        %s807 = smul.addr %s806, 4
        %s808 = scalar_lea.vmem %s18, %s807
      $region92: #{transformer_pointer_loss.6} parent=19 // pred_fallthru
        _
      // Predicated region
      $region93: #{transformer_pointer_loss.6} parent=19 // pred_check
        %p809 = pneg %p550
      $region94: #{transformer_pointer_loss.6} parent=19 // pred_check_branch
        %811 = sbr.rel (%p809) target = $region96
      $region95: #{transformer_pointer_loss.6} parent=19 // pred_region
        %p812 = scmp.lt.s32.totalorder %s37, 1
        %s813 = scalar_select %p812, %s37, 1
        %s814 = smul.addr %s813, 64
        %s815 = smul.addr %s814, 8
        %s816 = scalar_lea.vmem %s19, %s815
      $region96: #{transformer_pointer_loss.6} parent=19 // pred_fallthru
        _
      // Predicated region
      $region97: #{transformer_pointer_loss.6} parent=19 // pred_check
        %p817 = pneg %p576
      $region98: #{transformer_pointer_loss.6} parent=19 // pred_check_branch
        %819 = sbr.rel (%p817) target = $region100
      $region99: #{transformer_pointer_loss.6} parent=19 // pred_region
        %p820 = scmp.lt.s32.totalorder %s37, 1
        %s821 = scalar_select %p820, %s37, 1
        %s822 = scalar_lea.vmem %s20, %s821
      $region100: #{transformer_pointer_loss.6} parent=19 // pred_fallthru
        _
      // Predicated region
      $region101: #{transformer_pointer_loss.6} parent=19 // pred_check
        %p823 = pneg %p602
      $region102: #{transformer_pointer_loss.6} parent=19 // pred_check_branch
        %825 = sbr.rel (%p823) target = $region104
      $region103: #{transformer_pointer_loss.6} parent=19 // pred_region
        %p826 = scmp.lt.s32.totalorder %s37, 1
        %s827 = scalar_select %p826, %s37, 1
        %s828 = scalar_lea.vmem %s21, %s827
      $region104: #{transformer_pointer_loss.6} parent=19 // pred_fallthru
        _
      // Predicated region
      $region105: #{transformer_pointer_loss.6} parent=19 // pred_check
        %p829 = pneg %p628
      $region106: #{transformer_pointer_loss.6} parent=19 // pred_check_branch
        %831 = sbr.rel (%p829) target = $region108
      $region107: #{transformer_pointer_loss.6} parent=19 // pred_region
        %p832 = scmp.lt.s32.totalorder %s37, 1
        %s833 = scalar_select %p832, %s37, 1
        %s834 = scalar_lea.vmem %s22, %s833
      $region108: #{transformer_pointer_loss.6} parent=19 // pred_fallthru
        _
    $region20: #{transformer_pointer_loss.6} parent=5 // pred_fallthru
      _
    %p835 = scmp.le.s32.totalorder 1, %s29
    %p836 = scmp.lt.s32.totalorder %s29, 5
    %p837 = pnand %p835, %p836
    %p838 = pneg %p837
    // Predicated region
    $region109: #{transformer_pointer_loss.6} parent=5 // pred_check
      _
    $region110: #{transformer_pointer_loss.6} parent=5 // pred_check_branch
      %840 = sbr.rel (%p837) target = $region112
    $region111: #{transformer_pointer_loss.6} parent=5 // pred_region
      %s841 = ssub.s32 %s29, 1
      %p842 = scmp.lt.s32.totalorder %s38, 1
      %s843 = scalar_select %p842, %s38, 1
      %s844 = smul.addr %s843, 2
      %s845 = smul.addr %s844, 8
      %s846 = scalar_lea.vmem %s0, %s845
      %p847 = pneg %p67
      %p848 = pneg %p64
      %p849 = scmp.lt.s32.totalorder %s38, 1
      %s850 = scalar_select %p849, %s38, 1
      %s851 = smul.addr %s850, 2
      %s852 = smul.addr %s851, 8
      %s853 = scalar_lea.vmem %s1, %s852
      %p854 = pneg %p93
      %p855 = pneg %p90
      %p856 = pneg %p114
      %p857 = pneg %p111
      %p858 = scmp.lt.s32.totalorder %s39, 1
      %s859 = scalar_select %p858, %s39, 1
      %s860 = smul.addr %s859, 48
      %s861 = smul.addr %s860, 8
      %s862 = scalar_lea.vmem %s3, %s861
      %p863 = pneg %p140
      %p864 = pneg %p137
      %p865 = scmp.lt.s32.totalorder %s39, 1
      %s866 = scalar_select %p865, %s39, 1
      %s867 = smul.addr %s866, 3
      %s868 = scalar_lea.vmem %s4, %s867
      %p869 = pneg %p166
      %p870 = pneg %p163
      %p871 = scmp.lt.s32.totalorder %s39, 1
      %s872 = scalar_select %p871, %s39, 1
      %s873 = smul.addr %s872, 16
      %s874 = smul.addr %s873, 8
      %s875 = scalar_lea.vmem %s5, %s874
      %p876 = pneg %p192
      %p877 = pneg %p189
      %p878 = scmp.lt.s32.totalorder %s39, 1
      %s879 = scalar_select %p878, %s39, 1
      %s880 = scalar_lea.vmem %s6, %s879
      %p881 = pneg %p218
      %p882 = pneg %p215
      %p883 = scmp.lt.s32.totalorder %s39, 1
      %s884 = scalar_select %p883, %s39, 1
      %s885 = scalar_lea.vmem %s7, %s884
      %p886 = pneg %p244
      %p887 = pneg %p241
      %p888 = scmp.lt.s32.totalorder %s39, 1
      %s889 = scalar_select %p888, %s39, 1
      %s890 = scalar_lea.vmem %s8, %s889
      %p891 = pneg %p270
      %p892 = pneg %p267
      %p893 = scmp.lt.s32.totalorder %s39, 1
      %s894 = scalar_select %p893, %s39, 1
      %s895 = smul.addr %s894, 16
      %s896 = smul.addr %s895, 8
      %s897 = scalar_lea.vmem %s9, %s896
      %p898 = pneg %p296
      %p899 = pneg %p293
      %p900 = scmp.lt.s32.totalorder %s39, 1
      %s901 = scalar_select %p900, %s39, 1
      %s902 = scalar_lea.vmem %s10, %s901
      %p903 = pneg %p322
      %p904 = pneg %p319
      %p905 = scmp.lt.s32.totalorder %s39, 1
      %s906 = scalar_select %p905, %s39, 1
      %s907 = smul.addr %s906, 32
      %s908 = smul.addr %s907, 8
      %s909 = scalar_lea.vmem %s11, %s908
      %p910 = pneg %p348
      %p911 = pneg %p345
      %p912 = scmp.lt.s32.totalorder %s39, 1
      %s913 = scalar_select %p912, %s39, 1
      %s914 = smul.addr %s913, 2
      %s915 = scalar_lea.vmem %s12, %s914
      %p916 = pneg %p374
      %p917 = pneg %p371
      %p918 = scmp.lt.s32.totalorder %s39, 1
      %s919 = scalar_select %p918, %s39, 1
      %s920 = smul.addr %s919, 16
      %s921 = smul.addr %s920, 8
      %s922 = scalar_lea.vmem %s13, %s921
      %p923 = pneg %p400
      %p924 = pneg %p397
      %p925 = scmp.lt.s32.totalorder %s39, 1
      %s926 = scalar_select %p925, %s39, 1
      %s927 = scalar_lea.vmem %s14, %s926
      %p928 = pneg %p426
      %p929 = pneg %p423
      %p930 = scmp.lt.s32.totalorder %s39, 1
      %s931 = scalar_select %p930, %s39, 1
      %s932 = scalar_lea.vmem %s15, %s931
      %p933 = pneg %p452
      %p934 = pneg %p449
      %p935 = scmp.lt.s32.totalorder %s39, 1
      %s936 = scalar_select %p935, %s39, 1
      %s937 = scalar_lea.vmem %s16, %s936
      %p938 = pneg %p478
      %p939 = pneg %p475
      %p940 = scmp.lt.s32.totalorder %s39, 1
      %s941 = scalar_select %p940, %s39, 1
      %s942 = smul.addr %s941, 64
      %s943 = smul.addr %s942, 8
      %s944 = scalar_lea.vmem %s17, %s943
      %p945 = pneg %p504
      %p946 = pneg %p501
      %p947 = scmp.lt.s32.totalorder %s39, 1
      %s948 = scalar_select %p947, %s39, 1
      %s949 = smul.addr %s948, 4
      %s950 = scalar_lea.vmem %s18, %s949
      %p951 = pneg %p530
      %p952 = pneg %p527
      %p953 = scmp.lt.s32.totalorder %s39, 1
      %s954 = scalar_select %p953, %s39, 1
      %s955 = smul.addr %s954, 64
      %s956 = smul.addr %s955, 8
      %s957 = scalar_lea.vmem %s19, %s956
      %p958 = pneg %p556
      %p959 = pneg %p553
      %p960 = scmp.lt.s32.totalorder %s39, 1
      %s961 = scalar_select %p960, %s39, 1
      %s962 = scalar_lea.vmem %s20, %s961
      %p963 = pneg %p582
      %p964 = pneg %p579
      %p965 = scmp.lt.s32.totalorder %s39, 1
      %s966 = scalar_select %p965, %s39, 1
      %s967 = scalar_lea.vmem %s21, %s966
      %p968 = pneg %p608
      %p969 = pneg %p605
      %p970 = scmp.lt.s32.totalorder %s39, 1
      %s971 = scalar_select %p970, %s39, 1
      %s972 = scalar_lea.vmem %s22, %s971
      %p973 = pneg %p634
      %p974 = pneg %p631
      %p975 = pneg %p660
      %p976 = pneg %p657
      %p977 = scmp.lt.s32.totalorder %s38, 1
      %s978 = scalar_select %p977, %s38, 1
      %s979 = smul.addr %s978, 2
      %s980 = smul.addr %s979, 8
      %s981 = scalar_lea.vmem %s23, %s980
      %p982 = scmp.lt.s32.totalorder %s38, 1
      %s983 = scalar_select %p982, %s38, 1
      %s984 = smul.addr %s983, 2
      %s985 = smul.addr %s984, 8
      %s986 = scalar_lea.vmem %s0, %s985
      %p987 = scmp.lt.s32.totalorder %s38, 1
      %s988 = scalar_select %p987, %s38, 1
      %s989 = smul.addr %s988, 2
      %s990 = smul.addr %s989, 8
      %s991 = scalar_lea.vmem %s1, %s990
      %p992 = scmp.lt.s32.totalorder %s39, 1
      %s993 = scalar_select %p992, %s39, 1
      %s994 = smul.addr %s993, 48
      %s995 = smul.addr %s994, 8
      %s996 = scalar_lea.vmem %s3, %s995
      %p997 = scmp.lt.s32.totalorder %s39, 1
      %s998 = scalar_select %p997, %s39, 1
      %s999 = smul.addr %s998, 3
      %s1000 = scalar_lea.vmem %s4, %s999
      %p1001 = scmp.lt.s32.totalorder %s39, 1
      %s1002 = scalar_select %p1001, %s39, 1
      %s1003 = smul.addr %s1002, 16
      %s1004 = smul.addr %s1003, 8
      %s1005 = scalar_lea.vmem %s5, %s1004
      %p1006 = scmp.lt.s32.totalorder %s39, 1
      %s1007 = scalar_select %p1006, %s39, 1
      %s1008 = scalar_lea.vmem %s6, %s1007
      %p1009 = scmp.lt.s32.totalorder %s39, 1
      %s1010 = scalar_select %p1009, %s39, 1
      %s1011 = scalar_lea.vmem %s7, %s1010
      %p1012 = scmp.lt.s32.totalorder %s39, 1
      %s1013 = scalar_select %p1012, %s39, 1
      %s1014 = scalar_lea.vmem %s8, %s1013
      %p1015 = scmp.lt.s32.totalorder %s39, 1
      %s1016 = scalar_select %p1015, %s39, 1
      %s1017 = smul.addr %s1016, 16
      %s1018 = smul.addr %s1017, 8
      %s1019 = scalar_lea.vmem %s9, %s1018
      %p1020 = scmp.lt.s32.totalorder %s39, 1
      %s1021 = scalar_select %p1020, %s39, 1
      %s1022 = scalar_lea.vmem %s10, %s1021
      %p1023 = scmp.lt.s32.totalorder %s39, 1
      %s1024 = scalar_select %p1023, %s39, 1
      %s1025 = smul.addr %s1024, 32
      %s1026 = smul.addr %s1025, 8
      %s1027 = scalar_lea.vmem %s11, %s1026
      %p1028 = scmp.lt.s32.totalorder %s39, 1
      %s1029 = scalar_select %p1028, %s39, 1
      %s1030 = smul.addr %s1029, 2
      %s1031 = scalar_lea.vmem %s12, %s1030
      %p1032 = scmp.lt.s32.totalorder %s39, 1
      %s1033 = scalar_select %p1032, %s39, 1
      %s1034 = smul.addr %s1033, 16
      %s1035 = smul.addr %s1034, 8
      %s1036 = scalar_lea.vmem %s13, %s1035
      %p1037 = scmp.lt.s32.totalorder %s39, 1
      %s1038 = scalar_select %p1037, %s39, 1
      %s1039 = scalar_lea.vmem %s14, %s1038
      %p1040 = scmp.lt.s32.totalorder %s39, 1
      %s1041 = scalar_select %p1040, %s39, 1
      %s1042 = scalar_lea.vmem %s15, %s1041
      %p1043 = scmp.lt.s32.totalorder %s39, 1
      %s1044 = scalar_select %p1043, %s39, 1
      %s1045 = scalar_lea.vmem %s16, %s1044
      %p1046 = scmp.lt.s32.totalorder %s39, 1
      %s1047 = scalar_select %p1046, %s39, 1
      %s1048 = smul.addr %s1047, 64
      %s1049 = smul.addr %s1048, 8
      %s1050 = scalar_lea.vmem %s17, %s1049
      %p1051 = scmp.lt.s32.totalorder %s39, 1
      %s1052 = scalar_select %p1051, %s39, 1
      %s1053 = smul.addr %s1052, 4
      %s1054 = scalar_lea.vmem %s18, %s1053
      %p1055 = scmp.lt.s32.totalorder %s39, 1
      %s1056 = scalar_select %p1055, %s39, 1
      %s1057 = smul.addr %s1056, 64
      %s1058 = smul.addr %s1057, 8
      %s1059 = scalar_lea.vmem %s19, %s1058
      %p1060 = scmp.lt.s32.totalorder %s39, 1
      %s1061 = scalar_select %p1060, %s39, 1
      %s1062 = scalar_lea.vmem %s20, %s1061
      %p1063 = scmp.lt.s32.totalorder %s39, 1
      %s1064 = scalar_select %p1063, %s39, 1
      %s1065 = scalar_lea.vmem %s21, %s1064
      %p1066 = scmp.lt.s32.totalorder %s39, 1
      %s1067 = scalar_select %p1066, %s39, 1
      %s1068 = scalar_lea.vmem %s22, %s1067
      %p1069 = scmp.lt.s32.totalorder %s38, 1
      %s1070 = scalar_select %p1069, %s38, 1
      %s1071 = smul.addr %s1070, 2
      %s1072 = smul.addr %s1071, 8
      %s1073 = scalar_lea.vmem %s23, %s1072
      %p1074 = scmp.eq.s32.totalorder %s39, 0
      // Predicated region
      $region113: #{transformer_pointer_loss.6} parent=111 // pred_check
        %p1075 = pneg %p1074
      $region114: #{transformer_pointer_loss.6} parent=111 // pred_check_branch
        %1077 = sbr.rel (%p1075) target = $region116
      $region115: #{transformer_pointer_loss.6} parent=111 // pred_region
        %v1078 = vld [vmem:[%s986] sm:$0xff]
        %v1079 = vld [vmem:[%s986 + $0x8] sm:$0x1]
        %1080 = vst [vmem:[#allocation2] sm:$0xff] %v1078
        %1081 = vst [vmem:[#allocation2 + $0x8] sm:$0x1] %v1079
      $region116: #{transformer_pointer_loss.6} parent=111 // pred_fallthru
        _
      %v1082 = vld [vmem:[#allocation2] sm:$0xff]
      %v1083 = vld [vmem:[#allocation2 + $0x8] sm:$0x1]
      %v1084 = vld [vmem:[%s991] sm:$0xff]
      %v1085 = vld [vmem:[%s991 + $0x8] sm:$0x1]
      %v1086 = vld [vmem:[%s996] sm:$0xff]
      %v1087 = vld [vmem:[%s996 + $0x8] sm:$0xff]
      %v1088 = vld [vmem:[%s996 + $0x10] sm:$0xff]
      %v1089 = vld [vmem:[%s996 + $0x18] sm:$0xff]
      %v1090 = vld [vmem:[%s996 + $0x20] sm:$0xff]
      %v1091 = vld [vmem:[%s996 + $0x28] sm:$0xff]
      %v1092 = vld [vmem:[%s996 + $0x30] sm:$0xff]
      %v1093 = vld [vmem:[%s996 + $0x38] sm:$0xff]
      %v1094 = vld [vmem:[%s996 + $0x40] sm:$0xff]
      %v1095 = vld [vmem:[%s996 + $0x48] sm:$0xff]
      %v1096 = vld [vmem:[%s996 + $0x50] sm:$0xff]
      %v1097 = vld [vmem:[%s996 + $0x58] sm:$0xff]
      %v1098 = vld [vmem:[%s996 + $0x60] sm:$0xff]
      %v1099 = vld [vmem:[%s996 + $0x68] sm:$0xff]
      %v1100 = vld [vmem:[%s996 + $0x70] sm:$0xff]
      %v1101 = vld [vmem:[%s996 + $0x78] sm:$0xff]
      %v1102 = vld [vmem:[%s996 + $0x80] sm:$0xff]
      %v1103 = vld [vmem:[%s996 + $0x88] sm:$0xff]
      %v1104 = vld [vmem:[%s996 + $0x90] sm:$0xff]
      %v1105 = vld [vmem:[%s996 + $0x98] sm:$0xff]
      %v1106 = vld [vmem:[%s996 + $0xa0] sm:$0xff]
      %v1107 = vld [vmem:[%s996 + $0xa8] sm:$0xff]
      %v1108 = vld [vmem:[%s996 + $0xb0] sm:$0xff]
      %v1109 = vld [vmem:[%s996 + $0xb8] sm:$0xff]
      %v1110 = vld [vmem:[%s996 + $0xc0] sm:$0xff]
      %v1111 = vld [vmem:[%s996 + $0xc8] sm:$0xff]
      %v1112 = vld [vmem:[%s996 + $0xd0] sm:$0xff]
      %v1113 = vld [vmem:[%s996 + $0xd8] sm:$0xff]
      %v1114 = vld [vmem:[%s996 + $0xe0] sm:$0xff]
      %v1115 = vld [vmem:[%s996 + $0xe8] sm:$0xff]
      %v1116 = vld [vmem:[%s996 + $0xf0] sm:$0xff]
      %v1117 = vld [vmem:[%s996 + $0xf8] sm:$0xff]
      %v1118 = vld [vmem:[%s996 + $0x100] sm:$0xff]
      %v1119 = vld [vmem:[%s996 + $0x108] sm:$0xff]
      %v1120 = vld [vmem:[%s996 + $0x110] sm:$0xff]
      %v1121 = vld [vmem:[%s996 + $0x118] sm:$0xff]
      %v1122 = vld [vmem:[%s996 + $0x120] sm:$0xff]
      %v1123 = vld [vmem:[%s996 + $0x128] sm:$0xff]
      %v1124 = vld [vmem:[%s996 + $0x130] sm:$0xff]
      %v1125 = vld [vmem:[%s996 + $0x138] sm:$0xff]
      %v1126 = vld [vmem:[%s996 + $0x140] sm:$0xff]
      %v1127 = vld [vmem:[%s996 + $0x148] sm:$0xff]
      %v1128 = vld [vmem:[%s996 + $0x150] sm:$0xff]
      %v1129 = vld [vmem:[%s996 + $0x158] sm:$0xff]
      %v1130 = vld [vmem:[%s996 + $0x160] sm:$0xff]
      %v1131 = vld [vmem:[%s996 + $0x168] sm:$0xff]
      %v1132 = vld [vmem:[%s996 + $0x170] sm:$0xff]
      %v1133 = vld [vmem:[%s996 + $0x178] sm:$0xff]
      %v1134 = vld [vmem:[%s1000] sm:$0x7]
      %v1136 = vlaneseq
      %v1137 = vshrl.u32 %v1136, 7
      %v1138 = vsub.s32 0, %v1137
      %v1139 = vrot.slane %v1134, %v1138
      %v1140 = vlaneseq
      %v1141 = vshrl.u32 %v1140, 7
      %v1142 = vsub.s32 1, %v1141
      %v1143 = vrot.slane %v1134, %v1142
      %v1144 = vlaneseq
      %v1145 = vshrl.u32 %v1144, 7
      %v1146 = vsub.s32 2, %v1145
      %v1147 = vrot.slane %v1134, %v1146
      %1151 = vmatprep.subr.mxu0 %v1087
      %1152 = vmatpush1.msra.mxu0 %v1086
      %1153 = vmatprep.subr.mxu0 %v1090
      %1154 = vmatpush1.msra.mxu0 %v1089
      %1155 = vmatprep.subr.mxu0 %v1093
      %1156 = vmatpush1.msra.mxu0 %v1092
      %1157 = vmatprep.subr.mxu0 %v1096
      %1158 = vmatpush1.msra.mxu0 %v1095
      %1159 = vmatprep.subr.mxu0 %v1099
      %1160 = vmatpush1.msra.mxu0 %v1098
      %1161 = vmatprep.subr.mxu0 %v1102
      %1162 = vmatpush1.msra.mxu0 %v1101
      %1163 = vmatprep.subr.mxu0 %v1105
      %1164 = vmatpush1.msra.mxu0 %v1104
      %1165 = vmatprep.subr.mxu0 %v1108
      %1166 = vmatpush1.msra.mxu0 %v1107
      %1167 = vmatprep.subr.mxu0 %v1111
      %1168 = vmatpush1.msra.mxu0 %v1110
      %1169 = vmatprep.subr.mxu0 %v1114
      %1170 = vmatpush1.msra.mxu0 %v1113
      %1171 = vmatprep.subr.mxu0 %v1117
      %1172 = vmatpush1.msra.mxu0 %v1116
      %1173 = vmatprep.subr.mxu0 %v1120
      %1174 = vmatpush1.msra.mxu0 %v1119
      %1175 = vmatprep.subr.mxu0 %v1123
      %1176 = vmatpush1.msra.mxu0 %v1122
      %1177 = vmatprep.subr.mxu0 %v1126
      %1178 = vmatpush1.msra.mxu0 %v1125
      %1179 = vmatprep.subr.mxu0 %v1129
      %1180 = vmatpush1.msra.mxu0 %v1128
      %1181 = vmatprep.subr.mxu0 %v1132
      %1182 = vmatpush1.msra.mxu0 %v1131
      %1183 = vmatprep.subr.mxu0 0.0
      %1184 = vmatpush1.msra.mxu0 0.0
      %1185 = vmatprep.subr.mxu0 0.0
      %1186 = vmatpush1.msra.mxu0 0.0
      %1187 = vmatprep.subr.mxu0 0.0
      %1188 = vmatpush1.msra.mxu0 0.0
      %1189 = vmatprep.subr.mxu0 0.0
      %1190 = vmatpush1.msra.mxu0 0.0
      %1191 = vmatprep.subr.mxu0 0.0
      %1192 = vmatpush1.msra.mxu0 0.0
      %1193 = vmatprep.subr.mxu0 0.0
      %1194 = vmatpush1.msra.mxu0 0.0
      %1195 = vmatprep.subr.mxu0 0.0
      %1196 = vmatpush1.msra.mxu0 0.0
      %1197 = vmatprep.subr.mxu0 0.0
      %1198 = vmatpush1.msra.mxu0 0.0
      %1199 = vmatprep.subr.mxu0 0.0
      %1200 = vmatpush1.msra.mxu0 0.0
      %1201 = vmatprep.subr.mxu0 0.0
      %1202 = vmatpush1.msra.mxu0 0.0
      %1203 = vmatprep.subr.mxu0 0.0
      %1204 = vmatpush1.msra.mxu0 0.0
      %1205 = vmatprep.subr.mxu0 0.0
      %1206 = vmatpush1.msra.mxu0 0.0
      %1207 = vmatprep.subr.mxu0 0.0
      %1208 = vmatpush1.msra.mxu0 0.0
      %1209 = vmatprep.subr.mxu0 0.0
      %1210 = vmatpush1.msra.mxu0 0.0
      %1211 = vmatprep.subr.mxu0 0.0
      %1212 = vmatpush1.msra.mxu0 0.0
      %1213 = vmatprep.subr.mxu0 0.0
      %1214 = vmatpush1.msra.mxu0 0.0
      %1215 = vmatprep.mubr.f32.mxu0 0.0
      %1216 = vmatmul.mubr.f32.gmra.mrb[0].mxu0 %v1082
      %v1217 = vpop.f32.mrb[0].mxu0
      %v1218 = vadd.f32 %v1139, %v1217
      %v1219 = vpop.f32.mrb[0].mxu0
      %v1220 = vadd.f32 %v1143, %v1219
      %1221 = vmatprep.mubr.f32.mxu0 0.0
      %1222 = vmatmul.mubr.f32.gmra.mrb[0].mxu0 %v1083
      %v1223 = vpop.f32.mrb[0].mxu0
      %v1224 = vadd.f32 %v1139, %v1223
      %v1225 = vpop.f32.mrb[0].mxu0
      %v1226 = vadd.f32 %v1143, %v1225
      %1227 = vdwg.mxu0
      %1228 = vmatprep.subr.mxu0 0.0
      %1229 = vmatpush1.msra.mxu0 %v1088
      %1230 = vmatprep.subr.mxu0 0.0
      %1231 = vmatpush1.msra.mxu0 %v1091
      %1232 = vmatprep.subr.mxu0 0.0
      %1233 = vmatpush1.msra.mxu0 %v1094
      %1234 = vmatprep.subr.mxu0 0.0
      %1235 = vmatpush1.msra.mxu0 %v1097
      %1236 = vmatprep.subr.mxu0 0.0
      %1237 = vmatpush1.msra.mxu0 %v1100
      %1238 = vmatprep.subr.mxu0 0.0
      %1239 = vmatpush1.msra.mxu0 %v1103
      %1240 = vmatprep.subr.mxu0 0.0
      %1241 = vmatpush1.msra.mxu0 %v1106
      %1242 = vmatprep.subr.mxu0 0.0
      %1243 = vmatpush1.msra.mxu0 %v1109
      %1244 = vmatprep.subr.mxu0 0.0
      %1245 = vmatpush1.msra.mxu0 %v1112
      %1246 = vmatprep.subr.mxu0 0.0
      %1247 = vmatpush1.msra.mxu0 %v1115
      %1248 = vmatprep.subr.mxu0 0.0
      %1249 = vmatpush1.msra.mxu0 %v1118
      %1250 = vmatprep.subr.mxu0 0.0
      %1251 = vmatpush1.msra.mxu0 %v1121
      %1252 = vmatprep.subr.mxu0 0.0
      %1253 = vmatpush1.msra.mxu0 %v1124
      %1254 = vmatprep.subr.mxu0 0.0
      %1255 = vmatpush1.msra.mxu0 %v1127
      %1256 = vmatprep.subr.mxu0 0.0
      %1257 = vmatpush1.msra.mxu0 %v1130
      %1258 = vmatprep.subr.mxu0 0.0
      %1259 = vmatpush1.msra.mxu0 %v1133
      %1260 = vmatprep.subr.mxu0 0.0
      %1261 = vmatpush1.msra.mxu0 0.0
      %1262 = vmatprep.subr.mxu0 0.0
      %1263 = vmatpush1.msra.mxu0 0.0
      %1264 = vmatprep.subr.mxu0 0.0
      %1265 = vmatpush1.msra.mxu0 0.0
      %1266 = vmatprep.subr.mxu0 0.0
      %1267 = vmatpush1.msra.mxu0 0.0
      %1268 = vmatprep.subr.mxu0 0.0
      %1269 = vmatpush1.msra.mxu0 0.0
      %1270 = vmatprep.subr.mxu0 0.0
      %1271 = vmatpush1.msra.mxu0 0.0
      %1272 = vmatprep.subr.mxu0 0.0
      %1273 = vmatpush1.msra.mxu0 0.0
      %1274 = vmatprep.subr.mxu0 0.0
      %1275 = vmatpush1.msra.mxu0 0.0
      %1276 = vmatprep.subr.mxu0 0.0
      %1277 = vmatpush1.msra.mxu0 0.0
      %1278 = vmatprep.subr.mxu0 0.0
      %1279 = vmatpush1.msra.mxu0 0.0
      %1280 = vmatprep.subr.mxu0 0.0
      %1281 = vmatpush1.msra.mxu0 0.0
      %1282 = vmatprep.subr.mxu0 0.0
      %1283 = vmatpush1.msra.mxu0 0.0
      %1284 = vmatprep.subr.mxu0 0.0
      %1285 = vmatpush1.msra.mxu0 0.0
      %1286 = vmatprep.subr.mxu0 0.0
      %1287 = vmatpush1.msra.mxu0 0.0
      %1288 = vmatprep.subr.mxu0 0.0
      %1289 = vmatpush1.msra.mxu0 0.0
      %1290 = vmatprep.subr.mxu0 0.0
      %1291 = vmatpush1.msra.mxu0 0.0
      %1292 = vmatprep.mubr.f32.mxu0 0.0
      %1293 = vmatmul.mubr.f32.gmra.mrb[0].mxu0 %v1082
      %v1294 = vpop.f32.mrb[0].mxu0
      %v1295 = vadd.f32 %v1147, %v1294
      %v1296 = vpop.f32.mrb[0].mxu0
      %1297 = vmatprep.mubr.f32.mxu0 0.0
      %1298 = vmatmul.mubr.f32.gmra.mrb[0].mxu0 %v1083
      %v1299 = vpop.f32.mrb[0].mxu0
      %v1300 = vadd.f32 %v1147, %v1299
      %v1301 = vpop.f32.mrb[0].mxu0
      %1302 = vdwg.mxu0
      %v1303 = vld [vmem:[%s2] sm:$0xff]
      %v1304 = vld [vmem:[%s2 + $0x8] sm:$0x1]
      %1305 = vmatprep.subr.mxu0 0.0
      %1306 = vmatpush1.xpose.msra.mxu0 %v1220
      %1307 = vmatprep.subr.mxu0 0.0
      %1308 = vmatpush1.xpose.msra.mxu0 %v1226
      %1309 = vmatprep.subr.mxu0 0.0
      %1310 = vmatpush1.xpose.msra.mxu0 0.0
      %1311 = vmatprep.subr.mxu0 0.0
      %1312 = vmatpush1.xpose.msra.mxu0 0.0
      %1313 = vmatprep.subr.mxu0 0.0
      %1314 = vmatpush1.xpose.msra.mxu0 0.0
      %1315 = vmatprep.subr.mxu0 0.0
      %1316 = vmatpush1.xpose.msra.mxu0 0.0
      %1317 = vmatprep.subr.mxu0 0.0
      %1318 = vmatpush1.xpose.msra.mxu0 0.0
      %1319 = vmatprep.subr.mxu0 0.0
      %1320 = vmatpush1.xpose.msra.mxu0 0.0
      %1321 = vmatprep.subr.mxu0 0.0
      %1322 = vmatpush1.xpose.msra.mxu0 0.0
      %1323 = vmatprep.subr.mxu0 0.0
      %1324 = vmatpush1.xpose.msra.mxu0 0.0
      %1325 = vmatprep.subr.mxu0 0.0
      %1326 = vmatpush1.xpose.msra.mxu0 0.0
      %1327 = vmatprep.subr.mxu0 0.0
      %1328 = vmatpush1.xpose.msra.mxu0 0.0
      %1329 = vmatprep.subr.mxu0 0.0
      %1330 = vmatpush1.xpose.msra.mxu0 0.0
      %1331 = vmatprep.subr.mxu0 0.0
      %1332 = vmatpush1.xpose.msra.mxu0 0.0
      %1333 = vmatprep.subr.mxu0 0.0
      %1334 = vmatpush1.xpose.msra.mxu0 0.0
      %1335 = vmatprep.subr.mxu0 0.0
      %1336 = vmatpush1.xpose.msra.mxu0 0.0
      %1337 = vmatprep.subr.mxu0 0.0
      %1338 = vmatpush1.xpose.msra.mxu0 0.0
      %1339 = vmatprep.subr.mxu0 0.0
      %1340 = vmatpush1.xpose.msra.mxu0 0.0
      %1341 = vmatprep.subr.mxu0 0.0
      %1342 = vmatpush1.xpose.msra.mxu0 0.0
      %1343 = vmatprep.subr.mxu0 0.0
      %1344 = vmatpush1.xpose.msra.mxu0 0.0
      %1345 = vmatprep.subr.mxu0 0.0
      %1346 = vmatpush1.xpose.msra.mxu0 0.0
      %1347 = vmatprep.subr.mxu0 0.0
      %1348 = vmatpush1.xpose.msra.mxu0 0.0
      %1349 = vmatprep.subr.mxu0 0.0
      %1350 = vmatpush1.xpose.msra.mxu0 0.0
      %1351 = vmatprep.subr.mxu0 0.0
      %1352 = vmatpush1.xpose.msra.mxu0 0.0
      %1353 = vmatprep.subr.mxu0 0.0
      %1354 = vmatpush1.xpose.msra.mxu0 0.0
      %1355 = vmatprep.subr.mxu0 0.0
      %1356 = vmatpush1.xpose.msra.mxu0 0.0
      %1357 = vmatprep.subr.mxu0 0.0
      %1358 = vmatpush1.xpose.msra.mxu0 0.0
      %1359 = vmatprep.subr.mxu0 0.0
      %1360 = vmatpush1.xpose.msra.mxu0 0.0
      %1361 = vmatprep.subr.mxu0 0.0
      %1362 = vmatpush1.xpose.msra.mxu0 0.0
      %1363 = vmatprep.subr.mxu0 0.0
      %1364 = vmatpush1.xpose.msra.mxu0 0.0
      %1365 = vmatprep.subr.mxu0 0.0
      %1366 = vmatpush1.xpose.msra.mxu0 0.0
      %1367 = vmatprep.subr.mxu0 0.0
      %1368 = vmatpush1.xpose.msra.mxu0 0.0
      %1369 = vmatprep.mubr.f32.mxu0 0.0
      %1370 = vmatmul.mubr.f32.gmra.mrb[0].mxu0 %v1218
      %v1371 = vpop.f32.mrb[0].mxu0
      %v1372 = vadd.f32 0.0, %v1371
      %v1373 = vpop.f32.mrb[0].mxu0
      %1374 = vmatprep.mubr.f32.mxu0 0.0
      %1375 = vmatmul.mubr.f32.gmra.mrb[0].mxu0 %v1224
      %v1376 = vpop.f32.mrb[0].mxu0
      %v1377 = vadd.f32 0.0, %v1376
      %v1378 = vpop.f32.mrb[0].mxu0
      %1379 = vdwg.mxu0
      %v1380 = vmul.f32 %v1372, 0.088388346
      %v1381 = vmul.f32 %v1377, 0.088388346
      %v1382 = vadd.f32 %v1380, %v1303
      %v1383 = vadd.f32 %v1381, %v1304
      %vm1384 = vcmask 72704
      %v1385 = vsel %vm1384, %v1382, -inf
      %1386 = vmax.xlane.f32.xlu0 %v1385
      %v1387 = vpop.xlane.xlu0 %1386
      %vm1388 = vcmask 65536
      %v1389 = vsel %vm1388, %v1383, -inf
      %1390 = vmax.xlane.f32.xlu0 %v1389
      %v1391 = vpop.xlane.xlu0 %1390
      %v1392 = vsub.f32 %v1382, %v1387
      %v1393 = vsub.f32 %v1383, %v1391
      %v1394 = vmul.f32 %v1392, 1.442695
      %v1395 = vpow.pop %v1394
      %v1396 = vmul.f32 %v1393, 1.442695
      %v1397 = vpow.pop %v1396
      %v1398 = vsel %vm1384, %v1395, 0.0
      %1399 = vadd.xlane.f32.xlu0 %v1398
      %v1400 = vpop.xlane.xlu0 %1399
      %v1401 = vsel %vm1388, %v1397, 0.0
      %1402 = vadd.xlane.f32.xlu0 %v1401
      %v1403 = vpop.xlane.xlu0 %1402
      %v1404 = vrcp.pop %v1400
      %v1405 = vrcp.pop %v1403
      %v1406 = vmul.f32 %v1395, %v1404
      %v1407 = vmul.f32 %v1397, %v1405
      %v1409 = vsel %vm1384, %v1406, 0
      %v1412 = vsel %vm1384, %v1407, 0
      %vm1414 = vcmask 1040384
      %v1416 = vsel %vm1414, %v1300, 0
      %1418 = vmatprep.subr.mxu0 0.0
      %1419 = vmatpush1.msra.mxu0 %v1295
      %1420 = vmatprep.subr.mxu0 0.0
      %1421 = vmatpush1.msra.mxu0 %v1416
      %1422 = vmatprep.subr.mxu0 0.0
      %1423 = vmatpush1.msra.mxu0 0.0
      %1424 = vmatprep.subr.mxu0 0.0
      %1425 = vmatpush1.msra.mxu0 0.0
      %1426 = vmatprep.subr.mxu0 0.0
      %1427 = vmatpush1.msra.mxu0 0.0
      %1428 = vmatprep.subr.mxu0 0.0
      %1429 = vmatpush1.msra.mxu0 0.0
      %1430 = vmatprep.subr.mxu0 0.0
      %1431 = vmatpush1.msra.mxu0 0.0
      %1432 = vmatprep.subr.mxu0 0.0
      %1433 = vmatpush1.msra.mxu0 0.0
      %1434 = vmatprep.subr.mxu0 0.0
      %1435 = vmatpush1.msra.mxu0 0.0
      %1436 = vmatprep.subr.mxu0 0.0
      %1437 = vmatpush1.msra.mxu0 0.0
      %1438 = vmatprep.subr.mxu0 0.0
      %1439 = vmatpush1.msra.mxu0 0.0
      %1440 = vmatprep.subr.mxu0 0.0
      %1441 = vmatpush1.msra.mxu0 0.0
      %1442 = vmatprep.subr.mxu0 0.0
      %1443 = vmatpush1.msra.mxu0 0.0
      %1444 = vmatprep.subr.mxu0 0.0
      %1445 = vmatpush1.msra.mxu0 0.0
      %1446 = vmatprep.subr.mxu0 0.0
      %1447 = vmatpush1.msra.mxu0 0.0
      %1448 = vmatprep.subr.mxu0 0.0
      %1449 = vmatpush1.msra.mxu0 0.0
      %1450 = vmatprep.subr.mxu0 0.0
      %1451 = vmatpush1.msra.mxu0 0.0
      %1452 = vmatprep.subr.mxu0 0.0
      %1453 = vmatpush1.msra.mxu0 0.0
      %1454 = vmatprep.subr.mxu0 0.0
      %1455 = vmatpush1.msra.mxu0 0.0
      %1456 = vmatprep.subr.mxu0 0.0
      %1457 = vmatpush1.msra.mxu0 0.0
      %1458 = vmatprep.subr.mxu0 0.0
      %1459 = vmatpush1.msra.mxu0 0.0
      %1460 = vmatprep.subr.mxu0 0.0
      %1461 = vmatpush1.msra.mxu0 0.0
      %1462 = vmatprep.subr.mxu0 0.0
      %1463 = vmatpush1.msra.mxu0 0.0
      %1464 = vmatprep.subr.mxu0 0.0
      %1465 = vmatpush1.msra.mxu0 0.0
      %1466 = vmatprep.subr.mxu0 0.0
      %1467 = vmatpush1.msra.mxu0 0.0
      %1468 = vmatprep.subr.mxu0 0.0
      %1469 = vmatpush1.msra.mxu0 0.0
      %1470 = vmatprep.subr.mxu0 0.0
      %1471 = vmatpush1.msra.mxu0 0.0
      %1472 = vmatprep.subr.mxu0 0.0
      %1473 = vmatpush1.msra.mxu0 0.0
      %1474 = vmatprep.subr.mxu0 0.0
      %1475 = vmatpush1.msra.mxu0 0.0
      %1476 = vmatprep.subr.mxu0 0.0
      %1477 = vmatpush1.msra.mxu0 0.0
      %1478 = vmatprep.subr.mxu0 0.0
      %1479 = vmatpush1.msra.mxu0 0.0
      %1480 = vmatprep.subr.mxu0 0.0
      %1481 = vmatpush1.msra.mxu0 0.0
      %1482 = vmatprep.mubr.f32.mxu0 0.0
      %1483 = vmatmul.mubr.f32.gmra.mrb[0].mxu0 %v1409
      %v1484 = vpop.f32.mrb[0].mxu0
      %v1485 = vadd.f32 0.0, %v1484
      %v1486 = vpop.f32.mrb[0].mxu0
      %1487 = vmatprep.mubr.f32.mxu0 0.0
      %1488 = vmatmul.mubr.f32.gmra.mrb[0].mxu0 %v1412
      %v1489 = vpop.f32.mrb[0].mxu0
      %v1490 = vadd.f32 0.0, %v1489
      %v1491 = vpop.f32.mrb[0].mxu0
      %1492 = vdwg.mxu0
      %v1493 = vld [vmem:[%s1005] sm:$0xff]
      %v1494 = vld [vmem:[%s1005 + $0x8] sm:$0xff]
      %v1495 = vld [vmem:[%s1005 + $0x10] sm:$0xff]
      %v1496 = vld [vmem:[%s1005 + $0x18] sm:$0xff]
      %v1497 = vld [vmem:[%s1005 + $0x20] sm:$0xff]
      %v1498 = vld [vmem:[%s1005 + $0x28] sm:$0xff]
      %v1499 = vld [vmem:[%s1005 + $0x30] sm:$0xff]
      %v1500 = vld [vmem:[%s1005 + $0x38] sm:$0xff]
      %v1501 = vld [vmem:[%s1005 + $0x40] sm:$0xff]
      %v1502 = vld [vmem:[%s1005 + $0x48] sm:$0xff]
      %v1503 = vld [vmem:[%s1005 + $0x50] sm:$0xff]
      %v1504 = vld [vmem:[%s1005 + $0x58] sm:$0xff]
      %v1505 = vld [vmem:[%s1005 + $0x60] sm:$0xff]
      %v1506 = vld [vmem:[%s1005 + $0x68] sm:$0xff]
      %v1507 = vld [vmem:[%s1005 + $0x70] sm:$0xff]
      %v1508 = vld [vmem:[%s1005 + $0x78] sm:$0xff]
      %v1509 = vld [vmem:[%s1008] sm:$0x1]
      %v1511 = vlaneseq
      %v1512 = vshrl.u32 %v1511, 7
      %v1513 = vsub.s32 0, %v1512
      %v1514 = vrot.slane %v1509, %v1513
      %1516 = vmatprep.subr.mxu0 0.0
      %1517 = vmatpush1.msra.mxu0 %v1493
      %1518 = vmatprep.subr.mxu0 0.0
      %1519 = vmatpush1.msra.mxu0 %v1494
      %1520 = vmatprep.subr.mxu0 0.0
      %1521 = vmatpush1.msra.mxu0 %v1495
      %1522 = vmatprep.subr.mxu0 0.0
      %1523 = vmatpush1.msra.mxu0 %v1496
      %1524 = vmatprep.subr.mxu0 0.0
      %1525 = vmatpush1.msra.mxu0 %v1497
      %1526 = vmatprep.subr.mxu0 0.0
      %1527 = vmatpush1.msra.mxu0 %v1498
      %1528 = vmatprep.subr.mxu0 0.0
      %1529 = vmatpush1.msra.mxu0 %v1499
      %1530 = vmatprep.subr.mxu0 0.0
      %1531 = vmatpush1.msra.mxu0 %v1500
      %1532 = vmatprep.subr.mxu0 0.0
      %1533 = vmatpush1.msra.mxu0 %v1501
      %1534 = vmatprep.subr.mxu0 0.0
      %1535 = vmatpush1.msra.mxu0 %v1502
      %1536 = vmatprep.subr.mxu0 0.0
      %1537 = vmatpush1.msra.mxu0 %v1503
      %1538 = vmatprep.subr.mxu0 0.0
      %1539 = vmatpush1.msra.mxu0 %v1504
      %1540 = vmatprep.subr.mxu0 0.0
      %1541 = vmatpush1.msra.mxu0 %v1505
      %1542 = vmatprep.subr.mxu0 0.0
      %1543 = vmatpush1.msra.mxu0 %v1506
      %1544 = vmatprep.subr.mxu0 0.0
      %1545 = vmatpush1.msra.mxu0 %v1507
      %1546 = vmatprep.subr.mxu0 0.0
      %1547 = vmatpush1.msra.mxu0 %v1508
      %1548 = vmatprep.subr.mxu0 0.0
      %1549 = vmatpush1.msra.mxu0 0.0
      %1550 = vmatprep.subr.mxu0 0.0
      %1551 = vmatpush1.msra.mxu0 0.0
      %1552 = vmatprep.subr.mxu0 0.0
      %1553 = vmatpush1.msra.mxu0 0.0
      %1554 = vmatprep.subr.mxu0 0.0
      %1555 = vmatpush1.msra.mxu0 0.0
      %1556 = vmatprep.subr.mxu0 0.0
      %1557 = vmatpush1.msra.mxu0 0.0
      %1558 = vmatprep.subr.mxu0 0.0
      %1559 = vmatpush1.msra.mxu0 0.0
      %1560 = vmatprep.subr.mxu0 0.0
      %1561 = vmatpush1.msra.mxu0 0.0
      %1562 = vmatprep.subr.mxu0 0.0
      %1563 = vmatpush1.msra.mxu0 0.0
      %1564 = vmatprep.subr.mxu0 0.0
      %1565 = vmatpush1.msra.mxu0 0.0
      %1566 = vmatprep.subr.mxu0 0.0
      %1567 = vmatpush1.msra.mxu0 0.0
      %1568 = vmatprep.subr.mxu0 0.0
      %1569 = vmatpush1.msra.mxu0 0.0
      %1570 = vmatprep.subr.mxu0 0.0
      %1571 = vmatpush1.msra.mxu0 0.0
      %1572 = vmatprep.subr.mxu0 0.0
      %1573 = vmatpush1.msra.mxu0 0.0
      %1574 = vmatprep.subr.mxu0 0.0
      %1575 = vmatpush1.msra.mxu0 0.0
      %1576 = vmatprep.subr.mxu0 0.0
      %1577 = vmatpush1.msra.mxu0 0.0
      %1578 = vmatprep.subr.mxu0 0.0
      %1579 = vmatpush1.msra.mxu0 0.0
      %1580 = vmatprep.mubr.f32.mxu0 0.0
      %1581 = vmatmul.mubr.f32.gmra.mrb[0].mxu0 %v1485
      %v1582 = vpop.f32.mrb[0].mxu0
      %v1583 = vadd.f32 %v1514, %v1582
      %v1584 = vpop.f32.mrb[0].mxu0
      %1585 = vmatprep.mubr.f32.mxu0 0.0
      %1586 = vmatmul.mubr.f32.gmra.mrb[0].mxu0 %v1490
      %v1587 = vpop.f32.mrb[0].mxu0
      %v1588 = vadd.f32 %v1514, %v1587
      %v1589 = vpop.f32.mrb[0].mxu0
      %1590 = vdwg.mxu0
      %v1591 = vadd.f32 %v1082, %v1583
      %v1592 = vadd.f32 %v1083, %v1588
      %v1593 = vld [vmem:[%s1011] sm:$0x1]
      %v1594 = vld [vmem:[%s1014] sm:$0x1]
      %1595 = vadd.xlane.f32.xlu0 %v1591
      %v1596 = vpop.xlane.xlu0 %1595
      %v1597 = vsel %vm1414, %v1592, 0.0
      %1598 = vadd.xlane.f32.xlu0 %v1597
      %v1599 = vpop.xlane.xlu0 %1598
      %v1600 = vrcp.pop 128.0
      %v1601 = vmul.f32 %v1596, %v1600
      %v1602 = vmul.f32 %v1599, %v1600
      %v1603 = vsub.f32 %v1591, %v1601
      %v1604 = vsub.f32 %v1592, %v1602
      %v1605 = vmul.f32 %v1603, %v1603
      %v1606 = vmul.f32 %v1604, %v1604
      %1607 = vadd.xlane.f32.xlu0 %v1605
      %v1608 = vpop.xlane.xlu0 %1607
      %v1609 = vsel %vm1414, %v1606, 0.0
      %1610 = vadd.xlane.f32.xlu0 %v1609
      %v1611 = vpop.xlane.xlu0 %1610
      %v1612 = vmul.f32 %v1608, %v1600
      %v1613 = vmul.f32 %v1611, %v1600
      %v1614 = vadd.f32 %v1612, 1e-05
      %v1615 = vadd.f32 %v1613, 1e-05
      %v1616 = vrsqrt.pop %v1614
      %v1617 = vrsqrt.pop %v1615
      %v1618 = vmul.f32 %v1603, %v1616
      %v1619 = vmul.f32 %v1604, %v1617
      %v1621 = vlaneseq
      %v1622 = vshrl.u32 %v1621, 7
      %v1623 = vsub.s32 0, %v1622
      %v1624 = vrot.slane %v1593, %v1623
      %v1626 = vmul.f32 %v1618, %v1624
      %v1627 = vmul.f32 %v1619, %v1624
      %v1629 = vlaneseq
      %v1630 = vshrl.u32 %v1629, 7
      %v1631 = vsub.s32 0, %v1630
      %v1632 = vrot.slane %v1594, %v1631
      %v1634 = vadd.f32 %v1626, %v1632
      %v1635 = vadd.f32 %v1627, %v1632
      %v1636 = vld [vmem:[%s1019] sm:$0xff]
      %v1637 = vld [vmem:[%s1019 + $0x8] sm:$0xff]
      %v1638 = vld [vmem:[%s1019 + $0x10] sm:$0xff]
      %v1639 = vld [vmem:[%s1019 + $0x18] sm:$0xff]
      %v1640 = vld [vmem:[%s1019 + $0x20] sm:$0xff]
      %v1641 = vld [vmem:[%s1019 + $0x28] sm:$0xff]
      %v1642 = vld [vmem:[%s1019 + $0x30] sm:$0xff]
      %v1643 = vld [vmem:[%s1019 + $0x38] sm:$0xff]
      %v1644 = vld [vmem:[%s1019 + $0x40] sm:$0xff]
      %v1645 = vld [vmem:[%s1019 + $0x48] sm:$0xff]
      %v1646 = vld [vmem:[%s1019 + $0x50] sm:$0xff]
      %v1647 = vld [vmem:[%s1019 + $0x58] sm:$0xff]
      %v1648 = vld [vmem:[%s1019 + $0x60] sm:$0xff]
      %v1649 = vld [vmem:[%s1019 + $0x68] sm:$0xff]
      %v1650 = vld [vmem:[%s1019 + $0x70] sm:$0xff]
      %v1651 = vld [vmem:[%s1019 + $0x78] sm:$0xff]
      %v1652 = vld [vmem:[%s1022] sm:$0x1]
      %v1654 = vlaneseq
      %v1655 = vshrl.u32 %v1654, 7
      %v1656 = vsub.s32 0, %v1655
      %v1657 = vrot.slane %v1652, %v1656
      %1659 = vmatprep.subr.mxu0 0.0
      %1660 = vmatpush1.msra.mxu0 %v1636
      %1661 = vmatprep.subr.mxu0 0.0
      %1662 = vmatpush1.msra.mxu0 %v1637
      %1663 = vmatprep.subr.mxu0 0.0
      %1664 = vmatpush1.msra.mxu0 %v1638
      %1665 = vmatprep.subr.mxu0 0.0
      %1666 = vmatpush1.msra.mxu0 %v1639
      %1667 = vmatprep.subr.mxu0 0.0
      %1668 = vmatpush1.msra.mxu0 %v1640
      %1669 = vmatprep.subr.mxu0 0.0
      %1670 = vmatpush1.msra.mxu0 %v1641
      %1671 = vmatprep.subr.mxu0 0.0
      %1672 = vmatpush1.msra.mxu0 %v1642
      %1673 = vmatprep.subr.mxu0 0.0
      %1674 = vmatpush1.msra.mxu0 %v1643
      %1675 = vmatprep.subr.mxu0 0.0
      %1676 = vmatpush1.msra.mxu0 %v1644
      %1677 = vmatprep.subr.mxu0 0.0
      %1678 = vmatpush1.msra.mxu0 %v1645
      %1679 = vmatprep.subr.mxu0 0.0
      %1680 = vmatpush1.msra.mxu0 %v1646
      %1681 = vmatprep.subr.mxu0 0.0
      %1682 = vmatpush1.msra.mxu0 %v1647
      %1683 = vmatprep.subr.mxu0 0.0
      %1684 = vmatpush1.msra.mxu0 %v1648
      %1685 = vmatprep.subr.mxu0 0.0
      %1686 = vmatpush1.msra.mxu0 %v1649
      %1687 = vmatprep.subr.mxu0 0.0
      %1688 = vmatpush1.msra.mxu0 %v1650
      %1689 = vmatprep.subr.mxu0 0.0
      %1690 = vmatpush1.msra.mxu0 %v1651
      %1691 = vmatprep.subr.mxu0 0.0
      %1692 = vmatpush1.msra.mxu0 0.0
      %1693 = vmatprep.subr.mxu0 0.0
      %1694 = vmatpush1.msra.mxu0 0.0
      %1695 = vmatprep.subr.mxu0 0.0
      %1696 = vmatpush1.msra.mxu0 0.0
      %1697 = vmatprep.subr.mxu0 0.0
      %1698 = vmatpush1.msra.mxu0 0.0
      %1699 = vmatprep.subr.mxu0 0.0
      %1700 = vmatpush1.msra.mxu0 0.0
      %1701 = vmatprep.subr.mxu0 0.0
      %1702 = vmatpush1.msra.mxu0 0.0
      %1703 = vmatprep.subr.mxu0 0.0
      %1704 = vmatpush1.msra.mxu0 0.0
      %1705 = vmatprep.subr.mxu0 0.0
      %1706 = vmatpush1.msra.mxu0 0.0
      %1707 = vmatprep.subr.mxu0 0.0
      %1708 = vmatpush1.msra.mxu0 0.0
      %1709 = vmatprep.subr.mxu0 0.0
      %1710 = vmatpush1.msra.mxu0 0.0
      %1711 = vmatprep.subr.mxu0 0.0
      %1712 = vmatpush1.msra.mxu0 0.0
      %1713 = vmatprep.subr.mxu0 0.0
      %1714 = vmatpush1.msra.mxu0 0.0
      %1715 = vmatprep.subr.mxu0 0.0
      %1716 = vmatpush1.msra.mxu0 0.0
      %1717 = vmatprep.subr.mxu0 0.0
      %1718 = vmatpush1.msra.mxu0 0.0
      %1719 = vmatprep.subr.mxu0 0.0
      %1720 = vmatpush1.msra.mxu0 0.0
      %1721 = vmatprep.subr.mxu0 0.0
      %1722 = vmatpush1.msra.mxu0 0.0
      %1723 = vmatprep.mubr.f32.mxu0 0.0
      %1724 = vmatmul.mubr.f32.gmra.mrb[0].mxu0 %v1634
      %v1725 = vpop.f32.mrb[0].mxu0
      %v1726 = vadd.f32 %v1657, %v1725
      %v1727 = vpop.f32.mrb[0].mxu0
      %1728 = vmatprep.mubr.f32.mxu0 0.0
      %1729 = vmatmul.mubr.f32.gmra.mrb[0].mxu0 %v1635
      %v1730 = vpop.f32.mrb[0].mxu0
      %v1731 = vadd.f32 %v1657, %v1730
      %v1732 = vpop.f32.mrb[0].mxu0
      %1733 = vdwg.mxu0
      %v1734 = vld [vmem:[%s1027] sm:$0xff]
      %v1735 = vld [vmem:[%s1027 + $0x8] sm:$0xff]
      %v1736 = vld [vmem:[%s1027 + $0x10] sm:$0xff]
      %v1737 = vld [vmem:[%s1027 + $0x18] sm:$0xff]
      %v1738 = vld [vmem:[%s1027 + $0x20] sm:$0xff]
      %v1739 = vld [vmem:[%s1027 + $0x28] sm:$0xff]
      %v1740 = vld [vmem:[%s1027 + $0x30] sm:$0xff]
      %v1741 = vld [vmem:[%s1027 + $0x38] sm:$0xff]
      %v1742 = vld [vmem:[%s1027 + $0x40] sm:$0xff]
      %v1743 = vld [vmem:[%s1027 + $0x48] sm:$0xff]
      %v1744 = vld [vmem:[%s1027 + $0x50] sm:$0xff]
      %v1745 = vld [vmem:[%s1027 + $0x58] sm:$0xff]
      %v1746 = vld [vmem:[%s1027 + $0x60] sm:$0xff]
      %v1747 = vld [vmem:[%s1027 + $0x68] sm:$0xff]
      %v1748 = vld [vmem:[%s1027 + $0x70] sm:$0xff]
      %v1749 = vld [vmem:[%s1027 + $0x78] sm:$0xff]
      %v1750 = vld [vmem:[%s1027 + $0x80] sm:$0xff]
      %v1751 = vld [vmem:[%s1027 + $0x88] sm:$0xff]
      %v1752 = vld [vmem:[%s1027 + $0x90] sm:$0xff]
      %v1753 = vld [vmem:[%s1027 + $0x98] sm:$0xff]
      %v1754 = vld [vmem:[%s1027 + $0xa0] sm:$0xff]
      %v1755 = vld [vmem:[%s1027 + $0xa8] sm:$0xff]
      %v1756 = vld [vmem:[%s1027 + $0xb0] sm:$0xff]
      %v1757 = vld [vmem:[%s1027 + $0xb8] sm:$0xff]
      %v1758 = vld [vmem:[%s1027 + $0xc0] sm:$0xff]
      %v1759 = vld [vmem:[%s1027 + $0xc8] sm:$0xff]
      %v1760 = vld [vmem:[%s1027 + $0xd0] sm:$0xff]
      %v1761 = vld [vmem:[%s1027 + $0xd8] sm:$0xff]
      %v1762 = vld [vmem:[%s1027 + $0xe0] sm:$0xff]
      %v1763 = vld [vmem:[%s1027 + $0xe8] sm:$0xff]
      %v1764 = vld [vmem:[%s1027 + $0xf0] sm:$0xff]
      %v1765 = vld [vmem:[%s1027 + $0xf8] sm:$0xff]
      %v1766 = vld [vmem:[%s1031] sm:$0x3]
      %v1768 = vlaneseq
      %v1769 = vshrl.u32 %v1768, 7
      %v1770 = vsub.s32 0, %v1769
      %v1771 = vrot.slane %v1766, %v1770
      %v1772 = vlaneseq
      %v1773 = vshrl.u32 %v1772, 7
      %v1774 = vsub.s32 1, %v1773
      %v1775 = vrot.slane %v1766, %v1774
      %1778 = vmatprep.subr.mxu0 %v1735
      %1779 = vmatpush1.msra.mxu0 %v1734
      %1780 = vmatprep.subr.mxu0 %v1737
      %1781 = vmatpush1.msra.mxu0 %v1736
      %1782 = vmatprep.subr.mxu0 %v1739
      %1783 = vmatpush1.msra.mxu0 %v1738
      %1784 = vmatprep.subr.mxu0 %v1741
      %1785 = vmatpush1.msra.mxu0 %v1740
      %1786 = vmatprep.subr.mxu0 %v1743
      %1787 = vmatpush1.msra.mxu0 %v1742
      %1788 = vmatprep.subr.mxu0 %v1745
      %1789 = vmatpush1.msra.mxu0 %v1744
      %1790 = vmatprep.subr.mxu0 %v1747
      %1791 = vmatpush1.msra.mxu0 %v1746
      %1792 = vmatprep.subr.mxu0 %v1749
      %1793 = vmatpush1.msra.mxu0 %v1748
      %1794 = vmatprep.subr.mxu0 %v1751
      %1795 = vmatpush1.msra.mxu0 %v1750
      %1796 = vmatprep.subr.mxu0 %v1753
      %1797 = vmatpush1.msra.mxu0 %v1752
      %1798 = vmatprep.subr.mxu0 %v1755
      %1799 = vmatpush1.msra.mxu0 %v1754
      %1800 = vmatprep.subr.mxu0 %v1757
      %1801 = vmatpush1.msra.mxu0 %v1756
      %1802 = vmatprep.subr.mxu0 %v1759
      %1803 = vmatpush1.msra.mxu0 %v1758
      %1804 = vmatprep.subr.mxu0 %v1761
      %1805 = vmatpush1.msra.mxu0 %v1760
      %1806 = vmatprep.subr.mxu0 %v1763
      %1807 = vmatpush1.msra.mxu0 %v1762
      %1808 = vmatprep.subr.mxu0 %v1765
      %1809 = vmatpush1.msra.mxu0 %v1764
      %1810 = vmatprep.subr.mxu0 0.0
      %1811 = vmatpush1.msra.mxu0 0.0
      %1812 = vmatprep.subr.mxu0 0.0
      %1813 = vmatpush1.msra.mxu0 0.0
      %1814 = vmatprep.subr.mxu0 0.0
      %1815 = vmatpush1.msra.mxu0 0.0
      %1816 = vmatprep.subr.mxu0 0.0
      %1817 = vmatpush1.msra.mxu0 0.0
      %1818 = vmatprep.subr.mxu0 0.0
      %1819 = vmatpush1.msra.mxu0 0.0
      %1820 = vmatprep.subr.mxu0 0.0
      %1821 = vmatpush1.msra.mxu0 0.0
      %1822 = vmatprep.subr.mxu0 0.0
      %1823 = vmatpush1.msra.mxu0 0.0
      %1824 = vmatprep.subr.mxu0 0.0
      %1825 = vmatpush1.msra.mxu0 0.0
      %1826 = vmatprep.subr.mxu0 0.0
      %1827 = vmatpush1.msra.mxu0 0.0
      %1828 = vmatprep.subr.mxu0 0.0
      %1829 = vmatpush1.msra.mxu0 0.0
      %1830 = vmatprep.subr.mxu0 0.0
      %1831 = vmatpush1.msra.mxu0 0.0
      %1832 = vmatprep.subr.mxu0 0.0
      %1833 = vmatpush1.msra.mxu0 0.0
      %1834 = vmatprep.subr.mxu0 0.0
      %1835 = vmatpush1.msra.mxu0 0.0
      %1836 = vmatprep.subr.mxu0 0.0
      %1837 = vmatpush1.msra.mxu0 0.0
      %1838 = vmatprep.subr.mxu0 0.0
      %1839 = vmatpush1.msra.mxu0 0.0
      %1840 = vmatprep.subr.mxu0 0.0
      %1841 = vmatpush1.msra.mxu0 0.0
      %1842 = vmatprep.mubr.f32.mxu0 0.0
      %1843 = vmatmul.mubr.f32.gmra.mrb[0].mxu0 %v1084
      %v1844 = vpop.f32.mrb[0].mxu0
      %v1845 = vadd.f32 %v1771, %v1844
      %v1846 = vpop.f32.mrb[0].mxu0
      %v1847 = vadd.f32 %v1775, %v1846
      %1848 = vmatprep.mubr.f32.mxu0 0.0
      %1849 = vmatmul.mubr.f32.gmra.mrb[0].mxu0 %v1085
      %v1850 = vpop.f32.mrb[0].mxu0
      %v1851 = vadd.f32 %v1771, %v1850
      %v1852 = vpop.f32.mrb[0].mxu0
      %v1853 = vadd.f32 %v1775, %v1852
      %1854 = vdwg.mxu0
      %1855 = vmatprep.subr.mxu0 0.0
      %1856 = vmatpush1.xpose.msra.mxu0 %v1845
      %1857 = vmatprep.subr.mxu0 0.0
      %1858 = vmatpush1.xpose.msra.mxu0 %v1851
      %1859 = vmatprep.subr.mxu0 0.0
      %1860 = vmatpush1.xpose.msra.mxu0 0.0
      %1861 = vmatprep.subr.mxu0 0.0
      %1862 = vmatpush1.xpose.msra.mxu0 0.0
      %1863 = vmatprep.subr.mxu0 0.0
      %1864 = vmatpush1.xpose.msra.mxu0 0.0
      %1865 = vmatprep.subr.mxu0 0.0
      %1866 = vmatpush1.xpose.msra.mxu0 0.0
      %1867 = vmatprep.subr.mxu0 0.0
      %1868 = vmatpush1.xpose.msra.mxu0 0.0
      %1869 = vmatprep.subr.mxu0 0.0
      %1870 = vmatpush1.xpose.msra.mxu0 0.0
      %1871 = vmatprep.subr.mxu0 0.0
      %1872 = vmatpush1.xpose.msra.mxu0 0.0
      %1873 = vmatprep.subr.mxu0 0.0
      %1874 = vmatpush1.xpose.msra.mxu0 0.0
      %1875 = vmatprep.subr.mxu0 0.0
      %1876 = vmatpush1.xpose.msra.mxu0 0.0
      %1877 = vmatprep.subr.mxu0 0.0
      %1878 = vmatpush1.xpose.msra.mxu0 0.0
      %1879 = vmatprep.subr.mxu0 0.0
      %1880 = vmatpush1.xpose.msra.mxu0 0.0
      %1881 = vmatprep.subr.mxu0 0.0
      %1882 = vmatpush1.xpose.msra.mxu0 0.0
      %1883 = vmatprep.subr.mxu0 0.0
      %1884 = vmatpush1.xpose.msra.mxu0 0.0
      %1885 = vmatprep.subr.mxu0 0.0
      %1886 = vmatpush1.xpose.msra.mxu0 0.0
      %1887 = vmatprep.subr.mxu0 0.0
      %1888 = vmatpush1.xpose.msra.mxu0 0.0
      %1889 = vmatprep.subr.mxu0 0.0
      %1890 = vmatpush1.xpose.msra.mxu0 0.0
      %1891 = vmatprep.subr.mxu0 0.0
      %1892 = vmatpush1.xpose.msra.mxu0 0.0
      %1893 = vmatprep.subr.mxu0 0.0
      %1894 = vmatpush1.xpose.msra.mxu0 0.0
      %1895 = vmatprep.subr.mxu0 0.0
      %1896 = vmatpush1.xpose.msra.mxu0 0.0
      %1897 = vmatprep.subr.mxu0 0.0
      %1898 = vmatpush1.xpose.msra.mxu0 0.0
      %1899 = vmatprep.subr.mxu0 0.0
      %1900 = vmatpush1.xpose.msra.mxu0 0.0
      %1901 = vmatprep.subr.mxu0 0.0
      %1902 = vmatpush1.xpose.msra.mxu0 0.0
      %1903 = vmatprep.subr.mxu0 0.0
      %1904 = vmatpush1.xpose.msra.mxu0 0.0
      %1905 = vmatprep.subr.mxu0 0.0
      %1906 = vmatpush1.xpose.msra.mxu0 0.0
      %1907 = vmatprep.subr.mxu0 0.0
      %1908 = vmatpush1.xpose.msra.mxu0 0.0
      %1909 = vmatprep.subr.mxu0 0.0
      %1910 = vmatpush1.xpose.msra.mxu0 0.0
      %1911 = vmatprep.subr.mxu0 0.0
      %1912 = vmatpush1.xpose.msra.mxu0 0.0
      %1913 = vmatprep.subr.mxu0 0.0
      %1914 = vmatpush1.xpose.msra.mxu0 0.0
      %1915 = vmatprep.subr.mxu0 0.0
      %1916 = vmatpush1.xpose.msra.mxu0 0.0
      %1917 = vmatprep.subr.mxu0 0.0
      %1918 = vmatpush1.xpose.msra.mxu0 0.0
      %1919 = vmatprep.mubr.f32.mxu0 0.0
      %1920 = vmatmul.mubr.f32.gmra.mrb[0].mxu0 %v1726
      %v1921 = vpop.f32.mrb[0].mxu0
      %v1922 = vadd.f32 0.0, %v1921
      %v1923 = vpop.f32.mrb[0].mxu0
      %1924 = vmatprep.mubr.f32.mxu0 0.0
      %1925 = vmatmul.mubr.f32.gmra.mrb[0].mxu0 %v1731
      %v1926 = vpop.f32.mrb[0].mxu0
      %v1927 = vadd.f32 0.0, %v1926
      %v1928 = vpop.f32.mrb[0].mxu0
      %1929 = vdwg.mxu0
      %v1930 = vmul.f32 %v1922, 0.088388346
      %v1931 = vmul.f32 %v1927, 0.088388346
      %v1932 = vsel %vm1384, %v1930, -inf
      %1933 = vmax.xlane.f32.xlu0 %v1932
      %v1934 = vpop.xlane.xlu0 %1933
      %v1935 = vsel %vm1388, %v1931, -inf
      %1936 = vmax.xlane.f32.xlu0 %v1935
      %v1937 = vpop.xlane.xlu0 %1936
      %v1938 = vsub.f32 %v1930, %v1934
      %v1939 = vsub.f32 %v1931, %v1937
      %v1940 = vmul.f32 %v1938, 1.442695
      %v1941 = vpow.pop %v1940
      %v1942 = vmul.f32 %v1939, 1.442695
      %v1943 = vpow.pop %v1942
      %v1944 = vsel %vm1384, %v1941, 0.0
      %1945 = vadd.xlane.f32.xlu0 %v1944
      %v1946 = vpop.xlane.xlu0 %1945
      %v1947 = vsel %vm1388, %v1943, 0.0
      %1948 = vadd.xlane.f32.xlu0 %v1947
      %v1949 = vpop.xlane.xlu0 %1948
      %v1950 = vrcp.pop %v1946
      %v1951 = vrcp.pop %v1949
      %v1952 = vmul.f32 %v1941, %v1950
      %v1953 = vmul.f32 %v1943, %v1951
      %v1955 = vsel %vm1384, %v1952, 0
      %v1958 = vsel %vm1384, %v1953, 0
      %v1961 = vsel %vm1414, %v1853, 0
      %1963 = vmatprep.subr.mxu0 0.0
      %1964 = vmatpush1.msra.mxu0 %v1847
      %1965 = vmatprep.subr.mxu0 0.0
      %1966 = vmatpush1.msra.mxu0 %v1961
      %1967 = vmatprep.subr.mxu0 0.0
      %1968 = vmatpush1.msra.mxu0 0.0
      %1969 = vmatprep.subr.mxu0 0.0
      %1970 = vmatpush1.msra.mxu0 0.0
      %1971 = vmatprep.subr.mxu0 0.0
      %1972 = vmatpush1.msra.mxu0 0.0
      %1973 = vmatprep.subr.mxu0 0.0
      %1974 = vmatpush1.msra.mxu0 0.0
      %1975 = vmatprep.subr.mxu0 0.0
      %1976 = vmatpush1.msra.mxu0 0.0
      %1977 = vmatprep.subr.mxu0 0.0
      %1978 = vmatpush1.msra.mxu0 0.0
      %1979 = vmatprep.subr.mxu0 0.0
      %1980 = vmatpush1.msra.mxu0 0.0
      %1981 = vmatprep.subr.mxu0 0.0
      %1982 = vmatpush1.msra.mxu0 0.0
      %1983 = vmatprep.subr.mxu0 0.0
      %1984 = vmatpush1.msra.mxu0 0.0
      %1985 = vmatprep.subr.mxu0 0.0
      %1986 = vmatpush1.msra.mxu0 0.0
      %1987 = vmatprep.subr.mxu0 0.0
      %1988 = vmatpush1.msra.mxu0 0.0
      %1989 = vmatprep.subr.mxu0 0.0
      %1990 = vmatpush1.msra.mxu0 0.0
      %1991 = vmatprep.subr.mxu0 0.0
      %1992 = vmatpush1.msra.mxu0 0.0
      %1993 = vmatprep.subr.mxu0 0.0
      %1994 = vmatpush1.msra.mxu0 0.0
      %1995 = vmatprep.subr.mxu0 0.0
      %1996 = vmatpush1.msra.mxu0 0.0
      %1997 = vmatprep.subr.mxu0 0.0
      %1998 = vmatpush1.msra.mxu0 0.0
      %1999 = vmatprep.subr.mxu0 0.0
      %2000 = vmatpush1.msra.mxu0 0.0
      %2001 = vmatprep.subr.mxu0 0.0
      %2002 = vmatpush1.msra.mxu0 0.0
      %2003 = vmatprep.subr.mxu0 0.0
      %2004 = vmatpush1.msra.mxu0 0.0
      %2005 = vmatprep.subr.mxu0 0.0
      %2006 = vmatpush1.msra.mxu0 0.0
      %2007 = vmatprep.subr.mxu0 0.0
      %2008 = vmatpush1.msra.mxu0 0.0
      %2009 = vmatprep.subr.mxu0 0.0
      %2010 = vmatpush1.msra.mxu0 0.0
      %2011 = vmatprep.subr.mxu0 0.0
      %2012 = vmatpush1.msra.mxu0 0.0
      %2013 = vmatprep.subr.mxu0 0.0
      %2014 = vmatpush1.msra.mxu0 0.0
      %2015 = vmatprep.subr.mxu0 0.0
      %2016 = vmatpush1.msra.mxu0 0.0
      %2017 = vmatprep.subr.mxu0 0.0
      %2018 = vmatpush1.msra.mxu0 0.0
      %2019 = vmatprep.subr.mxu0 0.0
      %2020 = vmatpush1.msra.mxu0 0.0
      %2021 = vmatprep.subr.mxu0 0.0
      %2022 = vmatpush1.msra.mxu0 0.0
      %2023 = vmatprep.subr.mxu0 0.0
      %2024 = vmatpush1.msra.mxu0 0.0
      %2025 = vmatprep.subr.mxu0 0.0
      %2026 = vmatpush1.msra.mxu0 0.0
      %2027 = vmatprep.mubr.f32.mxu0 0.0
      %2028 = vmatmul.mubr.f32.gmra.mrb[0].mxu0 %v1955
      %v2029 = vpop.f32.mrb[0].mxu0
      %v2030 = vadd.f32 0.0, %v2029
      %v2031 = vpop.f32.mrb[0].mxu0
      %2032 = vmatprep.mubr.f32.mxu0 0.0
      %2033 = vmatmul.mubr.f32.gmra.mrb[0].mxu0 %v1958
      %v2034 = vpop.f32.mrb[0].mxu0
      %v2035 = vadd.f32 0.0, %v2034
      %v2036 = vpop.f32.mrb[0].mxu0
      %2037 = vdwg.mxu0
      %v2038 = vld [vmem:[%s1036] sm:$0xff]
      %v2039 = vld [vmem:[%s1036 + $0x8] sm:$0xff]
      %v2040 = vld [vmem:[%s1036 + $0x10] sm:$0xff]
      %v2041 = vld [vmem:[%s1036 + $0x18] sm:$0xff]
      %v2042 = vld [vmem:[%s1036 + $0x20] sm:$0xff]
      %v2043 = vld [vmem:[%s1036 + $0x28] sm:$0xff]
      %v2044 = vld [vmem:[%s1036 + $0x30] sm:$0xff]
      %v2045 = vld [vmem:[%s1036 + $0x38] sm:$0xff]
      %v2046 = vld [vmem:[%s1036 + $0x40] sm:$0xff]
      %v2047 = vld [vmem:[%s1036 + $0x48] sm:$0xff]
      %v2048 = vld [vmem:[%s1036 + $0x50] sm:$0xff]
      %v2049 = vld [vmem:[%s1036 + $0x58] sm:$0xff]
      %v2050 = vld [vmem:[%s1036 + $0x60] sm:$0xff]
      %v2051 = vld [vmem:[%s1036 + $0x68] sm:$0xff]
      %v2052 = vld [vmem:[%s1036 + $0x70] sm:$0xff]
      %v2053 = vld [vmem:[%s1036 + $0x78] sm:$0xff]
      %v2054 = vld [vmem:[%s1039] sm:$0x1]
      %v2056 = vlaneseq
      %v2057 = vshrl.u32 %v2056, 7
      %v2058 = vsub.s32 0, %v2057
      %v2059 = vrot.slane %v2054, %v2058
      %2061 = vmatprep.subr.mxu0 0.0
      %2062 = vmatpush1.msra.mxu0 %v2038
      %2063 = vmatprep.subr.mxu0 0.0
      %2064 = vmatpush1.msra.mxu0 %v2039
      %2065 = vmatprep.subr.mxu0 0.0
      %2066 = vmatpush1.msra.mxu0 %v2040
      %2067 = vmatprep.subr.mxu0 0.0
      %2068 = vmatpush1.msra.mxu0 %v2041
      %2069 = vmatprep.subr.mxu0 0.0
      %2070 = vmatpush1.msra.mxu0 %v2042
      %2071 = vmatprep.subr.mxu0 0.0
      %2072 = vmatpush1.msra.mxu0 %v2043
      %2073 = vmatprep.subr.mxu0 0.0
      %2074 = vmatpush1.msra.mxu0 %v2044
      %2075 = vmatprep.subr.mxu0 0.0
      %2076 = vmatpush1.msra.mxu0 %v2045
      %2077 = vmatprep.subr.mxu0 0.0
      %2078 = vmatpush1.msra.mxu0 %v2046
      %2079 = vmatprep.subr.mxu0 0.0
      %2080 = vmatpush1.msra.mxu0 %v2047
      %2081 = vmatprep.subr.mxu0 0.0
      %2082 = vmatpush1.msra.mxu0 %v2048
      %2083 = vmatprep.subr.mxu0 0.0
      %2084 = vmatpush1.msra.mxu0 %v2049
      %2085 = vmatprep.subr.mxu0 0.0
      %2086 = vmatpush1.msra.mxu0 %v2050
      %2087 = vmatprep.subr.mxu0 0.0
      %2088 = vmatpush1.msra.mxu0 %v2051
      %2089 = vmatprep.subr.mxu0 0.0
      %2090 = vmatpush1.msra.mxu0 %v2052
      %2091 = vmatprep.subr.mxu0 0.0
      %2092 = vmatpush1.msra.mxu0 %v2053
      %2093 = vmatprep.subr.mxu0 0.0
      %2094 = vmatpush1.msra.mxu0 0.0
      %2095 = vmatprep.subr.mxu0 0.0
      %2096 = vmatpush1.msra.mxu0 0.0
      %2097 = vmatprep.subr.mxu0 0.0
      %2098 = vmatpush1.msra.mxu0 0.0
      %2099 = vmatprep.subr.mxu0 0.0
      %2100 = vmatpush1.msra.mxu0 0.0
      %2101 = vmatprep.subr.mxu0 0.0
      %2102 = vmatpush1.msra.mxu0 0.0
      %2103 = vmatprep.subr.mxu0 0.0
      %2104 = vmatpush1.msra.mxu0 0.0
      %2105 = vmatprep.subr.mxu0 0.0
      %2106 = vmatpush1.msra.mxu0 0.0
      %2107 = vmatprep.subr.mxu0 0.0
      %2108 = vmatpush1.msra.mxu0 0.0
      %2109 = vmatprep.subr.mxu0 0.0
      %2110 = vmatpush1.msra.mxu0 0.0
      %2111 = vmatprep.subr.mxu0 0.0
      %2112 = vmatpush1.msra.mxu0 0.0
      %2113 = vmatprep.subr.mxu0 0.0
      %2114 = vmatpush1.msra.mxu0 0.0
      %2115 = vmatprep.subr.mxu0 0.0
      %2116 = vmatpush1.msra.mxu0 0.0
      %2117 = vmatprep.subr.mxu0 0.0
      %2118 = vmatpush1.msra.mxu0 0.0
      %2119 = vmatprep.subr.mxu0 0.0
      %2120 = vmatpush1.msra.mxu0 0.0
      %2121 = vmatprep.subr.mxu0 0.0
      %2122 = vmatpush1.msra.mxu0 0.0
      %2123 = vmatprep.subr.mxu0 0.0
      %2124 = vmatpush1.msra.mxu0 0.0
      %2125 = vmatprep.mubr.f32.mxu0 0.0
      %2126 = vmatmul.mubr.f32.gmra.mrb[0].mxu0 %v2030
      %v2127 = vpop.f32.mrb[0].mxu0
      %v2128 = vadd.f32 %v2059, %v2127
      %v2129 = vpop.f32.mrb[0].mxu0
      %2130 = vmatprep.mubr.f32.mxu0 0.0
      %2131 = vmatmul.mubr.f32.gmra.mrb[0].mxu0 %v2035
      %v2132 = vpop.f32.mrb[0].mxu0
      %v2133 = vadd.f32 %v2059, %v2132
      %v2134 = vpop.f32.mrb[0].mxu0
      %2135 = vdwg.mxu0
      %v2136 = vadd.f32 %v1634, %v2128
      %v2137 = vadd.f32 %v1635, %v2133
      %v2138 = vld [vmem:[%s1042] sm:$0x1]
      %v2139 = vld [vmem:[%s1045] sm:$0x1]
      %2140 = vadd.xlane.f32.xlu0 %v2136
      %v2141 = vpop.xlane.xlu0 %2140
      %v2142 = vsel %vm1414, %v2137, 0.0
      %2143 = vadd.xlane.f32.xlu0 %v2142
      %v2144 = vpop.xlane.xlu0 %2143
      %v2145 = vmul.f32 %v2141, %v1600
      %v2146 = vmul.f32 %v2144, %v1600
      %v2147 = vsub.f32 %v2136, %v2145
      %v2148 = vsub.f32 %v2137, %v2146
      %v2149 = vmul.f32 %v2147, %v2147
      %v2150 = vmul.f32 %v2148, %v2148
      %2151 = vadd.xlane.f32.xlu0 %v2149
      %v2152 = vpop.xlane.xlu0 %2151
      %v2153 = vsel %vm1414, %v2150, 0.0
      %2154 = vadd.xlane.f32.xlu0 %v2153
      %v2155 = vpop.xlane.xlu0 %2154
      %v2156 = vmul.f32 %v2152, %v1600
      %v2157 = vmul.f32 %v2155, %v1600
      %v2158 = vadd.f32 %v2156, 1e-05
      %v2159 = vadd.f32 %v2157, 1e-05
      %v2160 = vrsqrt.pop %v2158
      %v2161 = vrsqrt.pop %v2159
      %v2162 = vmul.f32 %v2147, %v2160
      %v2163 = vmul.f32 %v2148, %v2161
      %v2165 = vlaneseq
      %v2166 = vshrl.u32 %v2165, 7
      %v2167 = vsub.s32 0, %v2166
      %v2168 = vrot.slane %v2138, %v2167
      %v2170 = vmul.f32 %v2162, %v2168
      %v2171 = vmul.f32 %v2163, %v2168
      %v2173 = vlaneseq
      %v2174 = vshrl.u32 %v2173, 7
      %v2175 = vsub.s32 0, %v2174
      %v2176 = vrot.slane %v2139, %v2175
      %v2178 = vadd.f32 %v2170, %v2176
      %v2179 = vadd.f32 %v2171, %v2176
      %v2180 = vld [vmem:[%s1050] sm:$0xff]
      %v2181 = vld [vmem:[%s1050 + $0x8] sm:$0xff]
      %v2182 = vld [vmem:[%s1050 + $0x10] sm:$0xff]
      %v2183 = vld [vmem:[%s1050 + $0x18] sm:$0xff]
      %v2184 = vld [vmem:[%s1050 + $0x20] sm:$0xff]
      %v2185 = vld [vmem:[%s1050 + $0x28] sm:$0xff]
      %v2186 = vld [vmem:[%s1050 + $0x30] sm:$0xff]
      %v2187 = vld [vmem:[%s1050 + $0x38] sm:$0xff]
      %v2188 = vld [vmem:[%s1050 + $0x40] sm:$0xff]
      %v2189 = vld [vmem:[%s1050 + $0x48] sm:$0xff]
      %v2190 = vld [vmem:[%s1050 + $0x50] sm:$0xff]
      %v2191 = vld [vmem:[%s1050 + $0x58] sm:$0xff]
      %v2192 = vld [vmem:[%s1050 + $0x60] sm:$0xff]
      %v2193 = vld [vmem:[%s1050 + $0x68] sm:$0xff]
      %v2194 = vld [vmem:[%s1050 + $0x70] sm:$0xff]
      %v2195 = vld [vmem:[%s1050 + $0x78] sm:$0xff]
      %v2196 = vld [vmem:[%s1050 + $0x80] sm:$0xff]
      %v2197 = vld [vmem:[%s1050 + $0x88] sm:$0xff]
      %v2198 = vld [vmem:[%s1050 + $0x90] sm:$0xff]
      %v2199 = vld [vmem:[%s1050 + $0x98] sm:$0xff]
      %v2200 = vld [vmem:[%s1050 + $0xa0] sm:$0xff]
      %v2201 = vld [vmem:[%s1050 + $0xa8] sm:$0xff]
      %v2202 = vld [vmem:[%s1050 + $0xb0] sm:$0xff]
      %v2203 = vld [vmem:[%s1050 + $0xb8] sm:$0xff]
      %v2204 = vld [vmem:[%s1050 + $0xc0] sm:$0xff]
      %v2205 = vld [vmem:[%s1050 + $0xc8] sm:$0xff]
      %v2206 = vld [vmem:[%s1050 + $0xd0] sm:$0xff]
      %v2207 = vld [vmem:[%s1050 + $0xd8] sm:$0xff]
      %v2208 = vld [vmem:[%s1050 + $0xe0] sm:$0xff]
      %v2209 = vld [vmem:[%s1050 + $0xe8] sm:$0xff]
      %v2210 = vld [vmem:[%s1050 + $0xf0] sm:$0xff]
      %v2211 = vld [vmem:[%s1050 + $0xf8] sm:$0xff]
      %v2212 = vld [vmem:[%s1050 + $0x100] sm:$0xff]
      %v2213 = vld [vmem:[%s1050 + $0x108] sm:$0xff]
      %v2214 = vld [vmem:[%s1050 + $0x110] sm:$0xff]
      %v2215 = vld [vmem:[%s1050 + $0x118] sm:$0xff]
      %v2216 = vld [vmem:[%s1050 + $0x120] sm:$0xff]
      %v2217 = vld [vmem:[%s1050 + $0x128] sm:$0xff]
      %v2218 = vld [vmem:[%s1050 + $0x130] sm:$0xff]
      %v2219 = vld [vmem:[%s1050 + $0x138] sm:$0xff]
      %v2220 = vld [vmem:[%s1050 + $0x140] sm:$0xff]
      %v2221 = vld [vmem:[%s1050 + $0x148] sm:$0xff]
      %v2222 = vld [vmem:[%s1050 + $0x150] sm:$0xff]
      %v2223 = vld [vmem:[%s1050 + $0x158] sm:$0xff]
      %v2224 = vld [vmem:[%s1050 + $0x160] sm:$0xff]
      %v2225 = vld [vmem:[%s1050 + $0x168] sm:$0xff]
      %v2226 = vld [vmem:[%s1050 + $0x170] sm:$0xff]
      %v2227 = vld [vmem:[%s1050 + $0x178] sm:$0xff]
      %v2228 = vld [vmem:[%s1050 + $0x180] sm:$0xff]
      %v2229 = vld [vmem:[%s1050 + $0x188] sm:$0xff]
      %v2230 = vld [vmem:[%s1050 + $0x190] sm:$0xff]
      %v2231 = vld [vmem:[%s1050 + $0x198] sm:$0xff]
      %v2232 = vld [vmem:[%s1050 + $0x1a0] sm:$0xff]
      %v2233 = vld [vmem:[%s1050 + $0x1a8] sm:$0xff]
      %v2234 = vld [vmem:[%s1050 + $0x1b0] sm:$0xff]
      %v2235 = vld [vmem:[%s1050 + $0x1b8] sm:$0xff]
      %v2236 = vld [vmem:[%s1050 + $0x1c0] sm:$0xff]
      %v2237 = vld [vmem:[%s1050 + $0x1c8] sm:$0xff]
      %v2238 = vld [vmem:[%s1050 + $0x1d0] sm:$0xff]
      %v2239 = vld [vmem:[%s1050 + $0x1d8] sm:$0xff]
      %v2240 = vld [vmem:[%s1050 + $0x1e0] sm:$0xff]
      %v2241 = vld [vmem:[%s1050 + $0x1e8] sm:$0xff]
      %v2242 = vld [vmem:[%s1050 + $0x1f0] sm:$0xff]
      %v2243 = vld [vmem:[%s1050 + $0x1f8] sm:$0xff]
      %v2244 = vld [vmem:[%s1054] sm:$0xf]
      %v2246 = vlaneseq
      %v2247 = vshrl.u32 %v2246, 7
      %v2248 = vsub.s32 0, %v2247
      %v2249 = vrot.slane %v2244, %v2248
      %v2250 = vlaneseq
      %v2251 = vshrl.u32 %v2250, 7
      %v2252 = vsub.s32 1, %v2251
      %v2253 = vrot.slane %v2244, %v2252
      %v2254 = vlaneseq
      %v2255 = vshrl.u32 %v2254, 7
      %v2256 = vsub.s32 2, %v2255
      %v2257 = vrot.slane %v2244, %v2256
      %v2258 = vlaneseq
      %v2259 = vshrl.u32 %v2258, 7
      %v2260 = vsub.s32 3, %v2259
      %v2261 = vrot.slane %v2244, %v2260
      %2266 = vmatprep.subr.mxu0 %v2181
      %2267 = vmatpush1.msra.mxu0 %v2180
      %2268 = vmatprep.subr.mxu0 %v2185
      %2269 = vmatpush1.msra.mxu0 %v2184
      %2270 = vmatprep.subr.mxu0 %v2189
      %2271 = vmatpush1.msra.mxu0 %v2188
      %2272 = vmatprep.subr.mxu0 %v2193
      %2273 = vmatpush1.msra.mxu0 %v2192
      %2274 = vmatprep.subr.mxu0 %v2197
      %2275 = vmatpush1.msra.mxu0 %v2196
      %2276 = vmatprep.subr.mxu0 %v2201
      %2277 = vmatpush1.msra.mxu0 %v2200
      %2278 = vmatprep.subr.mxu0 %v2205
      %2279 = vmatpush1.msra.mxu0 %v2204
      %2280 = vmatprep.subr.mxu0 %v2209
      %2281 = vmatpush1.msra.mxu0 %v2208
      %2282 = vmatprep.subr.mxu0 %v2213
      %2283 = vmatpush1.msra.mxu0 %v2212
      %2284 = vmatprep.subr.mxu0 %v2217
      %2285 = vmatpush1.msra.mxu0 %v2216
      %2286 = vmatprep.subr.mxu0 %v2221
      %2287 = vmatpush1.msra.mxu0 %v2220
      %2288 = vmatprep.subr.mxu0 %v2225
      %2289 = vmatpush1.msra.mxu0 %v2224
      %2290 = vmatprep.subr.mxu0 %v2229
      %2291 = vmatpush1.msra.mxu0 %v2228
      %2292 = vmatprep.subr.mxu0 %v2233
      %2293 = vmatpush1.msra.mxu0 %v2232
      %2294 = vmatprep.subr.mxu0 %v2237
      %2295 = vmatpush1.msra.mxu0 %v2236
      %2296 = vmatprep.subr.mxu0 %v2241
      %2297 = vmatpush1.msra.mxu0 %v2240
      %2298 = vmatprep.subr.mxu0 0.0
      %2299 = vmatpush1.msra.mxu0 0.0
      %2300 = vmatprep.subr.mxu0 0.0
      %2301 = vmatpush1.msra.mxu0 0.0
      %2302 = vmatprep.subr.mxu0 0.0
      %2303 = vmatpush1.msra.mxu0 0.0
      %2304 = vmatprep.subr.mxu0 0.0
      %2305 = vmatpush1.msra.mxu0 0.0
      %2306 = vmatprep.subr.mxu0 0.0
      %2307 = vmatpush1.msra.mxu0 0.0
      %2308 = vmatprep.subr.mxu0 0.0
      %2309 = vmatpush1.msra.mxu0 0.0
      %2310 = vmatprep.subr.mxu0 0.0
      %2311 = vmatpush1.msra.mxu0 0.0
      %2312 = vmatprep.subr.mxu0 0.0
      %2313 = vmatpush1.msra.mxu0 0.0
      %2314 = vmatprep.subr.mxu0 0.0
      %2315 = vmatpush1.msra.mxu0 0.0
      %2316 = vmatprep.subr.mxu0 0.0
      %2317 = vmatpush1.msra.mxu0 0.0
      %2318 = vmatprep.subr.mxu0 0.0
      %2319 = vmatpush1.msra.mxu0 0.0
      %2320 = vmatprep.subr.mxu0 0.0
      %2321 = vmatpush1.msra.mxu0 0.0
      %2322 = vmatprep.subr.mxu0 0.0
      %2323 = vmatpush1.msra.mxu0 0.0
      %2324 = vmatprep.subr.mxu0 0.0
      %2325 = vmatpush1.msra.mxu0 0.0
      %2326 = vmatprep.subr.mxu0 0.0
      %2327 = vmatpush1.msra.mxu0 0.0
      %2328 = vmatprep.subr.mxu0 0.0
      %2329 = vmatpush1.msra.mxu0 0.0
      %2330 = vmatprep.mubr.f32.mxu0 0.0
      %2331 = vmatmul.mubr.f32.gmra.mrb[0].mxu0 %v2178
      %v2332 = vpop.f32.mrb[0].mxu0
      %v2333 = vadd.f32 %v2249, %v2332
      %v2334 = vpop.f32.mrb[0].mxu0
      %v2335 = vadd.f32 %v2253, %v2334
      %2336 = vmatprep.mubr.f32.mxu0 0.0
      %2337 = vmatmul.mubr.f32.gmra.mrb[0].mxu0 %v2179
      %v2338 = vpop.f32.mrb[0].mxu0
      %v2339 = vadd.f32 %v2249, %v2338
      %v2340 = vpop.f32.mrb[0].mxu0
      %v2341 = vadd.f32 %v2253, %v2340
      %2342 = vdwg.mxu0
      %2343 = vmatprep.subr.mxu0 %v2183
      %2344 = vmatpush1.msra.mxu0 %v2182
      %2345 = vmatprep.subr.mxu0 %v2187
      %2346 = vmatpush1.msra.mxu0 %v2186
      %2347 = vmatprep.subr.mxu0 %v2191
      %2348 = vmatpush1.msra.mxu0 %v2190
      %2349 = vmatprep.subr.mxu0 %v2195
      %2350 = vmatpush1.msra.mxu0 %v2194
      %2351 = vmatprep.subr.mxu0 %v2199
      %2352 = vmatpush1.msra.mxu0 %v2198
      %2353 = vmatprep.subr.mxu0 %v2203
      %2354 = vmatpush1.msra.mxu0 %v2202
      %2355 = vmatprep.subr.mxu0 %v2207
      %2356 = vmatpush1.msra.mxu0 %v2206
      %2357 = vmatprep.subr.mxu0 %v2211
      %2358 = vmatpush1.msra.mxu0 %v2210
      %2359 = vmatprep.subr.mxu0 %v2215
      %2360 = vmatpush1.msra.mxu0 %v2214
      %2361 = vmatprep.subr.mxu0 %v2219
      %2362 = vmatpush1.msra.mxu0 %v2218
      %2363 = vmatprep.subr.mxu0 %v2223
      %2364 = vmatpush1.msra.mxu0 %v2222
      %2365 = vmatprep.subr.mxu0 %v2227
      %2366 = vmatpush1.msra.mxu0 %v2226
      %2367 = vmatprep.subr.mxu0 %v2231
      %2368 = vmatpush1.msra.mxu0 %v2230
      %2369 = vmatprep.subr.mxu0 %v2235
      %2370 = vmatpush1.msra.mxu0 %v2234
      %2371 = vmatprep.subr.mxu0 %v2239
      %2372 = vmatpush1.msra.mxu0 %v2238
      %2373 = vmatprep.subr.mxu0 %v2243
      %2374 = vmatpush1.msra.mxu0 %v2242
      %2375 = vmatprep.subr.mxu0 0.0
      %2376 = vmatpush1.msra.mxu0 0.0
      %2377 = vmatprep.subr.mxu0 0.0
      %2378 = vmatpush1.msra.mxu0 0.0
      %2379 = vmatprep.subr.mxu0 0.0
      %2380 = vmatpush1.msra.mxu0 0.0
      %2381 = vmatprep.subr.mxu0 0.0
      %2382 = vmatpush1.msra.mxu0 0.0
      %2383 = vmatprep.subr.mxu0 0.0
      %2384 = vmatpush1.msra.mxu0 0.0
      %2385 = vmatprep.subr.mxu0 0.0
      %2386 = vmatpush1.msra.mxu0 0.0
      %2387 = vmatprep.subr.mxu0 0.0
      %2388 = vmatpush1.msra.mxu0 0.0
      %2389 = vmatprep.subr.mxu0 0.0
      %2390 = vmatpush1.msra.mxu0 0.0
      %2391 = vmatprep.subr.mxu0 0.0
      %2392 = vmatpush1.msra.mxu0 0.0
      %2393 = vmatprep.subr.mxu0 0.0
      %2394 = vmatpush1.msra.mxu0 0.0
      %2395 = vmatprep.subr.mxu0 0.0
      %2396 = vmatpush1.msra.mxu0 0.0
      %2397 = vmatprep.subr.mxu0 0.0
      %2398 = vmatpush1.msra.mxu0 0.0
      %2399 = vmatprep.subr.mxu0 0.0
      %2400 = vmatpush1.msra.mxu0 0.0
      %2401 = vmatprep.subr.mxu0 0.0
      %2402 = vmatpush1.msra.mxu0 0.0
      %2403 = vmatprep.subr.mxu0 0.0
      %2404 = vmatpush1.msra.mxu0 0.0
      %2405 = vmatprep.subr.mxu0 0.0
      %2406 = vmatpush1.msra.mxu0 0.0
      %2407 = vmatprep.mubr.f32.mxu0 0.0
      %2408 = vmatmul.mubr.f32.gmra.mrb[0].mxu0 %v2178
      %v2409 = vpop.f32.mrb[0].mxu0
      %v2410 = vadd.f32 %v2257, %v2409
      %v2411 = vpop.f32.mrb[0].mxu0
      %v2412 = vadd.f32 %v2261, %v2411
      %2413 = vmatprep.mubr.f32.mxu0 0.0
      %2414 = vmatmul.mubr.f32.gmra.mrb[0].mxu0 %v2179
      %v2415 = vpop.f32.mrb[0].mxu0
      %v2416 = vadd.f32 %v2257, %v2415
      %v2417 = vpop.f32.mrb[0].mxu0
      %v2418 = vadd.f32 %v2261, %v2417
      %2419 = vdwg.mxu0
      %v2420 = vmax.f32 %v2333, 0.0
      %v2421 = vmax.f32 %v2335, 0.0
      %v2422 = vmax.f32 %v2410, 0.0
      %v2423 = vmax.f32 %v2412, 0.0
      %v2424 = vmax.f32 %v2339, 0.0
      %v2425 = vmax.f32 %v2341, 0.0
      %v2426 = vmax.f32 %v2416, 0.0
      %v2427 = vmax.f32 %v2418, 0.0
      %v2428 = vld [vmem:[%s1059] sm:$0xff]
      %v2429 = vld [vmem:[%s1059 + $0x8] sm:$0xff]
      %v2430 = vld [vmem:[%s1059 + $0x10] sm:$0xff]
      %v2431 = vld [vmem:[%s1059 + $0x18] sm:$0xff]
      %v2432 = vld [vmem:[%s1059 + $0x20] sm:$0xff]
      %v2433 = vld [vmem:[%s1059 + $0x28] sm:$0xff]
      %v2434 = vld [vmem:[%s1059 + $0x30] sm:$0xff]
      %v2435 = vld [vmem:[%s1059 + $0x38] sm:$0xff]
      %v2436 = vld [vmem:[%s1059 + $0x40] sm:$0xff]
      %v2437 = vld [vmem:[%s1059 + $0x48] sm:$0xff]
      %v2438 = vld [vmem:[%s1059 + $0x50] sm:$0xff]
      %v2439 = vld [vmem:[%s1059 + $0x58] sm:$0xff]
      %v2440 = vld [vmem:[%s1059 + $0x60] sm:$0xff]
      %v2441 = vld [vmem:[%s1059 + $0x68] sm:$0xff]
      %v2442 = vld [vmem:[%s1059 + $0x70] sm:$0xff]
      %v2443 = vld [vmem:[%s1059 + $0x78] sm:$0xff]
      %v2444 = vld [vmem:[%s1059 + $0x80] sm:$0xff]
      %v2445 = vld [vmem:[%s1059 + $0x88] sm:$0xff]
      %v2446 = vld [vmem:[%s1059 + $0x90] sm:$0xff]
      %v2447 = vld [vmem:[%s1059 + $0x98] sm:$0xff]
      %v2448 = vld [vmem:[%s1059 + $0xa0] sm:$0xff]
      %v2449 = vld [vmem:[%s1059 + $0xa8] sm:$0xff]
      %v2450 = vld [vmem:[%s1059 + $0xb0] sm:$0xff]
      %v2451 = vld [vmem:[%s1059 + $0xb8] sm:$0xff]
      %v2452 = vld [vmem:[%s1059 + $0xc0] sm:$0xff]
      %v2453 = vld [vmem:[%s1059 + $0xc8] sm:$0xff]
      %v2454 = vld [vmem:[%s1059 + $0xd0] sm:$0xff]
      %v2455 = vld [vmem:[%s1059 + $0xd8] sm:$0xff]
      %v2456 = vld [vmem:[%s1059 + $0xe0] sm:$0xff]
      %v2457 = vld [vmem:[%s1059 + $0xe8] sm:$0xff]
      %v2458 = vld [vmem:[%s1059 + $0xf0] sm:$0xff]
      %v2459 = vld [vmem:[%s1059 + $0xf8] sm:$0xff]
      %v2460 = vld [vmem:[%s1059 + $0x100] sm:$0xff]
      %v2461 = vld [vmem:[%s1059 + $0x108] sm:$0xff]
      %v2462 = vld [vmem:[%s1059 + $0x110] sm:$0xff]
      %v2463 = vld [vmem:[%s1059 + $0x118] sm:$0xff]
      %v2464 = vld [vmem:[%s1059 + $0x120] sm:$0xff]
      %v2465 = vld [vmem:[%s1059 + $0x128] sm:$0xff]
      %v2466 = vld [vmem:[%s1059 + $0x130] sm:$0xff]
      %v2467 = vld [vmem:[%s1059 + $0x138] sm:$0xff]
      %v2468 = vld [vmem:[%s1059 + $0x140] sm:$0xff]
      %v2469 = vld [vmem:[%s1059 + $0x148] sm:$0xff]
      %v2470 = vld [vmem:[%s1059 + $0x150] sm:$0xff]
      %v2471 = vld [vmem:[%s1059 + $0x158] sm:$0xff]
      %v2472 = vld [vmem:[%s1059 + $0x160] sm:$0xff]
      %v2473 = vld [vmem:[%s1059 + $0x168] sm:$0xff]
      %v2474 = vld [vmem:[%s1059 + $0x170] sm:$0xff]
      %v2475 = vld [vmem:[%s1059 + $0x178] sm:$0xff]
      %v2476 = vld [vmem:[%s1059 + $0x180] sm:$0xff]
      %v2477 = vld [vmem:[%s1059 + $0x188] sm:$0xff]
      %v2478 = vld [vmem:[%s1059 + $0x190] sm:$0xff]
      %v2479 = vld [vmem:[%s1059 + $0x198] sm:$0xff]
      %v2480 = vld [vmem:[%s1059 + $0x1a0] sm:$0xff]
      %v2481 = vld [vmem:[%s1059 + $0x1a8] sm:$0xff]
      %v2482 = vld [vmem:[%s1059 + $0x1b0] sm:$0xff]
      %v2483 = vld [vmem:[%s1059 + $0x1b8] sm:$0xff]
      %v2484 = vld [vmem:[%s1059 + $0x1c0] sm:$0xff]
      %v2485 = vld [vmem:[%s1059 + $0x1c8] sm:$0xff]
      %v2486 = vld [vmem:[%s1059 + $0x1d0] sm:$0xff]
      %v2487 = vld [vmem:[%s1059 + $0x1d8] sm:$0xff]
      %v2488 = vld [vmem:[%s1059 + $0x1e0] sm:$0xff]
      %v2489 = vld [vmem:[%s1059 + $0x1e8] sm:$0xff]
      %v2490 = vld [vmem:[%s1059 + $0x1f0] sm:$0xff]
      %v2491 = vld [vmem:[%s1059 + $0x1f8] sm:$0xff]
      %v2492 = vld [vmem:[%s1062] sm:$0x1]
      %v2494 = vlaneseq
      %v2495 = vshrl.u32 %v2494, 7
      %v2496 = vsub.s32 0, %v2495
      %v2497 = vrot.slane %v2492, %v2496
      %2499 = vmatprep.subr.mxu0 0.0
      %2500 = vmatpush1.msra.mxu0 %v2428
      %2501 = vmatprep.subr.mxu0 0.0
      %2502 = vmatpush1.msra.mxu0 %v2429
      %2503 = vmatprep.subr.mxu0 0.0
      %2504 = vmatpush1.msra.mxu0 %v2430
      %2505 = vmatprep.subr.mxu0 0.0
      %2506 = vmatpush1.msra.mxu0 %v2431
      %2507 = vmatprep.subr.mxu0 0.0
      %2508 = vmatpush1.msra.mxu0 %v2432
      %2509 = vmatprep.subr.mxu0 0.0
      %2510 = vmatpush1.msra.mxu0 %v2433
      %2511 = vmatprep.subr.mxu0 0.0
      %2512 = vmatpush1.msra.mxu0 %v2434
      %2513 = vmatprep.subr.mxu0 0.0
      %2514 = vmatpush1.msra.mxu0 %v2435
      %2515 = vmatprep.subr.mxu0 0.0
      %2516 = vmatpush1.msra.mxu0 %v2436
      %2517 = vmatprep.subr.mxu0 0.0
      %2518 = vmatpush1.msra.mxu0 %v2437
      %2519 = vmatprep.subr.mxu0 0.0
      %2520 = vmatpush1.msra.mxu0 %v2438
      %2521 = vmatprep.subr.mxu0 0.0
      %2522 = vmatpush1.msra.mxu0 %v2439
      %2523 = vmatprep.subr.mxu0 0.0
      %2524 = vmatpush1.msra.mxu0 %v2440
      %2525 = vmatprep.subr.mxu0 0.0
      %2526 = vmatpush1.msra.mxu0 %v2441
      %2527 = vmatprep.subr.mxu0 0.0
      %2528 = vmatpush1.msra.mxu0 %v2442
      %2529 = vmatprep.subr.mxu0 0.0
      %2530 = vmatpush1.msra.mxu0 %v2443
      %2531 = vmatprep.subr.mxu0 0.0
      %2532 = vmatpush1.msra.mxu0 %v2444
      %2533 = vmatprep.subr.mxu0 0.0
      %2534 = vmatpush1.msra.mxu0 %v2445
      %2535 = vmatprep.subr.mxu0 0.0
      %2536 = vmatpush1.msra.mxu0 %v2446
      %2537 = vmatprep.subr.mxu0 0.0
      %2538 = vmatpush1.msra.mxu0 %v2447
      %2539 = vmatprep.subr.mxu0 0.0
      %2540 = vmatpush1.msra.mxu0 %v2448
      %2541 = vmatprep.subr.mxu0 0.0
      %2542 = vmatpush1.msra.mxu0 %v2449
      %2543 = vmatprep.subr.mxu0 0.0
      %2544 = vmatpush1.msra.mxu0 %v2450
      %2545 = vmatprep.subr.mxu0 0.0
      %2546 = vmatpush1.msra.mxu0 %v2451
      %2547 = vmatprep.subr.mxu0 0.0
      %2548 = vmatpush1.msra.mxu0 %v2452
      %2549 = vmatprep.subr.mxu0 0.0
      %2550 = vmatpush1.msra.mxu0 %v2453
      %2551 = vmatprep.subr.mxu0 0.0
      %2552 = vmatpush1.msra.mxu0 %v2454
      %2553 = vmatprep.subr.mxu0 0.0
      %2554 = vmatpush1.msra.mxu0 %v2455
      %2555 = vmatprep.subr.mxu0 0.0
      %2556 = vmatpush1.msra.mxu0 %v2456
      %2557 = vmatprep.subr.mxu0 0.0
      %2558 = vmatpush1.msra.mxu0 %v2457
      %2559 = vmatprep.subr.mxu0 0.0
      %2560 = vmatpush1.msra.mxu0 %v2458
      %2561 = vmatprep.subr.mxu0 0.0
      %2562 = vmatpush1.msra.mxu0 %v2459
      %2563 = vmatprep.mubr.f32.mxu0 %v2421
      %2564 = vmatmul.mubr.f32.gmra.mrb[0].mxu0 %v2420
      %v2565 = vpop.f32.mrb[0].mxu0
      %v2566 = vadd.f32 %v2497, %v2565
      %v2567 = vpop.f32.mrb[0].mxu0
      %2568 = vmatprep.mubr.f32.mxu0 %v2425
      %2569 = vmatmul.mubr.f32.gmra.mrb[0].mxu0 %v2424
      %v2570 = vpop.f32.mrb[0].mxu0
      %v2571 = vadd.f32 %v2497, %v2570
      %v2572 = vpop.f32.mrb[0].mxu0
      %2573 = vdwg.mxu0
      %2574 = vmatprep.subr.mxu0 0.0
      %2575 = vmatpush1.msra.mxu0 %v2460
      %2576 = vmatprep.subr.mxu0 0.0
      %2577 = vmatpush1.msra.mxu0 %v2461
      %2578 = vmatprep.subr.mxu0 0.0
      %2579 = vmatpush1.msra.mxu0 %v2462
      %2580 = vmatprep.subr.mxu0 0.0
      %2581 = vmatpush1.msra.mxu0 %v2463
      %2582 = vmatprep.subr.mxu0 0.0
      %2583 = vmatpush1.msra.mxu0 %v2464
      %2584 = vmatprep.subr.mxu0 0.0
      %2585 = vmatpush1.msra.mxu0 %v2465
      %2586 = vmatprep.subr.mxu0 0.0
      %2587 = vmatpush1.msra.mxu0 %v2466
      %2588 = vmatprep.subr.mxu0 0.0
      %2589 = vmatpush1.msra.mxu0 %v2467
      %2590 = vmatprep.subr.mxu0 0.0
      %2591 = vmatpush1.msra.mxu0 %v2468
      %2592 = vmatprep.subr.mxu0 0.0
      %2593 = vmatpush1.msra.mxu0 %v2469
      %2594 = vmatprep.subr.mxu0 0.0
      %2595 = vmatpush1.msra.mxu0 %v2470
      %2596 = vmatprep.subr.mxu0 0.0
      %2597 = vmatpush1.msra.mxu0 %v2471
      %2598 = vmatprep.subr.mxu0 0.0
      %2599 = vmatpush1.msra.mxu0 %v2472
      %2600 = vmatprep.subr.mxu0 0.0
      %2601 = vmatpush1.msra.mxu0 %v2473
      %2602 = vmatprep.subr.mxu0 0.0
      %2603 = vmatpush1.msra.mxu0 %v2474
      %2604 = vmatprep.subr.mxu0 0.0
      %2605 = vmatpush1.msra.mxu0 %v2475
      %2606 = vmatprep.subr.mxu0 0.0
      %2607 = vmatpush1.msra.mxu0 %v2476
      %2608 = vmatprep.subr.mxu0 0.0
      %2609 = vmatpush1.msra.mxu0 %v2477
      %2610 = vmatprep.subr.mxu0 0.0
      %2611 = vmatpush1.msra.mxu0 %v2478
      %2612 = vmatprep.subr.mxu0 0.0
      %2613 = vmatpush1.msra.mxu0 %v2479
      %2614 = vmatprep.subr.mxu0 0.0
      %2615 = vmatpush1.msra.mxu0 %v2480
      %2616 = vmatprep.subr.mxu0 0.0
      %2617 = vmatpush1.msra.mxu0 %v2481
      %2618 = vmatprep.subr.mxu0 0.0
      %2619 = vmatpush1.msra.mxu0 %v2482
      %2620 = vmatprep.subr.mxu0 0.0
      %2621 = vmatpush1.msra.mxu0 %v2483
      %2622 = vmatprep.subr.mxu0 0.0
      %2623 = vmatpush1.msra.mxu0 %v2484
      %2624 = vmatprep.subr.mxu0 0.0
      %2625 = vmatpush1.msra.mxu0 %v2485
      %2626 = vmatprep.subr.mxu0 0.0
      %2627 = vmatpush1.msra.mxu0 %v2486
      %2628 = vmatprep.subr.mxu0 0.0
      %2629 = vmatpush1.msra.mxu0 %v2487
      %2630 = vmatprep.subr.mxu0 0.0
      %2631 = vmatpush1.msra.mxu0 %v2488
      %2632 = vmatprep.subr.mxu0 0.0
      %2633 = vmatpush1.msra.mxu0 %v2489
      %2634 = vmatprep.subr.mxu0 0.0
      %2635 = vmatpush1.msra.mxu0 %v2490
      %2636 = vmatprep.subr.mxu0 0.0
      %2637 = vmatpush1.msra.mxu0 %v2491
      %2638 = vmatprep.mubr.f32.mxu0 %v2423
      %2639 = vmatmul.mubr.f32.gmra.mrb[0].mxu0 %v2422
      %v2640 = vpop.f32.mrb[0].mxu0
      %v2641 = vadd.f32 %v2566, %v2640
      %v2642 = vpop.f32.mrb[0].mxu0
      %2643 = vmatprep.mubr.f32.mxu0 %v2427
      %2644 = vmatmul.mubr.f32.gmra.mrb[0].mxu0 %v2426
      %v2645 = vpop.f32.mrb[0].mxu0
      %v2646 = vadd.f32 %v2571, %v2645
      %v2647 = vpop.f32.mrb[0].mxu0
      %2648 = vdwg.mxu0
      %v2649 = vadd.f32 %v2178, %v2641
      %v2650 = vadd.f32 %v2179, %v2646
      %v2651 = vld [vmem:[%s1065] sm:$0x1]
      %v2652 = vld [vmem:[%s1068] sm:$0x1]
      %2653 = vadd.xlane.f32.xlu0 %v2649
      %v2654 = vpop.xlane.xlu0 %2653
      %v2655 = vsel %vm1414, %v2650, 0.0
      %2656 = vadd.xlane.f32.xlu0 %v2655
      %v2657 = vpop.xlane.xlu0 %2656
      %v2658 = vmul.f32 %v2654, %v1600
      %v2659 = vmul.f32 %v2657, %v1600
      %v2660 = vsub.f32 %v2649, %v2658
      %v2661 = vsub.f32 %v2650, %v2659
      %v2662 = vmul.f32 %v2660, %v2660
      %v2663 = vmul.f32 %v2661, %v2661
      %2664 = vadd.xlane.f32.xlu0 %v2662
      %v2665 = vpop.xlane.xlu0 %2664
      %v2666 = vsel %vm1414, %v2663, 0.0
      %2667 = vadd.xlane.f32.xlu0 %v2666
      %v2668 = vpop.xlane.xlu0 %2667
      %v2669 = vmul.f32 %v2665, %v1600
      %v2670 = vmul.f32 %v2668, %v1600
      %v2671 = vadd.f32 %v2669, 1e-05
      %v2672 = vadd.f32 %v2670, 1e-05
      %v2673 = vrsqrt.pop %v2671
      %v2674 = vrsqrt.pop %v2672
      %v2675 = vmul.f32 %v2660, %v2673
      %v2676 = vmul.f32 %v2661, %v2674
      %v2678 = vlaneseq
      %v2679 = vshrl.u32 %v2678, 7
      %v2680 = vsub.s32 0, %v2679
      %v2681 = vrot.slane %v2651, %v2680
      %v2683 = vmul.f32 %v2675, %v2681
      %v2684 = vmul.f32 %v2676, %v2681
      %v2686 = vlaneseq
      %v2687 = vshrl.u32 %v2686, 7
      %v2688 = vsub.s32 0, %v2687
      %v2689 = vrot.slane %v2652, %v2688
      %v2691 = vadd.f32 %v2683, %v2689
      %v2692 = vadd.f32 %v2684, %v2689
      %2693 = vst [vmem:[#allocation2] sm:$0xff] %v2691
      %2694 = vst [vmem:[#allocation2 + $0x8] sm:$0x1] %v2692
      %p2695 = scmp.eq.s32.totalorder %s39, 1
      // Predicated region
      $region117: #{transformer_pointer_loss.6} parent=111 // pred_check
        %p2696 = pneg %p2695
      $region118: #{transformer_pointer_loss.6} parent=111 // pred_check_branch
        %2698 = sbr.rel (%p2696) target = $region120
      $region119: #{transformer_pointer_loss.6} parent=111 // pred_region
        %2699 = vst [vmem:[%s1073] sm:$0xff] %v2691
        %2700 = vst [vmem:[%s1073 + $0x8] sm:$0x1] %v2692
      $region120: #{transformer_pointer_loss.6} parent=111 // pred_fallthru
        _
      %p2701 = scmp.lt.s32.totalorder %s38, 1
      %s2702 = scalar_select %p2701, %s38, 1
      %s2703 = smul.addr %s2702, 2
      %s2704 = smul.addr %s2703, 8
      %s2705 = scalar_lea.vmem %s23, %s2704
      // Predicated region
      $region121: #{transformer_pointer_loss.6} parent=111 // pred_check
        %p2706 = pneg %p657
      $region122: #{transformer_pointer_loss.6} parent=111 // pred_check_branch
        %2708 = sbr.rel (%p2706) target = $region124
      $region123: #{transformer_pointer_loss.6} parent=111 // pred_region
        _
      $region124: #{transformer_pointer_loss.6} parent=111 // pred_fallthru
        _
    $region112: #{transformer_pointer_loss.6} parent=5 // pred_fallthru
      _
    %p2709 = scmp.le.s32.totalorder 2, %s29
    // Predicated region
    $region125: #{transformer_pointer_loss.6} parent=5 // pred_check
      %p2710 = pneg %p2709
    $region126: #{transformer_pointer_loss.6} parent=5 // pred_check_branch
      %2712 = sbr.rel (%p2710) target = $region128
    $region127: #{transformer_pointer_loss.6} parent=5 // pred_region
      %s2713 = ssub.s32 %s29, 2
      // Predicated region
      $region129: #{transformer_pointer_loss.6} parent=127 // pred_check
        %p2714 = pneg %p663
      $region130: #{transformer_pointer_loss.6} parent=127 // pred_check_branch
        %2716 = sbr.rel (%p2714) target = $region132
      $region131: #{transformer_pointer_loss.6} parent=127 // pred_region
        %p2717 = scmp.lt.s32.totalorder %s40, 1
        %s2718 = scalar_select %p2717, %s40, 1
        %s2719 = smul.addr %s2718, 2
        %s2720 = smul.addr %s2719, 8
        %s2721 = scalar_lea.vmem %s23, %s2720
      $region132: #{transformer_pointer_loss.6} parent=127 // pred_fallthru
        _
    $region128: #{transformer_pointer_loss.6} parent=5 // pred_fallthru
      _
  $region6: #{transformer_pointer_loss.6} parent=0 // loop_footer
    %s33 = sadd.s32 1, %s29
  $region7: #{transformer_pointer_loss.6} parent=0 // loop_footer_branch
    %28 = sbr.rel target = $region3
  $region8: #{transformer_pointer_loss.6} parent=0 // loop_exit
    _

</llo_original>
